<compile_context>
chip_gen: v7x
topology: tpu7x:2x2x1
jax: 0.10.0
libtpu: 0.0.40
codegen_flags: <defaults>
</compile_context>

<pallas_src>
import functools
import math

import jax
import jax.numpy as jnp
from jax.experimental import pallas as pl
from jax.experimental.pallas import tpu as pltpu

_LANES = 128  # distances per lane-dense input row


def _round_up(x, m):
    return ((x + m - 1) // m) * m


def _gaussian_rbf_kernel(dist_ref, out_ref, *, gamma, vmin, step, n_rbf,
                         group, exp_in_bf16):
    # dist_ref: (rb, 128) f32 lane-dense distances.
    # out_ref : (rb, 128 * n_rbf); lanes [l*n_rbf, (l+1)*n_rbf) of row r hold
    #           the expansion of distance r*128 + l  (flat order == (N, n_rbf)).
    d = dist_ref[...].astype(jnp.float32)                        # (rb, 128)
    idx = jax.lax.broadcasted_iota(jnp.int32, (1, n_rbf), 1)
    centers = vmin + idx.astype(jnp.float32) * step              # (1, n_rbf)

    # Process `group` input lanes at a time: group*n_rbf is a multiple of 128,
    # so every store below is a full-width, lane-aligned (unmasked) store, and
    # only ~group*n_rbf*rb elements are live at once.
    for g in range(0, _LANES, group):
        cols = [d[:, l:l + 1] - centers for l in range(g, g + group)]
        diff = cols[0] if group == 1 else jnp.concatenate(cols, axis=-1)
        z = (-gamma) * diff * diff
        if exp_in_bf16:
            z = z.astype(jnp.bfloat16)                           # optional (v6e/v7x EUP)
        val = jnp.exp(z)
        out_ref[:, g * n_rbf:(g + group) * n_rbf] = val.astype(out_ref.dtype)


def gaussian_rbf(distance, *, vmin=0.0, vmax=5.0, n_rbf=64, lengthscale=None,
                 out_dtype=jnp.bfloat16, block_bytes=2 << 20,
                 min_pallas_n=8192, exp_in_bf16=False):
    """distance: (N,) -> (N, n_rbf), mirroring torch GaussianRBF.forward."""
    n = distance.shape[0]

    # ---- parameters (Python floats; matches torch __init__ exactly) --------
    step = (vmax - vmin) / max(n_rbf - 1, 1)
    if lengthscale is None:
        # torch: lengthscale = diff(centers).mean() == step; gamma = 1/lengthscale
        gamma = 1.0 / step
    else:
        gamma = 1.0 / (lengthscale ** 2)

    dist = distance.astype(jnp.float32)

    # ---- small-N fallback: plain XLA is already at the HBM roofline --------
    if n < min_pallas_n:
        centers = vmin + step * jnp.arange(n_rbf, dtype=jnp.float32)
        out = jnp.exp(-gamma * (dist[:, None] - centers[None, :]) ** 2)
        return out.astype(out_dtype)

    # ---- lane-alignment group: group * n_rbf is a multiple of 128 ----------
    group = _LANES // math.gcd(n_rbf, _LANES)

    # ---- tiling: ~block_bytes output block, >= 2 grid steps (megacore) -----
    rows = pl.cdiv(n, _LANES)
    row_out_bytes = _LANES * n_rbf * jnp.dtype(out_dtype).itemsize
    rb = max(8, min(1024, (block_bytes // row_out_bytes) // 8 * 8))
    rb = min(rb, max(8, _round_up(pl.cdiv(rows, 2), 8)))
    rows_padded = _round_up(rows, rb)

    n_padded = rows_padded * _LANES
    if n_padded != n:
        dist = jnp.pad(dist, (0, n_padded - n))    # padded rows sliced off below
    dist2d = dist.reshape(rows_padded, _LANES)     # contiguous, lane-dense

    kernel = functools.partial(
        _gaussian_rbf_kernel, gamma=float(gamma), vmin=float(vmin),
        step=float(step), n_rbf=n_rbf, group=group,
        exp_in_bf16=bool(exp_in_bf16))

    out = pl.pallas_call(
        kernel,
        out_shape=jax.ShapeDtypeStruct((rows_padded, _LANES * n_rbf), out_dtype),
        grid_spec=pltpu.PrefetchScalarGridSpec(
            num_scalar_prefetch=0,
            grid=(rows_padded // rb,),
            in_specs=[pl.BlockSpec((rb, _LANES), lambda i: (i, 0))],
            out_specs=pl.BlockSpec((rb, _LANES * n_rbf), lambda i: (i, 0)),
        ),
        compiler_params=pltpu.CompilerParams(
            dimension_semantics=("parallel",)),
    )(dist2d)

    # (rows_padded, 128*n_rbf) row-major is flat-order identical to
    # (n_padded, n_rbf), so this reshape is free.
    return out.reshape(n_padded, n_rbf)[:n]


if __name__ == "__main__":
    VMIN, VMAX, N_RBF = 0.0, 5.0, 64

    def reference(d, vmin=VMIN, vmax=VMAX, n_rbf=N_RBF, lengthscale=None):
        centers = jnp.linspace(vmin, vmax, n_rbf, dtype=jnp.float32)
        if lengthscale is None:
            gamma = 1.0 / jnp.mean(jnp.diff(centers))
        else:
            gamma = 1.0 / lengthscale ** 2
        return jnp.exp(-gamma * (d[:, None] - centers[None, :]) ** 2)

    key = jax.random.PRNGKey(0)

    # --- Pallas path (N big enough to tile / use both TCs), exact f32 -------
    N = 20000  # number of interatomic distances (edges)
    d = jax.random.uniform(key, (N,), dtype=jnp.float32, minval=0.0, maxval=5.0)
    ref = reference(d)

    out_f32 = jax.block_until_ready(
        gaussian_rbf(d, vmin=VMIN, vmax=VMAX, n_rbf=N_RBF, out_dtype=jnp.float32))
    assert out_f32.shape == (N, N_RBF)
    assert jnp.allclose(out_f32, ref, atol=1e-4, rtol=1e-4)

    # --- Pallas path, default bf16 output (math stays f32) ------------------
    out_bf16 = jax.block_until_ready(
        gaussian_rbf(d, vmin=VMIN, vmax=VMAX, n_rbf=N_RBF))
    assert out_bf16.dtype == jnp.bfloat16
    assert out_bf16.shape == (N, N_RBF)
    assert jnp.allclose(out_bf16.astype(jnp.float32), ref, atol=1e-2, rtol=1e-2)

    # --- small-N fallback + explicit lengthscale branch ---------------------
    Ns = 257
    ds = jax.random.uniform(jax.random.PRNGKey(1), (Ns,), dtype=jnp.float32,
                            minval=0.0, maxval=5.0)
    out_small = jax.block_until_ready(
        gaussian_rbf(ds, vmin=VMIN, vmax=VMAX, n_rbf=N_RBF, lengthscale=0.5,
                     out_dtype=jnp.float32))
    assert jnp.allclose(out_small, reference(ds, lengthscale=0.5),
                        atol=1e-5, rtol=1e-5)

    print("KERNEL_OK")
</pallas_src>

<mosaic_0001>
module attributes {stable_mosaic.version = 11 : i64} {
  func.func @_gaussian_rbf_kernel(%arg0: i32, %arg1: memref<64x128xf32, #tpu.memory_space<vmem>>, %arg2: memref<64x8192xf32, #tpu.memory_space<vmem>>) attributes {dimension_semantics = [#tpu.dimension_semantics<parallel>], iteration_bounds = array<i64: 3>, scalar_prefetch = 0 : i64, scratch_operands = 0 : i64, tpu.core_type = #tpu.core_type<tc>, window_params = [{transform_indices = @transform_0, window_bounds = array<i64: 64, 128>}, {transform_indices = @transform_1, window_bounds = array<i64: 64, 8192>}]} {
    %c0 = arith.constant 0 : index
    %c0_0 = arith.constant 0 : index
    %0 = vector.load %arg1[%c0, %c0_0] : memref<64x128xf32, #tpu.memory_space<vmem>>, vector<64x128xf32>
    %1 = tpu.iota {dimensions = array<i32: 1>} : vector<1x64xi32>
    %2 = arith.sitofp %1 : vector<1x64xi32> to vector<1x64xf32>
    %cst = arith.constant 0.079365082 : f32
    %3 = vector.broadcast %cst : f32 to vector<1x64xf32>
    %4 = arith.mulf %2, %3 : vector<1x64xf32>
    %cst_1 = arith.constant 0.000000e+00 : f32
    %5 = vector.broadcast %cst_1 : f32 to vector<1x64xf32>
    %6 = arith.addf %5, %4 : vector<1x64xf32>
    %7 = vector.extract_strided_slice %0 {offsets = [0, 0], sizes = [64, 1], strides = [1, 1]} : vector<64x128xf32> to vector<64x1xf32>
    %8 = vector.broadcast %7 : vector<64x1xf32> to vector<64x64xf32>
    %9 = vector.broadcast %6 : vector<1x64xf32> to vector<64x64xf32>
    %10 = arith.subf %8, %9 : vector<64x64xf32>
    %11 = vector.extract_strided_slice %0 {offsets = [0, 1], sizes = [64, 1], strides = [1, 1]} : vector<64x128xf32> to vector<64x1xf32>
    %12 = vector.broadcast %11 : vector<64x1xf32> to vector<64x64xf32>
    %13 = vector.broadcast %6 : vector<1x64xf32> to vector<64x64xf32>
    %14 = arith.subf %12, %13 : vector<64x64xf32>
    %15 = tpu.concatenate %10, %14 in 1 : vector<64x64xf32>, vector<64x64xf32> -> vector<64x128xf32>
    %cst_2 = arith.constant -1.260000e+01 : f32
    %16 = vector.broadcast %cst_2 : f32 to vector<64x128xf32>
    %17 = arith.mulf %16, %15 : vector<64x128xf32>
    %18 = arith.mulf %17, %15 : vector<64x128xf32>
    %19 = math.exp %18 : vector<64x128xf32>
    %c0_3 = arith.constant 0 : index
    %c0_4 = arith.constant 0 : index
    %20 = vector.load %arg2[%c0_3, %c0_4] : memref<64x8192xf32, #tpu.memory_space<vmem>>, vector<64x128xf32>
    tpu.vector_store %arg2[%c0_3, %c0_4], %19 {strides = array<i32>} : memref<64x8192xf32, #tpu.memory_space<vmem>>, vector<64x128xf32>,
    %21 = vector.extract_strided_slice %0 {offsets = [0, 2], sizes = [64, 1], strides = [1, 1]} : vector<64x128xf32> to vector<64x1xf32>
    %22 = vector.broadcast %21 : vector<64x1xf32> to vector<64x64xf32>
    %23 = vector.broadcast %6 : vector<1x64xf32> to vector<64x64xf32>
    %24 = arith.subf %22, %23 : vector<64x64xf32>
    %25 = vector.extract_strided_slice %0 {offsets = [0, 3], sizes = [64, 1], strides = [1, 1]} : vector<64x128xf32> to vector<64x1xf32>
    %26 = vector.broadcast %25 : vector<64x1xf32> to vector<64x64xf32>
    %27 = vector.broadcast %6 : vector<1x64xf32> to vector<64x64xf32>
    %28 = arith.subf %26, %27 : vector<64x64xf32>
    %29 = tpu.concatenate %24, %28 in 1 : vector<64x64xf32>, vector<64x64xf32> -> vector<64x128xf32>
    %cst_5 = arith.constant -1.260000e+01 : f32
    %30 = vector.broadcast %cst_5 : f32 to vector<64x128xf32>
    %31 = arith.mulf %30, %29 : vector<64x128xf32>
    %32 = arith.mulf %31, %29 : vector<64x128xf32>
    %33 = math.exp %32 : vector<64x128xf32>
    %c0_6 = arith.constant 0 : index
    %c128 = arith.constant 128 : index
    %34 = vector.load %arg2[%c0_6, %c128] : memref<64x8192xf32, #tpu.memory_space<vmem>>, vector<64x128xf32>
    tpu.vector_store %arg2[%c0_6, %c128], %33 {strides = array<i32>} : memref<64x8192xf32, #tpu.memory_space<vmem>>, vector<64x128xf32>,
    %35 = vector.extract_strided_slice %0 {offsets = [0, 4], sizes = [64, 1], strides = [1, 1]} : vector<64x128xf32> to vector<64x1xf32>
    %36 = vector.broadcast %35 : vector<64x1xf32> to vector<64x64xf32>
    %37 = vector.broadcast %6 : vector<1x64xf32> to vector<64x64xf32>
    %38 = arith.subf %36, %37 : vector<64x64xf32>
    %39 = vector.extract_strided_slice %0 {offsets = [0, 5], sizes = [64, 1], strides = [1, 1]} : vector<64x128xf32> to vector<64x1xf32>
    %40 = vector.broadcast %39 : vector<64x1xf32> to vector<64x64xf32>
    %41 = vector.broadcast %6 : vector<1x64xf32> to vector<64x64xf32>
    %42 = arith.subf %40, %41 : vector<64x64xf32>
    %43 = tpu.concatenate %38, %42 in 1 : vector<64x64xf32>, vector<64x64xf32> -> vector<64x128xf32>
    %cst_7 = arith.constant -1.260000e+01 : f32
    %44 = vector.broadcast %cst_7 : f32 to vector<64x128xf32>
    %45 = arith.mulf %44, %43 : vector<64x128xf32>
    %46 = arith.mulf %45, %43 : vector<64x128xf32>
    %47 = math.exp %46 : vector<64x128xf32>
    %c0_8 = arith.constant 0 : index
    %c256 = arith.constant 256 : index
    %48 = vector.load %arg2[%c0_8, %c256] : memref<64x8192xf32, #tpu.memory_space<vmem>>, vector<64x128xf32>
    tpu.vector_store %arg2[%c0_8, %c256], %47 {strides = array<i32>} : memref<64x8192xf32, #tpu.memory_space<vmem>>, vector<64x128xf32>,
    %49 = vector.extract_strided_slice %0 {offsets = [0, 6], sizes = [64, 1], strides = [1, 1]} : vector<64x128xf32> to vector<64x1xf32>
    %50 = vector.broadcast %49 : vector<64x1xf32> to vector<64x64xf32>
    %51 = vector.broadcast %6 : vector<1x64xf32> to vector<64x64xf32>
    %52 = arith.subf %50, %51 : vector<64x64xf32>
    %53 = vector.extract_strided_slice %0 {offsets = [0, 7], sizes = [64, 1], strides = [1, 1]} : vector<64x128xf32> to vector<64x1xf32>
    %54 = vector.broadcast %53 : vector<64x1xf32> to vector<64x64xf32>
    %55 = vector.broadcast %6 : vector<1x64xf32> to vector<64x64xf32>
    %56 = arith.subf %54, %55 : vector<64x64xf32>
    %57 = tpu.concatenate %52, %56 in 1 : vector<64x64xf32>, vector<64x64xf32> -> vector<64x128xf32>
    %cst_9 = arith.constant -1.260000e+01 : f32
    %58 = vector.broadcast %cst_9 : f32 to vector<64x128xf32>
    %59 = arith.mulf %58, %57 : vector<64x128xf32>
    %60 = arith.mulf %59, %57 : vector<64x128xf32>
    %61 = math.exp %60 : vector<64x128xf32>
    %c0_10 = arith.constant 0 : index
    %c384 = arith.constant 384 : index
    %62 = vector.load %arg2[%c0_10, %c384] : memref<64x8192xf32, #tpu.memory_space<vmem>>, vector<64x128xf32>
    tpu.vector_store %arg2[%c0_10, %c384], %61 {strides = array<i32>} : memref<64x8192xf32, #tpu.memory_space<vmem>>, vector<64x128xf32>,
    %63 = vector.extract_strided_slice %0 {offsets = [0, 8], sizes = [64, 1], strides = [1, 1]} : vector<64x128xf32> to vector<64x1xf32>
    %64 = vector.broadcast %63 : vector<64x1xf32> to vector<64x64xf32>
    %65 = vector.broadcast %6 : vector<1x64xf32> to vector<64x64xf32>
    %66 = arith.subf %64, %65 : vector<64x64xf32>
    %67 = vector.extract_strided_slice %0 {offsets = [0, 9], sizes = [64, 1], strides = [1, 1]} : vector<64x128xf32> to vector<64x1xf32>
    %68 = vector.broadcast %67 : vector<64x1xf32> to vector<64x64xf32>
    %69 = vector.broadcast %6 : vector<1x64xf32> to vector<64x64xf32>
    %70 = arith.subf %68, %69 : vector<64x64xf32>
    %71 = tpu.concatenate %66, %70 in 1 : vector<64x64xf32>, vector<64x64xf32> -> vector<64x128xf32>
    %cst_11 = arith.constant -1.260000e+01 : f32
    %72 = vector.broadcast %cst_11 : f32 to vector<64x128xf32>
    %73 = arith.mulf %72, %71 : vector<64x128xf32>
    %74 = arith.mulf %73, %71 : vector<64x128xf32>
    %75 = math.exp %74 : vector<64x128xf32>
    %c0_12 = arith.constant 0 : index
    %c512 = arith.constant 512 : index
    %76 = vector.load %arg2[%c0_12, %c512] : memref<64x8192xf32, #tpu.memory_space<vmem>>, vector<64x128xf32>
    tpu.vector_store %arg2[%c0_12, %c512], %75 {strides = array<i32>} : memref<64x8192xf32, #tpu.memory_space<vmem>>, vector<64x128xf32>,
    %77 = vector.extract_strided_slice %0 {offsets = [0, 10], sizes = [64, 1], strides = [1, 1]} : vector<64x128xf32> to vector<64x1xf32>
    %78 = vector.broadcast %77 : vector<64x1xf32> to vector<64x64xf32>
    %79 = vector.broadcast %6 : vector<1x64xf32> to vector<64x64xf32>
    %80 = arith.subf %78, %79 : vector<64x64xf32>
    %81 = vector.extract_strided_slice %0 {offsets = [0, 11], sizes = [64, 1], strides = [1, 1]} : vector<64x128xf32> to vector<64x1xf32>
    %82 = vector.broadcast %81 : vector<64x1xf32> to vector<64x64xf32>
    %83 = vector.broadcast %6 : vector<1x64xf32> to vector<64x64xf32>
    %84 = arith.subf %82, %83 : vector<64x64xf32>
    %85 = tpu.concatenate %80, %84 in 1 : vector<64x64xf32>, vector<64x64xf32> -> vector<64x128xf32>
    %cst_13 = arith.constant -1.260000e+01 : f32
    %86 = vector.broadcast %cst_13 : f32 to vector<64x128xf32>
    %87 = arith.mulf %86, %85 : vector<64x128xf32>
    %88 = arith.mulf %87, %85 : vector<64x128xf32>
    %89 = math.exp %88 : vector<64x128xf32>
    %c0_14 = arith.constant 0 : index
    %c640 = arith.constant 640 : index
    %90 = vector.load %arg2[%c0_14, %c640] : memref<64x8192xf32, #tpu.memory_space<vmem>>, vector<64x128xf32>
    tpu.vector_store %arg2[%c0_14, %c640], %89 {strides = array<i32>} : memref<64x8192xf32, #tpu.memory_space<vmem>>, vector<64x128xf32>,
    %91 = vector.extract_strided_slice %0 {offsets = [0, 12], sizes = [64, 1], strides = [1, 1]} : vector<64x128xf32> to vector<64x1xf32>
    %92 = vector.broadcast %91 : vector<64x1xf32> to vector<64x64xf32>
    %93 = vector.broadcast %6 : vector<1x64xf32> to vector<64x64xf32>
    %94 = arith.subf %92, %93 : vector<64x64xf32>
    %95 = vector.extract_strided_slice %0 {offsets = [0, 13], sizes = [64, 1], strides = [1, 1]} : vector<64x128xf32> to vector<64x1xf32>
    %96 = vector.broadcast %95 : vector<64x1xf32> to vector<64x64xf32>
    %97 = vector.broadcast %6 : vector<1x64xf32> to vector<64x64xf32>
    %98 = arith.subf %96, %97 : vector<64x64xf32>
    %99 = tpu.concatenate %94, %98 in 1 : vector<64x64xf32>, vector<64x64xf32> -> vector<64x128xf32>
    %cst_15 = arith.constant -1.260000e+01 : f32
    %100 = vector.broadcast %cst_15 : f32 to vector<64x128xf32>
    %101 = arith.mulf %100, %99 : vector<64x128xf32>
    %102 = arith.mulf %101, %99 : vector<64x128xf32>
    %103 = math.exp %102 : vector<64x128xf32>
    %c0_16 = arith.constant 0 : index
    %c768 = arith.constant 768 : index
    %104 = vector.load %arg2[%c0_16, %c768] : memref<64x8192xf32, #tpu.memory_space<vmem>>, vector<64x128xf32>
    tpu.vector_store %arg2[%c0_16, %c768], %103 {strides = array<i32>} : memref<64x8192xf32, #tpu.memory_space<vmem>>, vector<64x128xf32>,
    %105 = vector.extract_strided_slice %0 {offsets = [0, 14], sizes = [64, 1], strides = [1, 1]} : vector<64x128xf32> to vector<64x1xf32>
    %106 = vector.broadcast %105 : vector<64x1xf32> to vector<64x64xf32>
    %107 = vector.broadcast %6 : vector<1x64xf32> to vector<64x64xf32>
    %108 = arith.subf %106, %107 : vector<64x64xf32>
    %109 = vector.extract_strided_slice %0 {offsets = [0, 15], sizes = [64, 1], strides = [1, 1]} : vector<64x128xf32> to vector<64x1xf32>
    %110 = vector.broadcast %109 : vector<64x1xf32> to vector<64x64xf32>
    %111 = vector.broadcast %6 : vector<1x64xf32> to vector<64x64xf32>
    %112 = arith.subf %110, %111 : vector<64x64xf32>
    %113 = tpu.concatenate %108, %112 in 1 : vector<64x64xf32>, vector<64x64xf32> -> vector<64x128xf32>
    %cst_17 = arith.constant -1.260000e+01 : f32
    %114 = vector.broadcast %cst_17 : f32 to vector<64x128xf32>
    %115 = arith.mulf %114, %113 : vector<64x128xf32>
    %116 = arith.mulf %115, %113 : vector<64x128xf32>
    %117 = math.exp %116 : vector<64x128xf32>
    %c0_18 = arith.constant 0 : index
    %c896 = arith.constant 896 : index
    %118 = vector.load %arg2[%c0_18, %c896] : memref<64x8192xf32, #tpu.memory_space<vmem>>, vector<64x128xf32>
    tpu.vector_store %arg2[%c0_18, %c896], %117 {strides = array<i32>} : memref<64x8192xf32, #tpu.memory_space<vmem>>, vector<64x128xf32>,
    %119 = vector.extract_strided_slice %0 {offsets = [0, 16], sizes = [64, 1], strides = [1, 1]} : vector<64x128xf32> to vector<64x1xf32>
    %120 = vector.broadcast %119 : vector<64x1xf32> to vector<64x64xf32>
    %121 = vector.broadcast %6 : vector<1x64xf32> to vector<64x64xf32>
    %122 = arith.subf %120, %121 : vector<64x64xf32>
    %123 = vector.extract_strided_slice %0 {offsets = [0, 17], sizes = [64, 1], strides = [1, 1]} : vector<64x128xf32> to vector<64x1xf32>
    %124 = vector.broadcast %123 : vector<64x1xf32> to vector<64x64xf32>
    %125 = vector.broadcast %6 : vector<1x64xf32> to vector<64x64xf32>
    %126 = arith.subf %124, %125 : vector<64x64xf32>
    %127 = tpu.concatenate %122, %126 in 1 : vector<64x64xf32>, vector<64x64xf32> -> vector<64x128xf32>
    %cst_19 = arith.constant -1.260000e+01 : f32
    %128 = vector.broadcast %cst_19 : f32 to vector<64x128xf32>
    %129 = arith.mulf %128, %127 : vector<64x128xf32>
    %130 = arith.mulf %129, %127 : vector<64x128xf32>
    %131 = math.exp %130 : vector<64x128xf32>
    %c0_20 = arith.constant 0 : index
    %c1024 = arith.constant 1024 : index
    %132 = vector.load %arg2[%c0_20, %c1024] : memref<64x8192xf32, #tpu.memory_space<vmem>>, vector<64x128xf32>
    tpu.vector_store %arg2[%c0_20, %c1024], %131 {strides = array<i32>} : memref<64x8192xf32, #tpu.memory_space<vmem>>, vector<64x128xf32>,
    %133 = vector.extract_strided_slice %0 {offsets = [0, 18], sizes = [64, 1], strides = [1, 1]} : vector<64x128xf32> to vector<64x1xf32>
    %134 = vector.broadcast %133 : vector<64x1xf32> to vector<64x64xf32>
    %135 = vector.broadcast %6 : vector<1x64xf32> to vector<64x64xf32>
    %136 = arith.subf %134, %135 : vector<64x64xf32>
    %137 = vector.extract_strided_slice %0 {offsets = [0, 19], sizes = [64, 1], strides = [1, 1]} : vector<64x128xf32> to vector<64x1xf32>
    %138 = vector.broadcast %137 : vector<64x1xf32> to vector<64x64xf32>
    %139 = vector.broadcast %6 : vector<1x64xf32> to vector<64x64xf32>
    %140 = arith.subf %138, %139 : vector<64x64xf32>
    %141 = tpu.concatenate %136, %140 in 1 : vector<64x64xf32>, vector<64x64xf32> -> vector<64x128xf32>
    %cst_21 = arith.constant -1.260000e+01 : f32
    %142 = vector.broadcast %cst_21 : f32 to vector<64x128xf32>
    %143 = arith.mulf %142, %141 : vector<64x128xf32>
    %144 = arith.mulf %143, %141 : vector<64x128xf32>
    %145 = math.exp %144 : vector<64x128xf32>
    %c0_22 = arith.constant 0 : index
    %c1152 = arith.constant 1152 : index
    %146 = vector.load %arg2[%c0_22, %c1152] : memref<64x8192xf32, #tpu.memory_space<vmem>>, vector<64x128xf32>
    tpu.vector_store %arg2[%c0_22, %c1152], %145 {strides = array<i32>} : memref<64x8192xf32, #tpu.memory_space<vmem>>, vector<64x128xf32>,
    %147 = vector.extract_strided_slice %0 {offsets = [0, 20], sizes = [64, 1], strides = [1, 1]} : vector<64x128xf32> to vector<64x1xf32>
    %148 = vector.broadcast %147 : vector<64x1xf32> to vector<64x64xf32>
    %149 = vector.broadcast %6 : vector<1x64xf32> to vector<64x64xf32>
    %150 = arith.subf %148, %149 : vector<64x64xf32>
    %151 = vector.extract_strided_slice %0 {offsets = [0, 21], sizes = [64, 1], strides = [1, 1]} : vector<64x128xf32> to vector<64x1xf32>
    %152 = vector.broadcast %151 : vector<64x1xf32> to vector<64x64xf32>
    %153 = vector.broadcast %6 : vector<1x64xf32> to vector<64x64xf32>
    %154 = arith.subf %152, %153 : vector<64x64xf32>
    %155 = tpu.concatenate %150, %154 in 1 : vector<64x64xf32>, vector<64x64xf32> -> vector<64x128xf32>
    %cst_23 = arith.constant -1.260000e+01 : f32
    %156 = vector.broadcast %cst_23 : f32 to vector<64x128xf32>
    %157 = arith.mulf %156, %155 : vector<64x128xf32>
    %158 = arith.mulf %157, %155 : vector<64x128xf32>
    %159 = math.exp %158 : vector<64x128xf32>
    %c0_24 = arith.constant 0 : index
    %c1280 = arith.constant 1280 : index
    %160 = vector.load %arg2[%c0_24, %c1280] : memref<64x8192xf32, #tpu.memory_space<vmem>>, vector<64x128xf32>
    tpu.vector_store %arg2[%c0_24, %c1280], %159 {strides = array<i32>} : memref<64x8192xf32, #tpu.memory_space<vmem>>, vector<64x128xf32>,
    %161 = vector.extract_strided_slice %0 {offsets = [0, 22], sizes = [64, 1], strides = [1, 1]} : vector<64x128xf32> to vector<64x1xf32>
    %162 = vector.broadcast %161 : vector<64x1xf32> to vector<64x64xf32>
    %163 = vector.broadcast %6 : vector<1x64xf32> to vector<64x64xf32>
    %164 = arith.subf %162, %163 : vector<64x64xf32>
    %165 = vector.extract_strided_slice %0 {offsets = [0, 23], sizes = [64, 1], strides = [1, 1]} : vector<64x128xf32> to vector<64x1xf32>
    %166 = vector.broadcast %165 : vector<64x1xf32> to vector<64x64xf32>
    %167 = vector.broadcast %6 : vector<1x64xf32> to vector<64x64xf32>
    %168 = arith.subf %166, %167 : vector<64x64xf32>
    %169 = tpu.concatenate %164, %168 in 1 : vector<64x64xf32>, vector<64x64xf32> -> vector<64x128xf32>
    %cst_25 = arith.constant -1.260000e+01 : f32
    %170 = vector.broadcast %cst_25 : f32 to vector<64x128xf32>
    %171 = arith.mulf %170, %169 : vector<64x128xf32>
    %172 = arith.mulf %171, %169 : vector<64x128xf32>
    %173 = math.exp %172 : vector<64x128xf32>
    %c0_26 = arith.constant 0 : index
    %c1408 = arith.constant 1408 : index
    %174 = vector.load %arg2[%c0_26, %c1408] : memref<64x8192xf32, #tpu.memory_space<vmem>>, vector<64x128xf32>
    tpu.vector_store %arg2[%c0_26, %c1408], %173 {strides = array<i32>} : memref<64x8192xf32, #tpu.memory_space<vmem>>, vector<64x128xf32>,
    %175 = vector.extract_strided_slice %0 {offsets = [0, 24], sizes = [64, 1], strides = [1, 1]} : vector<64x128xf32> to vector<64x1xf32>
    %176 = vector.broadcast %175 : vector<64x1xf32> to vector<64x64xf32>
    %177 = vector.broadcast %6 : vector<1x64xf32> to vector<64x64xf32>
    %178 = arith.subf %176, %177 : vector<64x64xf32>
    %179 = vector.extract_strided_slice %0 {offsets = [0, 25], sizes = [64, 1], strides = [1, 1]} : vector<64x128xf32> to vector<64x1xf32>
    %180 = vector.broadcast %179 : vector<64x1xf32> to vector<64x64xf32>
    %181 = vector.broadcast %6 : vector<1x64xf32> to vector<64x64xf32>
    %182 = arith.subf %180, %181 : vector<64x64xf32>
    %183 = tpu.concatenate %178, %182 in 1 : vector<64x64xf32>, vector<64x64xf32> -> vector<64x128xf32>
    %cst_27 = arith.constant -1.260000e+01 : f32
    %184 = vector.broadcast %cst_27 : f32 to vector<64x128xf32>
    %185 = arith.mulf %184, %183 : vector<64x128xf32>
    %186 = arith.mulf %185, %183 : vector<64x128xf32>
    %187 = math.exp %186 : vector<64x128xf32>
    %c0_28 = arith.constant 0 : index
    %c1536 = arith.constant 1536 : index
    %188 = vector.load %arg2[%c0_28, %c1536] : memref<64x8192xf32, #tpu.memory_space<vmem>>, vector<64x128xf32>
    tpu.vector_store %arg2[%c0_28, %c1536], %187 {strides = array<i32>} : memref<64x8192xf32, #tpu.memory_space<vmem>>, vector<64x128xf32>,
    %189 = vector.extract_strided_slice %0 {offsets = [0, 26], sizes = [64, 1], strides = [1, 1]} : vector<64x128xf32> to vector<64x1xf32>
    %190 = vector.broadcast %189 : vector<64x1xf32> to vector<64x64xf32>
    %191 = vector.broadcast %6 : vector<1x64xf32> to vector<64x64xf32>
    %192 = arith.subf %190, %191 : vector<64x64xf32>
    %193 = vector.extract_strided_slice %0 {offsets = [0, 27], sizes = [64, 1], strides = [1, 1]} : vector<64x128xf32> to vector<64x1xf32>
    %194 = vector.broadcast %193 : vector<64x1xf32> to vector<64x64xf32>
    %195 = vector.broadcast %6 : vector<1x64xf32> to vector<64x64xf32>
    %196 = arith.subf %194, %195 : vector<64x64xf32>
    %197 = tpu.concatenate %192, %196 in 1 : vector<64x64xf32>, vector<64x64xf32> -> vector<64x128xf32>
    %cst_29 = arith.constant -1.260000e+01 : f32
    %198 = vector.broadcast %cst_29 : f32 to vector<64x128xf32>
    %199 = arith.mulf %198, %197 : vector<64x128xf32>
    %200 = arith.mulf %199, %197 : vector<64x128xf32>
    %201 = math.exp %200 : vector<64x128xf32>
    %c0_30 = arith.constant 0 : index
    %c1664 = arith.constant 1664 : index
    %202 = vector.load %arg2[%c0_30, %c1664] : memref<64x8192xf32, #tpu.memory_space<vmem>>, vector<64x128xf32>
    tpu.vector_store %arg2[%c0_30, %c1664], %201 {strides = array<i32>} : memref<64x8192xf32, #tpu.memory_space<vmem>>, vector<64x128xf32>,
    %203 = vector.extract_strided_slice %0 {offsets = [0, 28], sizes = [64, 1], strides = [1, 1]} : vector<64x128xf32> to vector<64x1xf32>
    %204 = vector.broadcast %203 : vector<64x1xf32> to vector<64x64xf32>
    %205 = vector.broadcast %6 : vector<1x64xf32> to vector<64x64xf32>
    %206 = arith.subf %204, %205 : vector<64x64xf32>
    %207 = vector.extract_strided_slice %0 {offsets = [0, 29], sizes = [64, 1], strides = [1, 1]} : vector<64x128xf32> to vector<64x1xf32>
    %208 = vector.broadcast %207 : vector<64x1xf32> to vector<64x64xf32>
    %209 = vector.broadcast %6 : vector<1x64xf32> to vector<64x64xf32>
    %210 = arith.subf %208, %209 : vector<64x64xf32>
    %211 = tpu.concatenate %206, %210 in 1 : vector<64x64xf32>, vector<64x64xf32> -> vector<64x128xf32>
    %cst_31 = arith.constant -1.260000e+01 : f32
    %212 = vector.broadcast %cst_31 : f32 to vector<64x128xf32>
    %213 = arith.mulf %212, %211 : vector<64x128xf32>
    %214 = arith.mulf %213, %211 : vector<64x128xf32>
    %215 = math.exp %214 : vector<64x128xf32>
    %c0_32 = arith.constant 0 : index
    %c1792 = arith.constant 1792 : index
    %216 = vector.load %arg2[%c0_32, %c1792] : memref<64x8192xf32, #tpu.memory_space<vmem>>, vector<64x128xf32>
    tpu.vector_store %arg2[%c0_32, %c1792], %215 {strides = array<i32>} : memref<64x8192xf32, #tpu.memory_space<vmem>>, vector<64x128xf32>,
    %217 = vector.extract_strided_slice %0 {offsets = [0, 30], sizes = [64, 1], strides = [1, 1]} : vector<64x128xf32> to vector<64x1xf32>
    %218 = vector.broadcast %217 : vector<64x1xf32> to vector<64x64xf32>
    %219 = vector.broadcast %6 : vector<1x64xf32> to vector<64x64xf32>
    %220 = arith.subf %218, %219 : vector<64x64xf32>
    %221 = vector.extract_strided_slice %0 {offsets = [0, 31], sizes = [64, 1], strides = [1, 1]} : vector<64x128xf32> to vector<64x1xf32>
    %222 = vector.broadcast %221 : vector<64x1xf32> to vector<64x64xf32>
    %223 = vector.broadcast %6 : vector<1x64xf32> to vector<64x64xf32>
    %224 = arith.subf %222, %223 : vector<64x64xf32>
    %225 = tpu.concatenate %220, %224 in 1 : vector<64x64xf32>, vector<64x64xf32> -> vector<64x128xf32>
    %cst_33 = arith.constant -1.260000e+01 : f32
    %226 = vector.broadcast %cst_33 : f32 to vector<64x128xf32>
    %227 = arith.mulf %226, %225 : vector<64x128xf32>
    %228 = arith.mulf %227, %225 : vector<64x128xf32>
    %229 = math.exp %228 : vector<64x128xf32>
    %c0_34 = arith.constant 0 : index
    %c1920 = arith.constant 1920 : index
    %230 = vector.load %arg2[%c0_34, %c1920] : memref<64x8192xf32, #tpu.memory_space<vmem>>, vector<64x128xf32>
    tpu.vector_store %arg2[%c0_34, %c1920], %229 {strides = array<i32>} : memref<64x8192xf32, #tpu.memory_space<vmem>>, vector<64x128xf32>,
    %231 = vector.extract_strided_slice %0 {offsets = [0, 32], sizes = [64, 1], strides = [1, 1]} : vector<64x128xf32> to vector<64x1xf32>
    %232 = vector.broadcast %231 : vector<64x1xf32> to vector<64x64xf32>
    %233 = vector.broadcast %6 : vector<1x64xf32> to vector<64x64xf32>
    %234 = arith.subf %232, %233 : vector<64x64xf32>
    %235 = vector.extract_strided_slice %0 {offsets = [0, 33], sizes = [64, 1], strides = [1, 1]} : vector<64x128xf32> to vector<64x1xf32>
    %236 = vector.broadcast %235 : vector<64x1xf32> to vector<64x64xf32>
    %237 = vector.broadcast %6 : vector<1x64xf32> to vector<64x64xf32>
    %238 = arith.subf %236, %237 : vector<64x64xf32>
    %239 = tpu.concatenate %234, %238 in 1 : vector<64x64xf32>, vector<64x64xf32> -> vector<64x128xf32>
    %cst_35 = arith.constant -1.260000e+01 : f32
    %240 = vector.broadcast %cst_35 : f32 to vector<64x128xf32>
    %241 = arith.mulf %240, %239 : vector<64x128xf32>
    %242 = arith.mulf %241, %239 : vector<64x128xf32>
    %243 = math.exp %242 : vector<64x128xf32>
    %c0_36 = arith.constant 0 : index
    %c2048 = arith.constant 2048 : index
    %244 = vector.load %arg2[%c0_36, %c2048] : memref<64x8192xf32, #tpu.memory_space<vmem>>, vector<64x128xf32>
    tpu.vector_store %arg2[%c0_36, %c2048], %243 {strides = array<i32>} : memref<64x8192xf32, #tpu.memory_space<vmem>>, vector<64x128xf32>,
    %245 = vector.extract_strided_slice %0 {offsets = [0, 34], sizes = [64, 1], strides = [1, 1]} : vector<64x128xf32> to vector<64x1xf32>
    %246 = vector.broadcast %245 : vector<64x1xf32> to vector<64x64xf32>
    %247 = vector.broadcast %6 : vector<1x64xf32> to vector<64x64xf32>
    %248 = arith.subf %246, %247 : vector<64x64xf32>
    %249 = vector.extract_strided_slice %0 {offsets = [0, 35], sizes = [64, 1], strides = [1, 1]} : vector<64x128xf32> to vector<64x1xf32>
    %250 = vector.broadcast %249 : vector<64x1xf32> to vector<64x64xf32>
    %251 = vector.broadcast %6 : vector<1x64xf32> to vector<64x64xf32>
    %252 = arith.subf %250, %251 : vector<64x64xf32>
    %253 = tpu.concatenate %248, %252 in 1 : vector<64x64xf32>, vector<64x64xf32> -> vector<64x128xf32>
    %cst_37 = arith.constant -1.260000e+01 : f32
    %254 = vector.broadcast %cst_37 : f32 to vector<64x128xf32>
    %255 = arith.mulf %254, %253 : vector<64x128xf32>
    %256 = arith.mulf %255, %253 : vector<64x128xf32>
    %257 = math.exp %256 : vector<64x128xf32>
    %c0_38 = arith.constant 0 : index
    %c2176 = arith.constant 2176 : index
    %258 = vector.load %arg2[%c0_38, %c2176] : memref<64x8192xf32, #tpu.memory_space<vmem>>, vector<64x128xf32>
    tpu.vector_store %arg2[%c0_38, %c2176], %257 {strides = array<i32>} : memref<64x8192xf32, #tpu.memory_space<vmem>>, vector<64x128xf32>,
    %259 = vector.extract_strided_slice %0 {offsets = [0, 36], sizes = [64, 1], strides = [1, 1]} : vector<64x128xf32> to vector<64x1xf32>
    %260 = vector.broadcast %259 : vector<64x1xf32> to vector<64x64xf32>
    %261 = vector.broadcast %6 : vector<1x64xf32> to vector<64x64xf32>
    %262 = arith.subf %260, %261 : vector<64x64xf32>
    %263 = vector.extract_strided_slice %0 {offsets = [0, 37], sizes = [64, 1], strides = [1, 1]} : vector<64x128xf32> to vector<64x1xf32>
    %264 = vector.broadcast %263 : vector<64x1xf32> to vector<64x64xf32>
    %265 = vector.broadcast %6 : vector<1x64xf32> to vector<64x64xf32>
    %266 = arith.subf %264, %265 : vector<64x64xf32>
    %267 = tpu.concatenate %262, %266 in 1 : vector<64x64xf32>, vector<64x64xf32> -> vector<64x128xf32>
    %cst_39 = arith.constant -1.260000e+01 : f32
    %268 = vector.broadcast %cst_39 : f32 to vector<64x128xf32>
    %269 = arith.mulf %268, %267 : vector<64x128xf32>
    %270 = arith.mulf %269, %267 : vector<64x128xf32>
    %271 = math.exp %270 : vector<64x128xf32>
    %c0_40 = arith.constant 0 : index
    %c2304 = arith.constant 2304 : index
    %272 = vector.load %arg2[%c0_40, %c2304] : memref<64x8192xf32, #tpu.memory_space<vmem>>, vector<64x128xf32>
    tpu.vector_store %arg2[%c0_40, %c2304], %271 {strides = array<i32>} : memref<64x8192xf32, #tpu.memory_space<vmem>>, vector<64x128xf32>,
    %273 = vector.extract_strided_slice %0 {offsets = [0, 38], sizes = [64, 1], strides = [1, 1]} : vector<64x128xf32> to vector<64x1xf32>
    %274 = vector.broadcast %273 : vector<64x1xf32> to vector<64x64xf32>
    %275 = vector.broadcast %6 : vector<1x64xf32> to vector<64x64xf32>
    %276 = arith.subf %274, %275 : vector<64x64xf32>
    %277 = vector.extract_strided_slice %0 {offsets = [0, 39], sizes = [64, 1], strides = [1, 1]} : vector<64x128xf32> to vector<64x1xf32>
    %278 = vector.broadcast %277 : vector<64x1xf32> to vector<64x64xf32>
    %279 = vector.broadcast %6 : vector<1x64xf32> to vector<64x64xf32>
    %280 = arith.subf %278, %279 : vector<64x64xf32>
    %281 = tpu.concatenate %276, %280 in 1 : vector<64x64xf32>, vector<64x64xf32> -> vector<64x128xf32>
    %cst_41 = arith.constant -1.260000e+01 : f32
    %282 = vector.broadcast %cst_41 : f32 to vector<64x128xf32>
    %283 = arith.mulf %282, %281 : vector<64x128xf32>
    %284 = arith.mulf %283, %281 : vector<64x128xf32>
    %285 = math.exp %284 : vector<64x128xf32>
    %c0_42 = arith.constant 0 : index
    %c2432 = arith.constant 2432 : index
    %286 = vector.load %arg2[%c0_42, %c2432] : memref<64x8192xf32, #tpu.memory_space<vmem>>, vector<64x128xf32>
    tpu.vector_store %arg2[%c0_42, %c2432], %285 {strides = array<i32>} : memref<64x8192xf32, #tpu.memory_space<vmem>>, vector<64x128xf32>,
    %287 = vector.extract_strided_slice %0 {offsets = [0, 40], sizes = [64, 1], strides = [1, 1]} : vector<64x128xf32> to vector<64x1xf32>
    %288 = vector.broadcast %287 : vector<64x1xf32> to vector<64x64xf32>
    %289 = vector.broadcast %6 : vector<1x64xf32> to vector<64x64xf32>
    %290 = arith.subf %288, %289 : vector<64x64xf32>
    %291 = vector.extract_strided_slice %0 {offsets = [0, 41], sizes = [64, 1], strides = [1, 1]} : vector<64x128xf32> to vector<64x1xf32>
    %292 = vector.broadcast %291 : vector<64x1xf32> to vector<64x64xf32>
    %293 = vector.broadcast %6 : vector<1x64xf32> to vector<64x64xf32>
    %294 = arith.subf %292, %293 : vector<64x64xf32>
    %295 = tpu.concatenate %290, %294 in 1 : vector<64x64xf32>, vector<64x64xf32> -> vector<64x128xf32>
    %cst_43 = arith.constant -1.260000e+01 : f32
    %296 = vector.broadcast %cst_43 : f32 to vector<64x128xf32>
    %297 = arith.mulf %296, %295 : vector<64x128xf32>
    %298 = arith.mulf %297, %295 : vector<64x128xf32>
    %299 = math.exp %298 : vector<64x128xf32>
    %c0_44 = arith.constant 0 : index
    %c2560 = arith.constant 2560 : index
    %300 = vector.load %arg2[%c0_44, %c2560] : memref<64x8192xf32, #tpu.memory_space<vmem>>, vector<64x128xf32>
    tpu.vector_store %arg2[%c0_44, %c2560], %299 {strides = array<i32>} : memref<64x8192xf32, #tpu.memory_space<vmem>>, vector<64x128xf32>,
    %301 = vector.extract_strided_slice %0 {offsets = [0, 42], sizes = [64, 1], strides = [1, 1]} : vector<64x128xf32> to vector<64x1xf32>
    %302 = vector.broadcast %301 : vector<64x1xf32> to vector<64x64xf32>
    %303 = vector.broadcast %6 : vector<1x64xf32> to vector<64x64xf32>
    %304 = arith.subf %302, %303 : vector<64x64xf32>
    %305 = vector.extract_strided_slice %0 {offsets = [0, 43], sizes = [64, 1], strides = [1, 1]} : vector<64x128xf32> to vector<64x1xf32>
    %306 = vector.broadcast %305 : vector<64x1xf32> to vector<64x64xf32>
    %307 = vector.broadcast %6 : vector<1x64xf32> to vector<64x64xf32>
    %308 = arith.subf %306, %307 : vector<64x64xf32>
    %309 = tpu.concatenate %304, %308 in 1 : vector<64x64xf32>, vector<64x64xf32> -> vector<64x128xf32>
    %cst_45 = arith.constant -1.260000e+01 : f32
    %310 = vector.broadcast %cst_45 : f32 to vector<64x128xf32>
    %311 = arith.mulf %310, %309 : vector<64x128xf32>
    %312 = arith.mulf %311, %309 : vector<64x128xf32>
    %313 = math.exp %312 : vector<64x128xf32>
    %c0_46 = arith.constant 0 : index
    %c2688 = arith.constant 2688 : index
    %314 = vector.load %arg2[%c0_46, %c2688] : memref<64x8192xf32, #tpu.memory_space<vmem>>, vector<64x128xf32>
    tpu.vector_store %arg2[%c0_46, %c2688], %313 {strides = array<i32>} : memref<64x8192xf32, #tpu.memory_space<vmem>>, vector<64x128xf32>,
    %315 = vector.extract_strided_slice %0 {offsets = [0, 44], sizes = [64, 1], strides = [1, 1]} : vector<64x128xf32> to vector<64x1xf32>
    %316 = vector.broadcast %315 : vector<64x1xf32> to vector<64x64xf32>
    %317 = vector.broadcast %6 : vector<1x64xf32> to vector<64x64xf32>
    %318 = arith.subf %316, %317 : vector<64x64xf32>
    %319 = vector.extract_strided_slice %0 {offsets = [0, 45], sizes = [64, 1], strides = [1, 1]} : vector<64x128xf32> to vector<64x1xf32>
    %320 = vector.broadcast %319 : vector<64x1xf32> to vector<64x64xf32>
    %321 = vector.broadcast %6 : vector<1x64xf32> to vector<64x64xf32>
    %322 = arith.subf %320, %321 : vector<64x64xf32>
    %323 = tpu.concatenate %318, %322 in 1 : vector<64x64xf32>, vector<64x64xf32> -> vector<64x128xf32>
    %cst_47 = arith.constant -1.260000e+01 : f32
    %324 = vector.broadcast %cst_47 : f32 to vector<64x128xf32>
    %325 = arith.mulf %324, %323 : vector<64x128xf32>
    %326 = arith.mulf %325, %323 : vector<64x128xf32>
    %327 = math.exp %326 : vector<64x128xf32>
    %c0_48 = arith.constant 0 : index
    %c2816 = arith.constant 2816 : index
    %328 = vector.load %arg2[%c0_48, %c2816] : memref<64x8192xf32, #tpu.memory_space<vmem>>, vector<64x128xf32>
    tpu.vector_store %arg2[%c0_48, %c2816], %327 {strides = array<i32>} : memref<64x8192xf32, #tpu.memory_space<vmem>>, vector<64x128xf32>,
    %329 = vector.extract_strided_slice %0 {offsets = [0, 46], sizes = [64, 1], strides = [1, 1]} : vector<64x128xf32> to vector<64x1xf32>
    %330 = vector.broadcast %329 : vector<64x1xf32> to vector<64x64xf32>
    %331 = vector.broadcast %6 : vector<1x64xf32> to vector<64x64xf32>
    %332 = arith.subf %330, %331 : vector<64x64xf32>
    %333 = vector.extract_strided_slice %0 {offsets = [0, 47], sizes = [64, 1], strides = [1, 1]} : vector<64x128xf32> to vector<64x1xf32>
    %334 = vector.broadcast %333 : vector<64x1xf32> to vector<64x64xf32>
    %335 = vector.broadcast %6 : vector<1x64xf32> to vector<64x64xf32>
    %336 = arith.subf %334, %335 : vector<64x64xf32>
    %337 = tpu.concatenate %332, %336 in 1 : vector<64x64xf32>, vector<64x64xf32> -> vector<64x128xf32>
    %cst_49 = arith.constant -1.260000e+01 : f32
    %338 = vector.broadcast %cst_49 : f32 to vector<64x128xf32>
    %339 = arith.mulf %338, %337 : vector<64x128xf32>
    %340 = arith.mulf %339, %337 : vector<64x128xf32>
    %341 = math.exp %340 : vector<64x128xf32>
    %c0_50 = arith.constant 0 : index
    %c2944 = arith.constant 2944 : index
    %342 = vector.load %arg2[%c0_50, %c2944] : memref<64x8192xf32, #tpu.memory_space<vmem>>, vector<64x128xf32>
    tpu.vector_store %arg2[%c0_50, %c2944], %341 {strides = array<i32>} : memref<64x8192xf32, #tpu.memory_space<vmem>>, vector<64x128xf32>,
    %343 = vector.extract_strided_slice %0 {offsets = [0, 48], sizes = [64, 1], strides = [1, 1]} : vector<64x128xf32> to vector<64x1xf32>
    %344 = vector.broadcast %343 : vector<64x1xf32> to vector<64x64xf32>
    %345 = vector.broadcast %6 : vector<1x64xf32> to vector<64x64xf32>
    %346 = arith.subf %344, %345 : vector<64x64xf32>
    %347 = vector.extract_strided_slice %0 {offsets = [0, 49], sizes = [64, 1], strides = [1, 1]} : vector<64x128xf32> to vector<64x1xf32>
    %348 = vector.broadcast %347 : vector<64x1xf32> to vector<64x64xf32>
    %349 = vector.broadcast %6 : vector<1x64xf32> to vector<64x64xf32>
    %350 = arith.subf %348, %349 : vector<64x64xf32>
    %351 = tpu.concatenate %346, %350 in 1 : vector<64x64xf32>, vector<64x64xf32> -> vector<64x128xf32>
    %cst_51 = arith.constant -1.260000e+01 : f32
    %352 = vector.broadcast %cst_51 : f32 to vector<64x128xf32>
    %353 = arith.mulf %352, %351 : vector<64x128xf32>
    %354 = arith.mulf %353, %351 : vector<64x128xf32>
    %355 = math.exp %354 : vector<64x128xf32>
    %c0_52 = arith.constant 0 : index
    %c3072 = arith.constant 3072 : index
    %356 = vector.load %arg2[%c0_52, %c3072] : memref<64x8192xf32, #tpu.memory_space<vmem>>, vector<64x128xf32>
    tpu.vector_store %arg2[%c0_52, %c3072], %355 {strides = array<i32>} : memref<64x8192xf32, #tpu.memory_space<vmem>>, vector<64x128xf32>,
    %357 = vector.extract_strided_slice %0 {offsets = [0, 50], sizes = [64, 1], strides = [1, 1]} : vector<64x128xf32> to vector<64x1xf32>
    %358 = vector.broadcast %357 : vector<64x1xf32> to vector<64x64xf32>
    %359 = vector.broadcast %6 : vector<1x64xf32> to vector<64x64xf32>
    %360 = arith.subf %358, %359 : vector<64x64xf32>
    %361 = vector.extract_strided_slice %0 {offsets = [0, 51], sizes = [64, 1], strides = [1, 1]} : vector<64x128xf32> to vector<64x1xf32>
    %362 = vector.broadcast %361 : vector<64x1xf32> to vector<64x64xf32>
    %363 = vector.broadcast %6 : vector<1x64xf32> to vector<64x64xf32>
    %364 = arith.subf %362, %363 : vector<64x64xf32>
    %365 = tpu.concatenate %360, %364 in 1 : vector<64x64xf32>, vector<64x64xf32> -> vector<64x128xf32>
    %cst_53 = arith.constant -1.260000e+01 : f32
    %366 = vector.broadcast %cst_53 : f32 to vector<64x128xf32>
    %367 = arith.mulf %366, %365 : vector<64x128xf32>
    %368 = arith.mulf %367, %365 : vector<64x128xf32>
    %369 = math.exp %368 : vector<64x128xf32>
    %c0_54 = arith.constant 0 : index
    %c3200 = arith.constant 3200 : index
    %370 = vector.load %arg2[%c0_54, %c3200] : memref<64x8192xf32, #tpu.memory_space<vmem>>, vector<64x128xf32>
    tpu.vector_store %arg2[%c0_54, %c3200], %369 {strides = array<i32>} : memref<64x8192xf32, #tpu.memory_space<vmem>>, vector<64x128xf32>,
    %371 = vector.extract_strided_slice %0 {offsets = [0, 52], sizes = [64, 1], strides = [1, 1]} : vector<64x128xf32> to vector<64x1xf32>
    %372 = vector.broadcast %371 : vector<64x1xf32> to vector<64x64xf32>
    %373 = vector.broadcast %6 : vector<1x64xf32> to vector<64x64xf32>
    %374 = arith.subf %372, %373 : vector<64x64xf32>
    %375 = vector.extract_strided_slice %0 {offsets = [0, 53], sizes = [64, 1], strides = [1, 1]} : vector<64x128xf32> to vector<64x1xf32>
    %376 = vector.broadcast %375 : vector<64x1xf32> to vector<64x64xf32>
    %377 = vector.broadcast %6 : vector<1x64xf32> to vector<64x64xf32>
    %378 = arith.subf %376, %377 : vector<64x64xf32>
    %379 = tpu.concatenate %374, %378 in 1 : vector<64x64xf32>, vector<64x64xf32> -> vector<64x128xf32>
    %cst_55 = arith.constant -1.260000e+01 : f32
    %380 = vector.broadcast %cst_55 : f32 to vector<64x128xf32>
    %381 = arith.mulf %380, %379 : vector<64x128xf32>
    %382 = arith.mulf %381, %379 : vector<64x128xf32>
    %383 = math.exp %382 : vector<64x128xf32>
    %c0_56 = arith.constant 0 : index
    %c3328 = arith.constant 3328 : index
    %384 = vector.load %arg2[%c0_56, %c3328] : memref<64x8192xf32, #tpu.memory_space<vmem>>, vector<64x128xf32>
    tpu.vector_store %arg2[%c0_56, %c3328], %383 {strides = array<i32>} : memref<64x8192xf32, #tpu.memory_space<vmem>>, vector<64x128xf32>,
    %385 = vector.extract_strided_slice %0 {offsets = [0, 54], sizes = [64, 1], strides = [1, 1]} : vector<64x128xf32> to vector<64x1xf32>
    %386 = vector.broadcast %385 : vector<64x1xf32> to vector<64x64xf32>
    %387 = vector.broadcast %6 : vector<1x64xf32> to vector<64x64xf32>
    %388 = arith.subf %386, %387 : vector<64x64xf32>
    %389 = vector.extract_strided_slice %0 {offsets = [0, 55], sizes = [64, 1], strides = [1, 1]} : vector<64x128xf32> to vector<64x1xf32>
    %390 = vector.broadcast %389 : vector<64x1xf32> to vector<64x64xf32>
    %391 = vector.broadcast %6 : vector<1x64xf32> to vector<64x64xf32>
    %392 = arith.subf %390, %391 : vector<64x64xf32>
    %393 = tpu.concatenate %388, %392 in 1 : vector<64x64xf32>, vector<64x64xf32> -> vector<64x128xf32>
    %cst_57 = arith.constant -1.260000e+01 : f32
    %394 = vector.broadcast %cst_57 : f32 to vector<64x128xf32>
    %395 = arith.mulf %394, %393 : vector<64x128xf32>
    %396 = arith.mulf %395, %393 : vector<64x128xf32>
    %397 = math.exp %396 : vector<64x128xf32>
    %c0_58 = arith.constant 0 : index
    %c3456 = arith.constant 3456 : index
    %398 = vector.load %arg2[%c0_58, %c3456] : memref<64x8192xf32, #tpu.memory_space<vmem>>, vector<64x128xf32>
    tpu.vector_store %arg2[%c0_58, %c3456], %397 {strides = array<i32>} : memref<64x8192xf32, #tpu.memory_space<vmem>>, vector<64x128xf32>,
    %399 = vector.extract_strided_slice %0 {offsets = [0, 56], sizes = [64, 1], strides = [1, 1]} : vector<64x128xf32> to vector<64x1xf32>
    %400 = vector.broadcast %399 : vector<64x1xf32> to vector<64x64xf32>
    %401 = vector.broadcast %6 : vector<1x64xf32> to vector<64x64xf32>
    %402 = arith.subf %400, %401 : vector<64x64xf32>
    %403 = vector.extract_strided_slice %0 {offsets = [0, 57], sizes = [64, 1], strides = [1, 1]} : vector<64x128xf32> to vector<64x1xf32>
    %404 = vector.broadcast %403 : vector<64x1xf32> to vector<64x64xf32>
    %405 = vector.broadcast %6 : vector<1x64xf32> to vector<64x64xf32>
    %406 = arith.subf %404, %405 : vector<64x64xf32>
    %407 = tpu.concatenate %402, %406 in 1 : vector<64x64xf32>, vector<64x64xf32> -> vector<64x128xf32>
    %cst_59 = arith.constant -1.260000e+01 : f32
    %408 = vector.broadcast %cst_59 : f32 to vector<64x128xf32>
    %409 = arith.mulf %408, %407 : vector<64x128xf32>
    %410 = arith.mulf %409, %407 : vector<64x128xf32>
    %411 = math.exp %410 : vector<64x128xf32>
    %c0_60 = arith.constant 0 : index
    %c3584 = arith.constant 3584 : index
    %412 = vector.load %arg2[%c0_60, %c3584] : memref<64x8192xf32, #tpu.memory_space<vmem>>, vector<64x128xf32>
    tpu.vector_store %arg2[%c0_60, %c3584], %411 {strides = array<i32>} : memref<64x8192xf32, #tpu.memory_space<vmem>>, vector<64x128xf32>,
    %413 = vector.extract_strided_slice %0 {offsets = [0, 58], sizes = [64, 1], strides = [1, 1]} : vector<64x128xf32> to vector<64x1xf32>
    %414 = vector.broadcast %413 : vector<64x1xf32> to vector<64x64xf32>
    %415 = vector.broadcast %6 : vector<1x64xf32> to vector<64x64xf32>
    %416 = arith.subf %414, %415 : vector<64x64xf32>
    %417 = vector.extract_strided_slice %0 {offsets = [0, 59], sizes = [64, 1], strides = [1, 1]} : vector<64x128xf32> to vector<64x1xf32>
    %418 = vector.broadcast %417 : vector<64x1xf32> to vector<64x64xf32>
    %419 = vector.broadcast %6 : vector<1x64xf32> to vector<64x64xf32>
    %420 = arith.subf %418, %419 : vector<64x64xf32>
    %421 = tpu.concatenate %416, %420 in 1 : vector<64x64xf32>, vector<64x64xf32> -> vector<64x128xf32>
    %cst_61 = arith.constant -1.260000e+01 : f32
    %422 = vector.broadcast %cst_61 : f32 to vector<64x128xf32>
    %423 = arith.mulf %422, %421 : vector<64x128xf32>
    %424 = arith.mulf %423, %421 : vector<64x128xf32>
    %425 = math.exp %424 : vector<64x128xf32>
    %c0_62 = arith.constant 0 : index
    %c3712 = arith.constant 3712 : index
    %426 = vector.load %arg2[%c0_62, %c3712] : memref<64x8192xf32, #tpu.memory_space<vmem>>, vector<64x128xf32>
    tpu.vector_store %arg2[%c0_62, %c3712], %425 {strides = array<i32>} : memref<64x8192xf32, #tpu.memory_space<vmem>>, vector<64x128xf32>,
    %427 = vector.extract_strided_slice %0 {offsets = [0, 60], sizes = [64, 1], strides = [1, 1]} : vector<64x128xf32> to vector<64x1xf32>
    %428 = vector.broadcast %427 : vector<64x1xf32> to vector<64x64xf32>
    %429 = vector.broadcast %6 : vector<1x64xf32> to vector<64x64xf32>
    %430 = arith.subf %428, %429 : vector<64x64xf32>
    %431 = vector.extract_strided_slice %0 {offsets = [0, 61], sizes = [64, 1], strides = [1, 1]} : vector<64x128xf32> to vector<64x1xf32>
    %432 = vector.broadcast %431 : vector<64x1xf32> to vector<64x64xf32>
    %433 = vector.broadcast %6 : vector<1x64xf32> to vector<64x64xf32>
    %434 = arith.subf %432, %433 : vector<64x64xf32>
    %435 = tpu.concatenate %430, %434 in 1 : vector<64x64xf32>, vector<64x64xf32> -> vector<64x128xf32>
    %cst_63 = arith.constant -1.260000e+01 : f32
    %436 = vector.broadcast %cst_63 : f32 to vector<64x128xf32>
    %437 = arith.mulf %436, %435 : vector<64x128xf32>
    %438 = arith.mulf %437, %435 : vector<64x128xf32>
    %439 = math.exp %438 : vector<64x128xf32>
    %c0_64 = arith.constant 0 : index
    %c3840 = arith.constant 3840 : index
    %440 = vector.load %arg2[%c0_64, %c3840] : memref<64x8192xf32, #tpu.memory_space<vmem>>, vector<64x128xf32>
    tpu.vector_store %arg2[%c0_64, %c3840], %439 {strides = array<i32>} : memref<64x8192xf32, #tpu.memory_space<vmem>>, vector<64x128xf32>,
    %441 = vector.extract_strided_slice %0 {offsets = [0, 62], sizes = [64, 1], strides = [1, 1]} : vector<64x128xf32> to vector<64x1xf32>
    %442 = vector.broadcast %441 : vector<64x1xf32> to vector<64x64xf32>
    %443 = vector.broadcast %6 : vector<1x64xf32> to vector<64x64xf32>
    %444 = arith.subf %442, %443 : vector<64x64xf32>
    %445 = vector.extract_strided_slice %0 {offsets = [0, 63], sizes = [64, 1], strides = [1, 1]} : vector<64x128xf32> to vector<64x1xf32>
    %446 = vector.broadcast %445 : vector<64x1xf32> to vector<64x64xf32>
    %447 = vector.broadcast %6 : vector<1x64xf32> to vector<64x64xf32>
    %448 = arith.subf %446, %447 : vector<64x64xf32>
    %449 = tpu.concatenate %444, %448 in 1 : vector<64x64xf32>, vector<64x64xf32> -> vector<64x128xf32>
    %cst_65 = arith.constant -1.260000e+01 : f32
    %450 = vector.broadcast %cst_65 : f32 to vector<64x128xf32>
    %451 = arith.mulf %450, %449 : vector<64x128xf32>
    %452 = arith.mulf %451, %449 : vector<64x128xf32>
    %453 = math.exp %452 : vector<64x128xf32>
    %c0_66 = arith.constant 0 : index
    %c3968 = arith.constant 3968 : index
    %454 = vector.load %arg2[%c0_66, %c3968] : memref<64x8192xf32, #tpu.memory_space<vmem>>, vector<64x128xf32>
    tpu.vector_store %arg2[%c0_66, %c3968], %453 {strides = array<i32>} : memref<64x8192xf32, #tpu.memory_space<vmem>>, vector<64x128xf32>,
    %455 = vector.extract_strided_slice %0 {offsets = [0, 64], sizes = [64, 1], strides = [1, 1]} : vector<64x128xf32> to vector<64x1xf32>
    %456 = vector.broadcast %455 : vector<64x1xf32> to vector<64x64xf32>
    %457 = vector.broadcast %6 : vector<1x64xf32> to vector<64x64xf32>
    %458 = arith.subf %456, %457 : vector<64x64xf32>
    %459 = vector.extract_strided_slice %0 {offsets = [0, 65], sizes = [64, 1], strides = [1, 1]} : vector<64x128xf32> to vector<64x1xf32>
    %460 = vector.broadcast %459 : vector<64x1xf32> to vector<64x64xf32>
    %461 = vector.broadcast %6 : vector<1x64xf32> to vector<64x64xf32>
    %462 = arith.subf %460, %461 : vector<64x64xf32>
    %463 = tpu.concatenate %458, %462 in 1 : vector<64x64xf32>, vector<64x64xf32> -> vector<64x128xf32>
    %cst_67 = arith.constant -1.260000e+01 : f32
    %464 = vector.broadcast %cst_67 : f32 to vector<64x128xf32>
    %465 = arith.mulf %464, %463 : vector<64x128xf32>
    %466 = arith.mulf %465, %463 : vector<64x128xf32>
    %467 = math.exp %466 : vector<64x128xf32>
    %c0_68 = arith.constant 0 : index
    %c4096 = arith.constant 4096 : index
    %468 = vector.load %arg2[%c0_68, %c4096] : memref<64x8192xf32, #tpu.memory_space<vmem>>, vector<64x128xf32>
    tpu.vector_store %arg2[%c0_68, %c4096], %467 {strides = array<i32>} : memref<64x8192xf32, #tpu.memory_space<vmem>>, vector<64x128xf32>,
    %469 = vector.extract_strided_slice %0 {offsets = [0, 66], sizes = [64, 1], strides = [1, 1]} : vector<64x128xf32> to vector<64x1xf32>
    %470 = vector.broadcast %469 : vector<64x1xf32> to vector<64x64xf32>
    %471 = vector.broadcast %6 : vector<1x64xf32> to vector<64x64xf32>
    %472 = arith.subf %470, %471 : vector<64x64xf32>
    %473 = vector.extract_strided_slice %0 {offsets = [0, 67], sizes = [64, 1], strides = [1, 1]} : vector<64x128xf32> to vector<64x1xf32>
    %474 = vector.broadcast %473 : vector<64x1xf32> to vector<64x64xf32>
    %475 = vector.broadcast %6 : vector<1x64xf32> to vector<64x64xf32>
    %476 = arith.subf %474, %475 : vector<64x64xf32>
    %477 = tpu.concatenate %472, %476 in 1 : vector<64x64xf32>, vector<64x64xf32> -> vector<64x128xf32>
    %cst_69 = arith.constant -1.260000e+01 : f32
    %478 = vector.broadcast %cst_69 : f32 to vector<64x128xf32>
    %479 = arith.mulf %478, %477 : vector<64x128xf32>
    %480 = arith.mulf %479, %477 : vector<64x128xf32>
    %481 = math.exp %480 : vector<64x128xf32>
    %c0_70 = arith.constant 0 : index
    %c4224 = arith.constant 4224 : index
    %482 = vector.load %arg2[%c0_70, %c4224] : memref<64x8192xf32, #tpu.memory_space<vmem>>, vector<64x128xf32>
    tpu.vector_store %arg2[%c0_70, %c4224], %481 {strides = array<i32>} : memref<64x8192xf32, #tpu.memory_space<vmem>>, vector<64x128xf32>,
    %483 = vector.extract_strided_slice %0 {offsets = [0, 68], sizes = [64, 1], strides = [1, 1]} : vector<64x128xf32> to vector<64x1xf32>
    %484 = vector.broadcast %483 : vector<64x1xf32> to vector<64x64xf32>
    %485 = vector.broadcast %6 : vector<1x64xf32> to vector<64x64xf32>
    %486 = arith.subf %484, %485 : vector<64x64xf32>
    %487 = vector.extract_strided_slice %0 {offsets = [0, 69], sizes = [64, 1], strides = [1, 1]} : vector<64x128xf32> to vector<64x1xf32>
    %488 = vector.broadcast %487 : vector<64x1xf32> to vector<64x64xf32>
    %489 = vector.broadcast %6 : vector<1x64xf32> to vector<64x64xf32>
    %490 = arith.subf %488, %489 : vector<64x64xf32>
    %491 = tpu.concatenate %486, %490 in 1 : vector<64x64xf32>, vector<64x64xf32> -> vector<64x128xf32>
    %cst_71 = arith.constant -1.260000e+01 : f32
    %492 = vector.broadcast %cst_71 : f32 to vector<64x128xf32>
    %493 = arith.mulf %492, %491 : vector<64x128xf32>
    %494 = arith.mulf %493, %491 : vector<64x128xf32>
    %495 = math.exp %494 : vector<64x128xf32>
    %c0_72 = arith.constant 0 : index
    %c4352 = arith.constant 4352 : index
    %496 = vector.load %arg2[%c0_72, %c4352] : memref<64x8192xf32, #tpu.memory_space<vmem>>, vector<64x128xf32>
    tpu.vector_store %arg2[%c0_72, %c4352], %495 {strides = array<i32>} : memref<64x8192xf32, #tpu.memory_space<vmem>>, vector<64x128xf32>,
    %497 = vector.extract_strided_slice %0 {offsets = [0, 70], sizes = [64, 1], strides = [1, 1]} : vector<64x128xf32> to vector<64x1xf32>
    %498 = vector.broadcast %497 : vector<64x1xf32> to vector<64x64xf32>
    %499 = vector.broadcast %6 : vector<1x64xf32> to vector<64x64xf32>
    %500 = arith.subf %498, %499 : vector<64x64xf32>
    %501 = vector.extract_strided_slice %0 {offsets = [0, 71], sizes = [64, 1], strides = [1, 1]} : vector<64x128xf32> to vector<64x1xf32>
    %502 = vector.broadcast %501 : vector<64x1xf32> to vector<64x64xf32>
    %503 = vector.broadcast %6 : vector<1x64xf32> to vector<64x64xf32>
    %504 = arith.subf %502, %503 : vector<64x64xf32>
    %505 = tpu.concatenate %500, %504 in 1 : vector<64x64xf32>, vector<64x64xf32> -> vector<64x128xf32>
    %cst_73 = arith.constant -1.260000e+01 : f32
    %506 = vector.broadcast %cst_73 : f32 to vector<64x128xf32>
    %507 = arith.mulf %506, %505 : vector<64x128xf32>
    %508 = arith.mulf %507, %505 : vector<64x128xf32>
    %509 = math.exp %508 : vector<64x128xf32>
    %c0_74 = arith.constant 0 : index
    %c4480 = arith.constant 4480 : index
    %510 = vector.load %arg2[%c0_74, %c4480] : memref<64x8192xf32, #tpu.memory_space<vmem>>, vector<64x128xf32>
    tpu.vector_store %arg2[%c0_74, %c4480], %509 {strides = array<i32>} : memref<64x8192xf32, #tpu.memory_space<vmem>>, vector<64x128xf32>,
    %511 = vector.extract_strided_slice %0 {offsets = [0, 72], sizes = [64, 1], strides = [1, 1]} : vector<64x128xf32> to vector<64x1xf32>
    %512 = vector.broadcast %511 : vector<64x1xf32> to vector<64x64xf32>
    %513 = vector.broadcast %6 : vector<1x64xf32> to vector<64x64xf32>
    %514 = arith.subf %512, %513 : vector<64x64xf32>
    %515 = vector.extract_strided_slice %0 {offsets = [0, 73], sizes = [64, 1], strides = [1, 1]} : vector<64x128xf32> to vector<64x1xf32>
    %516 = vector.broadcast %515 : vector<64x1xf32> to vector<64x64xf32>
    %517 = vector.broadcast %6 : vector<1x64xf32> to vector<64x64xf32>
    %518 = arith.subf %516, %517 : vector<64x64xf32>
    %519 = tpu.concatenate %514, %518 in 1 : vector<64x64xf32>, vector<64x64xf32> -> vector<64x128xf32>
    %cst_75 = arith.constant -1.260000e+01 : f32
    %520 = vector.broadcast %cst_75 : f32 to vector<64x128xf32>
    %521 = arith.mulf %520, %519 : vector<64x128xf32>
    %522 = arith.mulf %521, %519 : vector<64x128xf32>
    %523 = math.exp %522 : vector<64x128xf32>
    %c0_76 = arith.constant 0 : index
    %c4608 = arith.constant 4608 : index
    %524 = vector.load %arg2[%c0_76, %c4608] : memref<64x8192xf32, #tpu.memory_space<vmem>>, vector<64x128xf32>
    tpu.vector_store %arg2[%c0_76, %c4608], %523 {strides = array<i32>} : memref<64x8192xf32, #tpu.memory_space<vmem>>, vector<64x128xf32>,
    %525 = vector.extract_strided_slice %0 {offsets = [0, 74], sizes = [64, 1], strides = [1, 1]} : vector<64x128xf32> to vector<64x1xf32>
    %526 = vector.broadcast %525 : vector<64x1xf32> to vector<64x64xf32>
    %527 = vector.broadcast %6 : vector<1x64xf32> to vector<64x64xf32>
    %528 = arith.subf %526, %527 : vector<64x64xf32>
    %529 = vector.extract_strided_slice %0 {offsets = [0, 75], sizes = [64, 1], strides = [1, 1]} : vector<64x128xf32> to vector<64x1xf32>
    %530 = vector.broadcast %529 : vector<64x1xf32> to vector<64x64xf32>
    %531 = vector.broadcast %6 : vector<1x64xf32> to vector<64x64xf32>
    %532 = arith.subf %530, %531 : vector<64x64xf32>
    %533 = tpu.concatenate %528, %532 in 1 : vector<64x64xf32>, vector<64x64xf32> -> vector<64x128xf32>
    %cst_77 = arith.constant -1.260000e+01 : f32
    %534 = vector.broadcast %cst_77 : f32 to vector<64x128xf32>
    %535 = arith.mulf %534, %533 : vector<64x128xf32>
    %536 = arith.mulf %535, %533 : vector<64x128xf32>
    %537 = math.exp %536 : vector<64x128xf32>
    %c0_78 = arith.constant 0 : index
    %c4736 = arith.constant 4736 : index
    %538 = vector.load %arg2[%c0_78, %c4736] : memref<64x8192xf32, #tpu.memory_space<vmem>>, vector<64x128xf32>
    tpu.vector_store %arg2[%c0_78, %c4736], %537 {strides = array<i32>} : memref<64x8192xf32, #tpu.memory_space<vmem>>, vector<64x128xf32>,
    %539 = vector.extract_strided_slice %0 {offsets = [0, 76], sizes = [64, 1], strides = [1, 1]} : vector<64x128xf32> to vector<64x1xf32>
    %540 = vector.broadcast %539 : vector<64x1xf32> to vector<64x64xf32>
    %541 = vector.broadcast %6 : vector<1x64xf32> to vector<64x64xf32>
    %542 = arith.subf %540, %541 : vector<64x64xf32>
    %543 = vector.extract_strided_slice %0 {offsets = [0, 77], sizes = [64, 1], strides = [1, 1]} : vector<64x128xf32> to vector<64x1xf32>
    %544 = vector.broadcast %543 : vector<64x1xf32> to vector<64x64xf32>
    %545 = vector.broadcast %6 : vector<1x64xf32> to vector<64x64xf32>
    %546 = arith.subf %544, %545 : vector<64x64xf32>
    %547 = tpu.concatenate %542, %546 in 1 : vector<64x64xf32>, vector<64x64xf32> -> vector<64x128xf32>
    %cst_79 = arith.constant -1.260000e+01 : f32
    %548 = vector.broadcast %cst_79 : f32 to vector<64x128xf32>
    %549 = arith.mulf %548, %547 : vector<64x128xf32>
    %550 = arith.mulf %549, %547 : vector<64x128xf32>
    %551 = math.exp %550 : vector<64x128xf32>
    %c0_80 = arith.constant 0 : index
    %c4864 = arith.constant 4864 : index
    %552 = vector.load %arg2[%c0_80, %c4864] : memref<64x8192xf32, #tpu.memory_space<vmem>>, vector<64x128xf32>
    tpu.vector_store %arg2[%c0_80, %c4864], %551 {strides = array<i32>} : memref<64x8192xf32, #tpu.memory_space<vmem>>, vector<64x128xf32>,
    %553 = vector.extract_strided_slice %0 {offsets = [0, 78], sizes = [64, 1], strides = [1, 1]} : vector<64x128xf32> to vector<64x1xf32>
    %554 = vector.broadcast %553 : vector<64x1xf32> to vector<64x64xf32>
    %555 = vector.broadcast %6 : vector<1x64xf32> to vector<64x64xf32>
    %556 = arith.subf %554, %555 : vector<64x64xf32>
    %557 = vector.extract_strided_slice %0 {offsets = [0, 79], sizes = [64, 1], strides = [1, 1]} : vector<64x128xf32> to vector<64x1xf32>
    %558 = vector.broadcast %557 : vector<64x1xf32> to vector<64x64xf32>
    %559 = vector.broadcast %6 : vector<1x64xf32> to vector<64x64xf32>
    %560 = arith.subf %558, %559 : vector<64x64xf32>
    %561 = tpu.concatenate %556, %560 in 1 : vector<64x64xf32>, vector<64x64xf32> -> vector<64x128xf32>
    %cst_81 = arith.constant -1.260000e+01 : f32
    %562 = vector.broadcast %cst_81 : f32 to vector<64x128xf32>
    %563 = arith.mulf %562, %561 : vector<64x128xf32>
    %564 = arith.mulf %563, %561 : vector<64x128xf32>
    %565 = math.exp %564 : vector<64x128xf32>
    %c0_82 = arith.constant 0 : index
    %c4992 = arith.constant 4992 : index
    %566 = vector.load %arg2[%c0_82, %c4992] : memref<64x8192xf32, #tpu.memory_space<vmem>>, vector<64x128xf32>
    tpu.vector_store %arg2[%c0_82, %c4992], %565 {strides = array<i32>} : memref<64x8192xf32, #tpu.memory_space<vmem>>, vector<64x128xf32>,
    %567 = vector.extract_strided_slice %0 {offsets = [0, 80], sizes = [64, 1], strides = [1, 1]} : vector<64x128xf32> to vector<64x1xf32>
    %568 = vector.broadcast %567 : vector<64x1xf32> to vector<64x64xf32>
    %569 = vector.broadcast %6 : vector<1x64xf32> to vector<64x64xf32>
    %570 = arith.subf %568, %569 : vector<64x64xf32>
    %571 = vector.extract_strided_slice %0 {offsets = [0, 81], sizes = [64, 1], strides = [1, 1]} : vector<64x128xf32> to vector<64x1xf32>
    %572 = vector.broadcast %571 : vector<64x1xf32> to vector<64x64xf32>
    %573 = vector.broadcast %6 : vector<1x64xf32> to vector<64x64xf32>
    %574 = arith.subf %572, %573 : vector<64x64xf32>
    %575 = tpu.concatenate %570, %574 in 1 : vector<64x64xf32>, vector<64x64xf32> -> vector<64x128xf32>
    %cst_83 = arith.constant -1.260000e+01 : f32
    %576 = vector.broadcast %cst_83 : f32 to vector<64x128xf32>
    %577 = arith.mulf %576, %575 : vector<64x128xf32>
    %578 = arith.mulf %577, %575 : vector<64x128xf32>
    %579 = math.exp %578 : vector<64x128xf32>
    %c0_84 = arith.constant 0 : index
    %c5120 = arith.constant 5120 : index
    %580 = vector.load %arg2[%c0_84, %c5120] : memref<64x8192xf32, #tpu.memory_space<vmem>>, vector<64x128xf32>
    tpu.vector_store %arg2[%c0_84, %c5120], %579 {strides = array<i32>} : memref<64x8192xf32, #tpu.memory_space<vmem>>, vector<64x128xf32>,
    %581 = vector.extract_strided_slice %0 {offsets = [0, 82], sizes = [64, 1], strides = [1, 1]} : vector<64x128xf32> to vector<64x1xf32>
    %582 = vector.broadcast %581 : vector<64x1xf32> to vector<64x64xf32>
    %583 = vector.broadcast %6 : vector<1x64xf32> to vector<64x64xf32>
    %584 = arith.subf %582, %583 : vector<64x64xf32>
    %585 = vector.extract_strided_slice %0 {offsets = [0, 83], sizes = [64, 1], strides = [1, 1]} : vector<64x128xf32> to vector<64x1xf32>
    %586 = vector.broadcast %585 : vector<64x1xf32> to vector<64x64xf32>
    %587 = vector.broadcast %6 : vector<1x64xf32> to vector<64x64xf32>
    %588 = arith.subf %586, %587 : vector<64x64xf32>
    %589 = tpu.concatenate %584, %588 in 1 : vector<64x64xf32>, vector<64x64xf32> -> vector<64x128xf32>
    %cst_85 = arith.constant -1.260000e+01 : f32
    %590 = vector.broadcast %cst_85 : f32 to vector<64x128xf32>
    %591 = arith.mulf %590, %589 : vector<64x128xf32>
    %592 = arith.mulf %591, %589 : vector<64x128xf32>
    %593 = math.exp %592 : vector<64x128xf32>
    %c0_86 = arith.constant 0 : index
    %c5248 = arith.constant 5248 : index
    %594 = vector.load %arg2[%c0_86, %c5248] : memref<64x8192xf32, #tpu.memory_space<vmem>>, vector<64x128xf32>
    tpu.vector_store %arg2[%c0_86, %c5248], %593 {strides = array<i32>} : memref<64x8192xf32, #tpu.memory_space<vmem>>, vector<64x128xf32>,
    %595 = vector.extract_strided_slice %0 {offsets = [0, 84], sizes = [64, 1], strides = [1, 1]} : vector<64x128xf32> to vector<64x1xf32>
    %596 = vector.broadcast %595 : vector<64x1xf32> to vector<64x64xf32>
    %597 = vector.broadcast %6 : vector<1x64xf32> to vector<64x64xf32>
    %598 = arith.subf %596, %597 : vector<64x64xf32>
    %599 = vector.extract_strided_slice %0 {offsets = [0, 85], sizes = [64, 1], strides = [1, 1]} : vector<64x128xf32> to vector<64x1xf32>
    %600 = vector.broadcast %599 : vector<64x1xf32> to vector<64x64xf32>
    %601 = vector.broadcast %6 : vector<1x64xf32> to vector<64x64xf32>
    %602 = arith.subf %600, %601 : vector<64x64xf32>
    %603 = tpu.concatenate %598, %602 in 1 : vector<64x64xf32>, vector<64x64xf32> -> vector<64x128xf32>
    %cst_87 = arith.constant -1.260000e+01 : f32
    %604 = vector.broadcast %cst_87 : f32 to vector<64x128xf32>
    %605 = arith.mulf %604, %603 : vector<64x128xf32>
    %606 = arith.mulf %605, %603 : vector<64x128xf32>
    %607 = math.exp %606 : vector<64x128xf32>
    %c0_88 = arith.constant 0 : index
    %c5376 = arith.constant 5376 : index
    %608 = vector.load %arg2[%c0_88, %c5376] : memref<64x8192xf32, #tpu.memory_space<vmem>>, vector<64x128xf32>
    tpu.vector_store %arg2[%c0_88, %c5376], %607 {strides = array<i32>} : memref<64x8192xf32, #tpu.memory_space<vmem>>, vector<64x128xf32>,
    %609 = vector.extract_strided_slice %0 {offsets = [0, 86], sizes = [64, 1], strides = [1, 1]} : vector<64x128xf32> to vector<64x1xf32>
    %610 = vector.broadcast %609 : vector<64x1xf32> to vector<64x64xf32>
    %611 = vector.broadcast %6 : vector<1x64xf32> to vector<64x64xf32>
    %612 = arith.subf %610, %611 : vector<64x64xf32>
    %613 = vector.extract_strided_slice %0 {offsets = [0, 87], sizes = [64, 1], strides = [1, 1]} : vector<64x128xf32> to vector<64x1xf32>
    %614 = vector.broadcast %613 : vector<64x1xf32> to vector<64x64xf32>
    %615 = vector.broadcast %6 : vector<1x64xf32> to vector<64x64xf32>
    %616 = arith.subf %614, %615 : vector<64x64xf32>
    %617 = tpu.concatenate %612, %616 in 1 : vector<64x64xf32>, vector<64x64xf32> -> vector<64x128xf32>
    %cst_89 = arith.constant -1.260000e+01 : f32
    %618 = vector.broadcast %cst_89 : f32 to vector<64x128xf32>
    %619 = arith.mulf %618, %617 : vector<64x128xf32>
    %620 = arith.mulf %619, %617 : vector<64x128xf32>
    %621 = math.exp %620 : vector<64x128xf32>
    %c0_90 = arith.constant 0 : index
    %c5504 = arith.constant 5504 : index
    %622 = vector.load %arg2[%c0_90, %c5504] : memref<64x8192xf32, #tpu.memory_space<vmem>>, vector<64x128xf32>
    tpu.vector_store %arg2[%c0_90, %c5504], %621 {strides = array<i32>} : memref<64x8192xf32, #tpu.memory_space<vmem>>, vector<64x128xf32>,
    %623 = vector.extract_strided_slice %0 {offsets = [0, 88], sizes = [64, 1], strides = [1, 1]} : vector<64x128xf32> to vector<64x1xf32>
    %624 = vector.broadcast %623 : vector<64x1xf32> to vector<64x64xf32>
    %625 = vector.broadcast %6 : vector<1x64xf32> to vector<64x64xf32>
    %626 = arith.subf %624, %625 : vector<64x64xf32>
    %627 = vector.extract_strided_slice %0 {offsets = [0, 89], sizes = [64, 1], strides = [1, 1]} : vector<64x128xf32> to vector<64x1xf32>
    %628 = vector.broadcast %627 : vector<64x1xf32> to vector<64x64xf32>
    %629 = vector.broadcast %6 : vector<1x64xf32> to vector<64x64xf32>
    %630 = arith.subf %628, %629 : vector<64x64xf32>
    %631 = tpu.concatenate %626, %630 in 1 : vector<64x64xf32>, vector<64x64xf32> -> vector<64x128xf32>
    %cst_91 = arith.constant -1.260000e+01 : f32
    %632 = vector.broadcast %cst_91 : f32 to vector<64x128xf32>
    %633 = arith.mulf %632, %631 : vector<64x128xf32>
    %634 = arith.mulf %633, %631 : vector<64x128xf32>
    %635 = math.exp %634 : vector<64x128xf32>
    %c0_92 = arith.constant 0 : index
    %c5632 = arith.constant 5632 : index
    %636 = vector.load %arg2[%c0_92, %c5632] : memref<64x8192xf32, #tpu.memory_space<vmem>>, vector<64x128xf32>
    tpu.vector_store %arg2[%c0_92, %c5632], %635 {strides = array<i32>} : memref<64x8192xf32, #tpu.memory_space<vmem>>, vector<64x128xf32>,
    %637 = vector.extract_strided_slice %0 {offsets = [0, 90], sizes = [64, 1], strides = [1, 1]} : vector<64x128xf32> to vector<64x1xf32>
    %638 = vector.broadcast %637 : vector<64x1xf32> to vector<64x64xf32>
    %639 = vector.broadcast %6 : vector<1x64xf32> to vector<64x64xf32>
    %640 = arith.subf %638, %639 : vector<64x64xf32>
    %641 = vector.extract_strided_slice %0 {offsets = [0, 91], sizes = [64, 1], strides = [1, 1]} : vector<64x128xf32> to vector<64x1xf32>
    %642 = vector.broadcast %641 : vector<64x1xf32> to vector<64x64xf32>
    %643 = vector.broadcast %6 : vector<1x64xf32> to vector<64x64xf32>
    %644 = arith.subf %642, %643 : vector<64x64xf32>
    %645 = tpu.concatenate %640, %644 in 1 : vector<64x64xf32>, vector<64x64xf32> -> vector<64x128xf32>
    %cst_93 = arith.constant -1.260000e+01 : f32
    %646 = vector.broadcast %cst_93 : f32 to vector<64x128xf32>
    %647 = arith.mulf %646, %645 : vector<64x128xf32>
    %648 = arith.mulf %647, %645 : vector<64x128xf32>
    %649 = math.exp %648 : vector<64x128xf32>
    %c0_94 = arith.constant 0 : index
    %c5760 = arith.constant 5760 : index
    %650 = vector.load %arg2[%c0_94, %c5760] : memref<64x8192xf32, #tpu.memory_space<vmem>>, vector<64x128xf32>
    tpu.vector_store %arg2[%c0_94, %c5760], %649 {strides = array<i32>} : memref<64x8192xf32, #tpu.memory_space<vmem>>, vector<64x128xf32>,
    %651 = vector.extract_strided_slice %0 {offsets = [0, 92], sizes = [64, 1], strides = [1, 1]} : vector<64x128xf32> to vector<64x1xf32>
    %652 = vector.broadcast %651 : vector<64x1xf32> to vector<64x64xf32>
    %653 = vector.broadcast %6 : vector<1x64xf32> to vector<64x64xf32>
    %654 = arith.subf %652, %653 : vector<64x64xf32>
    %655 = vector.extract_strided_slice %0 {offsets = [0, 93], sizes = [64, 1], strides = [1, 1]} : vector<64x128xf32> to vector<64x1xf32>
    %656 = vector.broadcast %655 : vector<64x1xf32> to vector<64x64xf32>
    %657 = vector.broadcast %6 : vector<1x64xf32> to vector<64x64xf32>
    %658 = arith.subf %656, %657 : vector<64x64xf32>
    %659 = tpu.concatenate %654, %658 in 1 : vector<64x64xf32>, vector<64x64xf32> -> vector<64x128xf32>
    %cst_95 = arith.constant -1.260000e+01 : f32
    %660 = vector.broadcast %cst_95 : f32 to vector<64x128xf32>
    %661 = arith.mulf %660, %659 : vector<64x128xf32>
    %662 = arith.mulf %661, %659 : vector<64x128xf32>
    %663 = math.exp %662 : vector<64x128xf32>
    %c0_96 = arith.constant 0 : index
    %c5888 = arith.constant 5888 : index
    %664 = vector.load %arg2[%c0_96, %c5888] : memref<64x8192xf32, #tpu.memory_space<vmem>>, vector<64x128xf32>
    tpu.vector_store %arg2[%c0_96, %c5888], %663 {strides = array<i32>} : memref<64x8192xf32, #tpu.memory_space<vmem>>, vector<64x128xf32>,
    %665 = vector.extract_strided_slice %0 {offsets = [0, 94], sizes = [64, 1], strides = [1, 1]} : vector<64x128xf32> to vector<64x1xf32>
    %666 = vector.broadcast %665 : vector<64x1xf32> to vector<64x64xf32>
    %667 = vector.broadcast %6 : vector<1x64xf32> to vector<64x64xf32>
    %668 = arith.subf %666, %667 : vector<64x64xf32>
    %669 = vector.extract_strided_slice %0 {offsets = [0, 95], sizes = [64, 1], strides = [1, 1]} : vector<64x128xf32> to vector<64x1xf32>
    %670 = vector.broadcast %669 : vector<64x1xf32> to vector<64x64xf32>
    %671 = vector.broadcast %6 : vector<1x64xf32> to vector<64x64xf32>
    %672 = arith.subf %670, %671 : vector<64x64xf32>
    %673 = tpu.concatenate %668, %672 in 1 : vector<64x64xf32>, vector<64x64xf32> -> vector<64x128xf32>
    %cst_97 = arith.constant -1.260000e+01 : f32
    %674 = vector.broadcast %cst_97 : f32 to vector<64x128xf32>
    %675 = arith.mulf %674, %673 : vector<64x128xf32>
    %676 = arith.mulf %675, %673 : vector<64x128xf32>
    %677 = math.exp %676 : vector<64x128xf32>
    %c0_98 = arith.constant 0 : index
    %c6016 = arith.constant 6016 : index
    %678 = vector.load %arg2[%c0_98, %c6016] : memref<64x8192xf32, #tpu.memory_space<vmem>>, vector<64x128xf32>
    tpu.vector_store %arg2[%c0_98, %c6016], %677 {strides = array<i32>} : memref<64x8192xf32, #tpu.memory_space<vmem>>, vector<64x128xf32>,
    %679 = vector.extract_strided_slice %0 {offsets = [0, 96], sizes = [64, 1], strides = [1, 1]} : vector<64x128xf32> to vector<64x1xf32>
    %680 = vector.broadcast %679 : vector<64x1xf32> to vector<64x64xf32>
    %681 = vector.broadcast %6 : vector<1x64xf32> to vector<64x64xf32>
    %682 = arith.subf %680, %681 : vector<64x64xf32>
    %683 = vector.extract_strided_slice %0 {offsets = [0, 97], sizes = [64, 1], strides = [1, 1]} : vector<64x128xf32> to vector<64x1xf32>
    %684 = vector.broadcast %683 : vector<64x1xf32> to vector<64x64xf32>
    %685 = vector.broadcast %6 : vector<1x64xf32> to vector<64x64xf32>
    %686 = arith.subf %684, %685 : vector<64x64xf32>
    %687 = tpu.concatenate %682, %686 in 1 : vector<64x64xf32>, vector<64x64xf32> -> vector<64x128xf32>
    %cst_99 = arith.constant -1.260000e+01 : f32
    %688 = vector.broadcast %cst_99 : f32 to vector<64x128xf32>
    %689 = arith.mulf %688, %687 : vector<64x128xf32>
    %690 = arith.mulf %689, %687 : vector<64x128xf32>
    %691 = math.exp %690 : vector<64x128xf32>
    %c0_100 = arith.constant 0 : index
    %c6144 = arith.constant 6144 : index
    %692 = vector.load %arg2[%c0_100, %c6144] : memref<64x8192xf32, #tpu.memory_space<vmem>>, vector<64x128xf32>
    tpu.vector_store %arg2[%c0_100, %c6144], %691 {strides = array<i32>} : memref<64x8192xf32, #tpu.memory_space<vmem>>, vector<64x128xf32>,
    %693 = vector.extract_strided_slice %0 {offsets = [0, 98], sizes = [64, 1], strides = [1, 1]} : vector<64x128xf32> to vector<64x1xf32>
    %694 = vector.broadcast %693 : vector<64x1xf32> to vector<64x64xf32>
    %695 = vector.broadcast %6 : vector<1x64xf32> to vector<64x64xf32>
    %696 = arith.subf %694, %695 : vector<64x64xf32>
    %697 = vector.extract_strided_slice %0 {offsets = [0, 99], sizes = [64, 1], strides = [1, 1]} : vector<64x128xf32> to vector<64x1xf32>
    %698 = vector.broadcast %697 : vector<64x1xf32> to vector<64x64xf32>
    %699 = vector.broadcast %6 : vector<1x64xf32> to vector<64x64xf32>
    %700 = arith.subf %698, %699 : vector<64x64xf32>
    %701 = tpu.concatenate %696, %700 in 1 : vector<64x64xf32>, vector<64x64xf32> -> vector<64x128xf32>
    %cst_101 = arith.constant -1.260000e+01 : f32
    %702 = vector.broadcast %cst_101 : f32 to vector<64x128xf32>
    %703 = arith.mulf %702, %701 : vector<64x128xf32>
    %704 = arith.mulf %703, %701 : vector<64x128xf32>
    %705 = math.exp %704 : vector<64x128xf32>
    %c0_102 = arith.constant 0 : index
    %c6272 = arith.constant 6272 : index
    %706 = vector.load %arg2[%c0_102, %c6272] : memref<64x8192xf32, #tpu.memory_space<vmem>>, vector<64x128xf32>
    tpu.vector_store %arg2[%c0_102, %c6272], %705 {strides = array<i32>} : memref<64x8192xf32, #tpu.memory_space<vmem>>, vector<64x128xf32>,
    %707 = vector.extract_strided_slice %0 {offsets = [0, 100], sizes = [64, 1], strides = [1, 1]} : vector<64x128xf32> to vector<64x1xf32>
    %708 = vector.broadcast %707 : vector<64x1xf32> to vector<64x64xf32>
    %709 = vector.broadcast %6 : vector<1x64xf32> to vector<64x64xf32>
    %710 = arith.subf %708, %709 : vector<64x64xf32>
    %711 = vector.extract_strided_slice %0 {offsets = [0, 101], sizes = [64, 1], strides = [1, 1]} : vector<64x128xf32> to vector<64x1xf32>
    %712 = vector.broadcast %711 : vector<64x1xf32> to vector<64x64xf32>
    %713 = vector.broadcast %6 : vector<1x64xf32> to vector<64x64xf32>
    %714 = arith.subf %712, %713 : vector<64x64xf32>
    %715 = tpu.concatenate %710, %714 in 1 : vector<64x64xf32>, vector<64x64xf32> -> vector<64x128xf32>
    %cst_103 = arith.constant -1.260000e+01 : f32
    %716 = vector.broadcast %cst_103 : f32 to vector<64x128xf32>
    %717 = arith.mulf %716, %715 : vector<64x128xf32>
    %718 = arith.mulf %717, %715 : vector<64x128xf32>
    %719 = math.exp %718 : vector<64x128xf32>
    %c0_104 = arith.constant 0 : index
    %c6400 = arith.constant 6400 : index
    %720 = vector.load %arg2[%c0_104, %c6400] : memref<64x8192xf32, #tpu.memory_space<vmem>>, vector<64x128xf32>
    tpu.vector_store %arg2[%c0_104, %c6400], %719 {strides = array<i32>} : memref<64x8192xf32, #tpu.memory_space<vmem>>, vector<64x128xf32>,
    %721 = vector.extract_strided_slice %0 {offsets = [0, 102], sizes = [64, 1], strides = [1, 1]} : vector<64x128xf32> to vector<64x1xf32>
    %722 = vector.broadcast %721 : vector<64x1xf32> to vector<64x64xf32>
    %723 = vector.broadcast %6 : vector<1x64xf32> to vector<64x64xf32>
    %724 = arith.subf %722, %723 : vector<64x64xf32>
    %725 = vector.extract_strided_slice %0 {offsets = [0, 103], sizes = [64, 1], strides = [1, 1]} : vector<64x128xf32> to vector<64x1xf32>
    %726 = vector.broadcast %725 : vector<64x1xf32> to vector<64x64xf32>
    %727 = vector.broadcast %6 : vector<1x64xf32> to vector<64x64xf32>
    %728 = arith.subf %726, %727 : vector<64x64xf32>
    %729 = tpu.concatenate %724, %728 in 1 : vector<64x64xf32>, vector<64x64xf32> -> vector<64x128xf32>
    %cst_105 = arith.constant -1.260000e+01 : f32
    %730 = vector.broadcast %cst_105 : f32 to vector<64x128xf32>
    %731 = arith.mulf %730, %729 : vector<64x128xf32>
    %732 = arith.mulf %731, %729 : vector<64x128xf32>
    %733 = math.exp %732 : vector<64x128xf32>
    %c0_106 = arith.constant 0 : index
    %c6528 = arith.constant 6528 : index
    %734 = vector.load %arg2[%c0_106, %c6528] : memref<64x8192xf32, #tpu.memory_space<vmem>>, vector<64x128xf32>
    tpu.vector_store %arg2[%c0_106, %c6528], %733 {strides = array<i32>} : memref<64x8192xf32, #tpu.memory_space<vmem>>, vector<64x128xf32>,
    %735 = vector.extract_strided_slice %0 {offsets = [0, 104], sizes = [64, 1], strides = [1, 1]} : vector<64x128xf32> to vector<64x1xf32>
    %736 = vector.broadcast %735 : vector<64x1xf32> to vector<64x64xf32>
    %737 = vector.broadcast %6 : vector<1x64xf32> to vector<64x64xf32>
    %738 = arith.subf %736, %737 : vector<64x64xf32>
    %739 = vector.extract_strided_slice %0 {offsets = [0, 105], sizes = [64, 1], strides = [1, 1]} : vector<64x128xf32> to vector<64x1xf32>
    %740 = vector.broadcast %739 : vector<64x1xf32> to vector<64x64xf32>
    %741 = vector.broadcast %6 : vector<1x64xf32> to vector<64x64xf32>
    %742 = arith.subf %740, %741 : vector<64x64xf32>
    %743 = tpu.concatenate %738, %742 in 1 : vector<64x64xf32>, vector<64x64xf32> -> vector<64x128xf32>
    %cst_107 = arith.constant -1.260000e+01 : f32
    %744 = vector.broadcast %cst_107 : f32 to vector<64x128xf32>
    %745 = arith.mulf %744, %743 : vector<64x128xf32>
    %746 = arith.mulf %745, %743 : vector<64x128xf32>
    %747 = math.exp %746 : vector<64x128xf32>
    %c0_108 = arith.constant 0 : index
    %c6656 = arith.constant 6656 : index
    %748 = vector.load %arg2[%c0_108, %c6656] : memref<64x8192xf32, #tpu.memory_space<vmem>>, vector<64x128xf32>
    tpu.vector_store %arg2[%c0_108, %c6656], %747 {strides = array<i32>} : memref<64x8192xf32, #tpu.memory_space<vmem>>, vector<64x128xf32>,
    %749 = vector.extract_strided_slice %0 {offsets = [0, 106], sizes = [64, 1], strides = [1, 1]} : vector<64x128xf32> to vector<64x1xf32>
    %750 = vector.broadcast %749 : vector<64x1xf32> to vector<64x64xf32>
    %751 = vector.broadcast %6 : vector<1x64xf32> to vector<64x64xf32>
    %752 = arith.subf %750, %751 : vector<64x64xf32>
    %753 = vector.extract_strided_slice %0 {offsets = [0, 107], sizes = [64, 1], strides = [1, 1]} : vector<64x128xf32> to vector<64x1xf32>
    %754 = vector.broadcast %753 : vector<64x1xf32> to vector<64x64xf32>
    %755 = vector.broadcast %6 : vector<1x64xf32> to vector<64x64xf32>
    %756 = arith.subf %754, %755 : vector<64x64xf32>
    %757 = tpu.concatenate %752, %756 in 1 : vector<64x64xf32>, vector<64x64xf32> -> vector<64x128xf32>
    %cst_109 = arith.constant -1.260000e+01 : f32
    %758 = vector.broadcast %cst_109 : f32 to vector<64x128xf32>
    %759 = arith.mulf %758, %757 : vector<64x128xf32>
    %760 = arith.mulf %759, %757 : vector<64x128xf32>
    %761 = math.exp %760 : vector<64x128xf32>
    %c0_110 = arith.constant 0 : index
    %c6784 = arith.constant 6784 : index
    %762 = vector.load %arg2[%c0_110, %c6784] : memref<64x8192xf32, #tpu.memory_space<vmem>>, vector<64x128xf32>
    tpu.vector_store %arg2[%c0_110, %c6784], %761 {strides = array<i32>} : memref<64x8192xf32, #tpu.memory_space<vmem>>, vector<64x128xf32>,
    %763 = vector.extract_strided_slice %0 {offsets = [0, 108], sizes = [64, 1], strides = [1, 1]} : vector<64x128xf32> to vector<64x1xf32>
    %764 = vector.broadcast %763 : vector<64x1xf32> to vector<64x64xf32>
    %765 = vector.broadcast %6 : vector<1x64xf32> to vector<64x64xf32>
    %766 = arith.subf %764, %765 : vector<64x64xf32>
    %767 = vector.extract_strided_slice %0 {offsets = [0, 109], sizes = [64, 1], strides = [1, 1]} : vector<64x128xf32> to vector<64x1xf32>
    %768 = vector.broadcast %767 : vector<64x1xf32> to vector<64x64xf32>
    %769 = vector.broadcast %6 : vector<1x64xf32> to vector<64x64xf32>
    %770 = arith.subf %768, %769 : vector<64x64xf32>
    %771 = tpu.concatenate %766, %770 in 1 : vector<64x64xf32>, vector<64x64xf32> -> vector<64x128xf32>
    %cst_111 = arith.constant -1.260000e+01 : f32
    %772 = vector.broadcast %cst_111 : f32 to vector<64x128xf32>
    %773 = arith.mulf %772, %771 : vector<64x128xf32>
    %774 = arith.mulf %773, %771 : vector<64x128xf32>
    %775 = math.exp %774 : vector<64x128xf32>
    %c0_112 = arith.constant 0 : index
    %c6912 = arith.constant 6912 : index
    %776 = vector.load %arg2[%c0_112, %c6912] : memref<64x8192xf32, #tpu.memory_space<vmem>>, vector<64x128xf32>
    tpu.vector_store %arg2[%c0_112, %c6912], %775 {strides = array<i32>} : memref<64x8192xf32, #tpu.memory_space<vmem>>, vector<64x128xf32>,
    %777 = vector.extract_strided_slice %0 {offsets = [0, 110], sizes = [64, 1], strides = [1, 1]} : vector<64x128xf32> to vector<64x1xf32>
    %778 = vector.broadcast %777 : vector<64x1xf32> to vector<64x64xf32>
    %779 = vector.broadcast %6 : vector<1x64xf32> to vector<64x64xf32>
    %780 = arith.subf %778, %779 : vector<64x64xf32>
    %781 = vector.extract_strided_slice %0 {offsets = [0, 111], sizes = [64, 1], strides = [1, 1]} : vector<64x128xf32> to vector<64x1xf32>
    %782 = vector.broadcast %781 : vector<64x1xf32> to vector<64x64xf32>
    %783 = vector.broadcast %6 : vector<1x64xf32> to vector<64x64xf32>
    %784 = arith.subf %782, %783 : vector<64x64xf32>
    %785 = tpu.concatenate %780, %784 in 1 : vector<64x64xf32>, vector<64x64xf32> -> vector<64x128xf32>
    %cst_113 = arith.constant -1.260000e+01 : f32
    %786 = vector.broadcast %cst_113 : f32 to vector<64x128xf32>
    %787 = arith.mulf %786, %785 : vector<64x128xf32>
    %788 = arith.mulf %787, %785 : vector<64x128xf32>
    %789 = math.exp %788 : vector<64x128xf32>
    %c0_114 = arith.constant 0 : index
    %c7040 = arith.constant 7040 : index
    %790 = vector.load %arg2[%c0_114, %c7040] : memref<64x8192xf32, #tpu.memory_space<vmem>>, vector<64x128xf32>
    tpu.vector_store %arg2[%c0_114, %c7040], %789 {strides = array<i32>} : memref<64x8192xf32, #tpu.memory_space<vmem>>, vector<64x128xf32>,
    %791 = vector.extract_strided_slice %0 {offsets = [0, 112], sizes = [64, 1], strides = [1, 1]} : vector<64x128xf32> to vector<64x1xf32>
    %792 = vector.broadcast %791 : vector<64x1xf32> to vector<64x64xf32>
    %793 = vector.broadcast %6 : vector<1x64xf32> to vector<64x64xf32>
    %794 = arith.subf %792, %793 : vector<64x64xf32>
    %795 = vector.extract_strided_slice %0 {offsets = [0, 113], sizes = [64, 1], strides = [1, 1]} : vector<64x128xf32> to vector<64x1xf32>
    %796 = vector.broadcast %795 : vector<64x1xf32> to vector<64x64xf32>
    %797 = vector.broadcast %6 : vector<1x64xf32> to vector<64x64xf32>
    %798 = arith.subf %796, %797 : vector<64x64xf32>
    %799 = tpu.concatenate %794, %798 in 1 : vector<64x64xf32>, vector<64x64xf32> -> vector<64x128xf32>
    %cst_115 = arith.constant -1.260000e+01 : f32
    %800 = vector.broadcast %cst_115 : f32 to vector<64x128xf32>
    %801 = arith.mulf %800, %799 : vector<64x128xf32>
    %802 = arith.mulf %801, %799 : vector<64x128xf32>
    %803 = math.exp %802 : vector<64x128xf32>
    %c0_116 = arith.constant 0 : index
    %c7168 = arith.constant 7168 : index
    %804 = vector.load %arg2[%c0_116, %c7168] : memref<64x8192xf32, #tpu.memory_space<vmem>>, vector<64x128xf32>
    tpu.vector_store %arg2[%c0_116, %c7168], %803 {strides = array<i32>} : memref<64x8192xf32, #tpu.memory_space<vmem>>, vector<64x128xf32>,
    %805 = vector.extract_strided_slice %0 {offsets = [0, 114], sizes = [64, 1], strides = [1, 1]} : vector<64x128xf32> to vector<64x1xf32>
    %806 = vector.broadcast %805 : vector<64x1xf32> to vector<64x64xf32>
    %807 = vector.broadcast %6 : vector<1x64xf32> to vector<64x64xf32>
    %808 = arith.subf %806, %807 : vector<64x64xf32>
    %809 = vector.extract_strided_slice %0 {offsets = [0, 115], sizes = [64, 1], strides = [1, 1]} : vector<64x128xf32> to vector<64x1xf32>
    %810 = vector.broadcast %809 : vector<64x1xf32> to vector<64x64xf32>
    %811 = vector.broadcast %6 : vector<1x64xf32> to vector<64x64xf32>
    %812 = arith.subf %810, %811 : vector<64x64xf32>
    %813 = tpu.concatenate %808, %812 in 1 : vector<64x64xf32>, vector<64x64xf32> -> vector<64x128xf32>
    %cst_117 = arith.constant -1.260000e+01 : f32
    %814 = vector.broadcast %cst_117 : f32 to vector<64x128xf32>
    %815 = arith.mulf %814, %813 : vector<64x128xf32>
    %816 = arith.mulf %815, %813 : vector<64x128xf32>
    %817 = math.exp %816 : vector<64x128xf32>
    %c0_118 = arith.constant 0 : index
    %c7296 = arith.constant 7296 : index
    %818 = vector.load %arg2[%c0_118, %c7296] : memref<64x8192xf32, #tpu.memory_space<vmem>>, vector<64x128xf32>
    tpu.vector_store %arg2[%c0_118, %c7296], %817 {strides = array<i32>} : memref<64x8192xf32, #tpu.memory_space<vmem>>, vector<64x128xf32>,
    %819 = vector.extract_strided_slice %0 {offsets = [0, 116], sizes = [64, 1], strides = [1, 1]} : vector<64x128xf32> to vector<64x1xf32>
    %820 = vector.broadcast %819 : vector<64x1xf32> to vector<64x64xf32>
    %821 = vector.broadcast %6 : vector<1x64xf32> to vector<64x64xf32>
    %822 = arith.subf %820, %821 : vector<64x64xf32>
    %823 = vector.extract_strided_slice %0 {offsets = [0, 117], sizes = [64, 1], strides = [1, 1]} : vector<64x128xf32> to vector<64x1xf32>
    %824 = vector.broadcast %823 : vector<64x1xf32> to vector<64x64xf32>
    %825 = vector.broadcast %6 : vector<1x64xf32> to vector<64x64xf32>
    %826 = arith.subf %824, %825 : vector<64x64xf32>
    %827 = tpu.concatenate %822, %826 in 1 : vector<64x64xf32>, vector<64x64xf32> -> vector<64x128xf32>
    %cst_119 = arith.constant -1.260000e+01 : f32
    %828 = vector.broadcast %cst_119 : f32 to vector<64x128xf32>
    %829 = arith.mulf %828, %827 : vector<64x128xf32>
    %830 = arith.mulf %829, %827 : vector<64x128xf32>
    %831 = math.exp %830 : vector<64x128xf32>
    %c0_120 = arith.constant 0 : index
    %c7424 = arith.constant 7424 : index
    %832 = vector.load %arg2[%c0_120, %c7424] : memref<64x8192xf32, #tpu.memory_space<vmem>>, vector<64x128xf32>
    tpu.vector_store %arg2[%c0_120, %c7424], %831 {strides = array<i32>} : memref<64x8192xf32, #tpu.memory_space<vmem>>, vector<64x128xf32>,
    %833 = vector.extract_strided_slice %0 {offsets = [0, 118], sizes = [64, 1], strides = [1, 1]} : vector<64x128xf32> to vector<64x1xf32>
    %834 = vector.broadcast %833 : vector<64x1xf32> to vector<64x64xf32>
    %835 = vector.broadcast %6 : vector<1x64xf32> to vector<64x64xf32>
    %836 = arith.subf %834, %835 : vector<64x64xf32>
    %837 = vector.extract_strided_slice %0 {offsets = [0, 119], sizes = [64, 1], strides = [1, 1]} : vector<64x128xf32> to vector<64x1xf32>
    %838 = vector.broadcast %837 : vector<64x1xf32> to vector<64x64xf32>
    %839 = vector.broadcast %6 : vector<1x64xf32> to vector<64x64xf32>
    %840 = arith.subf %838, %839 : vector<64x64xf32>
    %841 = tpu.concatenate %836, %840 in 1 : vector<64x64xf32>, vector<64x64xf32> -> vector<64x128xf32>
    %cst_121 = arith.constant -1.260000e+01 : f32
    %842 = vector.broadcast %cst_121 : f32 to vector<64x128xf32>
    %843 = arith.mulf %842, %841 : vector<64x128xf32>
    %844 = arith.mulf %843, %841 : vector<64x128xf32>
    %845 = math.exp %844 : vector<64x128xf32>
    %c0_122 = arith.constant 0 : index
    %c7552 = arith.constant 7552 : index
    %846 = vector.load %arg2[%c0_122, %c7552] : memref<64x8192xf32, #tpu.memory_space<vmem>>, vector<64x128xf32>
    tpu.vector_store %arg2[%c0_122, %c7552], %845 {strides = array<i32>} : memref<64x8192xf32, #tpu.memory_space<vmem>>, vector<64x128xf32>,
    %847 = vector.extract_strided_slice %0 {offsets = [0, 120], sizes = [64, 1], strides = [1, 1]} : vector<64x128xf32> to vector<64x1xf32>
    %848 = vector.broadcast %847 : vector<64x1xf32> to vector<64x64xf32>
    %849 = vector.broadcast %6 : vector<1x64xf32> to vector<64x64xf32>
    %850 = arith.subf %848, %849 : vector<64x64xf32>
    %851 = vector.extract_strided_slice %0 {offsets = [0, 121], sizes = [64, 1], strides = [1, 1]} : vector<64x128xf32> to vector<64x1xf32>
    %852 = vector.broadcast %851 : vector<64x1xf32> to vector<64x64xf32>
    %853 = vector.broadcast %6 : vector<1x64xf32> to vector<64x64xf32>
    %854 = arith.subf %852, %853 : vector<64x64xf32>
    %855 = tpu.concatenate %850, %854 in 1 : vector<64x64xf32>, vector<64x64xf32> -> vector<64x128xf32>
    %cst_123 = arith.constant -1.260000e+01 : f32
    %856 = vector.broadcast %cst_123 : f32 to vector<64x128xf32>
    %857 = arith.mulf %856, %855 : vector<64x128xf32>
    %858 = arith.mulf %857, %855 : vector<64x128xf32>
    %859 = math.exp %858 : vector<64x128xf32>
    %c0_124 = arith.constant 0 : index
    %c7680 = arith.constant 7680 : index
    %860 = vector.load %arg2[%c0_124, %c7680] : memref<64x8192xf32, #tpu.memory_space<vmem>>, vector<64x128xf32>
    tpu.vector_store %arg2[%c0_124, %c7680], %859 {strides = array<i32>} : memref<64x8192xf32, #tpu.memory_space<vmem>>, vector<64x128xf32>,
    %861 = vector.extract_strided_slice %0 {offsets = [0, 122], sizes = [64, 1], strides = [1, 1]} : vector<64x128xf32> to vector<64x1xf32>
    %862 = vector.broadcast %861 : vector<64x1xf32> to vector<64x64xf32>
    %863 = vector.broadcast %6 : vector<1x64xf32> to vector<64x64xf32>
    %864 = arith.subf %862, %863 : vector<64x64xf32>
    %865 = vector.extract_strided_slice %0 {offsets = [0, 123], sizes = [64, 1], strides = [1, 1]} : vector<64x128xf32> to vector<64x1xf32>
    %866 = vector.broadcast %865 : vector<64x1xf32> to vector<64x64xf32>
    %867 = vector.broadcast %6 : vector<1x64xf32> to vector<64x64xf32>
    %868 = arith.subf %866, %867 : vector<64x64xf32>
    %869 = tpu.concatenate %864, %868 in 1 : vector<64x64xf32>, vector<64x64xf32> -> vector<64x128xf32>
    %cst_125 = arith.constant -1.260000e+01 : f32
    %870 = vector.broadcast %cst_125 : f32 to vector<64x128xf32>
    %871 = arith.mulf %870, %869 : vector<64x128xf32>
    %872 = arith.mulf %871, %869 : vector<64x128xf32>
    %873 = math.exp %872 : vector<64x128xf32>
    %c0_126 = arith.constant 0 : index
    %c7808 = arith.constant 7808 : index
    %874 = vector.load %arg2[%c0_126, %c7808] : memref<64x8192xf32, #tpu.memory_space<vmem>>, vector<64x128xf32>
    tpu.vector_store %arg2[%c0_126, %c7808], %873 {strides = array<i32>} : memref<64x8192xf32, #tpu.memory_space<vmem>>, vector<64x128xf32>,
    %875 = vector.extract_strided_slice %0 {offsets = [0, 124], sizes = [64, 1], strides = [1, 1]} : vector<64x128xf32> to vector<64x1xf32>
    %876 = vector.broadcast %875 : vector<64x1xf32> to vector<64x64xf32>
    %877 = vector.broadcast %6 : vector<1x64xf32> to vector<64x64xf32>
    %878 = arith.subf %876, %877 : vector<64x64xf32>
    %879 = vector.extract_strided_slice %0 {offsets = [0, 125], sizes = [64, 1], strides = [1, 1]} : vector<64x128xf32> to vector<64x1xf32>
    %880 = vector.broadcast %879 : vector<64x1xf32> to vector<64x64xf32>
    %881 = vector.broadcast %6 : vector<1x64xf32> to vector<64x64xf32>
    %882 = arith.subf %880, %881 : vector<64x64xf32>
    %883 = tpu.concatenate %878, %882 in 1 : vector<64x64xf32>, vector<64x64xf32> -> vector<64x128xf32>
    %cst_127 = arith.constant -1.260000e+01 : f32
    %884 = vector.broadcast %cst_127 : f32 to vector<64x128xf32>
    %885 = arith.mulf %884, %883 : vector<64x128xf32>
    %886 = arith.mulf %885, %883 : vector<64x128xf32>
    %887 = math.exp %886 : vector<64x128xf32>
    %c0_128 = arith.constant 0 : index
    %c7936 = arith.constant 7936 : index
    %888 = vector.load %arg2[%c0_128, %c7936] : memref<64x8192xf32, #tpu.memory_space<vmem>>, vector<64x128xf32>
    tpu.vector_store %arg2[%c0_128, %c7936], %887 {strides = array<i32>} : memref<64x8192xf32, #tpu.memory_space<vmem>>, vector<64x128xf32>,
    %889 = vector.extract_strided_slice %0 {offsets = [0, 126], sizes = [64, 1], strides = [1, 1]} : vector<64x128xf32> to vector<64x1xf32>
    %890 = vector.broadcast %889 : vector<64x1xf32> to vector<64x64xf32>
    %891 = vector.broadcast %6 : vector<1x64xf32> to vector<64x64xf32>
    %892 = arith.subf %890, %891 : vector<64x64xf32>
    %893 = vector.extract_strided_slice %0 {offsets = [0, 127], sizes = [64, 1], strides = [1, 1]} : vector<64x128xf32> to vector<64x1xf32>
    %894 = vector.broadcast %893 : vector<64x1xf32> to vector<64x64xf32>
    %895 = vector.broadcast %6 : vector<1x64xf32> to vector<64x64xf32>
    %896 = arith.subf %894, %895 : vector<64x64xf32>
    %897 = tpu.concatenate %892, %896 in 1 : vector<64x64xf32>, vector<64x64xf32> -> vector<64x128xf32>
    %cst_129 = arith.constant -1.260000e+01 : f32
    %898 = vector.broadcast %cst_129 : f32 to vector<64x128xf32>
    %899 = arith.mulf %898, %897 : vector<64x128xf32>
    %900 = arith.mulf %899, %897 : vector<64x128xf32>
    %901 = math.exp %900 : vector<64x128xf32>
    %c0_130 = arith.constant 0 : index
    %c8064 = arith.constant 8064 : index
    %902 = vector.load %arg2[%c0_130, %c8064] : memref<64x8192xf32, #tpu.memory_space<vmem>>, vector<64x128xf32>
    tpu.vector_store %arg2[%c0_130, %c8064], %901 {strides = array<i32>} : memref<64x8192xf32, #tpu.memory_space<vmem>>, vector<64x128xf32>,
    return
  }
  func.func @transform_0(%arg0: i32) -> (i32, i32) {
    %c0_i32 = arith.constant 0 : i32
    %c0_i32_0 = arith.constant 0 : i32
    return %arg0, %c0_i32 : i32, i32
  }
  func.func @transform_1(%arg0: i32) -> (i32, i32) {
    %c0_i32 = arith.constant 0 : i32
    %c0_i32_0 = arith.constant 0 : i32
    return %arg0, %c0_i32 : i32, i32
  }
}

</mosaic_0001>

<llo_original>
// kernel: tpu_custom_call.1
$region0: #{tpu_custom_call.1}
  #allocation0 [shape = 'u32[]', space=smem, size = 0x4, offset = 0x4, fixed_abs, tag = 'smem constant byte address 0x4 - core index']
  #allocation1 [shape = 'u32[144,128]{1,0:T(1,128)}', space=vmem, size = 0x12000, scoped, tag = 'internal scratch']
  %s0 = inlined_call_operand.hbm [shape: f32[192,128], index: 0, kind: input, shape index: {}]
  %s1 = inlined_call_operand.hbm [shape: f32[192,8192], index: 1, kind: output, shape index: {}]
  %s2 = sld [smem:[#allocation0]]
  $region41: #{tpu_custom_call.1} parent=0
    _
  %s4 = ssub.s32 1, %s2
  %s5 = scalar_select 0, %s4, %s2
  $region1: #{tpu_custom_call.1} parent=0
    #allocation2 [shape = 'u8[65536]{0}', space=vmem, size = 0x10000, scoped, tag = 'input window, operand 0']
    #allocation3 [shape = 's32[2]{0}', space=sflag, size = 0x8, scoped, tag = 'scoped memory for tpu_custom_call.1']
    #allocation4 [shape = 's32[2]{0}', space=sflag, size = 0x8, scoped, tag = 'scoped memory for tpu_custom_call.1']
    #allocation5 [shape = 'u8[4194304]{0}', space=vmem, size = 0x400000, scoped, tag = 'output window, operand 0']
    %6 = vsyncpa [#allocation3], 0
    %s7 = scalar_lea.sflag [#allocation3], 1
    %8 = vsyncpa %s7, 0
    %9 = vsyncpa [#allocation4], 0
    %s10 = scalar_lea.sflag [#allocation4], 1
    %11 = vsyncpa %s10, 0
    loop: start=0, step=1, limit=5
    $region2: #{tpu_custom_call.1} parent=1 // loop_pre_header
      _
    $region3: #{tpu_custom_call.1} parent=1 // loop_header
      %s13 = sphi 0, %s17
      %p14 = scmp.ge.s32.totalorder %s13, 5
      %s23 = sphi 0, %s25
      %s26 = sphi 0, %s23
      %s27 = sphi 0, %s26
      %s43 = sphi 0, %s27
      %s49 = sphi 0, %s51
      %s52 = sphi 0, %s49
      %s53 = sphi 0, %s52
      %s69 = sphi 0, %s53
    $region4: #{tpu_custom_call.1} parent=1 // loop_header_branch
      %16 = sbr.rel (%p14) target = $region8
    $region5: #{tpu_custom_call.1} parent=1 // loop_body
      %s18 = ssub.s32 %s13, 1
      %s19 = ssub.s32 %s13, 2
      %s20 = sadd.s32 %s13, 1
      %s21 = ssub.s32 %s13, %s20
      %p22 = scmp.eq.s32.totalorder %s21, 0
      %s24 = sadd.s32 %s23, 1
      %s25 = scalar_select %p22, %s23, %s24
      %p28 = pneg %p22
      %p29 = scmp.eq.s32.totalorder %s13, 2
      %p30 = por %p28, %p29
      %p31 = scmp.ne.s32.totalorder %s23, %s26
      %p32 = scmp.eq.s32.totalorder %s13, 0
      %p33 = por %p31, %p32
      %p34 = scmp.ne.s32.totalorder %s23, %s26
      %p35 = scmp.eq.s32.totalorder %s18, 2
      %p36 = por %p34, %p35
      %p37 = scmp.ne.s32.totalorder %s26, %s27
      %p38 = scmp.eq.s32.totalorder %s18, 0
      %p39 = por %p37, %p38
      %p40 = scmp.ne.s32.totalorder %s26, %s27
      %p41 = scmp.eq.s32.totalorder %s19, 2
      %p42 = por %p40, %p41
      %p44 = scmp.ne.s32.totalorder %s27, %s43
      %p45 = scmp.eq.s32.totalorder %s19, 0
      %p46 = por %p44, %p45
      %s47 = ssub.s32 %s13, %s20
      %p48 = scmp.eq.s32.totalorder %s47, 0
      %s50 = sadd.s32 %s49, 1
      %s51 = scalar_select %p48, %s49, %s50
      %p54 = pneg %p48
      %p55 = scmp.eq.s32.totalorder %s13, 2
      %p56 = por %p54, %p55
      %p57 = scmp.ne.s32.totalorder %s49, %s52
      %p58 = scmp.eq.s32.totalorder %s13, 0
      %p59 = por %p57, %p58
      %p60 = scmp.ne.s32.totalorder %s49, %s52
      %p61 = scmp.eq.s32.totalorder %s18, 2
      %p62 = por %p60, %p61
      %p63 = scmp.ne.s32.totalorder %s52, %s53
      %p64 = scmp.eq.s32.totalorder %s18, 0
      %p65 = por %p63, %p64
      %p66 = scmp.ne.s32.totalorder %s52, %s53
      %p67 = scmp.eq.s32.totalorder %s19, 2
      %p68 = por %p66, %p67
      %p70 = scmp.ne.s32.totalorder %s53, %s69
      %p71 = scmp.eq.s32.totalorder %s19, 0
      %p72 = por %p70, %p71
      %p73 = scmp.le.s32.totalorder 1, %s13
      %p74 = scmp.lt.s32.totalorder %s13, 4
      %p75 = pnand %p73, %p74
      %p76 = pneg %p75
      // Predicated region
      $region9: #{tpu_custom_call.1} parent=5 // pred_check
        _
      $region10: #{tpu_custom_call.1} parent=5 // pred_check_branch
        %78 = sbr.rel (%p75) target = $region12
      $region11: #{tpu_custom_call.1} parent=5 // pred_region
        %s79 = ssub.s32 %s13, 1
      $region12: #{tpu_custom_call.1} parent=5 // pred_fallthru
        _
      %p80 = scmp.lt.s32.totalorder %s13, 3
      // Predicated region
      $region13: #{tpu_custom_call.1} parent=5 // pred_check
        %p81 = pneg %p80
      $region14: #{tpu_custom_call.1} parent=5 // pred_check_branch
        %83 = sbr.rel (%p81) target = $region16
      $region15: #{tpu_custom_call.1} parent=5 // pred_region
        // Predicated region
        $region17: #{tpu_custom_call.1} parent=15 // pred_check
          %p84 = pneg %p33
        $region18: #{tpu_custom_call.1} parent=15 // pred_check_branch
          %86 = sbr.rel (%p84) target = $region20
        $region19: #{tpu_custom_call.1} parent=15 // pred_region
          %s87 = sand.u32 %s23, 1
          %s88 = scalar_lea.sflag [#allocation3], %s87
          %s89 = sand.u32 %s23, 1
          %s90 = smul.addr %s89, 64
          %s91 = scalar_lea.vmem [#allocation2], %s90
          %s92 = smul.u32 8, %s13
          %s94 = ssub.s32 1024, 1024
          %95 = vsyncadd %s88, %s94
          %s96 = smul.addr %s92, 128
          %s97 = scalar_lea.hbm %s0, %s96
          %s98 = sshll.u32 %s91, 4
          %s99 = int_to_ptr.vmem [resolvable:$true] %s98
          %104 = dma.hbm_to_vmem [thread:$0]  %s97, 1024, %s99, %s88, 128, 128, 8
        $region20: #{tpu_custom_call.1} parent=15 // pred_fallthru
          _
      $region16: #{tpu_custom_call.1} parent=5 // pred_fallthru
        _
      %p105 = scmp.le.s32.totalorder 1, %s13
      %p106 = scmp.lt.s32.totalorder %s13, 4
      %p107 = pnand %p105, %p106
      %p108 = pneg %p107
      // Predicated region
      $region21: #{tpu_custom_call.1} parent=5 // pred_check
        _
      $region22: #{tpu_custom_call.1} parent=5 // pred_check_branch
        %110 = sbr.rel (%p107) target = $region24
      $region23: #{tpu_custom_call.1} parent=5 // pred_region
        %s111 = ssub.s32 %s13, 1
        %s112 = sand.u32 %s26, 1
        %s113 = scalar_lea.sflag [#allocation3], %s112
        %s114 = sand.u32 %s26, 1
        %s115 = smul.addr %s114, 64
        %s116 = scalar_lea.vmem [#allocation2], %s115
        // Predicated region
        $region25: #{tpu_custom_call.1} parent=23 // pred_check
          %p117 = pneg %p39
        $region26: #{tpu_custom_call.1} parent=23 // pred_check_branch
          %119 = sbr.rel (%p117) target = $region28
        $region27: #{tpu_custom_call.1} parent=23 // pred_region
          %120 = dma.done %s113, 1024
        $region28: #{tpu_custom_call.1} parent=23 // pred_fallthru
          _
        %s121 = sand.u32 %s26, 1
        %s122 = scalar_lea.sflag [#allocation3], %s121
        %s123 = sand.u32 %s26, 1
        %s124 = smul.addr %s123, 64
        %s125 = scalar_lea.vmem [#allocation2], %s124
        %p126 = pneg %p39
        %p127 = pneg %p36
        %p128 = pneg %p65
        %p129 = pneg %p62
        %s130 = sand.u32 %s52, 1
        %s131 = scalar_lea.sflag [#allocation4], %s130
        %s132 = sand.u32 %s52, 1
        %s133 = smul.addr %s132, 4096
        %s134 = scalar_lea.vmem [#allocation5], %s133
        %s135 = smul.u32 8, %s18
        %s136 = smul.u32 8, %s18
        %v137 = vld [vmem:[%s116] sm:$0xff]
        %v138 = vld [vmem:[%s116 + $0x8] sm:$0xff]
        %v139 = vld [vmem:[%s116 + $0x10] sm:$0xff]
        %v140 = vld [vmem:[%s116 + $0x18] sm:$0xff]
        %v141 = vld [vmem:[%s116 + $0x20] sm:$0xff]
        %v142 = vld [vmem:[%s116 + $0x28] sm:$0xff]
        %v143 = vld [vmem:[%s116 + $0x30] sm:$0xff]
        %v144 = vld [vmem:[%s116 + $0x38] sm:$0xff]
        %v145 = vlaneseq
        %v146 = vand.u32 %v145, 127
        %v147 = vcvt.s32.f32 %v146
        %v148 = vmul.f32 %v147, 0.07936508
        %v149 = vadd.f32 %v148, 0.0
        %151 = vset.pattern.permute.xlu0 0
        %152 = vperm.xlu0 %151, %v137
        %v153 = vpop.permute.xlu0 %152
        %156 = vset.pattern.permute.xlu0 0
        %157 = vperm.xlu0 %156, %v138
        %v158 = vpop.permute.xlu0 %157
        %161 = vset.pattern.permute.xlu0 0
        %162 = vperm.xlu0 %161, %v139
        %v163 = vpop.permute.xlu0 %162
        %166 = vset.pattern.permute.xlu0 0
        %167 = vperm.xlu0 %166, %v140
        %v168 = vpop.permute.xlu0 %167
        %171 = vset.pattern.permute.xlu0 0
        %172 = vperm.xlu0 %171, %v141
        %v173 = vpop.permute.xlu0 %172
        %176 = vset.pattern.permute.xlu0 0
        %177 = vperm.xlu0 %176, %v142
        %v178 = vpop.permute.xlu0 %177
        %181 = vset.pattern.permute.xlu0 0
        %182 = vperm.xlu0 %181, %v143
        %v183 = vpop.permute.xlu0 %182
        %186 = vset.pattern.permute.xlu0 0
        %187 = vperm.xlu0 %186, %v144
        %v188 = vpop.permute.xlu0 %187
        %v190 = vsub.f32 %v153, %v149
        %v191 = vsub.f32 %v158, %v149
        %v192 = vsub.f32 %v163, %v149
        %v193 = vsub.f32 %v168, %v149
        %v194 = vsub.f32 %v173, %v149
        %v195 = vsub.f32 %v178, %v149
        %v196 = vsub.f32 %v183, %v149
        %v197 = vsub.f32 %v188, %v149
        %198 = vset.pattern.permute.xlu0 1
        %199 = vperm.xlu0 %198, %v137
        %v200 = vpop.permute.xlu0 %199
        %202 = vset.pattern.permute.xlu0 1
        %203 = vperm.xlu0 %202, %v138
        %v204 = vpop.permute.xlu0 %203
        %206 = vset.pattern.permute.xlu0 1
        %207 = vperm.xlu0 %206, %v139
        %v208 = vpop.permute.xlu0 %207
        %210 = vset.pattern.permute.xlu0 1
        %211 = vperm.xlu0 %210, %v140
        %v212 = vpop.permute.xlu0 %211
        %214 = vset.pattern.permute.xlu0 1
        %215 = vperm.xlu0 %214, %v141
        %v216 = vpop.permute.xlu0 %215
        %218 = vset.pattern.permute.xlu0 1
        %219 = vperm.xlu0 %218, %v142
        %v220 = vpop.permute.xlu0 %219
        %222 = vset.pattern.permute.xlu0 1
        %223 = vperm.xlu0 %222, %v143
        %v224 = vpop.permute.xlu0 %223
        %226 = vset.pattern.permute.xlu0 1
        %227 = vperm.xlu0 %226, %v144
        %v228 = vpop.permute.xlu0 %227
        %v230 = vsub.f32 %v200, %v149
        %v231 = vsub.f32 %v204, %v149
        %v232 = vsub.f32 %v208, %v149
        %v233 = vsub.f32 %v212, %v149
        %v234 = vsub.f32 %v216, %v149
        %v235 = vsub.f32 %v220, %v149
        %v236 = vsub.f32 %v224, %v149
        %v237 = vsub.f32 %v228, %v149
        %246 = vrot.lane.b32.xlu0 %v230, 64
        %v247 = vpop.permute.xlu0 %246
        %248 = vrot.lane.b32.xlu0 %v231, 64
        %v249 = vpop.permute.xlu0 %248
        %250 = vrot.lane.b32.xlu0 %v232, 64
        %v251 = vpop.permute.xlu0 %250
        %252 = vrot.lane.b32.xlu0 %v233, 64
        %v253 = vpop.permute.xlu0 %252
        %254 = vrot.lane.b32.xlu0 %v234, 64
        %v255 = vpop.permute.xlu0 %254
        %256 = vrot.lane.b32.xlu0 %v235, 64
        %v257 = vpop.permute.xlu0 %256
        %258 = vrot.lane.b32.xlu0 %v236, 64
        %v259 = vpop.permute.xlu0 %258
        %260 = vrot.lane.b32.xlu0 %v237, 64
        %v261 = vpop.permute.xlu0 %260
        %vm270 = vcmask 523264
        %v271 = vsel %vm270, %v190, %v247
        %v272 = vsel %vm270, %v191, %v249
        %v273 = vsel %vm270, %v192, %v251
        %v274 = vsel %vm270, %v193, %v253
        %v275 = vsel %vm270, %v194, %v255
        %v276 = vsel %vm270, %v195, %v257
        %v277 = vsel %vm270, %v196, %v259
        %v278 = vsel %vm270, %v197, %v261
        %v279 = vmul.f32 %v271, -12.6
        %v280 = vmul.f32 %v272, -12.6
        %v281 = vmul.f32 %v273, -12.6
        %v282 = vmul.f32 %v274, -12.6
        %v283 = vmul.f32 %v275, -12.6
        %v284 = vmul.f32 %v276, -12.6
        %v285 = vmul.f32 %v277, -12.6
        %v286 = vmul.f32 %v278, -12.6
        %v287 = vmul.f32 %v279, %v271
        %v288 = vmul.f32 %v280, %v272
        %v289 = vmul.f32 %v281, %v273
        %v290 = vmul.f32 %v282, %v274
        %v291 = vmul.f32 %v283, %v275
        %v292 = vmul.f32 %v284, %v276
        %v293 = vmul.f32 %v285, %v277
        %v294 = vmul.f32 %v286, %v278
        %v295 = vmul.f32 %v287, 1.442695
        %v296 = vpow.pop %v295
        %v297 = vmul.f32 %v288, 1.442695
        %v298 = vpow.pop %v297
        %v299 = vmul.f32 %v289, 1.442695
        %v300 = vpow.pop %v299
        %v301 = vmul.f32 %v290, 1.442695
        %v302 = vpow.pop %v301
        %v303 = vmul.f32 %v291, 1.442695
        %v304 = vpow.pop %v303
        %v305 = vmul.f32 %v292, 1.442695
        %v306 = vpow.pop %v305
        %v307 = vmul.f32 %v293, 1.442695
        %v308 = vpow.pop %v307
        %v309 = vmul.f32 %v294, 1.442695
        %v310 = vpow.pop %v309
        %311 = vst [vmem:[%s134] sm:$0xff] %v296
        %312 = vst [vmem:[%s134 + $0x200] sm:$0xff] %v298
        %313 = vst [vmem:[%s134 + $0x400] sm:$0xff] %v300
        %314 = vst [vmem:[%s134 + $0x600] sm:$0xff] %v302
        %315 = vst [vmem:[%s134 + $0x800] sm:$0xff] %v304
        %316 = vst [vmem:[%s134 + $0xa00] sm:$0xff] %v306
        %317 = vst [vmem:[%s134 + $0xc00] sm:$0xff] %v308
        %318 = vst [vmem:[%s134 + $0xe00] sm:$0xff] %v310
        %319 = vset.pattern.permute.xlu0 2
        %320 = vperm.xlu0 %319, %v137
        %v321 = vpop.permute.xlu0 %320
        %323 = vset.pattern.permute.xlu0 2
        %324 = vperm.xlu0 %323, %v138
        %v325 = vpop.permute.xlu0 %324
        %327 = vset.pattern.permute.xlu0 2
        %328 = vperm.xlu0 %327, %v139
        %v329 = vpop.permute.xlu0 %328
        %331 = vset.pattern.permute.xlu0 2
        %332 = vperm.xlu0 %331, %v140
        %v333 = vpop.permute.xlu0 %332
        %335 = vset.pattern.permute.xlu0 2
        %336 = vperm.xlu0 %335, %v141
        %v337 = vpop.permute.xlu0 %336
        %339 = vset.pattern.permute.xlu0 2
        %340 = vperm.xlu0 %339, %v142
        %v341 = vpop.permute.xlu0 %340
        %343 = vset.pattern.permute.xlu0 2
        %344 = vperm.xlu0 %343, %v143
        %v345 = vpop.permute.xlu0 %344
        %347 = vset.pattern.permute.xlu0 2
        %348 = vperm.xlu0 %347, %v144
        %v349 = vpop.permute.xlu0 %348
        %v351 = vsub.f32 %v321, %v149
        %v352 = vsub.f32 %v325, %v149
        %v353 = vsub.f32 %v329, %v149
        %v354 = vsub.f32 %v333, %v149
        %v355 = vsub.f32 %v337, %v149
        %v356 = vsub.f32 %v341, %v149
        %v357 = vsub.f32 %v345, %v149
        %v358 = vsub.f32 %v349, %v149
        %359 = vset.pattern.permute.xlu0 3
        %360 = vperm.xlu0 %359, %v137
        %v361 = vpop.permute.xlu0 %360
        %363 = vset.pattern.permute.xlu0 3
        %364 = vperm.xlu0 %363, %v138
        %v365 = vpop.permute.xlu0 %364
        %367 = vset.pattern.permute.xlu0 3
        %368 = vperm.xlu0 %367, %v139
        %v369 = vpop.permute.xlu0 %368
        %371 = vset.pattern.permute.xlu0 3
        %372 = vperm.xlu0 %371, %v140
        %v373 = vpop.permute.xlu0 %372
        %375 = vset.pattern.permute.xlu0 3
        %376 = vperm.xlu0 %375, %v141
        %v377 = vpop.permute.xlu0 %376
        %379 = vset.pattern.permute.xlu0 3
        %380 = vperm.xlu0 %379, %v142
        %v381 = vpop.permute.xlu0 %380
        %383 = vset.pattern.permute.xlu0 3
        %384 = vperm.xlu0 %383, %v143
        %v385 = vpop.permute.xlu0 %384
        %387 = vset.pattern.permute.xlu0 3
        %388 = vperm.xlu0 %387, %v144
        %v389 = vpop.permute.xlu0 %388
        %v391 = vsub.f32 %v361, %v149
        %v392 = vsub.f32 %v365, %v149
        %v393 = vsub.f32 %v369, %v149
        %v394 = vsub.f32 %v373, %v149
        %v395 = vsub.f32 %v377, %v149
        %v396 = vsub.f32 %v381, %v149
        %v397 = vsub.f32 %v385, %v149
        %v398 = vsub.f32 %v389, %v149
        %407 = vrot.lane.b32.xlu0 %v391, 64
        %v408 = vpop.permute.xlu0 %407
        %409 = vrot.lane.b32.xlu0 %v392, 64
        %v410 = vpop.permute.xlu0 %409
        %411 = vrot.lane.b32.xlu0 %v393, 64
        %v412 = vpop.permute.xlu0 %411
        %413 = vrot.lane.b32.xlu0 %v394, 64
        %v414 = vpop.permute.xlu0 %413
        %415 = vrot.lane.b32.xlu0 %v395, 64
        %v416 = vpop.permute.xlu0 %415
        %417 = vrot.lane.b32.xlu0 %v396, 64
        %v418 = vpop.permute.xlu0 %417
        %419 = vrot.lane.b32.xlu0 %v397, 64
        %v420 = vpop.permute.xlu0 %419
        %421 = vrot.lane.b32.xlu0 %v398, 64
        %v422 = vpop.permute.xlu0 %421
        %v431 = vsel %vm270, %v351, %v408
        %v432 = vsel %vm270, %v352, %v410
        %v433 = vsel %vm270, %v353, %v412
        %v434 = vsel %vm270, %v354, %v414
        %v435 = vsel %vm270, %v355, %v416
        %v436 = vsel %vm270, %v356, %v418
        %v437 = vsel %vm270, %v357, %v420
        %v438 = vsel %vm270, %v358, %v422
        %v439 = vmul.f32 %v431, -12.6
        %v440 = vmul.f32 %v432, -12.6
        %v441 = vmul.f32 %v433, -12.6
        %v442 = vmul.f32 %v434, -12.6
        %v443 = vmul.f32 %v435, -12.6
        %v444 = vmul.f32 %v436, -12.6
        %v445 = vmul.f32 %v437, -12.6
        %v446 = vmul.f32 %v438, -12.6
        %v447 = vmul.f32 %v439, %v431
        %v448 = vmul.f32 %v440, %v432
        %v449 = vmul.f32 %v441, %v433
        %v450 = vmul.f32 %v442, %v434
        %v451 = vmul.f32 %v443, %v435
        %v452 = vmul.f32 %v444, %v436
        %v453 = vmul.f32 %v445, %v437
        %v454 = vmul.f32 %v446, %v438
        %v455 = vmul.f32 %v447, 1.442695
        %v456 = vpow.pop %v455
        %v457 = vmul.f32 %v448, 1.442695
        %v458 = vpow.pop %v457
        %v459 = vmul.f32 %v449, 1.442695
        %v460 = vpow.pop %v459
        %v461 = vmul.f32 %v450, 1.442695
        %v462 = vpow.pop %v461
        %v463 = vmul.f32 %v451, 1.442695
        %v464 = vpow.pop %v463
        %v465 = vmul.f32 %v452, 1.442695
        %v466 = vpow.pop %v465
        %v467 = vmul.f32 %v453, 1.442695
        %v468 = vpow.pop %v467
        %v469 = vmul.f32 %v454, 1.442695
        %v470 = vpow.pop %v469
        %471 = vst [vmem:[%s134 + $0x8] sm:$0xff] %v456
        %472 = vst [vmem:[%s134 + $0x208] sm:$0xff] %v458
        %473 = vst [vmem:[%s134 + $0x408] sm:$0xff] %v460
        %474 = vst [vmem:[%s134 + $0x608] sm:$0xff] %v462
        %475 = vst [vmem:[%s134 + $0x808] sm:$0xff] %v464
        %476 = vst [vmem:[%s134 + $0xa08] sm:$0xff] %v466
        %477 = vst [vmem:[%s134 + $0xc08] sm:$0xff] %v468
        %478 = vst [vmem:[%s134 + $0xe08] sm:$0xff] %v470
        %479 = vset.pattern.permute.xlu0 4
        %480 = vperm.xlu0 %479, %v137
        %v481 = vpop.permute.xlu0 %480
        %483 = vset.pattern.permute.xlu0 4
        %484 = vperm.xlu0 %483, %v138
        %v485 = vpop.permute.xlu0 %484
        %487 = vset.pattern.permute.xlu0 4
        %488 = vperm.xlu0 %487, %v139
        %v489 = vpop.permute.xlu0 %488
        %491 = vset.pattern.permute.xlu0 4
        %492 = vperm.xlu0 %491, %v140
        %v493 = vpop.permute.xlu0 %492
        %495 = vset.pattern.permute.xlu0 4
        %496 = vperm.xlu0 %495, %v141
        %v497 = vpop.permute.xlu0 %496
        %499 = vset.pattern.permute.xlu0 4
        %500 = vperm.xlu0 %499, %v142
        %v501 = vpop.permute.xlu0 %500
        %503 = vset.pattern.permute.xlu0 4
        %504 = vperm.xlu0 %503, %v143
        %v505 = vpop.permute.xlu0 %504
        %507 = vset.pattern.permute.xlu0 4
        %508 = vperm.xlu0 %507, %v144
        %v509 = vpop.permute.xlu0 %508
        %v511 = vsub.f32 %v481, %v149
        %v512 = vsub.f32 %v485, %v149
        %v513 = vsub.f32 %v489, %v149
        %v514 = vsub.f32 %v493, %v149
        %v515 = vsub.f32 %v497, %v149
        %v516 = vsub.f32 %v501, %v149
        %v517 = vsub.f32 %v505, %v149
        %v518 = vsub.f32 %v509, %v149
        %519 = vset.pattern.permute.xlu0 5
        %520 = vperm.xlu0 %519, %v137
        %v521 = vpop.permute.xlu0 %520
        %523 = vset.pattern.permute.xlu0 5
        %524 = vperm.xlu0 %523, %v138
        %v525 = vpop.permute.xlu0 %524
        %527 = vset.pattern.permute.xlu0 5
        %528 = vperm.xlu0 %527, %v139
        %v529 = vpop.permute.xlu0 %528
        %531 = vset.pattern.permute.xlu0 5
        %532 = vperm.xlu0 %531, %v140
        %v533 = vpop.permute.xlu0 %532
        %535 = vset.pattern.permute.xlu0 5
        %536 = vperm.xlu0 %535, %v141
        %v537 = vpop.permute.xlu0 %536
        %539 = vset.pattern.permute.xlu0 5
        %540 = vperm.xlu0 %539, %v142
        %v541 = vpop.permute.xlu0 %540
        %543 = vset.pattern.permute.xlu0 5
        %544 = vperm.xlu0 %543, %v143
        %v545 = vpop.permute.xlu0 %544
        %547 = vset.pattern.permute.xlu0 5
        %548 = vperm.xlu0 %547, %v144
        %v549 = vpop.permute.xlu0 %548
        %v551 = vsub.f32 %v521, %v149
        %v552 = vsub.f32 %v525, %v149
        %v553 = vsub.f32 %v529, %v149
        %v554 = vsub.f32 %v533, %v149
        %v555 = vsub.f32 %v537, %v149
        %v556 = vsub.f32 %v541, %v149
        %v557 = vsub.f32 %v545, %v149
        %v558 = vsub.f32 %v549, %v149
        %567 = vrot.lane.b32.xlu0 %v551, 64
        %v568 = vpop.permute.xlu0 %567
        %569 = vrot.lane.b32.xlu0 %v552, 64
        %v570 = vpop.permute.xlu0 %569
        %571 = vrot.lane.b32.xlu0 %v553, 64
        %v572 = vpop.permute.xlu0 %571
        %573 = vrot.lane.b32.xlu0 %v554, 64
        %v574 = vpop.permute.xlu0 %573
        %575 = vrot.lane.b32.xlu0 %v555, 64
        %v576 = vpop.permute.xlu0 %575
        %577 = vrot.lane.b32.xlu0 %v556, 64
        %v578 = vpop.permute.xlu0 %577
        %579 = vrot.lane.b32.xlu0 %v557, 64
        %v580 = vpop.permute.xlu0 %579
        %581 = vrot.lane.b32.xlu0 %v558, 64
        %v582 = vpop.permute.xlu0 %581
        %v591 = vsel %vm270, %v511, %v568
        %v592 = vsel %vm270, %v512, %v570
        %v593 = vsel %vm270, %v513, %v572
        %v594 = vsel %vm270, %v514, %v574
        %v595 = vsel %vm270, %v515, %v576
        %v596 = vsel %vm270, %v516, %v578
        %v597 = vsel %vm270, %v517, %v580
        %v598 = vsel %vm270, %v518, %v582
        %v599 = vmul.f32 %v591, -12.6
        %v600 = vmul.f32 %v592, -12.6
        %v601 = vmul.f32 %v593, -12.6
        %v602 = vmul.f32 %v594, -12.6
        %v603 = vmul.f32 %v595, -12.6
        %v604 = vmul.f32 %v596, -12.6
        %v605 = vmul.f32 %v597, -12.6
        %v606 = vmul.f32 %v598, -12.6
        %v607 = vmul.f32 %v599, %v591
        %v608 = vmul.f32 %v600, %v592
        %v609 = vmul.f32 %v601, %v593
        %v610 = vmul.f32 %v602, %v594
        %v611 = vmul.f32 %v603, %v595
        %v612 = vmul.f32 %v604, %v596
        %v613 = vmul.f32 %v605, %v597
        %v614 = vmul.f32 %v606, %v598
        %v615 = vmul.f32 %v607, 1.442695
        %v616 = vpow.pop %v615
        %v617 = vmul.f32 %v608, 1.442695
        %v618 = vpow.pop %v617
        %v619 = vmul.f32 %v609, 1.442695
        %v620 = vpow.pop %v619
        %v621 = vmul.f32 %v610, 1.442695
        %v622 = vpow.pop %v621
        %v623 = vmul.f32 %v611, 1.442695
        %v624 = vpow.pop %v623
        %v625 = vmul.f32 %v612, 1.442695
        %v626 = vpow.pop %v625
        %v627 = vmul.f32 %v613, 1.442695
        %v628 = vpow.pop %v627
        %v629 = vmul.f32 %v614, 1.442695
        %v630 = vpow.pop %v629
        %631 = vst [vmem:[%s134 + $0x10] sm:$0xff] %v616
        %632 = vst [vmem:[%s134 + $0x210] sm:$0xff] %v618
        %633 = vst [vmem:[%s134 + $0x410] sm:$0xff] %v620
        %634 = vst [vmem:[%s134 + $0x610] sm:$0xff] %v622
        %635 = vst [vmem:[%s134 + $0x810] sm:$0xff] %v624
        %636 = vst [vmem:[%s134 + $0xa10] sm:$0xff] %v626
        %637 = vst [vmem:[%s134 + $0xc10] sm:$0xff] %v628
        %638 = vst [vmem:[%s134 + $0xe10] sm:$0xff] %v630
        %639 = vset.pattern.permute.xlu0 6
        %640 = vperm.xlu0 %639, %v137
        %v641 = vpop.permute.xlu0 %640
        %643 = vset.pattern.permute.xlu0 6
        %644 = vperm.xlu0 %643, %v138
        %v645 = vpop.permute.xlu0 %644
        %647 = vset.pattern.permute.xlu0 6
        %648 = vperm.xlu0 %647, %v139
        %v649 = vpop.permute.xlu0 %648
        %651 = vset.pattern.permute.xlu0 6
        %652 = vperm.xlu0 %651, %v140
        %v653 = vpop.permute.xlu0 %652
        %655 = vset.pattern.permute.xlu0 6
        %656 = vperm.xlu0 %655, %v141
        %v657 = vpop.permute.xlu0 %656
        %659 = vset.pattern.permute.xlu0 6
        %660 = vperm.xlu0 %659, %v142
        %v661 = vpop.permute.xlu0 %660
        %663 = vset.pattern.permute.xlu0 6
        %664 = vperm.xlu0 %663, %v143
        %v665 = vpop.permute.xlu0 %664
        %667 = vset.pattern.permute.xlu0 6
        %668 = vperm.xlu0 %667, %v144
        %v669 = vpop.permute.xlu0 %668
        %v671 = vsub.f32 %v641, %v149
        %v672 = vsub.f32 %v645, %v149
        %v673 = vsub.f32 %v649, %v149
        %v674 = vsub.f32 %v653, %v149
        %v675 = vsub.f32 %v657, %v149
        %v676 = vsub.f32 %v661, %v149
        %v677 = vsub.f32 %v665, %v149
        %v678 = vsub.f32 %v669, %v149
        %679 = vset.pattern.permute.xlu0 7
        %680 = vperm.xlu0 %679, %v137
        %v681 = vpop.permute.xlu0 %680
        %683 = vset.pattern.permute.xlu0 7
        %684 = vperm.xlu0 %683, %v138
        %v685 = vpop.permute.xlu0 %684
        %687 = vset.pattern.permute.xlu0 7
        %688 = vperm.xlu0 %687, %v139
        %v689 = vpop.permute.xlu0 %688
        %691 = vset.pattern.permute.xlu0 7
        %692 = vperm.xlu0 %691, %v140
        %v693 = vpop.permute.xlu0 %692
        %695 = vset.pattern.permute.xlu0 7
        %696 = vperm.xlu0 %695, %v141
        %v697 = vpop.permute.xlu0 %696
        %699 = vset.pattern.permute.xlu0 7
        %700 = vperm.xlu0 %699, %v142
        %v701 = vpop.permute.xlu0 %700
        %703 = vset.pattern.permute.xlu0 7
        %704 = vperm.xlu0 %703, %v143
        %v705 = vpop.permute.xlu0 %704
        %707 = vset.pattern.permute.xlu0 7
        %708 = vperm.xlu0 %707, %v144
        %v709 = vpop.permute.xlu0 %708
        %v711 = vsub.f32 %v681, %v149
        %v712 = vsub.f32 %v685, %v149
        %v713 = vsub.f32 %v689, %v149
        %v714 = vsub.f32 %v693, %v149
        %v715 = vsub.f32 %v697, %v149
        %v716 = vsub.f32 %v701, %v149
        %v717 = vsub.f32 %v705, %v149
        %v718 = vsub.f32 %v709, %v149
        %727 = vrot.lane.b32.xlu0 %v711, 64
        %v728 = vpop.permute.xlu0 %727
        %729 = vrot.lane.b32.xlu0 %v712, 64
        %v730 = vpop.permute.xlu0 %729
        %731 = vrot.lane.b32.xlu0 %v713, 64
        %v732 = vpop.permute.xlu0 %731
        %733 = vrot.lane.b32.xlu0 %v714, 64
        %v734 = vpop.permute.xlu0 %733
        %735 = vrot.lane.b32.xlu0 %v715, 64
        %v736 = vpop.permute.xlu0 %735
        %737 = vrot.lane.b32.xlu0 %v716, 64
        %v738 = vpop.permute.xlu0 %737
        %739 = vrot.lane.b32.xlu0 %v717, 64
        %v740 = vpop.permute.xlu0 %739
        %741 = vrot.lane.b32.xlu0 %v718, 64
        %v742 = vpop.permute.xlu0 %741
        %v751 = vsel %vm270, %v671, %v728
        %v752 = vsel %vm270, %v672, %v730
        %v753 = vsel %vm270, %v673, %v732
        %v754 = vsel %vm270, %v674, %v734
        %v755 = vsel %vm270, %v675, %v736
        %v756 = vsel %vm270, %v676, %v738
        %v757 = vsel %vm270, %v677, %v740
        %v758 = vsel %vm270, %v678, %v742
        %v759 = vmul.f32 %v751, -12.6
        %v760 = vmul.f32 %v752, -12.6
        %v761 = vmul.f32 %v753, -12.6
        %v762 = vmul.f32 %v754, -12.6
        %v763 = vmul.f32 %v755, -12.6
        %v764 = vmul.f32 %v756, -12.6
        %v765 = vmul.f32 %v757, -12.6
        %v766 = vmul.f32 %v758, -12.6
        %v767 = vmul.f32 %v759, %v751
        %v768 = vmul.f32 %v760, %v752
        %v769 = vmul.f32 %v761, %v753
        %v770 = vmul.f32 %v762, %v754
        %v771 = vmul.f32 %v763, %v755
        %v772 = vmul.f32 %v764, %v756
        %v773 = vmul.f32 %v765, %v757
        %v774 = vmul.f32 %v766, %v758
        %v775 = vmul.f32 %v767, 1.442695
        %v776 = vpow.pop %v775
        %v777 = vmul.f32 %v768, 1.442695
        %v778 = vpow.pop %v777
        %v779 = vmul.f32 %v769, 1.442695
        %v780 = vpow.pop %v779
        %v781 = vmul.f32 %v770, 1.442695
        %v782 = vpow.pop %v781
        %v783 = vmul.f32 %v771, 1.442695
        %v784 = vpow.pop %v783
        %v785 = vmul.f32 %v772, 1.442695
        %v786 = vpow.pop %v785
        %v787 = vmul.f32 %v773, 1.442695
        %v788 = vpow.pop %v787
        %v789 = vmul.f32 %v774, 1.442695
        %v790 = vpow.pop %v789
        %791 = vst [vmem:[%s134 + $0x18] sm:$0xff] %v776
        %792 = vst [vmem:[%s134 + $0x218] sm:$0xff] %v778
        %793 = vst [vmem:[%s134 + $0x418] sm:$0xff] %v780
        %794 = vst [vmem:[%s134 + $0x618] sm:$0xff] %v782
        %795 = vst [vmem:[%s134 + $0x818] sm:$0xff] %v784
        %796 = vst [vmem:[%s134 + $0xa18] sm:$0xff] %v786
        %797 = vst [vmem:[%s134 + $0xc18] sm:$0xff] %v788
        %798 = vst [vmem:[%s134 + $0xe18] sm:$0xff] %v790
        %799 = vset.pattern.permute.xlu0 8
        %800 = vperm.xlu0 %799, %v137
        %v801 = vpop.permute.xlu0 %800
        %803 = vset.pattern.permute.xlu0 8
        %804 = vperm.xlu0 %803, %v138
        %v805 = vpop.permute.xlu0 %804
        %807 = vset.pattern.permute.xlu0 8
        %808 = vperm.xlu0 %807, %v139
        %v809 = vpop.permute.xlu0 %808
        %811 = vset.pattern.permute.xlu0 8
        %812 = vperm.xlu0 %811, %v140
        %v813 = vpop.permute.xlu0 %812
        %815 = vset.pattern.permute.xlu0 8
        %816 = vperm.xlu0 %815, %v141
        %v817 = vpop.permute.xlu0 %816
        %819 = vset.pattern.permute.xlu0 8
        %820 = vperm.xlu0 %819, %v142
        %v821 = vpop.permute.xlu0 %820
        %823 = vset.pattern.permute.xlu0 8
        %824 = vperm.xlu0 %823, %v143
        %v825 = vpop.permute.xlu0 %824
        %827 = vset.pattern.permute.xlu0 8
        %828 = vperm.xlu0 %827, %v144
        %v829 = vpop.permute.xlu0 %828
        %v831 = vsub.f32 %v801, %v149
        %v832 = vsub.f32 %v805, %v149
        %v833 = vsub.f32 %v809, %v149
        %v834 = vsub.f32 %v813, %v149
        %v835 = vsub.f32 %v817, %v149
        %v836 = vsub.f32 %v821, %v149
        %v837 = vsub.f32 %v825, %v149
        %v838 = vsub.f32 %v829, %v149
        %839 = vset.pattern.permute.xlu0 9
        %840 = vperm.xlu0 %839, %v137
        %v841 = vpop.permute.xlu0 %840
        %843 = vset.pattern.permute.xlu0 9
        %844 = vperm.xlu0 %843, %v138
        %v845 = vpop.permute.xlu0 %844
        %847 = vset.pattern.permute.xlu0 9
        %848 = vperm.xlu0 %847, %v139
        %v849 = vpop.permute.xlu0 %848
        %851 = vset.pattern.permute.xlu0 9
        %852 = vperm.xlu0 %851, %v140
        %v853 = vpop.permute.xlu0 %852
        %855 = vset.pattern.permute.xlu0 9
        %856 = vperm.xlu0 %855, %v141
        %v857 = vpop.permute.xlu0 %856
        %859 = vset.pattern.permute.xlu0 9
        %860 = vperm.xlu0 %859, %v142
        %v861 = vpop.permute.xlu0 %860
        %863 = vset.pattern.permute.xlu0 9
        %864 = vperm.xlu0 %863, %v143
        %v865 = vpop.permute.xlu0 %864
        %867 = vset.pattern.permute.xlu0 9
        %868 = vperm.xlu0 %867, %v144
        %v869 = vpop.permute.xlu0 %868
        %v871 = vsub.f32 %v841, %v149
        %v872 = vsub.f32 %v845, %v149
        %v873 = vsub.f32 %v849, %v149
        %v874 = vsub.f32 %v853, %v149
        %v875 = vsub.f32 %v857, %v149
        %v876 = vsub.f32 %v861, %v149
        %v877 = vsub.f32 %v865, %v149
        %v878 = vsub.f32 %v869, %v149
        %887 = vrot.lane.b32.xlu0 %v871, 64
        %v888 = vpop.permute.xlu0 %887
        %889 = vrot.lane.b32.xlu0 %v872, 64
        %v890 = vpop.permute.xlu0 %889
        %891 = vrot.lane.b32.xlu0 %v873, 64
        %v892 = vpop.permute.xlu0 %891
        %893 = vrot.lane.b32.xlu0 %v874, 64
        %v894 = vpop.permute.xlu0 %893
        %895 = vrot.lane.b32.xlu0 %v875, 64
        %v896 = vpop.permute.xlu0 %895
        %897 = vrot.lane.b32.xlu0 %v876, 64
        %v898 = vpop.permute.xlu0 %897
        %899 = vrot.lane.b32.xlu0 %v877, 64
        %v900 = vpop.permute.xlu0 %899
        %901 = vrot.lane.b32.xlu0 %v878, 64
        %v902 = vpop.permute.xlu0 %901
        %v911 = vsel %vm270, %v831, %v888
        %v912 = vsel %vm270, %v832, %v890
        %v913 = vsel %vm270, %v833, %v892
        %v914 = vsel %vm270, %v834, %v894
        %v915 = vsel %vm270, %v835, %v896
        %v916 = vsel %vm270, %v836, %v898
        %v917 = vsel %vm270, %v837, %v900
        %v918 = vsel %vm270, %v838, %v902
        %v919 = vmul.f32 %v911, -12.6
        %v920 = vmul.f32 %v912, -12.6
        %v921 = vmul.f32 %v913, -12.6
        %v922 = vmul.f32 %v914, -12.6
        %v923 = vmul.f32 %v915, -12.6
        %v924 = vmul.f32 %v916, -12.6
        %v925 = vmul.f32 %v917, -12.6
        %v926 = vmul.f32 %v918, -12.6
        %v927 = vmul.f32 %v919, %v911
        %v928 = vmul.f32 %v920, %v912
        %v929 = vmul.f32 %v921, %v913
        %v930 = vmul.f32 %v922, %v914
        %v931 = vmul.f32 %v923, %v915
        %v932 = vmul.f32 %v924, %v916
        %v933 = vmul.f32 %v925, %v917
        %v934 = vmul.f32 %v926, %v918
        %v935 = vmul.f32 %v927, 1.442695
        %v936 = vpow.pop %v935
        %v937 = vmul.f32 %v928, 1.442695
        %v938 = vpow.pop %v937
        %v939 = vmul.f32 %v929, 1.442695
        %v940 = vpow.pop %v939
        %v941 = vmul.f32 %v930, 1.442695
        %v942 = vpow.pop %v941
        %v943 = vmul.f32 %v931, 1.442695
        %v944 = vpow.pop %v943
        %v945 = vmul.f32 %v932, 1.442695
        %v946 = vpow.pop %v945
        %v947 = vmul.f32 %v933, 1.442695
        %v948 = vpow.pop %v947
        %v949 = vmul.f32 %v934, 1.442695
        %v950 = vpow.pop %v949
        %951 = vst [vmem:[%s134 + $0x20] sm:$0xff] %v936
        %952 = vst [vmem:[%s134 + $0x220] sm:$0xff] %v938
        %953 = vst [vmem:[%s134 + $0x420] sm:$0xff] %v940
        %954 = vst [vmem:[%s134 + $0x620] sm:$0xff] %v942
        %955 = vst [vmem:[%s134 + $0x820] sm:$0xff] %v944
        %956 = vst [vmem:[%s134 + $0xa20] sm:$0xff] %v946
        %957 = vst [vmem:[%s134 + $0xc20] sm:$0xff] %v948
        %958 = vst [vmem:[%s134 + $0xe20] sm:$0xff] %v950
        %959 = vset.pattern.permute.xlu0 10
        %960 = vperm.xlu0 %959, %v137
        %v961 = vpop.permute.xlu0 %960
        %963 = vset.pattern.permute.xlu0 10
        %964 = vperm.xlu0 %963, %v138
        %v965 = vpop.permute.xlu0 %964
        %967 = vset.pattern.permute.xlu0 10
        %968 = vperm.xlu0 %967, %v139
        %v969 = vpop.permute.xlu0 %968
        %971 = vset.pattern.permute.xlu0 10
        %972 = vperm.xlu0 %971, %v140
        %v973 = vpop.permute.xlu0 %972
        %975 = vset.pattern.permute.xlu0 10
        %976 = vperm.xlu0 %975, %v141
        %v977 = vpop.permute.xlu0 %976
        %979 = vset.pattern.permute.xlu0 10
        %980 = vperm.xlu0 %979, %v142
        %v981 = vpop.permute.xlu0 %980
        %983 = vset.pattern.permute.xlu0 10
        %984 = vperm.xlu0 %983, %v143
        %v985 = vpop.permute.xlu0 %984
        %987 = vset.pattern.permute.xlu0 10
        %988 = vperm.xlu0 %987, %v144
        %v989 = vpop.permute.xlu0 %988
        %v991 = vsub.f32 %v961, %v149
        %v992 = vsub.f32 %v965, %v149
        %v993 = vsub.f32 %v969, %v149
        %v994 = vsub.f32 %v973, %v149
        %v995 = vsub.f32 %v977, %v149
        %v996 = vsub.f32 %v981, %v149
        %v997 = vsub.f32 %v985, %v149
        %v998 = vsub.f32 %v989, %v149
        %999 = vset.pattern.permute.xlu0 11
        %1000 = vperm.xlu0 %999, %v137
        %v1001 = vpop.permute.xlu0 %1000
        %1003 = vset.pattern.permute.xlu0 11
        %1004 = vperm.xlu0 %1003, %v138
        %v1005 = vpop.permute.xlu0 %1004
        %1007 = vset.pattern.permute.xlu0 11
        %1008 = vperm.xlu0 %1007, %v139
        %v1009 = vpop.permute.xlu0 %1008
        %1011 = vset.pattern.permute.xlu0 11
        %1012 = vperm.xlu0 %1011, %v140
        %v1013 = vpop.permute.xlu0 %1012
        %1015 = vset.pattern.permute.xlu0 11
        %1016 = vperm.xlu0 %1015, %v141
        %v1017 = vpop.permute.xlu0 %1016
        %1019 = vset.pattern.permute.xlu0 11
        %1020 = vperm.xlu0 %1019, %v142
        %v1021 = vpop.permute.xlu0 %1020
        %1023 = vset.pattern.permute.xlu0 11
        %1024 = vperm.xlu0 %1023, %v143
        %v1025 = vpop.permute.xlu0 %1024
        %1027 = vset.pattern.permute.xlu0 11
        %1028 = vperm.xlu0 %1027, %v144
        %v1029 = vpop.permute.xlu0 %1028
        %v1031 = vsub.f32 %v1001, %v149
        %v1032 = vsub.f32 %v1005, %v149
        %v1033 = vsub.f32 %v1009, %v149
        %v1034 = vsub.f32 %v1013, %v149
        %v1035 = vsub.f32 %v1017, %v149
        %v1036 = vsub.f32 %v1021, %v149
        %v1037 = vsub.f32 %v1025, %v149
        %v1038 = vsub.f32 %v1029, %v149
        %1047 = vrot.lane.b32.xlu0 %v1031, 64
        %v1048 = vpop.permute.xlu0 %1047
        %1049 = vrot.lane.b32.xlu0 %v1032, 64
        %v1050 = vpop.permute.xlu0 %1049
        %1051 = vrot.lane.b32.xlu0 %v1033, 64
        %v1052 = vpop.permute.xlu0 %1051
        %1053 = vrot.lane.b32.xlu0 %v1034, 64
        %v1054 = vpop.permute.xlu0 %1053
        %1055 = vrot.lane.b32.xlu0 %v1035, 64
        %v1056 = vpop.permute.xlu0 %1055
        %1057 = vrot.lane.b32.xlu0 %v1036, 64
        %v1058 = vpop.permute.xlu0 %1057
        %1059 = vrot.lane.b32.xlu0 %v1037, 64
        %v1060 = vpop.permute.xlu0 %1059
        %1061 = vrot.lane.b32.xlu0 %v1038, 64
        %v1062 = vpop.permute.xlu0 %1061
        %v1071 = vsel %vm270, %v991, %v1048
        %v1072 = vsel %vm270, %v992, %v1050
        %v1073 = vsel %vm270, %v993, %v1052
        %v1074 = vsel %vm270, %v994, %v1054
        %v1075 = vsel %vm270, %v995, %v1056
        %v1076 = vsel %vm270, %v996, %v1058
        %v1077 = vsel %vm270, %v997, %v1060
        %v1078 = vsel %vm270, %v998, %v1062
        %v1079 = vmul.f32 %v1071, -12.6
        %v1080 = vmul.f32 %v1072, -12.6
        %v1081 = vmul.f32 %v1073, -12.6
        %v1082 = vmul.f32 %v1074, -12.6
        %v1083 = vmul.f32 %v1075, -12.6
        %v1084 = vmul.f32 %v1076, -12.6
        %v1085 = vmul.f32 %v1077, -12.6
        %v1086 = vmul.f32 %v1078, -12.6
        %v1087 = vmul.f32 %v1079, %v1071
        %v1088 = vmul.f32 %v1080, %v1072
        %v1089 = vmul.f32 %v1081, %v1073
        %v1090 = vmul.f32 %v1082, %v1074
        %v1091 = vmul.f32 %v1083, %v1075
        %v1092 = vmul.f32 %v1084, %v1076
        %v1093 = vmul.f32 %v1085, %v1077
        %v1094 = vmul.f32 %v1086, %v1078
        %v1095 = vmul.f32 %v1087, 1.442695
        %v1096 = vpow.pop %v1095
        %v1097 = vmul.f32 %v1088, 1.442695
        %v1098 = vpow.pop %v1097
        %v1099 = vmul.f32 %v1089, 1.442695
        %v1100 = vpow.pop %v1099
        %v1101 = vmul.f32 %v1090, 1.442695
        %v1102 = vpow.pop %v1101
        %v1103 = vmul.f32 %v1091, 1.442695
        %v1104 = vpow.pop %v1103
        %v1105 = vmul.f32 %v1092, 1.442695
        %v1106 = vpow.pop %v1105
        %v1107 = vmul.f32 %v1093, 1.442695
        %v1108 = vpow.pop %v1107
        %v1109 = vmul.f32 %v1094, 1.442695
        %v1110 = vpow.pop %v1109
        %1111 = vst [vmem:[%s134 + $0x28] sm:$0xff] %v1096
        %1112 = vst [vmem:[%s134 + $0x228] sm:$0xff] %v1098
        %1113 = vst [vmem:[%s134 + $0x428] sm:$0xff] %v1100
        %1114 = vst [vmem:[%s134 + $0x628] sm:$0xff] %v1102
        %1115 = vst [vmem:[%s134 + $0x828] sm:$0xff] %v1104
        %1116 = vst [vmem:[%s134 + $0xa28] sm:$0xff] %v1106
        %1117 = vst [vmem:[%s134 + $0xc28] sm:$0xff] %v1108
        %1118 = vst [vmem:[%s134 + $0xe28] sm:$0xff] %v1110
        %1119 = vset.pattern.permute.xlu0 12
        %1120 = vperm.xlu0 %1119, %v137
        %v1121 = vpop.permute.xlu0 %1120
        %1123 = vset.pattern.permute.xlu0 12
        %1124 = vperm.xlu0 %1123, %v138
        %v1125 = vpop.permute.xlu0 %1124
        %1127 = vset.pattern.permute.xlu0 12
        %1128 = vperm.xlu0 %1127, %v139
        %v1129 = vpop.permute.xlu0 %1128
        %1131 = vset.pattern.permute.xlu0 12
        %1132 = vperm.xlu0 %1131, %v140
        %v1133 = vpop.permute.xlu0 %1132
        %1135 = vset.pattern.permute.xlu0 12
        %1136 = vperm.xlu0 %1135, %v141
        %v1137 = vpop.permute.xlu0 %1136
        %1139 = vset.pattern.permute.xlu0 12
        %1140 = vperm.xlu0 %1139, %v142
        %v1141 = vpop.permute.xlu0 %1140
        %1143 = vset.pattern.permute.xlu0 12
        %1144 = vperm.xlu0 %1143, %v143
        %v1145 = vpop.permute.xlu0 %1144
        %1147 = vset.pattern.permute.xlu0 12
        %1148 = vperm.xlu0 %1147, %v144
        %v1149 = vpop.permute.xlu0 %1148
        %v1151 = vsub.f32 %v1121, %v149
        %v1152 = vsub.f32 %v1125, %v149
        %v1153 = vsub.f32 %v1129, %v149
        %v1154 = vsub.f32 %v1133, %v149
        %v1155 = vsub.f32 %v1137, %v149
        %v1156 = vsub.f32 %v1141, %v149
        %v1157 = vsub.f32 %v1145, %v149
        %v1158 = vsub.f32 %v1149, %v149
        %1159 = vset.pattern.permute.xlu0 13
        %1160 = vperm.xlu0 %1159, %v137
        %v1161 = vpop.permute.xlu0 %1160
        %1163 = vset.pattern.permute.xlu0 13
        %1164 = vperm.xlu0 %1163, %v138
        %v1165 = vpop.permute.xlu0 %1164
        %1167 = vset.pattern.permute.xlu0 13
        %1168 = vperm.xlu0 %1167, %v139
        %v1169 = vpop.permute.xlu0 %1168
        %1171 = vset.pattern.permute.xlu0 13
        %1172 = vperm.xlu0 %1171, %v140
        %v1173 = vpop.permute.xlu0 %1172
        %1175 = vset.pattern.permute.xlu0 13
        %1176 = vperm.xlu0 %1175, %v141
        %v1177 = vpop.permute.xlu0 %1176
        %1179 = vset.pattern.permute.xlu0 13
        %1180 = vperm.xlu0 %1179, %v142
        %v1181 = vpop.permute.xlu0 %1180
        %1183 = vset.pattern.permute.xlu0 13
        %1184 = vperm.xlu0 %1183, %v143
        %v1185 = vpop.permute.xlu0 %1184
        %1187 = vset.pattern.permute.xlu0 13
        %1188 = vperm.xlu0 %1187, %v144
        %v1189 = vpop.permute.xlu0 %1188
        %v1191 = vsub.f32 %v1161, %v149
        %v1192 = vsub.f32 %v1165, %v149
        %v1193 = vsub.f32 %v1169, %v149
        %v1194 = vsub.f32 %v1173, %v149
        %v1195 = vsub.f32 %v1177, %v149
        %v1196 = vsub.f32 %v1181, %v149
        %v1197 = vsub.f32 %v1185, %v149
        %v1198 = vsub.f32 %v1189, %v149
        %1207 = vrot.lane.b32.xlu0 %v1191, 64
        %v1208 = vpop.permute.xlu0 %1207
        %1209 = vrot.lane.b32.xlu0 %v1192, 64
        %v1210 = vpop.permute.xlu0 %1209
        %1211 = vrot.lane.b32.xlu0 %v1193, 64
        %v1212 = vpop.permute.xlu0 %1211
        %1213 = vrot.lane.b32.xlu0 %v1194, 64
        %v1214 = vpop.permute.xlu0 %1213
        %1215 = vrot.lane.b32.xlu0 %v1195, 64
        %v1216 = vpop.permute.xlu0 %1215
        %1217 = vrot.lane.b32.xlu0 %v1196, 64
        %v1218 = vpop.permute.xlu0 %1217
        %1219 = vrot.lane.b32.xlu0 %v1197, 64
        %v1220 = vpop.permute.xlu0 %1219
        %1221 = vrot.lane.b32.xlu0 %v1198, 64
        %v1222 = vpop.permute.xlu0 %1221
        %v1231 = vsel %vm270, %v1151, %v1208
        %v1232 = vsel %vm270, %v1152, %v1210
        %v1233 = vsel %vm270, %v1153, %v1212
        %v1234 = vsel %vm270, %v1154, %v1214
        %v1235 = vsel %vm270, %v1155, %v1216
        %v1236 = vsel %vm270, %v1156, %v1218
        %v1237 = vsel %vm270, %v1157, %v1220
        %v1238 = vsel %vm270, %v1158, %v1222
        %v1239 = vmul.f32 %v1231, -12.6
        %v1240 = vmul.f32 %v1232, -12.6
        %v1241 = vmul.f32 %v1233, -12.6
        %v1242 = vmul.f32 %v1234, -12.6
        %v1243 = vmul.f32 %v1235, -12.6
        %v1244 = vmul.f32 %v1236, -12.6
        %v1245 = vmul.f32 %v1237, -12.6
        %v1246 = vmul.f32 %v1238, -12.6
        %v1247 = vmul.f32 %v1239, %v1231
        %v1248 = vmul.f32 %v1240, %v1232
        %v1249 = vmul.f32 %v1241, %v1233
        %v1250 = vmul.f32 %v1242, %v1234
        %v1251 = vmul.f32 %v1243, %v1235
        %v1252 = vmul.f32 %v1244, %v1236
        %v1253 = vmul.f32 %v1245, %v1237
        %v1254 = vmul.f32 %v1246, %v1238
        %v1255 = vmul.f32 %v1247, 1.442695
        %v1256 = vpow.pop %v1255
        %v1257 = vmul.f32 %v1248, 1.442695
        %v1258 = vpow.pop %v1257
        %v1259 = vmul.f32 %v1249, 1.442695
        %v1260 = vpow.pop %v1259
        %v1261 = vmul.f32 %v1250, 1.442695
        %v1262 = vpow.pop %v1261
        %v1263 = vmul.f32 %v1251, 1.442695
        %v1264 = vpow.pop %v1263
        %v1265 = vmul.f32 %v1252, 1.442695
        %v1266 = vpow.pop %v1265
        %v1267 = vmul.f32 %v1253, 1.442695
        %v1268 = vpow.pop %v1267
        %v1269 = vmul.f32 %v1254, 1.442695
        %v1270 = vpow.pop %v1269
        %1271 = vst [vmem:[%s134 + $0x30] sm:$0xff] %v1256
        %1272 = vst [vmem:[%s134 + $0x230] sm:$0xff] %v1258
        %1273 = vst [vmem:[%s134 + $0x430] sm:$0xff] %v1260
        %1274 = vst [vmem:[%s134 + $0x630] sm:$0xff] %v1262
        %1275 = vst [vmem:[%s134 + $0x830] sm:$0xff] %v1264
        %1276 = vst [vmem:[%s134 + $0xa30] sm:$0xff] %v1266
        %1277 = vst [vmem:[%s134 + $0xc30] sm:$0xff] %v1268
        %1278 = vst [vmem:[%s134 + $0xe30] sm:$0xff] %v1270
        %1279 = vset.pattern.permute.xlu0 14
        %1280 = vperm.xlu0 %1279, %v137
        %v1281 = vpop.permute.xlu0 %1280
        %1283 = vset.pattern.permute.xlu0 14
        %1284 = vperm.xlu0 %1283, %v138
        %v1285 = vpop.permute.xlu0 %1284
        %1287 = vset.pattern.permute.xlu0 14
        %1288 = vperm.xlu0 %1287, %v139
        %v1289 = vpop.permute.xlu0 %1288
        %1291 = vset.pattern.permute.xlu0 14
        %1292 = vperm.xlu0 %1291, %v140
        %v1293 = vpop.permute.xlu0 %1292
        %1295 = vset.pattern.permute.xlu0 14
        %1296 = vperm.xlu0 %1295, %v141
        %v1297 = vpop.permute.xlu0 %1296
        %1299 = vset.pattern.permute.xlu0 14
        %1300 = vperm.xlu0 %1299, %v142
        %v1301 = vpop.permute.xlu0 %1300
        %1303 = vset.pattern.permute.xlu0 14
        %1304 = vperm.xlu0 %1303, %v143
        %v1305 = vpop.permute.xlu0 %1304
        %1307 = vset.pattern.permute.xlu0 14
        %1308 = vperm.xlu0 %1307, %v144
        %v1309 = vpop.permute.xlu0 %1308
        %v1311 = vsub.f32 %v1281, %v149
        %v1312 = vsub.f32 %v1285, %v149
        %v1313 = vsub.f32 %v1289, %v149
        %v1314 = vsub.f32 %v1293, %v149
        %v1315 = vsub.f32 %v1297, %v149
        %v1316 = vsub.f32 %v1301, %v149
        %v1317 = vsub.f32 %v1305, %v149
        %v1318 = vsub.f32 %v1309, %v149
        %1319 = vset.pattern.permute.xlu0 15
        %1320 = vperm.xlu0 %1319, %v137
        %v1321 = vpop.permute.xlu0 %1320
        %1323 = vset.pattern.permute.xlu0 15
        %1324 = vperm.xlu0 %1323, %v138
        %v1325 = vpop.permute.xlu0 %1324
        %1327 = vset.pattern.permute.xlu0 15
        %1328 = vperm.xlu0 %1327, %v139
        %v1329 = vpop.permute.xlu0 %1328
        %1331 = vset.pattern.permute.xlu0 15
        %1332 = vperm.xlu0 %1331, %v140
        %v1333 = vpop.permute.xlu0 %1332
        %1335 = vset.pattern.permute.xlu0 15
        %1336 = vperm.xlu0 %1335, %v141
        %v1337 = vpop.permute.xlu0 %1336
        %1339 = vset.pattern.permute.xlu0 15
        %1340 = vperm.xlu0 %1339, %v142
        %v1341 = vpop.permute.xlu0 %1340
        %1343 = vset.pattern.permute.xlu0 15
        %1344 = vperm.xlu0 %1343, %v143
        %v1345 = vpop.permute.xlu0 %1344
        %1347 = vset.pattern.permute.xlu0 15
        %1348 = vperm.xlu0 %1347, %v144
        %v1349 = vpop.permute.xlu0 %1348
        %v1351 = vsub.f32 %v1321, %v149
        %v1352 = vsub.f32 %v1325, %v149
        %v1353 = vsub.f32 %v1329, %v149
        %v1354 = vsub.f32 %v1333, %v149
        %v1355 = vsub.f32 %v1337, %v149
        %v1356 = vsub.f32 %v1341, %v149
        %v1357 = vsub.f32 %v1345, %v149
        %v1358 = vsub.f32 %v1349, %v149
        %1367 = vrot.lane.b32.xlu0 %v1351, 64
        %v1368 = vpop.permute.xlu0 %1367
        %1369 = vrot.lane.b32.xlu0 %v1352, 64
        %v1370 = vpop.permute.xlu0 %1369
        %1371 = vrot.lane.b32.xlu0 %v1353, 64
        %v1372 = vpop.permute.xlu0 %1371
        %1373 = vrot.lane.b32.xlu0 %v1354, 64
        %v1374 = vpop.permute.xlu0 %1373
        %1375 = vrot.lane.b32.xlu0 %v1355, 64
        %v1376 = vpop.permute.xlu0 %1375
        %1377 = vrot.lane.b32.xlu0 %v1356, 64
        %v1378 = vpop.permute.xlu0 %1377
        %1379 = vrot.lane.b32.xlu0 %v1357, 64
        %v1380 = vpop.permute.xlu0 %1379
        %1381 = vrot.lane.b32.xlu0 %v1358, 64
        %v1382 = vpop.permute.xlu0 %1381
        %v1391 = vsel %vm270, %v1311, %v1368
        %v1392 = vsel %vm270, %v1312, %v1370
        %v1393 = vsel %vm270, %v1313, %v1372
        %v1394 = vsel %vm270, %v1314, %v1374
        %v1395 = vsel %vm270, %v1315, %v1376
        %v1396 = vsel %vm270, %v1316, %v1378
        %v1397 = vsel %vm270, %v1317, %v1380
        %v1398 = vsel %vm270, %v1318, %v1382
        %v1399 = vmul.f32 %v1391, -12.6
        %v1400 = vmul.f32 %v1392, -12.6
        %v1401 = vmul.f32 %v1393, -12.6
        %v1402 = vmul.f32 %v1394, -12.6
        %v1403 = vmul.f32 %v1395, -12.6
        %v1404 = vmul.f32 %v1396, -12.6
        %v1405 = vmul.f32 %v1397, -12.6
        %v1406 = vmul.f32 %v1398, -12.6
        %v1407 = vmul.f32 %v1399, %v1391
        %v1408 = vmul.f32 %v1400, %v1392
        %v1409 = vmul.f32 %v1401, %v1393
        %v1410 = vmul.f32 %v1402, %v1394
        %v1411 = vmul.f32 %v1403, %v1395
        %v1412 = vmul.f32 %v1404, %v1396
        %v1413 = vmul.f32 %v1405, %v1397
        %v1414 = vmul.f32 %v1406, %v1398
        %v1415 = vmul.f32 %v1407, 1.442695
        %v1416 = vpow.pop %v1415
        %v1417 = vmul.f32 %v1408, 1.442695
        %v1418 = vpow.pop %v1417
        %v1419 = vmul.f32 %v1409, 1.442695
        %v1420 = vpow.pop %v1419
        %v1421 = vmul.f32 %v1410, 1.442695
        %v1422 = vpow.pop %v1421
        %v1423 = vmul.f32 %v1411, 1.442695
        %v1424 = vpow.pop %v1423
        %v1425 = vmul.f32 %v1412, 1.442695
        %v1426 = vpow.pop %v1425
        %v1427 = vmul.f32 %v1413, 1.442695
        %v1428 = vpow.pop %v1427
        %v1429 = vmul.f32 %v1414, 1.442695
        %v1430 = vpow.pop %v1429
        %1431 = vst [vmem:[%s134 + $0x38] sm:$0xff] %v1416
        %1432 = vst [vmem:[%s134 + $0x238] sm:$0xff] %v1418
        %1433 = vst [vmem:[%s134 + $0x438] sm:$0xff] %v1420
        %1434 = vst [vmem:[%s134 + $0x638] sm:$0xff] %v1422
        %1435 = vst [vmem:[%s134 + $0x838] sm:$0xff] %v1424
        %1436 = vst [vmem:[%s134 + $0xa38] sm:$0xff] %v1426
        %1437 = vst [vmem:[%s134 + $0xc38] sm:$0xff] %v1428
        %1438 = vst [vmem:[%s134 + $0xe38] sm:$0xff] %v1430
        %1439 = vset.pattern.permute.xlu0 16
        %1440 = vperm.xlu0 %1439, %v137
        %v1441 = vpop.permute.xlu0 %1440
        %1443 = vset.pattern.permute.xlu0 16
        %1444 = vperm.xlu0 %1443, %v138
        %v1445 = vpop.permute.xlu0 %1444
        %1447 = vset.pattern.permute.xlu0 16
        %1448 = vperm.xlu0 %1447, %v139
        %v1449 = vpop.permute.xlu0 %1448
        %1451 = vset.pattern.permute.xlu0 16
        %1452 = vperm.xlu0 %1451, %v140
        %v1453 = vpop.permute.xlu0 %1452
        %1455 = vset.pattern.permute.xlu0 16
        %1456 = vperm.xlu0 %1455, %v141
        %v1457 = vpop.permute.xlu0 %1456
        %1459 = vset.pattern.permute.xlu0 16
        %1460 = vperm.xlu0 %1459, %v142
        %v1461 = vpop.permute.xlu0 %1460
        %1463 = vset.pattern.permute.xlu0 16
        %1464 = vperm.xlu0 %1463, %v143
        %v1465 = vpop.permute.xlu0 %1464
        %1467 = vset.pattern.permute.xlu0 16
        %1468 = vperm.xlu0 %1467, %v144
        %v1469 = vpop.permute.xlu0 %1468
        %v1471 = vsub.f32 %v1441, %v149
        %v1472 = vsub.f32 %v1445, %v149
        %v1473 = vsub.f32 %v1449, %v149
        %v1474 = vsub.f32 %v1453, %v149
        %v1475 = vsub.f32 %v1457, %v149
        %v1476 = vsub.f32 %v1461, %v149
        %v1477 = vsub.f32 %v1465, %v149
        %v1478 = vsub.f32 %v1469, %v149
        %1479 = vset.pattern.permute.xlu0 17
        %1480 = vperm.xlu0 %1479, %v137
        %v1481 = vpop.permute.xlu0 %1480
        %1483 = vset.pattern.permute.xlu0 17
        %1484 = vperm.xlu0 %1483, %v138
        %v1485 = vpop.permute.xlu0 %1484
        %1487 = vset.pattern.permute.xlu0 17
        %1488 = vperm.xlu0 %1487, %v139
        %v1489 = vpop.permute.xlu0 %1488
        %1491 = vset.pattern.permute.xlu0 17
        %1492 = vperm.xlu0 %1491, %v140
        %v1493 = vpop.permute.xlu0 %1492
        %1495 = vset.pattern.permute.xlu0 17
        %1496 = vperm.xlu0 %1495, %v141
        %v1497 = vpop.permute.xlu0 %1496
        %1499 = vset.pattern.permute.xlu0 17
        %1500 = vperm.xlu0 %1499, %v142
        %v1501 = vpop.permute.xlu0 %1500
        %1503 = vset.pattern.permute.xlu0 17
        %1504 = vperm.xlu0 %1503, %v143
        %v1505 = vpop.permute.xlu0 %1504
        %1507 = vset.pattern.permute.xlu0 17
        %1508 = vperm.xlu0 %1507, %v144
        %v1509 = vpop.permute.xlu0 %1508
        %v1511 = vsub.f32 %v1481, %v149
        %v1512 = vsub.f32 %v1485, %v149
        %v1513 = vsub.f32 %v1489, %v149
        %v1514 = vsub.f32 %v1493, %v149
        %v1515 = vsub.f32 %v1497, %v149
        %v1516 = vsub.f32 %v1501, %v149
        %v1517 = vsub.f32 %v1505, %v149
        %v1518 = vsub.f32 %v1509, %v149
        %1527 = vrot.lane.b32.xlu0 %v1511, 64
        %v1528 = vpop.permute.xlu0 %1527
        %1529 = vrot.lane.b32.xlu0 %v1512, 64
        %v1530 = vpop.permute.xlu0 %1529
        %1531 = vrot.lane.b32.xlu0 %v1513, 64
        %v1532 = vpop.permute.xlu0 %1531
        %1533 = vrot.lane.b32.xlu0 %v1514, 64
        %v1534 = vpop.permute.xlu0 %1533
        %1535 = vrot.lane.b32.xlu0 %v1515, 64
        %v1536 = vpop.permute.xlu0 %1535
        %1537 = vrot.lane.b32.xlu0 %v1516, 64
        %v1538 = vpop.permute.xlu0 %1537
        %1539 = vrot.lane.b32.xlu0 %v1517, 64
        %v1540 = vpop.permute.xlu0 %1539
        %1541 = vrot.lane.b32.xlu0 %v1518, 64
        %v1542 = vpop.permute.xlu0 %1541
        %v1551 = vsel %vm270, %v1471, %v1528
        %v1552 = vsel %vm270, %v1472, %v1530
        %v1553 = vsel %vm270, %v1473, %v1532
        %v1554 = vsel %vm270, %v1474, %v1534
        %v1555 = vsel %vm270, %v1475, %v1536
        %v1556 = vsel %vm270, %v1476, %v1538
        %v1557 = vsel %vm270, %v1477, %v1540
        %v1558 = vsel %vm270, %v1478, %v1542
        %v1559 = vmul.f32 %v1551, -12.6
        %v1560 = vmul.f32 %v1552, -12.6
        %v1561 = vmul.f32 %v1553, -12.6
        %v1562 = vmul.f32 %v1554, -12.6
        %v1563 = vmul.f32 %v1555, -12.6
        %v1564 = vmul.f32 %v1556, -12.6
        %v1565 = vmul.f32 %v1557, -12.6
        %v1566 = vmul.f32 %v1558, -12.6
        %v1567 = vmul.f32 %v1559, %v1551
        %v1568 = vmul.f32 %v1560, %v1552
        %v1569 = vmul.f32 %v1561, %v1553
        %v1570 = vmul.f32 %v1562, %v1554
        %v1571 = vmul.f32 %v1563, %v1555
        %v1572 = vmul.f32 %v1564, %v1556
        %v1573 = vmul.f32 %v1565, %v1557
        %v1574 = vmul.f32 %v1566, %v1558
        %v1575 = vmul.f32 %v1567, 1.442695
        %v1576 = vpow.pop %v1575
        %v1577 = vmul.f32 %v1568, 1.442695
        %v1578 = vpow.pop %v1577
        %v1579 = vmul.f32 %v1569, 1.442695
        %v1580 = vpow.pop %v1579
        %v1581 = vmul.f32 %v1570, 1.442695
        %v1582 = vpow.pop %v1581
        %v1583 = vmul.f32 %v1571, 1.442695
        %v1584 = vpow.pop %v1583
        %v1585 = vmul.f32 %v1572, 1.442695
        %v1586 = vpow.pop %v1585
        %v1587 = vmul.f32 %v1573, 1.442695
        %v1588 = vpow.pop %v1587
        %v1589 = vmul.f32 %v1574, 1.442695
        %v1590 = vpow.pop %v1589
        %1591 = vst [vmem:[%s134 + $0x40] sm:$0xff] %v1576
        %1592 = vst [vmem:[%s134 + $0x240] sm:$0xff] %v1578
        %1593 = vst [vmem:[%s134 + $0x440] sm:$0xff] %v1580
        %1594 = vst [vmem:[%s134 + $0x640] sm:$0xff] %v1582
        %1595 = vst [vmem:[%s134 + $0x840] sm:$0xff] %v1584
        %1596 = vst [vmem:[%s134 + $0xa40] sm:$0xff] %v1586
        %1597 = vst [vmem:[%s134 + $0xc40] sm:$0xff] %v1588
        %1598 = vst [vmem:[%s134 + $0xe40] sm:$0xff] %v1590
        %1599 = vset.pattern.permute.xlu0 18
        %1600 = vperm.xlu0 %1599, %v137
        %v1601 = vpop.permute.xlu0 %1600
        %1603 = vset.pattern.permute.xlu0 18
        %1604 = vperm.xlu0 %1603, %v138
        %v1605 = vpop.permute.xlu0 %1604
        %1607 = vset.pattern.permute.xlu0 18
        %1608 = vperm.xlu0 %1607, %v139
        %v1609 = vpop.permute.xlu0 %1608
        %1611 = vset.pattern.permute.xlu0 18
        %1612 = vperm.xlu0 %1611, %v140
        %v1613 = vpop.permute.xlu0 %1612
        %1615 = vset.pattern.permute.xlu0 18
        %1616 = vperm.xlu0 %1615, %v141
        %v1617 = vpop.permute.xlu0 %1616
        %1619 = vset.pattern.permute.xlu0 18
        %1620 = vperm.xlu0 %1619, %v142
        %v1621 = vpop.permute.xlu0 %1620
        %1623 = vset.pattern.permute.xlu0 18
        %1624 = vperm.xlu0 %1623, %v143
        %v1625 = vpop.permute.xlu0 %1624
        %1627 = vset.pattern.permute.xlu0 18
        %1628 = vperm.xlu0 %1627, %v144
        %v1629 = vpop.permute.xlu0 %1628
        %v1631 = vsub.f32 %v1601, %v149
        %v1632 = vsub.f32 %v1605, %v149
        %v1633 = vsub.f32 %v1609, %v149
        %v1634 = vsub.f32 %v1613, %v149
        %v1635 = vsub.f32 %v1617, %v149
        %v1636 = vsub.f32 %v1621, %v149
        %v1637 = vsub.f32 %v1625, %v149
        %v1638 = vsub.f32 %v1629, %v149
        %1639 = vset.pattern.permute.xlu0 19
        %1640 = vperm.xlu0 %1639, %v137
        %v1641 = vpop.permute.xlu0 %1640
        %1643 = vset.pattern.permute.xlu0 19
        %1644 = vperm.xlu0 %1643, %v138
        %v1645 = vpop.permute.xlu0 %1644
        %1647 = vset.pattern.permute.xlu0 19
        %1648 = vperm.xlu0 %1647, %v139
        %v1649 = vpop.permute.xlu0 %1648
        %1651 = vset.pattern.permute.xlu0 19
        %1652 = vperm.xlu0 %1651, %v140
        %v1653 = vpop.permute.xlu0 %1652
        %1655 = vset.pattern.permute.xlu0 19
        %1656 = vperm.xlu0 %1655, %v141
        %v1657 = vpop.permute.xlu0 %1656
        %1659 = vset.pattern.permute.xlu0 19
        %1660 = vperm.xlu0 %1659, %v142
        %v1661 = vpop.permute.xlu0 %1660
        %1663 = vset.pattern.permute.xlu0 19
        %1664 = vperm.xlu0 %1663, %v143
        %v1665 = vpop.permute.xlu0 %1664
        %1667 = vset.pattern.permute.xlu0 19
        %1668 = vperm.xlu0 %1667, %v144
        %v1669 = vpop.permute.xlu0 %1668
        %v1671 = vsub.f32 %v1641, %v149
        %v1672 = vsub.f32 %v1645, %v149
        %v1673 = vsub.f32 %v1649, %v149
        %v1674 = vsub.f32 %v1653, %v149
        %v1675 = vsub.f32 %v1657, %v149
        %v1676 = vsub.f32 %v1661, %v149
        %v1677 = vsub.f32 %v1665, %v149
        %v1678 = vsub.f32 %v1669, %v149
        %1687 = vrot.lane.b32.xlu0 %v1671, 64
        %v1688 = vpop.permute.xlu0 %1687
        %1689 = vrot.lane.b32.xlu0 %v1672, 64
        %v1690 = vpop.permute.xlu0 %1689
        %1691 = vrot.lane.b32.xlu0 %v1673, 64
        %v1692 = vpop.permute.xlu0 %1691
        %1693 = vrot.lane.b32.xlu0 %v1674, 64
        %v1694 = vpop.permute.xlu0 %1693
        %1695 = vrot.lane.b32.xlu0 %v1675, 64
        %v1696 = vpop.permute.xlu0 %1695
        %1697 = vrot.lane.b32.xlu0 %v1676, 64
        %v1698 = vpop.permute.xlu0 %1697
        %1699 = vrot.lane.b32.xlu0 %v1677, 64
        %v1700 = vpop.permute.xlu0 %1699
        %1701 = vrot.lane.b32.xlu0 %v1678, 64
        %v1702 = vpop.permute.xlu0 %1701
        %v1711 = vsel %vm270, %v1631, %v1688
        %v1712 = vsel %vm270, %v1632, %v1690
        %v1713 = vsel %vm270, %v1633, %v1692
        %v1714 = vsel %vm270, %v1634, %v1694
        %v1715 = vsel %vm270, %v1635, %v1696
        %v1716 = vsel %vm270, %v1636, %v1698
        %v1717 = vsel %vm270, %v1637, %v1700
        %v1718 = vsel %vm270, %v1638, %v1702
        %v1719 = vmul.f32 %v1711, -12.6
        %v1720 = vmul.f32 %v1712, -12.6
        %v1721 = vmul.f32 %v1713, -12.6
        %v1722 = vmul.f32 %v1714, -12.6
        %v1723 = vmul.f32 %v1715, -12.6
        %v1724 = vmul.f32 %v1716, -12.6
        %v1725 = vmul.f32 %v1717, -12.6
        %v1726 = vmul.f32 %v1718, -12.6
        %v1727 = vmul.f32 %v1719, %v1711
        %v1728 = vmul.f32 %v1720, %v1712
        %v1729 = vmul.f32 %v1721, %v1713
        %v1730 = vmul.f32 %v1722, %v1714
        %v1731 = vmul.f32 %v1723, %v1715
        %v1732 = vmul.f32 %v1724, %v1716
        %v1733 = vmul.f32 %v1725, %v1717
        %v1734 = vmul.f32 %v1726, %v1718
        %v1735 = vmul.f32 %v1727, 1.442695
        %v1736 = vpow.pop %v1735
        %v1737 = vmul.f32 %v1728, 1.442695
        %v1738 = vpow.pop %v1737
        %v1739 = vmul.f32 %v1729, 1.442695
        %v1740 = vpow.pop %v1739
        %v1741 = vmul.f32 %v1730, 1.442695
        %v1742 = vpow.pop %v1741
        %v1743 = vmul.f32 %v1731, 1.442695
        %v1744 = vpow.pop %v1743
        %v1745 = vmul.f32 %v1732, 1.442695
        %v1746 = vpow.pop %v1745
        %v1747 = vmul.f32 %v1733, 1.442695
        %v1748 = vpow.pop %v1747
        %v1749 = vmul.f32 %v1734, 1.442695
        %v1750 = vpow.pop %v1749
        %1751 = vst [vmem:[%s134 + $0x48] sm:$0xff] %v1736
        %1752 = vst [vmem:[%s134 + $0x248] sm:$0xff] %v1738
        %1753 = vst [vmem:[%s134 + $0x448] sm:$0xff] %v1740
        %1754 = vst [vmem:[%s134 + $0x648] sm:$0xff] %v1742
        %1755 = vst [vmem:[%s134 + $0x848] sm:$0xff] %v1744
        %1756 = vst [vmem:[%s134 + $0xa48] sm:$0xff] %v1746
        %1757 = vst [vmem:[%s134 + $0xc48] sm:$0xff] %v1748
        %1758 = vst [vmem:[%s134 + $0xe48] sm:$0xff] %v1750
        %1759 = vset.pattern.permute.xlu0 20
        %1760 = vperm.xlu0 %1759, %v137
        %v1761 = vpop.permute.xlu0 %1760
        %1763 = vset.pattern.permute.xlu0 20
        %1764 = vperm.xlu0 %1763, %v138
        %v1765 = vpop.permute.xlu0 %1764
        %1767 = vset.pattern.permute.xlu0 20
        %1768 = vperm.xlu0 %1767, %v139
        %v1769 = vpop.permute.xlu0 %1768
        %1771 = vset.pattern.permute.xlu0 20
        %1772 = vperm.xlu0 %1771, %v140
        %v1773 = vpop.permute.xlu0 %1772
        %1775 = vset.pattern.permute.xlu0 20
        %1776 = vperm.xlu0 %1775, %v141
        %v1777 = vpop.permute.xlu0 %1776
        %1779 = vset.pattern.permute.xlu0 20
        %1780 = vperm.xlu0 %1779, %v142
        %v1781 = vpop.permute.xlu0 %1780
        %1783 = vset.pattern.permute.xlu0 20
        %1784 = vperm.xlu0 %1783, %v143
        %v1785 = vpop.permute.xlu0 %1784
        %1787 = vset.pattern.permute.xlu0 20
        %1788 = vperm.xlu0 %1787, %v144
        %v1789 = vpop.permute.xlu0 %1788
        %v1791 = vsub.f32 %v1761, %v149
        %v1792 = vsub.f32 %v1765, %v149
        %v1793 = vsub.f32 %v1769, %v149
        %v1794 = vsub.f32 %v1773, %v149
        %v1795 = vsub.f32 %v1777, %v149
        %v1796 = vsub.f32 %v1781, %v149
        %v1797 = vsub.f32 %v1785, %v149
        %v1798 = vsub.f32 %v1789, %v149
        %1799 = vset.pattern.permute.xlu0 21
        %1800 = vperm.xlu0 %1799, %v137
        %v1801 = vpop.permute.xlu0 %1800
        %1803 = vset.pattern.permute.xlu0 21
        %1804 = vperm.xlu0 %1803, %v138
        %v1805 = vpop.permute.xlu0 %1804
        %1807 = vset.pattern.permute.xlu0 21
        %1808 = vperm.xlu0 %1807, %v139
        %v1809 = vpop.permute.xlu0 %1808
        %1811 = vset.pattern.permute.xlu0 21
        %1812 = vperm.xlu0 %1811, %v140
        %v1813 = vpop.permute.xlu0 %1812
        %1815 = vset.pattern.permute.xlu0 21
        %1816 = vperm.xlu0 %1815, %v141
        %v1817 = vpop.permute.xlu0 %1816
        %1819 = vset.pattern.permute.xlu0 21
        %1820 = vperm.xlu0 %1819, %v142
        %v1821 = vpop.permute.xlu0 %1820
        %1823 = vset.pattern.permute.xlu0 21
        %1824 = vperm.xlu0 %1823, %v143
        %v1825 = vpop.permute.xlu0 %1824
        %1827 = vset.pattern.permute.xlu0 21
        %1828 = vperm.xlu0 %1827, %v144
        %v1829 = vpop.permute.xlu0 %1828
        %v1831 = vsub.f32 %v1801, %v149
        %v1832 = vsub.f32 %v1805, %v149
        %v1833 = vsub.f32 %v1809, %v149
        %v1834 = vsub.f32 %v1813, %v149
        %v1835 = vsub.f32 %v1817, %v149
        %v1836 = vsub.f32 %v1821, %v149
        %v1837 = vsub.f32 %v1825, %v149
        %v1838 = vsub.f32 %v1829, %v149
        %1847 = vrot.lane.b32.xlu0 %v1831, 64
        %v1848 = vpop.permute.xlu0 %1847
        %1849 = vrot.lane.b32.xlu0 %v1832, 64
        %v1850 = vpop.permute.xlu0 %1849
        %1851 = vrot.lane.b32.xlu0 %v1833, 64
        %v1852 = vpop.permute.xlu0 %1851
        %1853 = vrot.lane.b32.xlu0 %v1834, 64
        %v1854 = vpop.permute.xlu0 %1853
        %1855 = vrot.lane.b32.xlu0 %v1835, 64
        %v1856 = vpop.permute.xlu0 %1855
        %1857 = vrot.lane.b32.xlu0 %v1836, 64
        %v1858 = vpop.permute.xlu0 %1857
        %1859 = vrot.lane.b32.xlu0 %v1837, 64
        %v1860 = vpop.permute.xlu0 %1859
        %1861 = vrot.lane.b32.xlu0 %v1838, 64
        %v1862 = vpop.permute.xlu0 %1861
        %v1871 = vsel %vm270, %v1791, %v1848
        %v1872 = vsel %vm270, %v1792, %v1850
        %v1873 = vsel %vm270, %v1793, %v1852
        %v1874 = vsel %vm270, %v1794, %v1854
        %v1875 = vsel %vm270, %v1795, %v1856
        %v1876 = vsel %vm270, %v1796, %v1858
        %v1877 = vsel %vm270, %v1797, %v1860
        %v1878 = vsel %vm270, %v1798, %v1862
        %v1879 = vmul.f32 %v1871, -12.6
        %v1880 = vmul.f32 %v1872, -12.6
        %v1881 = vmul.f32 %v1873, -12.6
        %v1882 = vmul.f32 %v1874, -12.6
        %v1883 = vmul.f32 %v1875, -12.6
        %v1884 = vmul.f32 %v1876, -12.6
        %v1885 = vmul.f32 %v1877, -12.6
        %v1886 = vmul.f32 %v1878, -12.6
        %v1887 = vmul.f32 %v1879, %v1871
        %v1888 = vmul.f32 %v1880, %v1872
        %v1889 = vmul.f32 %v1881, %v1873
        %v1890 = vmul.f32 %v1882, %v1874
        %v1891 = vmul.f32 %v1883, %v1875
        %v1892 = vmul.f32 %v1884, %v1876
        %v1893 = vmul.f32 %v1885, %v1877
        %v1894 = vmul.f32 %v1886, %v1878
        %v1895 = vmul.f32 %v1887, 1.442695
        %v1896 = vpow.pop %v1895
        %v1897 = vmul.f32 %v1888, 1.442695
        %v1898 = vpow.pop %v1897
        %v1899 = vmul.f32 %v1889, 1.442695
        %v1900 = vpow.pop %v1899
        %v1901 = vmul.f32 %v1890, 1.442695
        %v1902 = vpow.pop %v1901
        %v1903 = vmul.f32 %v1891, 1.442695
        %v1904 = vpow.pop %v1903
        %v1905 = vmul.f32 %v1892, 1.442695
        %v1906 = vpow.pop %v1905
        %v1907 = vmul.f32 %v1893, 1.442695
        %v1908 = vpow.pop %v1907
        %v1909 = vmul.f32 %v1894, 1.442695
        %v1910 = vpow.pop %v1909
        %1911 = vst [vmem:[%s134 + $0x50] sm:$0xff] %v1896
        %1912 = vst [vmem:[%s134 + $0x250] sm:$0xff] %v1898
        %1913 = vst [vmem:[%s134 + $0x450] sm:$0xff] %v1900
        %1914 = vst [vmem:[%s134 + $0x650] sm:$0xff] %v1902
        %1915 = vst [vmem:[%s134 + $0x850] sm:$0xff] %v1904
        %1916 = vst [vmem:[%s134 + $0xa50] sm:$0xff] %v1906
        %1917 = vst [vmem:[%s134 + $0xc50] sm:$0xff] %v1908
        %1918 = vst [vmem:[%s134 + $0xe50] sm:$0xff] %v1910
        %1919 = vset.pattern.permute.xlu0 22
        %1920 = vperm.xlu0 %1919, %v137
        %v1921 = vpop.permute.xlu0 %1920
        %1923 = vset.pattern.permute.xlu0 22
        %1924 = vperm.xlu0 %1923, %v138
        %v1925 = vpop.permute.xlu0 %1924
        %1927 = vset.pattern.permute.xlu0 22
        %1928 = vperm.xlu0 %1927, %v139
        %v1929 = vpop.permute.xlu0 %1928
        %1931 = vset.pattern.permute.xlu0 22
        %1932 = vperm.xlu0 %1931, %v140
        %v1933 = vpop.permute.xlu0 %1932
        %1935 = vset.pattern.permute.xlu0 22
        %1936 = vperm.xlu0 %1935, %v141
        %v1937 = vpop.permute.xlu0 %1936
        %1939 = vset.pattern.permute.xlu0 22
        %1940 = vperm.xlu0 %1939, %v142
        %v1941 = vpop.permute.xlu0 %1940
        %1943 = vset.pattern.permute.xlu0 22
        %1944 = vperm.xlu0 %1943, %v143
        %v1945 = vpop.permute.xlu0 %1944
        %1947 = vset.pattern.permute.xlu0 22
        %1948 = vperm.xlu0 %1947, %v144
        %v1949 = vpop.permute.xlu0 %1948
        %v1951 = vsub.f32 %v1921, %v149
        %v1952 = vsub.f32 %v1925, %v149
        %v1953 = vsub.f32 %v1929, %v149
        %v1954 = vsub.f32 %v1933, %v149
        %v1955 = vsub.f32 %v1937, %v149
        %v1956 = vsub.f32 %v1941, %v149
        %v1957 = vsub.f32 %v1945, %v149
        %v1958 = vsub.f32 %v1949, %v149
        %1959 = vset.pattern.permute.xlu0 23
        %1960 = vperm.xlu0 %1959, %v137
        %v1961 = vpop.permute.xlu0 %1960
        %1963 = vset.pattern.permute.xlu0 23
        %1964 = vperm.xlu0 %1963, %v138
        %v1965 = vpop.permute.xlu0 %1964
        %1967 = vset.pattern.permute.xlu0 23
        %1968 = vperm.xlu0 %1967, %v139
        %v1969 = vpop.permute.xlu0 %1968
        %1971 = vset.pattern.permute.xlu0 23
        %1972 = vperm.xlu0 %1971, %v140
        %v1973 = vpop.permute.xlu0 %1972
        %1975 = vset.pattern.permute.xlu0 23
        %1976 = vperm.xlu0 %1975, %v141
        %v1977 = vpop.permute.xlu0 %1976
        %1979 = vset.pattern.permute.xlu0 23
        %1980 = vperm.xlu0 %1979, %v142
        %v1981 = vpop.permute.xlu0 %1980
        %1983 = vset.pattern.permute.xlu0 23
        %1984 = vperm.xlu0 %1983, %v143
        %v1985 = vpop.permute.xlu0 %1984
        %1987 = vset.pattern.permute.xlu0 23
        %1988 = vperm.xlu0 %1987, %v144
        %v1989 = vpop.permute.xlu0 %1988
        %v1991 = vsub.f32 %v1961, %v149
        %v1992 = vsub.f32 %v1965, %v149
        %v1993 = vsub.f32 %v1969, %v149
        %v1994 = vsub.f32 %v1973, %v149
        %v1995 = vsub.f32 %v1977, %v149
        %v1996 = vsub.f32 %v1981, %v149
        %v1997 = vsub.f32 %v1985, %v149
        %v1998 = vsub.f32 %v1989, %v149
        %2007 = vrot.lane.b32.xlu0 %v1991, 64
        %v2008 = vpop.permute.xlu0 %2007
        %2009 = vrot.lane.b32.xlu0 %v1992, 64
        %v2010 = vpop.permute.xlu0 %2009
        %2011 = vrot.lane.b32.xlu0 %v1993, 64
        %v2012 = vpop.permute.xlu0 %2011
        %2013 = vrot.lane.b32.xlu0 %v1994, 64
        %v2014 = vpop.permute.xlu0 %2013
        %2015 = vrot.lane.b32.xlu0 %v1995, 64
        %v2016 = vpop.permute.xlu0 %2015
        %2017 = vrot.lane.b32.xlu0 %v1996, 64
        %v2018 = vpop.permute.xlu0 %2017
        %2019 = vrot.lane.b32.xlu0 %v1997, 64
        %v2020 = vpop.permute.xlu0 %2019
        %2021 = vrot.lane.b32.xlu0 %v1998, 64
        %v2022 = vpop.permute.xlu0 %2021
        %v2031 = vsel %vm270, %v1951, %v2008
        %v2032 = vsel %vm270, %v1952, %v2010
        %v2033 = vsel %vm270, %v1953, %v2012
        %v2034 = vsel %vm270, %v1954, %v2014
        %v2035 = vsel %vm270, %v1955, %v2016
        %v2036 = vsel %vm270, %v1956, %v2018
        %v2037 = vsel %vm270, %v1957, %v2020
        %v2038 = vsel %vm270, %v1958, %v2022
        %v2039 = vmul.f32 %v2031, -12.6
        %v2040 = vmul.f32 %v2032, -12.6
        %v2041 = vmul.f32 %v2033, -12.6
        %v2042 = vmul.f32 %v2034, -12.6
        %v2043 = vmul.f32 %v2035, -12.6
        %v2044 = vmul.f32 %v2036, -12.6
        %v2045 = vmul.f32 %v2037, -12.6
        %v2046 = vmul.f32 %v2038, -12.6
        %v2047 = vmul.f32 %v2039, %v2031
        %v2048 = vmul.f32 %v2040, %v2032
        %v2049 = vmul.f32 %v2041, %v2033
        %v2050 = vmul.f32 %v2042, %v2034
        %v2051 = vmul.f32 %v2043, %v2035
        %v2052 = vmul.f32 %v2044, %v2036
        %v2053 = vmul.f32 %v2045, %v2037
        %v2054 = vmul.f32 %v2046, %v2038
        %v2055 = vmul.f32 %v2047, 1.442695
        %v2056 = vpow.pop %v2055
        %v2057 = vmul.f32 %v2048, 1.442695
        %v2058 = vpow.pop %v2057
        %v2059 = vmul.f32 %v2049, 1.442695
        %v2060 = vpow.pop %v2059
        %v2061 = vmul.f32 %v2050, 1.442695
        %v2062 = vpow.pop %v2061
        %v2063 = vmul.f32 %v2051, 1.442695
        %v2064 = vpow.pop %v2063
        %v2065 = vmul.f32 %v2052, 1.442695
        %v2066 = vpow.pop %v2065
        %v2067 = vmul.f32 %v2053, 1.442695
        %v2068 = vpow.pop %v2067
        %v2069 = vmul.f32 %v2054, 1.442695
        %v2070 = vpow.pop %v2069
        %2071 = vst [vmem:[%s134 + $0x58] sm:$0xff] %v2056
        %2072 = vst [vmem:[%s134 + $0x258] sm:$0xff] %v2058
        %2073 = vst [vmem:[%s134 + $0x458] sm:$0xff] %v2060
        %2074 = vst [vmem:[%s134 + $0x658] sm:$0xff] %v2062
        %2075 = vst [vmem:[%s134 + $0x858] sm:$0xff] %v2064
        %2076 = vst [vmem:[%s134 + $0xa58] sm:$0xff] %v2066
        %2077 = vst [vmem:[%s134 + $0xc58] sm:$0xff] %v2068
        %2078 = vst [vmem:[%s134 + $0xe58] sm:$0xff] %v2070
        %2079 = vset.pattern.permute.xlu0 24
        %2080 = vperm.xlu0 %2079, %v137
        %v2081 = vpop.permute.xlu0 %2080
        %2083 = vset.pattern.permute.xlu0 24
        %2084 = vperm.xlu0 %2083, %v138
        %v2085 = vpop.permute.xlu0 %2084
        %2087 = vset.pattern.permute.xlu0 24
        %2088 = vperm.xlu0 %2087, %v139
        %v2089 = vpop.permute.xlu0 %2088
        %2091 = vset.pattern.permute.xlu0 24
        %2092 = vperm.xlu0 %2091, %v140
        %v2093 = vpop.permute.xlu0 %2092
        %2095 = vset.pattern.permute.xlu0 24
        %2096 = vperm.xlu0 %2095, %v141
        %v2097 = vpop.permute.xlu0 %2096
        %2099 = vset.pattern.permute.xlu0 24
        %2100 = vperm.xlu0 %2099, %v142
        %v2101 = vpop.permute.xlu0 %2100
        %2103 = vset.pattern.permute.xlu0 24
        %2104 = vperm.xlu0 %2103, %v143
        %v2105 = vpop.permute.xlu0 %2104
        %2107 = vset.pattern.permute.xlu0 24
        %2108 = vperm.xlu0 %2107, %v144
        %v2109 = vpop.permute.xlu0 %2108
        %v2111 = vsub.f32 %v2081, %v149
        %v2112 = vsub.f32 %v2085, %v149
        %v2113 = vsub.f32 %v2089, %v149
        %v2114 = vsub.f32 %v2093, %v149
        %v2115 = vsub.f32 %v2097, %v149
        %v2116 = vsub.f32 %v2101, %v149
        %v2117 = vsub.f32 %v2105, %v149
        %v2118 = vsub.f32 %v2109, %v149
        %2119 = vset.pattern.permute.xlu0 25
        %2120 = vperm.xlu0 %2119, %v137
        %v2121 = vpop.permute.xlu0 %2120
        %2123 = vset.pattern.permute.xlu0 25
        %2124 = vperm.xlu0 %2123, %v138
        %v2125 = vpop.permute.xlu0 %2124
        %2127 = vset.pattern.permute.xlu0 25
        %2128 = vperm.xlu0 %2127, %v139
        %v2129 = vpop.permute.xlu0 %2128
        %2131 = vset.pattern.permute.xlu0 25
        %2132 = vperm.xlu0 %2131, %v140
        %v2133 = vpop.permute.xlu0 %2132
        %2135 = vset.pattern.permute.xlu0 25
        %2136 = vperm.xlu0 %2135, %v141
        %v2137 = vpop.permute.xlu0 %2136
        %2139 = vset.pattern.permute.xlu0 25
        %2140 = vperm.xlu0 %2139, %v142
        %v2141 = vpop.permute.xlu0 %2140
        %2143 = vset.pattern.permute.xlu0 25
        %2144 = vperm.xlu0 %2143, %v143
        %v2145 = vpop.permute.xlu0 %2144
        %2147 = vset.pattern.permute.xlu0 25
        %2148 = vperm.xlu0 %2147, %v144
        %v2149 = vpop.permute.xlu0 %2148
        %v2151 = vsub.f32 %v2121, %v149
        %v2152 = vsub.f32 %v2125, %v149
        %v2153 = vsub.f32 %v2129, %v149
        %v2154 = vsub.f32 %v2133, %v149
        %v2155 = vsub.f32 %v2137, %v149
        %v2156 = vsub.f32 %v2141, %v149
        %v2157 = vsub.f32 %v2145, %v149
        %v2158 = vsub.f32 %v2149, %v149
        %2167 = vrot.lane.b32.xlu0 %v2151, 64
        %v2168 = vpop.permute.xlu0 %2167
        %2169 = vrot.lane.b32.xlu0 %v2152, 64
        %v2170 = vpop.permute.xlu0 %2169
        %2171 = vrot.lane.b32.xlu0 %v2153, 64
        %v2172 = vpop.permute.xlu0 %2171
        %2173 = vrot.lane.b32.xlu0 %v2154, 64
        %v2174 = vpop.permute.xlu0 %2173
        %2175 = vrot.lane.b32.xlu0 %v2155, 64
        %v2176 = vpop.permute.xlu0 %2175
        %2177 = vrot.lane.b32.xlu0 %v2156, 64
        %v2178 = vpop.permute.xlu0 %2177
        %2179 = vrot.lane.b32.xlu0 %v2157, 64
        %v2180 = vpop.permute.xlu0 %2179
        %2181 = vrot.lane.b32.xlu0 %v2158, 64
        %v2182 = vpop.permute.xlu0 %2181
        %v2191 = vsel %vm270, %v2111, %v2168
        %v2192 = vsel %vm270, %v2112, %v2170
        %v2193 = vsel %vm270, %v2113, %v2172
        %v2194 = vsel %vm270, %v2114, %v2174
        %v2195 = vsel %vm270, %v2115, %v2176
        %v2196 = vsel %vm270, %v2116, %v2178
        %v2197 = vsel %vm270, %v2117, %v2180
        %v2198 = vsel %vm270, %v2118, %v2182
        %v2199 = vmul.f32 %v2191, -12.6
        %v2200 = vmul.f32 %v2192, -12.6
        %v2201 = vmul.f32 %v2193, -12.6
        %v2202 = vmul.f32 %v2194, -12.6
        %v2203 = vmul.f32 %v2195, -12.6
        %v2204 = vmul.f32 %v2196, -12.6
        %v2205 = vmul.f32 %v2197, -12.6
        %v2206 = vmul.f32 %v2198, -12.6
        %v2207 = vmul.f32 %v2199, %v2191
        %v2208 = vmul.f32 %v2200, %v2192
        %v2209 = vmul.f32 %v2201, %v2193
        %v2210 = vmul.f32 %v2202, %v2194
        %v2211 = vmul.f32 %v2203, %v2195
        %v2212 = vmul.f32 %v2204, %v2196
        %v2213 = vmul.f32 %v2205, %v2197
        %v2214 = vmul.f32 %v2206, %v2198
        %v2215 = vmul.f32 %v2207, 1.442695
        %v2216 = vpow.pop %v2215
        %v2217 = vmul.f32 %v2208, 1.442695
        %v2218 = vpow.pop %v2217
        %v2219 = vmul.f32 %v2209, 1.442695
        %v2220 = vpow.pop %v2219
        %v2221 = vmul.f32 %v2210, 1.442695
        %v2222 = vpow.pop %v2221
        %v2223 = vmul.f32 %v2211, 1.442695
        %v2224 = vpow.pop %v2223
        %v2225 = vmul.f32 %v2212, 1.442695
        %v2226 = vpow.pop %v2225
        %v2227 = vmul.f32 %v2213, 1.442695
        %v2228 = vpow.pop %v2227
        %v2229 = vmul.f32 %v2214, 1.442695
        %v2230 = vpow.pop %v2229
        %2231 = vst [vmem:[%s134 + $0x60] sm:$0xff] %v2216
        %2232 = vst [vmem:[%s134 + $0x260] sm:$0xff] %v2218
        %2233 = vst [vmem:[%s134 + $0x460] sm:$0xff] %v2220
        %2234 = vst [vmem:[%s134 + $0x660] sm:$0xff] %v2222
        %2235 = vst [vmem:[%s134 + $0x860] sm:$0xff] %v2224
        %2236 = vst [vmem:[%s134 + $0xa60] sm:$0xff] %v2226
        %2237 = vst [vmem:[%s134 + $0xc60] sm:$0xff] %v2228
        %2238 = vst [vmem:[%s134 + $0xe60] sm:$0xff] %v2230
        %2239 = vset.pattern.permute.xlu0 26
        %2240 = vperm.xlu0 %2239, %v137
        %v2241 = vpop.permute.xlu0 %2240
        %2243 = vset.pattern.permute.xlu0 26
        %2244 = vperm.xlu0 %2243, %v138
        %v2245 = vpop.permute.xlu0 %2244
        %2247 = vset.pattern.permute.xlu0 26
        %2248 = vperm.xlu0 %2247, %v139
        %v2249 = vpop.permute.xlu0 %2248
        %2251 = vset.pattern.permute.xlu0 26
        %2252 = vperm.xlu0 %2251, %v140
        %v2253 = vpop.permute.xlu0 %2252
        %2255 = vset.pattern.permute.xlu0 26
        %2256 = vperm.xlu0 %2255, %v141
        %v2257 = vpop.permute.xlu0 %2256
        %2259 = vset.pattern.permute.xlu0 26
        %2260 = vperm.xlu0 %2259, %v142
        %v2261 = vpop.permute.xlu0 %2260
        %2263 = vset.pattern.permute.xlu0 26
        %2264 = vperm.xlu0 %2263, %v143
        %v2265 = vpop.permute.xlu0 %2264
        %2267 = vset.pattern.permute.xlu0 26
        %2268 = vperm.xlu0 %2267, %v144
        %v2269 = vpop.permute.xlu0 %2268
        %v2271 = vsub.f32 %v2241, %v149
        %v2272 = vsub.f32 %v2245, %v149
        %v2273 = vsub.f32 %v2249, %v149
        %v2274 = vsub.f32 %v2253, %v149
        %v2275 = vsub.f32 %v2257, %v149
        %v2276 = vsub.f32 %v2261, %v149
        %v2277 = vsub.f32 %v2265, %v149
        %v2278 = vsub.f32 %v2269, %v149
        %2279 = vset.pattern.permute.xlu0 27
        %2280 = vperm.xlu0 %2279, %v137
        %v2281 = vpop.permute.xlu0 %2280
        %2283 = vset.pattern.permute.xlu0 27
        %2284 = vperm.xlu0 %2283, %v138
        %v2285 = vpop.permute.xlu0 %2284
        %2287 = vset.pattern.permute.xlu0 27
        %2288 = vperm.xlu0 %2287, %v139
        %v2289 = vpop.permute.xlu0 %2288
        %2291 = vset.pattern.permute.xlu0 27
        %2292 = vperm.xlu0 %2291, %v140
        %v2293 = vpop.permute.xlu0 %2292
        %2295 = vset.pattern.permute.xlu0 27
        %2296 = vperm.xlu0 %2295, %v141
        %v2297 = vpop.permute.xlu0 %2296
        %2299 = vset.pattern.permute.xlu0 27
        %2300 = vperm.xlu0 %2299, %v142
        %v2301 = vpop.permute.xlu0 %2300
        %2303 = vset.pattern.permute.xlu0 27
        %2304 = vperm.xlu0 %2303, %v143
        %v2305 = vpop.permute.xlu0 %2304
        %2307 = vset.pattern.permute.xlu0 27
        %2308 = vperm.xlu0 %2307, %v144
        %v2309 = vpop.permute.xlu0 %2308
        %v2311 = vsub.f32 %v2281, %v149
        %v2312 = vsub.f32 %v2285, %v149
        %v2313 = vsub.f32 %v2289, %v149
        %v2314 = vsub.f32 %v2293, %v149
        %v2315 = vsub.f32 %v2297, %v149
        %v2316 = vsub.f32 %v2301, %v149
        %v2317 = vsub.f32 %v2305, %v149
        %v2318 = vsub.f32 %v2309, %v149
        %2327 = vrot.lane.b32.xlu0 %v2311, 64
        %v2328 = vpop.permute.xlu0 %2327
        %2329 = vrot.lane.b32.xlu0 %v2312, 64
        %v2330 = vpop.permute.xlu0 %2329
        %2331 = vrot.lane.b32.xlu0 %v2313, 64
        %v2332 = vpop.permute.xlu0 %2331
        %2333 = vrot.lane.b32.xlu0 %v2314, 64
        %v2334 = vpop.permute.xlu0 %2333
        %2335 = vrot.lane.b32.xlu0 %v2315, 64
        %v2336 = vpop.permute.xlu0 %2335
        %2337 = vrot.lane.b32.xlu0 %v2316, 64
        %v2338 = vpop.permute.xlu0 %2337
        %2339 = vrot.lane.b32.xlu0 %v2317, 64
        %v2340 = vpop.permute.xlu0 %2339
        %2341 = vrot.lane.b32.xlu0 %v2318, 64
        %v2342 = vpop.permute.xlu0 %2341
        %v2351 = vsel %vm270, %v2271, %v2328
        %v2352 = vsel %vm270, %v2272, %v2330
        %v2353 = vsel %vm270, %v2273, %v2332
        %v2354 = vsel %vm270, %v2274, %v2334
        %v2355 = vsel %vm270, %v2275, %v2336
        %v2356 = vsel %vm270, %v2276, %v2338
        %v2357 = vsel %vm270, %v2277, %v2340
        %v2358 = vsel %vm270, %v2278, %v2342
        %v2359 = vmul.f32 %v2351, -12.6
        %v2360 = vmul.f32 %v2352, -12.6
        %v2361 = vmul.f32 %v2353, -12.6
        %v2362 = vmul.f32 %v2354, -12.6
        %v2363 = vmul.f32 %v2355, -12.6
        %v2364 = vmul.f32 %v2356, -12.6
        %v2365 = vmul.f32 %v2357, -12.6
        %v2366 = vmul.f32 %v2358, -12.6
        %v2367 = vmul.f32 %v2359, %v2351
        %v2368 = vmul.f32 %v2360, %v2352
        %v2369 = vmul.f32 %v2361, %v2353
        %v2370 = vmul.f32 %v2362, %v2354
        %v2371 = vmul.f32 %v2363, %v2355
        %v2372 = vmul.f32 %v2364, %v2356
        %v2373 = vmul.f32 %v2365, %v2357
        %v2374 = vmul.f32 %v2366, %v2358
        %v2375 = vmul.f32 %v2367, 1.442695
        %v2376 = vpow.pop %v2375
        %v2377 = vmul.f32 %v2368, 1.442695
        %v2378 = vpow.pop %v2377
        %v2379 = vmul.f32 %v2369, 1.442695
        %v2380 = vpow.pop %v2379
        %v2381 = vmul.f32 %v2370, 1.442695
        %v2382 = vpow.pop %v2381
        %v2383 = vmul.f32 %v2371, 1.442695
        %v2384 = vpow.pop %v2383
        %v2385 = vmul.f32 %v2372, 1.442695
        %v2386 = vpow.pop %v2385
        %v2387 = vmul.f32 %v2373, 1.442695
        %v2388 = vpow.pop %v2387
        %v2389 = vmul.f32 %v2374, 1.442695
        %v2390 = vpow.pop %v2389
        %2391 = vst [vmem:[%s134 + $0x68] sm:$0xff] %v2376
        %2392 = vst [vmem:[%s134 + $0x268] sm:$0xff] %v2378
        %2393 = vst [vmem:[%s134 + $0x468] sm:$0xff] %v2380
        %2394 = vst [vmem:[%s134 + $0x668] sm:$0xff] %v2382
        %2395 = vst [vmem:[%s134 + $0x868] sm:$0xff] %v2384
        %2396 = vst [vmem:[%s134 + $0xa68] sm:$0xff] %v2386
        %2397 = vst [vmem:[%s134 + $0xc68] sm:$0xff] %v2388
        %2398 = vst [vmem:[%s134 + $0xe68] sm:$0xff] %v2390
        %2399 = vset.pattern.permute.xlu0 28
        %2400 = vperm.xlu0 %2399, %v137
        %v2401 = vpop.permute.xlu0 %2400
        %2403 = vset.pattern.permute.xlu0 28
        %2404 = vperm.xlu0 %2403, %v138
        %v2405 = vpop.permute.xlu0 %2404
        %2407 = vset.pattern.permute.xlu0 28
        %2408 = vperm.xlu0 %2407, %v139
        %v2409 = vpop.permute.xlu0 %2408
        %2411 = vset.pattern.permute.xlu0 28
        %2412 = vperm.xlu0 %2411, %v140
        %v2413 = vpop.permute.xlu0 %2412
        %2415 = vset.pattern.permute.xlu0 28
        %2416 = vperm.xlu0 %2415, %v141
        %v2417 = vpop.permute.xlu0 %2416
        %2419 = vset.pattern.permute.xlu0 28
        %2420 = vperm.xlu0 %2419, %v142
        %v2421 = vpop.permute.xlu0 %2420
        %2423 = vset.pattern.permute.xlu0 28
        %2424 = vperm.xlu0 %2423, %v143
        %v2425 = vpop.permute.xlu0 %2424
        %2427 = vset.pattern.permute.xlu0 28
        %2428 = vperm.xlu0 %2427, %v144
        %v2429 = vpop.permute.xlu0 %2428
        %v2431 = vsub.f32 %v2401, %v149
        %v2432 = vsub.f32 %v2405, %v149
        %v2433 = vsub.f32 %v2409, %v149
        %v2434 = vsub.f32 %v2413, %v149
        %v2435 = vsub.f32 %v2417, %v149
        %v2436 = vsub.f32 %v2421, %v149
        %v2437 = vsub.f32 %v2425, %v149
        %v2438 = vsub.f32 %v2429, %v149
        %2439 = vset.pattern.permute.xlu0 29
        %2440 = vperm.xlu0 %2439, %v137
        %v2441 = vpop.permute.xlu0 %2440
        %2443 = vset.pattern.permute.xlu0 29
        %2444 = vperm.xlu0 %2443, %v138
        %v2445 = vpop.permute.xlu0 %2444
        %2447 = vset.pattern.permute.xlu0 29
        %2448 = vperm.xlu0 %2447, %v139
        %v2449 = vpop.permute.xlu0 %2448
        %2451 = vset.pattern.permute.xlu0 29
        %2452 = vperm.xlu0 %2451, %v140
        %v2453 = vpop.permute.xlu0 %2452
        %2455 = vset.pattern.permute.xlu0 29
        %2456 = vperm.xlu0 %2455, %v141
        %v2457 = vpop.permute.xlu0 %2456
        %2459 = vset.pattern.permute.xlu0 29
        %2460 = vperm.xlu0 %2459, %v142
        %v2461 = vpop.permute.xlu0 %2460
        %2463 = vset.pattern.permute.xlu0 29
        %2464 = vperm.xlu0 %2463, %v143
        %v2465 = vpop.permute.xlu0 %2464
        %2467 = vset.pattern.permute.xlu0 29
        %2468 = vperm.xlu0 %2467, %v144
        %v2469 = vpop.permute.xlu0 %2468
        %v2471 = vsub.f32 %v2441, %v149
        %v2472 = vsub.f32 %v2445, %v149
        %v2473 = vsub.f32 %v2449, %v149
        %v2474 = vsub.f32 %v2453, %v149
        %v2475 = vsub.f32 %v2457, %v149
        %v2476 = vsub.f32 %v2461, %v149
        %v2477 = vsub.f32 %v2465, %v149
        %v2478 = vsub.f32 %v2469, %v149
        %2487 = vrot.lane.b32.xlu0 %v2471, 64
        %v2488 = vpop.permute.xlu0 %2487
        %2489 = vrot.lane.b32.xlu0 %v2472, 64
        %v2490 = vpop.permute.xlu0 %2489
        %2491 = vrot.lane.b32.xlu0 %v2473, 64
        %v2492 = vpop.permute.xlu0 %2491
        %2493 = vrot.lane.b32.xlu0 %v2474, 64
        %v2494 = vpop.permute.xlu0 %2493
        %2495 = vrot.lane.b32.xlu0 %v2475, 64
        %v2496 = vpop.permute.xlu0 %2495
        %2497 = vrot.lane.b32.xlu0 %v2476, 64
        %v2498 = vpop.permute.xlu0 %2497
        %2499 = vrot.lane.b32.xlu0 %v2477, 64
        %v2500 = vpop.permute.xlu0 %2499
        %2501 = vrot.lane.b32.xlu0 %v2478, 64
        %v2502 = vpop.permute.xlu0 %2501
        %v2511 = vsel %vm270, %v2431, %v2488
        %v2512 = vsel %vm270, %v2432, %v2490
        %v2513 = vsel %vm270, %v2433, %v2492
        %v2514 = vsel %vm270, %v2434, %v2494
        %v2515 = vsel %vm270, %v2435, %v2496
        %v2516 = vsel %vm270, %v2436, %v2498
        %v2517 = vsel %vm270, %v2437, %v2500
        %v2518 = vsel %vm270, %v2438, %v2502
        %v2519 = vmul.f32 %v2511, -12.6
        %v2520 = vmul.f32 %v2512, -12.6
        %v2521 = vmul.f32 %v2513, -12.6
        %v2522 = vmul.f32 %v2514, -12.6
        %v2523 = vmul.f32 %v2515, -12.6
        %v2524 = vmul.f32 %v2516, -12.6
        %v2525 = vmul.f32 %v2517, -12.6
        %v2526 = vmul.f32 %v2518, -12.6
        %v2527 = vmul.f32 %v2519, %v2511
        %v2528 = vmul.f32 %v2520, %v2512
        %v2529 = vmul.f32 %v2521, %v2513
        %v2530 = vmul.f32 %v2522, %v2514
        %v2531 = vmul.f32 %v2523, %v2515
        %v2532 = vmul.f32 %v2524, %v2516
        %v2533 = vmul.f32 %v2525, %v2517
        %v2534 = vmul.f32 %v2526, %v2518
        %v2535 = vmul.f32 %v2527, 1.442695
        %v2536 = vpow.pop %v2535
        %v2537 = vmul.f32 %v2528, 1.442695
        %v2538 = vpow.pop %v2537
        %v2539 = vmul.f32 %v2529, 1.442695
        %v2540 = vpow.pop %v2539
        %v2541 = vmul.f32 %v2530, 1.442695
        %v2542 = vpow.pop %v2541
        %v2543 = vmul.f32 %v2531, 1.442695
        %v2544 = vpow.pop %v2543
        %v2545 = vmul.f32 %v2532, 1.442695
        %v2546 = vpow.pop %v2545
        %v2547 = vmul.f32 %v2533, 1.442695
        %v2548 = vpow.pop %v2547
        %v2549 = vmul.f32 %v2534, 1.442695
        %v2550 = vpow.pop %v2549
        %2551 = vst [vmem:[%s134 + $0x70] sm:$0xff] %v2536
        %2552 = vst [vmem:[%s134 + $0x270] sm:$0xff] %v2538
        %2553 = vst [vmem:[%s134 + $0x470] sm:$0xff] %v2540
        %2554 = vst [vmem:[%s134 + $0x670] sm:$0xff] %v2542
        %2555 = vst [vmem:[%s134 + $0x870] sm:$0xff] %v2544
        %2556 = vst [vmem:[%s134 + $0xa70] sm:$0xff] %v2546
        %2557 = vst [vmem:[%s134 + $0xc70] sm:$0xff] %v2548
        %2558 = vst [vmem:[%s134 + $0xe70] sm:$0xff] %v2550
        %2559 = vset.pattern.permute.xlu0 30
        %2560 = vperm.xlu0 %2559, %v137
        %v2561 = vpop.permute.xlu0 %2560
        %2563 = vset.pattern.permute.xlu0 30
        %2564 = vperm.xlu0 %2563, %v138
        %v2565 = vpop.permute.xlu0 %2564
        %2567 = vset.pattern.permute.xlu0 30
        %2568 = vperm.xlu0 %2567, %v139
        %v2569 = vpop.permute.xlu0 %2568
        %2571 = vset.pattern.permute.xlu0 30
        %2572 = vperm.xlu0 %2571, %v140
        %v2573 = vpop.permute.xlu0 %2572
        %2575 = vset.pattern.permute.xlu0 30
        %2576 = vperm.xlu0 %2575, %v141
        %v2577 = vpop.permute.xlu0 %2576
        %2579 = vset.pattern.permute.xlu0 30
        %2580 = vperm.xlu0 %2579, %v142
        %v2581 = vpop.permute.xlu0 %2580
        %2583 = vset.pattern.permute.xlu0 30
        %2584 = vperm.xlu0 %2583, %v143
        %v2585 = vpop.permute.xlu0 %2584
        %2587 = vset.pattern.permute.xlu0 30
        %2588 = vperm.xlu0 %2587, %v144
        %v2589 = vpop.permute.xlu0 %2588
        %v2591 = vsub.f32 %v2561, %v149
        %v2592 = vsub.f32 %v2565, %v149
        %v2593 = vsub.f32 %v2569, %v149
        %v2594 = vsub.f32 %v2573, %v149
        %v2595 = vsub.f32 %v2577, %v149
        %v2596 = vsub.f32 %v2581, %v149
        %v2597 = vsub.f32 %v2585, %v149
        %v2598 = vsub.f32 %v2589, %v149
        %2599 = vset.pattern.permute.xlu0 31
        %2600 = vperm.xlu0 %2599, %v137
        %v2601 = vpop.permute.xlu0 %2600
        %2603 = vset.pattern.permute.xlu0 31
        %2604 = vperm.xlu0 %2603, %v138
        %v2605 = vpop.permute.xlu0 %2604
        %2607 = vset.pattern.permute.xlu0 31
        %2608 = vperm.xlu0 %2607, %v139
        %v2609 = vpop.permute.xlu0 %2608
        %2611 = vset.pattern.permute.xlu0 31
        %2612 = vperm.xlu0 %2611, %v140
        %v2613 = vpop.permute.xlu0 %2612
        %2615 = vset.pattern.permute.xlu0 31
        %2616 = vperm.xlu0 %2615, %v141
        %v2617 = vpop.permute.xlu0 %2616
        %2619 = vset.pattern.permute.xlu0 31
        %2620 = vperm.xlu0 %2619, %v142
        %v2621 = vpop.permute.xlu0 %2620
        %2623 = vset.pattern.permute.xlu0 31
        %2624 = vperm.xlu0 %2623, %v143
        %v2625 = vpop.permute.xlu0 %2624
        %2627 = vset.pattern.permute.xlu0 31
        %2628 = vperm.xlu0 %2627, %v144
        %v2629 = vpop.permute.xlu0 %2628
        %v2631 = vsub.f32 %v2601, %v149
        %v2632 = vsub.f32 %v2605, %v149
        %v2633 = vsub.f32 %v2609, %v149
        %v2634 = vsub.f32 %v2613, %v149
        %v2635 = vsub.f32 %v2617, %v149
        %v2636 = vsub.f32 %v2621, %v149
        %v2637 = vsub.f32 %v2625, %v149
        %v2638 = vsub.f32 %v2629, %v149
        %2647 = vrot.lane.b32.xlu0 %v2631, 64
        %v2648 = vpop.permute.xlu0 %2647
        %2649 = vrot.lane.b32.xlu0 %v2632, 64
        %v2650 = vpop.permute.xlu0 %2649
        %2651 = vrot.lane.b32.xlu0 %v2633, 64
        %v2652 = vpop.permute.xlu0 %2651
        %2653 = vrot.lane.b32.xlu0 %v2634, 64
        %v2654 = vpop.permute.xlu0 %2653
        %2655 = vrot.lane.b32.xlu0 %v2635, 64
        %v2656 = vpop.permute.xlu0 %2655
        %2657 = vrot.lane.b32.xlu0 %v2636, 64
        %v2658 = vpop.permute.xlu0 %2657
        %2659 = vrot.lane.b32.xlu0 %v2637, 64
        %v2660 = vpop.permute.xlu0 %2659
        %2661 = vrot.lane.b32.xlu0 %v2638, 64
        %v2662 = vpop.permute.xlu0 %2661
        %v2671 = vsel %vm270, %v2591, %v2648
        %v2672 = vsel %vm270, %v2592, %v2650
        %v2673 = vsel %vm270, %v2593, %v2652
        %v2674 = vsel %vm270, %v2594, %v2654
        %v2675 = vsel %vm270, %v2595, %v2656
        %v2676 = vsel %vm270, %v2596, %v2658
        %v2677 = vsel %vm270, %v2597, %v2660
        %v2678 = vsel %vm270, %v2598, %v2662
        %v2679 = vmul.f32 %v2671, -12.6
        %v2680 = vmul.f32 %v2672, -12.6
        %v2681 = vmul.f32 %v2673, -12.6
        %v2682 = vmul.f32 %v2674, -12.6
        %v2683 = vmul.f32 %v2675, -12.6
        %v2684 = vmul.f32 %v2676, -12.6
        %v2685 = vmul.f32 %v2677, -12.6
        %v2686 = vmul.f32 %v2678, -12.6
        %v2687 = vmul.f32 %v2679, %v2671
        %v2688 = vmul.f32 %v2680, %v2672
        %v2689 = vmul.f32 %v2681, %v2673
        %v2690 = vmul.f32 %v2682, %v2674
        %v2691 = vmul.f32 %v2683, %v2675
        %v2692 = vmul.f32 %v2684, %v2676
        %v2693 = vmul.f32 %v2685, %v2677
        %v2694 = vmul.f32 %v2686, %v2678
        %v2695 = vmul.f32 %v2687, 1.442695
        %v2696 = vpow.pop %v2695
        %v2697 = vmul.f32 %v2688, 1.442695
        %v2698 = vpow.pop %v2697
        %v2699 = vmul.f32 %v2689, 1.442695
        %v2700 = vpow.pop %v2699
        %v2701 = vmul.f32 %v2690, 1.442695
        %v2702 = vpow.pop %v2701
        %v2703 = vmul.f32 %v2691, 1.442695
        %v2704 = vpow.pop %v2703
        %v2705 = vmul.f32 %v2692, 1.442695
        %v2706 = vpow.pop %v2705
        %v2707 = vmul.f32 %v2693, 1.442695
        %v2708 = vpow.pop %v2707
        %v2709 = vmul.f32 %v2694, 1.442695
        %v2710 = vpow.pop %v2709
        %2711 = vst [vmem:[%s134 + $0x78] sm:$0xff] %v2696
        %2712 = vst [vmem:[%s134 + $0x278] sm:$0xff] %v2698
        %2713 = vst [vmem:[%s134 + $0x478] sm:$0xff] %v2700
        %2714 = vst [vmem:[%s134 + $0x678] sm:$0xff] %v2702
        %2715 = vst [vmem:[%s134 + $0x878] sm:$0xff] %v2704
        %2716 = vst [vmem:[%s134 + $0xa78] sm:$0xff] %v2706
        %2717 = vst [vmem:[%s134 + $0xc78] sm:$0xff] %v2708
        %2718 = vst [vmem:[%s134 + $0xe78] sm:$0xff] %v2710
        %2719 = vset.pattern.permute.xlu0 32
        %2720 = vperm.xlu0 %2719, %v137
        %v2721 = vpop.permute.xlu0 %2720
        %2723 = vset.pattern.permute.xlu0 32
        %2724 = vperm.xlu0 %2723, %v138
        %v2725 = vpop.permute.xlu0 %2724
        %2727 = vset.pattern.permute.xlu0 32
        %2728 = vperm.xlu0 %2727, %v139
        %v2729 = vpop.permute.xlu0 %2728
        %2731 = vset.pattern.permute.xlu0 32
        %2732 = vperm.xlu0 %2731, %v140
        %v2733 = vpop.permute.xlu0 %2732
        %2735 = vset.pattern.permute.xlu0 32
        %2736 = vperm.xlu0 %2735, %v141
        %v2737 = vpop.permute.xlu0 %2736
        %2739 = vset.pattern.permute.xlu0 32
        %2740 = vperm.xlu0 %2739, %v142
        %v2741 = vpop.permute.xlu0 %2740
        %2743 = vset.pattern.permute.xlu0 32
        %2744 = vperm.xlu0 %2743, %v143
        %v2745 = vpop.permute.xlu0 %2744
        %2747 = vset.pattern.permute.xlu0 32
        %2748 = vperm.xlu0 %2747, %v144
        %v2749 = vpop.permute.xlu0 %2748
        %v2751 = vsub.f32 %v2721, %v149
        %v2752 = vsub.f32 %v2725, %v149
        %v2753 = vsub.f32 %v2729, %v149
        %v2754 = vsub.f32 %v2733, %v149
        %v2755 = vsub.f32 %v2737, %v149
        %v2756 = vsub.f32 %v2741, %v149
        %v2757 = vsub.f32 %v2745, %v149
        %v2758 = vsub.f32 %v2749, %v149
        %2759 = vset.pattern.permute.xlu0 33
        %2760 = vperm.xlu0 %2759, %v137
        %v2761 = vpop.permute.xlu0 %2760
        %2763 = vset.pattern.permute.xlu0 33
        %2764 = vperm.xlu0 %2763, %v138
        %v2765 = vpop.permute.xlu0 %2764
        %2767 = vset.pattern.permute.xlu0 33
        %2768 = vperm.xlu0 %2767, %v139
        %v2769 = vpop.permute.xlu0 %2768
        %2771 = vset.pattern.permute.xlu0 33
        %2772 = vperm.xlu0 %2771, %v140
        %v2773 = vpop.permute.xlu0 %2772
        %2775 = vset.pattern.permute.xlu0 33
        %2776 = vperm.xlu0 %2775, %v141
        %v2777 = vpop.permute.xlu0 %2776
        %2779 = vset.pattern.permute.xlu0 33
        %2780 = vperm.xlu0 %2779, %v142
        %v2781 = vpop.permute.xlu0 %2780
        %2783 = vset.pattern.permute.xlu0 33
        %2784 = vperm.xlu0 %2783, %v143
        %v2785 = vpop.permute.xlu0 %2784
        %2787 = vset.pattern.permute.xlu0 33
        %2788 = vperm.xlu0 %2787, %v144
        %v2789 = vpop.permute.xlu0 %2788
        %v2791 = vsub.f32 %v2761, %v149
        %v2792 = vsub.f32 %v2765, %v149
        %v2793 = vsub.f32 %v2769, %v149
        %v2794 = vsub.f32 %v2773, %v149
        %v2795 = vsub.f32 %v2777, %v149
        %v2796 = vsub.f32 %v2781, %v149
        %v2797 = vsub.f32 %v2785, %v149
        %v2798 = vsub.f32 %v2789, %v149
        %2807 = vrot.lane.b32.xlu0 %v2791, 64
        %v2808 = vpop.permute.xlu0 %2807
        %2809 = vrot.lane.b32.xlu0 %v2792, 64
        %v2810 = vpop.permute.xlu0 %2809
        %2811 = vrot.lane.b32.xlu0 %v2793, 64
        %v2812 = vpop.permute.xlu0 %2811
        %2813 = vrot.lane.b32.xlu0 %v2794, 64
        %v2814 = vpop.permute.xlu0 %2813
        %2815 = vrot.lane.b32.xlu0 %v2795, 64
        %v2816 = vpop.permute.xlu0 %2815
        %2817 = vrot.lane.b32.xlu0 %v2796, 64
        %v2818 = vpop.permute.xlu0 %2817
        %2819 = vrot.lane.b32.xlu0 %v2797, 64
        %v2820 = vpop.permute.xlu0 %2819
        %2821 = vrot.lane.b32.xlu0 %v2798, 64
        %v2822 = vpop.permute.xlu0 %2821
        %v2831 = vsel %vm270, %v2751, %v2808
        %v2832 = vsel %vm270, %v2752, %v2810
        %v2833 = vsel %vm270, %v2753, %v2812
        %v2834 = vsel %vm270, %v2754, %v2814
        %v2835 = vsel %vm270, %v2755, %v2816
        %v2836 = vsel %vm270, %v2756, %v2818
        %v2837 = vsel %vm270, %v2757, %v2820
        %v2838 = vsel %vm270, %v2758, %v2822
        %v2839 = vmul.f32 %v2831, -12.6
        %v2840 = vmul.f32 %v2832, -12.6
        %v2841 = vmul.f32 %v2833, -12.6
        %v2842 = vmul.f32 %v2834, -12.6
        %v2843 = vmul.f32 %v2835, -12.6
        %v2844 = vmul.f32 %v2836, -12.6
        %v2845 = vmul.f32 %v2837, -12.6
        %v2846 = vmul.f32 %v2838, -12.6
        %v2847 = vmul.f32 %v2839, %v2831
        %v2848 = vmul.f32 %v2840, %v2832
        %v2849 = vmul.f32 %v2841, %v2833
        %v2850 = vmul.f32 %v2842, %v2834
        %v2851 = vmul.f32 %v2843, %v2835
        %v2852 = vmul.f32 %v2844, %v2836
        %v2853 = vmul.f32 %v2845, %v2837
        %v2854 = vmul.f32 %v2846, %v2838
        %v2855 = vmul.f32 %v2847, 1.442695
        %v2856 = vpow.pop %v2855
        %v2857 = vmul.f32 %v2848, 1.442695
        %v2858 = vpow.pop %v2857
        %v2859 = vmul.f32 %v2849, 1.442695
        %v2860 = vpow.pop %v2859
        %v2861 = vmul.f32 %v2850, 1.442695
        %v2862 = vpow.pop %v2861
        %v2863 = vmul.f32 %v2851, 1.442695
        %v2864 = vpow.pop %v2863
        %v2865 = vmul.f32 %v2852, 1.442695
        %v2866 = vpow.pop %v2865
        %v2867 = vmul.f32 %v2853, 1.442695
        %v2868 = vpow.pop %v2867
        %v2869 = vmul.f32 %v2854, 1.442695
        %v2870 = vpow.pop %v2869
        %2871 = vst [vmem:[%s134 + $0x80] sm:$0xff] %v2856
        %2872 = vst [vmem:[%s134 + $0x280] sm:$0xff] %v2858
        %2873 = vst [vmem:[%s134 + $0x480] sm:$0xff] %v2860
        %2874 = vst [vmem:[%s134 + $0x680] sm:$0xff] %v2862
        %2875 = vst [vmem:[%s134 + $0x880] sm:$0xff] %v2864
        %2876 = vst [vmem:[%s134 + $0xa80] sm:$0xff] %v2866
        %2877 = vst [vmem:[%s134 + $0xc80] sm:$0xff] %v2868
        %2878 = vst [vmem:[%s134 + $0xe80] sm:$0xff] %v2870
        %2879 = vset.pattern.permute.xlu0 34
        %2880 = vperm.xlu0 %2879, %v137
        %v2881 = vpop.permute.xlu0 %2880
        %2883 = vset.pattern.permute.xlu0 34
        %2884 = vperm.xlu0 %2883, %v138
        %v2885 = vpop.permute.xlu0 %2884
        %2887 = vset.pattern.permute.xlu0 34
        %2888 = vperm.xlu0 %2887, %v139
        %v2889 = vpop.permute.xlu0 %2888
        %2891 = vset.pattern.permute.xlu0 34
        %2892 = vperm.xlu0 %2891, %v140
        %v2893 = vpop.permute.xlu0 %2892
        %2895 = vset.pattern.permute.xlu0 34
        %2896 = vperm.xlu0 %2895, %v141
        %v2897 = vpop.permute.xlu0 %2896
        %2899 = vset.pattern.permute.xlu0 34
        %2900 = vperm.xlu0 %2899, %v142
        %v2901 = vpop.permute.xlu0 %2900
        %2903 = vset.pattern.permute.xlu0 34
        %2904 = vperm.xlu0 %2903, %v143
        %v2905 = vpop.permute.xlu0 %2904
        %2907 = vset.pattern.permute.xlu0 34
        %2908 = vperm.xlu0 %2907, %v144
        %v2909 = vpop.permute.xlu0 %2908
        %v2911 = vsub.f32 %v2881, %v149
        %v2912 = vsub.f32 %v2885, %v149
        %v2913 = vsub.f32 %v2889, %v149
        %v2914 = vsub.f32 %v2893, %v149
        %v2915 = vsub.f32 %v2897, %v149
        %v2916 = vsub.f32 %v2901, %v149
        %v2917 = vsub.f32 %v2905, %v149
        %v2918 = vsub.f32 %v2909, %v149
        %2919 = vset.pattern.permute.xlu0 35
        %2920 = vperm.xlu0 %2919, %v137
        %v2921 = vpop.permute.xlu0 %2920
        %2923 = vset.pattern.permute.xlu0 35
        %2924 = vperm.xlu0 %2923, %v138
        %v2925 = vpop.permute.xlu0 %2924
        %2927 = vset.pattern.permute.xlu0 35
        %2928 = vperm.xlu0 %2927, %v139
        %v2929 = vpop.permute.xlu0 %2928
        %2931 = vset.pattern.permute.xlu0 35
        %2932 = vperm.xlu0 %2931, %v140
        %v2933 = vpop.permute.xlu0 %2932
        %2935 = vset.pattern.permute.xlu0 35
        %2936 = vperm.xlu0 %2935, %v141
        %v2937 = vpop.permute.xlu0 %2936
        %2939 = vset.pattern.permute.xlu0 35
        %2940 = vperm.xlu0 %2939, %v142
        %v2941 = vpop.permute.xlu0 %2940
        %2943 = vset.pattern.permute.xlu0 35
        %2944 = vperm.xlu0 %2943, %v143
        %v2945 = vpop.permute.xlu0 %2944
        %2947 = vset.pattern.permute.xlu0 35
        %2948 = vperm.xlu0 %2947, %v144
        %v2949 = vpop.permute.xlu0 %2948
        %v2951 = vsub.f32 %v2921, %v149
        %v2952 = vsub.f32 %v2925, %v149
        %v2953 = vsub.f32 %v2929, %v149
        %v2954 = vsub.f32 %v2933, %v149
        %v2955 = vsub.f32 %v2937, %v149
        %v2956 = vsub.f32 %v2941, %v149
        %v2957 = vsub.f32 %v2945, %v149
        %v2958 = vsub.f32 %v2949, %v149
        %2967 = vrot.lane.b32.xlu0 %v2951, 64
        %v2968 = vpop.permute.xlu0 %2967
        %2969 = vrot.lane.b32.xlu0 %v2952, 64
        %v2970 = vpop.permute.xlu0 %2969
        %2971 = vrot.lane.b32.xlu0 %v2953, 64
        %v2972 = vpop.permute.xlu0 %2971
        %2973 = vrot.lane.b32.xlu0 %v2954, 64
        %v2974 = vpop.permute.xlu0 %2973
        %2975 = vrot.lane.b32.xlu0 %v2955, 64
        %v2976 = vpop.permute.xlu0 %2975
        %2977 = vrot.lane.b32.xlu0 %v2956, 64
        %v2978 = vpop.permute.xlu0 %2977
        %2979 = vrot.lane.b32.xlu0 %v2957, 64
        %v2980 = vpop.permute.xlu0 %2979
        %2981 = vrot.lane.b32.xlu0 %v2958, 64
        %v2982 = vpop.permute.xlu0 %2981
        %v2991 = vsel %vm270, %v2911, %v2968
        %v2992 = vsel %vm270, %v2912, %v2970
        %v2993 = vsel %vm270, %v2913, %v2972
        %v2994 = vsel %vm270, %v2914, %v2974
        %v2995 = vsel %vm270, %v2915, %v2976
        %v2996 = vsel %vm270, %v2916, %v2978
        %v2997 = vsel %vm270, %v2917, %v2980
        %v2998 = vsel %vm270, %v2918, %v2982
        %v2999 = vmul.f32 %v2991, -12.6
        %v3000 = vmul.f32 %v2992, -12.6
        %v3001 = vmul.f32 %v2993, -12.6
        %v3002 = vmul.f32 %v2994, -12.6
        %v3003 = vmul.f32 %v2995, -12.6
        %v3004 = vmul.f32 %v2996, -12.6
        %v3005 = vmul.f32 %v2997, -12.6
        %v3006 = vmul.f32 %v2998, -12.6
        %v3007 = vmul.f32 %v2999, %v2991
        %v3008 = vmul.f32 %v3000, %v2992
        %v3009 = vmul.f32 %v3001, %v2993
        %v3010 = vmul.f32 %v3002, %v2994
        %v3011 = vmul.f32 %v3003, %v2995
        %v3012 = vmul.f32 %v3004, %v2996
        %v3013 = vmul.f32 %v3005, %v2997
        %v3014 = vmul.f32 %v3006, %v2998
        %v3015 = vmul.f32 %v3007, 1.442695
        %v3016 = vpow.pop %v3015
        %v3017 = vmul.f32 %v3008, 1.442695
        %v3018 = vpow.pop %v3017
        %v3019 = vmul.f32 %v3009, 1.442695
        %v3020 = vpow.pop %v3019
        %v3021 = vmul.f32 %v3010, 1.442695
        %v3022 = vpow.pop %v3021
        %v3023 = vmul.f32 %v3011, 1.442695
        %v3024 = vpow.pop %v3023
        %v3025 = vmul.f32 %v3012, 1.442695
        %v3026 = vpow.pop %v3025
        %v3027 = vmul.f32 %v3013, 1.442695
        %v3028 = vpow.pop %v3027
        %v3029 = vmul.f32 %v3014, 1.442695
        %v3030 = vpow.pop %v3029
        %3031 = vst [vmem:[%s134 + $0x88] sm:$0xff] %v3016
        %3032 = vst [vmem:[%s134 + $0x288] sm:$0xff] %v3018
        %3033 = vst [vmem:[%s134 + $0x488] sm:$0xff] %v3020
        %3034 = vst [vmem:[%s134 + $0x688] sm:$0xff] %v3022
        %3035 = vst [vmem:[%s134 + $0x888] sm:$0xff] %v3024
        %3036 = vst [vmem:[%s134 + $0xa88] sm:$0xff] %v3026
        %3037 = vst [vmem:[%s134 + $0xc88] sm:$0xff] %v3028
        %3038 = vst [vmem:[%s134 + $0xe88] sm:$0xff] %v3030
        %3039 = vset.pattern.permute.xlu0 36
        %3040 = vperm.xlu0 %3039, %v137
        %v3041 = vpop.permute.xlu0 %3040
        %3043 = vset.pattern.permute.xlu0 36
        %3044 = vperm.xlu0 %3043, %v138
        %v3045 = vpop.permute.xlu0 %3044
        %3047 = vset.pattern.permute.xlu0 36
        %3048 = vperm.xlu0 %3047, %v139
        %v3049 = vpop.permute.xlu0 %3048
        %3051 = vset.pattern.permute.xlu0 36
        %3052 = vperm.xlu0 %3051, %v140
        %v3053 = vpop.permute.xlu0 %3052
        %3055 = vset.pattern.permute.xlu0 36
        %3056 = vperm.xlu0 %3055, %v141
        %v3057 = vpop.permute.xlu0 %3056
        %3059 = vset.pattern.permute.xlu0 36
        %3060 = vperm.xlu0 %3059, %v142
        %v3061 = vpop.permute.xlu0 %3060
        %3063 = vset.pattern.permute.xlu0 36
        %3064 = vperm.xlu0 %3063, %v143
        %v3065 = vpop.permute.xlu0 %3064
        %3067 = vset.pattern.permute.xlu0 36
        %3068 = vperm.xlu0 %3067, %v144
        %v3069 = vpop.permute.xlu0 %3068
        %v3071 = vsub.f32 %v3041, %v149
        %v3072 = vsub.f32 %v3045, %v149
        %v3073 = vsub.f32 %v3049, %v149
        %v3074 = vsub.f32 %v3053, %v149
        %v3075 = vsub.f32 %v3057, %v149
        %v3076 = vsub.f32 %v3061, %v149
        %v3077 = vsub.f32 %v3065, %v149
        %v3078 = vsub.f32 %v3069, %v149
        %3079 = vset.pattern.permute.xlu0 37
        %3080 = vperm.xlu0 %3079, %v137
        %v3081 = vpop.permute.xlu0 %3080
        %3083 = vset.pattern.permute.xlu0 37
        %3084 = vperm.xlu0 %3083, %v138
        %v3085 = vpop.permute.xlu0 %3084
        %3087 = vset.pattern.permute.xlu0 37
        %3088 = vperm.xlu0 %3087, %v139
        %v3089 = vpop.permute.xlu0 %3088
        %3091 = vset.pattern.permute.xlu0 37
        %3092 = vperm.xlu0 %3091, %v140
        %v3093 = vpop.permute.xlu0 %3092
        %3095 = vset.pattern.permute.xlu0 37
        %3096 = vperm.xlu0 %3095, %v141
        %v3097 = vpop.permute.xlu0 %3096
        %3099 = vset.pattern.permute.xlu0 37
        %3100 = vperm.xlu0 %3099, %v142
        %v3101 = vpop.permute.xlu0 %3100
        %3103 = vset.pattern.permute.xlu0 37
        %3104 = vperm.xlu0 %3103, %v143
        %v3105 = vpop.permute.xlu0 %3104
        %3107 = vset.pattern.permute.xlu0 37
        %3108 = vperm.xlu0 %3107, %v144
        %v3109 = vpop.permute.xlu0 %3108
        %v3111 = vsub.f32 %v3081, %v149
        %v3112 = vsub.f32 %v3085, %v149
        %v3113 = vsub.f32 %v3089, %v149
        %v3114 = vsub.f32 %v3093, %v149
        %v3115 = vsub.f32 %v3097, %v149
        %v3116 = vsub.f32 %v3101, %v149
        %v3117 = vsub.f32 %v3105, %v149
        %v3118 = vsub.f32 %v3109, %v149
        %3127 = vrot.lane.b32.xlu0 %v3111, 64
        %v3128 = vpop.permute.xlu0 %3127
        %3129 = vrot.lane.b32.xlu0 %v3112, 64
        %v3130 = vpop.permute.xlu0 %3129
        %3131 = vrot.lane.b32.xlu0 %v3113, 64
        %v3132 = vpop.permute.xlu0 %3131
        %3133 = vrot.lane.b32.xlu0 %v3114, 64
        %v3134 = vpop.permute.xlu0 %3133
        %3135 = vrot.lane.b32.xlu0 %v3115, 64
        %v3136 = vpop.permute.xlu0 %3135
        %3137 = vrot.lane.b32.xlu0 %v3116, 64
        %v3138 = vpop.permute.xlu0 %3137
        %3139 = vrot.lane.b32.xlu0 %v3117, 64
        %v3140 = vpop.permute.xlu0 %3139
        %3141 = vrot.lane.b32.xlu0 %v3118, 64
        %v3142 = vpop.permute.xlu0 %3141
        %v3151 = vsel %vm270, %v3071, %v3128
        %v3152 = vsel %vm270, %v3072, %v3130
        %v3153 = vsel %vm270, %v3073, %v3132
        %v3154 = vsel %vm270, %v3074, %v3134
        %v3155 = vsel %vm270, %v3075, %v3136
        %v3156 = vsel %vm270, %v3076, %v3138
        %v3157 = vsel %vm270, %v3077, %v3140
        %v3158 = vsel %vm270, %v3078, %v3142
        %v3159 = vmul.f32 %v3151, -12.6
        %v3160 = vmul.f32 %v3152, -12.6
        %v3161 = vmul.f32 %v3153, -12.6
        %v3162 = vmul.f32 %v3154, -12.6
        %v3163 = vmul.f32 %v3155, -12.6
        %v3164 = vmul.f32 %v3156, -12.6
        %v3165 = vmul.f32 %v3157, -12.6
        %v3166 = vmul.f32 %v3158, -12.6
        %v3167 = vmul.f32 %v3159, %v3151
        %v3168 = vmul.f32 %v3160, %v3152
        %v3169 = vmul.f32 %v3161, %v3153
        %v3170 = vmul.f32 %v3162, %v3154
        %v3171 = vmul.f32 %v3163, %v3155
        %v3172 = vmul.f32 %v3164, %v3156
        %v3173 = vmul.f32 %v3165, %v3157
        %v3174 = vmul.f32 %v3166, %v3158
        %v3175 = vmul.f32 %v3167, 1.442695
        %v3176 = vpow.pop %v3175
        %v3177 = vmul.f32 %v3168, 1.442695
        %v3178 = vpow.pop %v3177
        %v3179 = vmul.f32 %v3169, 1.442695
        %v3180 = vpow.pop %v3179
        %v3181 = vmul.f32 %v3170, 1.442695
        %v3182 = vpow.pop %v3181
        %v3183 = vmul.f32 %v3171, 1.442695
        %v3184 = vpow.pop %v3183
        %v3185 = vmul.f32 %v3172, 1.442695
        %v3186 = vpow.pop %v3185
        %v3187 = vmul.f32 %v3173, 1.442695
        %v3188 = vpow.pop %v3187
        %v3189 = vmul.f32 %v3174, 1.442695
        %v3190 = vpow.pop %v3189
        %3191 = vst [vmem:[%s134 + $0x90] sm:$0xff] %v3176
        %3192 = vst [vmem:[%s134 + $0x290] sm:$0xff] %v3178
        %3193 = vst [vmem:[%s134 + $0x490] sm:$0xff] %v3180
        %3194 = vst [vmem:[%s134 + $0x690] sm:$0xff] %v3182
        %3195 = vst [vmem:[%s134 + $0x890] sm:$0xff] %v3184
        %3196 = vst [vmem:[%s134 + $0xa90] sm:$0xff] %v3186
        %3197 = vst [vmem:[%s134 + $0xc90] sm:$0xff] %v3188
        %3198 = vst [vmem:[%s134 + $0xe90] sm:$0xff] %v3190
        %3199 = vset.pattern.permute.xlu0 38
        %3200 = vperm.xlu0 %3199, %v137
        %v3201 = vpop.permute.xlu0 %3200
        %3203 = vset.pattern.permute.xlu0 38
        %3204 = vperm.xlu0 %3203, %v138
        %v3205 = vpop.permute.xlu0 %3204
        %3207 = vset.pattern.permute.xlu0 38
        %3208 = vperm.xlu0 %3207, %v139
        %v3209 = vpop.permute.xlu0 %3208
        %3211 = vset.pattern.permute.xlu0 38
        %3212 = vperm.xlu0 %3211, %v140
        %v3213 = vpop.permute.xlu0 %3212
        %3215 = vset.pattern.permute.xlu0 38
        %3216 = vperm.xlu0 %3215, %v141
        %v3217 = vpop.permute.xlu0 %3216
        %3219 = vset.pattern.permute.xlu0 38
        %3220 = vperm.xlu0 %3219, %v142
        %v3221 = vpop.permute.xlu0 %3220
        %3223 = vset.pattern.permute.xlu0 38
        %3224 = vperm.xlu0 %3223, %v143
        %v3225 = vpop.permute.xlu0 %3224
        %3227 = vset.pattern.permute.xlu0 38
        %3228 = vperm.xlu0 %3227, %v144
        %v3229 = vpop.permute.xlu0 %3228
        %v3231 = vsub.f32 %v3201, %v149
        %v3232 = vsub.f32 %v3205, %v149
        %v3233 = vsub.f32 %v3209, %v149
        %v3234 = vsub.f32 %v3213, %v149
        %v3235 = vsub.f32 %v3217, %v149
        %v3236 = vsub.f32 %v3221, %v149
        %v3237 = vsub.f32 %v3225, %v149
        %v3238 = vsub.f32 %v3229, %v149
        %3239 = vset.pattern.permute.xlu0 39
        %3240 = vperm.xlu0 %3239, %v137
        %v3241 = vpop.permute.xlu0 %3240
        %3243 = vset.pattern.permute.xlu0 39
        %3244 = vperm.xlu0 %3243, %v138
        %v3245 = vpop.permute.xlu0 %3244
        %3247 = vset.pattern.permute.xlu0 39
        %3248 = vperm.xlu0 %3247, %v139
        %v3249 = vpop.permute.xlu0 %3248
        %3251 = vset.pattern.permute.xlu0 39
        %3252 = vperm.xlu0 %3251, %v140
        %v3253 = vpop.permute.xlu0 %3252
        %3255 = vset.pattern.permute.xlu0 39
        %3256 = vperm.xlu0 %3255, %v141
        %v3257 = vpop.permute.xlu0 %3256
        %3259 = vset.pattern.permute.xlu0 39
        %3260 = vperm.xlu0 %3259, %v142
        %v3261 = vpop.permute.xlu0 %3260
        %3263 = vset.pattern.permute.xlu0 39
        %3264 = vperm.xlu0 %3263, %v143
        %v3265 = vpop.permute.xlu0 %3264
        %3267 = vset.pattern.permute.xlu0 39
        %3268 = vperm.xlu0 %3267, %v144
        %v3269 = vpop.permute.xlu0 %3268
        %v3271 = vsub.f32 %v3241, %v149
        %v3272 = vsub.f32 %v3245, %v149
        %v3273 = vsub.f32 %v3249, %v149
        %v3274 = vsub.f32 %v3253, %v149
        %v3275 = vsub.f32 %v3257, %v149
        %v3276 = vsub.f32 %v3261, %v149
        %v3277 = vsub.f32 %v3265, %v149
        %v3278 = vsub.f32 %v3269, %v149
        %3287 = vrot.lane.b32.xlu0 %v3271, 64
        %v3288 = vpop.permute.xlu0 %3287
        %3289 = vrot.lane.b32.xlu0 %v3272, 64
        %v3290 = vpop.permute.xlu0 %3289
        %3291 = vrot.lane.b32.xlu0 %v3273, 64
        %v3292 = vpop.permute.xlu0 %3291
        %3293 = vrot.lane.b32.xlu0 %v3274, 64
        %v3294 = vpop.permute.xlu0 %3293
        %3295 = vrot.lane.b32.xlu0 %v3275, 64
        %v3296 = vpop.permute.xlu0 %3295
        %3297 = vrot.lane.b32.xlu0 %v3276, 64
        %v3298 = vpop.permute.xlu0 %3297
        %3299 = vrot.lane.b32.xlu0 %v3277, 64
        %v3300 = vpop.permute.xlu0 %3299
        %3301 = vrot.lane.b32.xlu0 %v3278, 64
        %v3302 = vpop.permute.xlu0 %3301
        %v3311 = vsel %vm270, %v3231, %v3288
        %v3312 = vsel %vm270, %v3232, %v3290
        %v3313 = vsel %vm270, %v3233, %v3292
        %v3314 = vsel %vm270, %v3234, %v3294
        %v3315 = vsel %vm270, %v3235, %v3296
        %v3316 = vsel %vm270, %v3236, %v3298
        %v3317 = vsel %vm270, %v3237, %v3300
        %v3318 = vsel %vm270, %v3238, %v3302
        %v3319 = vmul.f32 %v3311, -12.6
        %v3320 = vmul.f32 %v3312, -12.6
        %v3321 = vmul.f32 %v3313, -12.6
        %v3322 = vmul.f32 %v3314, -12.6
        %v3323 = vmul.f32 %v3315, -12.6
        %v3324 = vmul.f32 %v3316, -12.6
        %v3325 = vmul.f32 %v3317, -12.6
        %v3326 = vmul.f32 %v3318, -12.6
        %v3327 = vmul.f32 %v3319, %v3311
        %v3328 = vmul.f32 %v3320, %v3312
        %v3329 = vmul.f32 %v3321, %v3313
        %v3330 = vmul.f32 %v3322, %v3314
        %v3331 = vmul.f32 %v3323, %v3315
        %v3332 = vmul.f32 %v3324, %v3316
        %v3333 = vmul.f32 %v3325, %v3317
        %v3334 = vmul.f32 %v3326, %v3318
        %v3335 = vmul.f32 %v3327, 1.442695
        %v3336 = vpow.pop %v3335
        %v3337 = vmul.f32 %v3328, 1.442695
        %v3338 = vpow.pop %v3337
        %v3339 = vmul.f32 %v3329, 1.442695
        %v3340 = vpow.pop %v3339
        %v3341 = vmul.f32 %v3330, 1.442695
        %v3342 = vpow.pop %v3341
        %v3343 = vmul.f32 %v3331, 1.442695
        %v3344 = vpow.pop %v3343
        %v3345 = vmul.f32 %v3332, 1.442695
        %v3346 = vpow.pop %v3345
        %v3347 = vmul.f32 %v3333, 1.442695
        %v3348 = vpow.pop %v3347
        %v3349 = vmul.f32 %v3334, 1.442695
        %v3350 = vpow.pop %v3349
        %3351 = vst [vmem:[%s134 + $0x98] sm:$0xff] %v3336
        %3352 = vst [vmem:[%s134 + $0x298] sm:$0xff] %v3338
        %3353 = vst [vmem:[%s134 + $0x498] sm:$0xff] %v3340
        %3354 = vst [vmem:[%s134 + $0x698] sm:$0xff] %v3342
        %3355 = vst [vmem:[%s134 + $0x898] sm:$0xff] %v3344
        %3356 = vst [vmem:[%s134 + $0xa98] sm:$0xff] %v3346
        %3357 = vst [vmem:[%s134 + $0xc98] sm:$0xff] %v3348
        %3358 = vst [vmem:[%s134 + $0xe98] sm:$0xff] %v3350
        %3359 = vset.pattern.permute.xlu0 40
        %3360 = vperm.xlu0 %3359, %v137
        %v3361 = vpop.permute.xlu0 %3360
        %3363 = vset.pattern.permute.xlu0 40
        %3364 = vperm.xlu0 %3363, %v138
        %v3365 = vpop.permute.xlu0 %3364
        %3367 = vset.pattern.permute.xlu0 40
        %3368 = vperm.xlu0 %3367, %v139
        %v3369 = vpop.permute.xlu0 %3368
        %3371 = vset.pattern.permute.xlu0 40
        %3372 = vperm.xlu0 %3371, %v140
        %v3373 = vpop.permute.xlu0 %3372
        %3375 = vset.pattern.permute.xlu0 40
        %3376 = vperm.xlu0 %3375, %v141
        %v3377 = vpop.permute.xlu0 %3376
        %3379 = vset.pattern.permute.xlu0 40
        %3380 = vperm.xlu0 %3379, %v142
        %v3381 = vpop.permute.xlu0 %3380
        %3383 = vset.pattern.permute.xlu0 40
        %3384 = vperm.xlu0 %3383, %v143
        %v3385 = vpop.permute.xlu0 %3384
        %3387 = vset.pattern.permute.xlu0 40
        %3388 = vperm.xlu0 %3387, %v144
        %v3389 = vpop.permute.xlu0 %3388
        %v3391 = vsub.f32 %v3361, %v149
        %v3392 = vsub.f32 %v3365, %v149
        %v3393 = vsub.f32 %v3369, %v149
        %v3394 = vsub.f32 %v3373, %v149
        %v3395 = vsub.f32 %v3377, %v149
        %v3396 = vsub.f32 %v3381, %v149
        %v3397 = vsub.f32 %v3385, %v149
        %v3398 = vsub.f32 %v3389, %v149
        %3399 = vset.pattern.permute.xlu0 41
        %3400 = vperm.xlu0 %3399, %v137
        %v3401 = vpop.permute.xlu0 %3400
        %3403 = vset.pattern.permute.xlu0 41
        %3404 = vperm.xlu0 %3403, %v138
        %v3405 = vpop.permute.xlu0 %3404
        %3407 = vset.pattern.permute.xlu0 41
        %3408 = vperm.xlu0 %3407, %v139
        %v3409 = vpop.permute.xlu0 %3408
        %3411 = vset.pattern.permute.xlu0 41
        %3412 = vperm.xlu0 %3411, %v140
        %v3413 = vpop.permute.xlu0 %3412
        %3415 = vset.pattern.permute.xlu0 41
        %3416 = vperm.xlu0 %3415, %v141
        %v3417 = vpop.permute.xlu0 %3416
        %3419 = vset.pattern.permute.xlu0 41
        %3420 = vperm.xlu0 %3419, %v142
        %v3421 = vpop.permute.xlu0 %3420
        %3423 = vset.pattern.permute.xlu0 41
        %3424 = vperm.xlu0 %3423, %v143
        %v3425 = vpop.permute.xlu0 %3424
        %3427 = vset.pattern.permute.xlu0 41
        %3428 = vperm.xlu0 %3427, %v144
        %v3429 = vpop.permute.xlu0 %3428
        %v3431 = vsub.f32 %v3401, %v149
        %v3432 = vsub.f32 %v3405, %v149
        %v3433 = vsub.f32 %v3409, %v149
        %v3434 = vsub.f32 %v3413, %v149
        %v3435 = vsub.f32 %v3417, %v149
        %v3436 = vsub.f32 %v3421, %v149
        %v3437 = vsub.f32 %v3425, %v149
        %v3438 = vsub.f32 %v3429, %v149
        %3447 = vrot.lane.b32.xlu0 %v3431, 64
        %v3448 = vpop.permute.xlu0 %3447
        %3449 = vrot.lane.b32.xlu0 %v3432, 64
        %v3450 = vpop.permute.xlu0 %3449
        %3451 = vrot.lane.b32.xlu0 %v3433, 64
        %v3452 = vpop.permute.xlu0 %3451
        %3453 = vrot.lane.b32.xlu0 %v3434, 64
        %v3454 = vpop.permute.xlu0 %3453
        %3455 = vrot.lane.b32.xlu0 %v3435, 64
        %v3456 = vpop.permute.xlu0 %3455
        %3457 = vrot.lane.b32.xlu0 %v3436, 64
        %v3458 = vpop.permute.xlu0 %3457
        %3459 = vrot.lane.b32.xlu0 %v3437, 64
        %v3460 = vpop.permute.xlu0 %3459
        %3461 = vrot.lane.b32.xlu0 %v3438, 64
        %v3462 = vpop.permute.xlu0 %3461
        %v3471 = vsel %vm270, %v3391, %v3448
        %v3472 = vsel %vm270, %v3392, %v3450
        %v3473 = vsel %vm270, %v3393, %v3452
        %v3474 = vsel %vm270, %v3394, %v3454
        %v3475 = vsel %vm270, %v3395, %v3456
        %v3476 = vsel %vm270, %v3396, %v3458
        %v3477 = vsel %vm270, %v3397, %v3460
        %v3478 = vsel %vm270, %v3398, %v3462
        %v3479 = vmul.f32 %v3471, -12.6
        %v3480 = vmul.f32 %v3472, -12.6
        %v3481 = vmul.f32 %v3473, -12.6
        %v3482 = vmul.f32 %v3474, -12.6
        %v3483 = vmul.f32 %v3475, -12.6
        %v3484 = vmul.f32 %v3476, -12.6
        %v3485 = vmul.f32 %v3477, -12.6
        %v3486 = vmul.f32 %v3478, -12.6
        %v3487 = vmul.f32 %v3479, %v3471
        %v3488 = vmul.f32 %v3480, %v3472
        %v3489 = vmul.f32 %v3481, %v3473
        %v3490 = vmul.f32 %v3482, %v3474
        %v3491 = vmul.f32 %v3483, %v3475
        %v3492 = vmul.f32 %v3484, %v3476
        %v3493 = vmul.f32 %v3485, %v3477
        %v3494 = vmul.f32 %v3486, %v3478
        %v3495 = vmul.f32 %v3487, 1.442695
        %v3496 = vpow.pop %v3495
        %v3497 = vmul.f32 %v3488, 1.442695
        %v3498 = vpow.pop %v3497
        %v3499 = vmul.f32 %v3489, 1.442695
        %v3500 = vpow.pop %v3499
        %v3501 = vmul.f32 %v3490, 1.442695
        %v3502 = vpow.pop %v3501
        %v3503 = vmul.f32 %v3491, 1.442695
        %v3504 = vpow.pop %v3503
        %v3505 = vmul.f32 %v3492, 1.442695
        %v3506 = vpow.pop %v3505
        %v3507 = vmul.f32 %v3493, 1.442695
        %v3508 = vpow.pop %v3507
        %v3509 = vmul.f32 %v3494, 1.442695
        %v3510 = vpow.pop %v3509
        %3511 = vst [vmem:[%s134 + $0xa0] sm:$0xff] %v3496
        %3512 = vst [vmem:[%s134 + $0x2a0] sm:$0xff] %v3498
        %3513 = vst [vmem:[%s134 + $0x4a0] sm:$0xff] %v3500
        %3514 = vst [vmem:[%s134 + $0x6a0] sm:$0xff] %v3502
        %3515 = vst [vmem:[%s134 + $0x8a0] sm:$0xff] %v3504
        %3516 = vst [vmem:[%s134 + $0xaa0] sm:$0xff] %v3506
        %3517 = vst [vmem:[%s134 + $0xca0] sm:$0xff] %v3508
        %3518 = vst [vmem:[%s134 + $0xea0] sm:$0xff] %v3510
        %3519 = vset.pattern.permute.xlu0 42
        %3520 = vperm.xlu0 %3519, %v137
        %v3521 = vpop.permute.xlu0 %3520
        %3523 = vset.pattern.permute.xlu0 42
        %3524 = vperm.xlu0 %3523, %v138
        %v3525 = vpop.permute.xlu0 %3524
        %3527 = vset.pattern.permute.xlu0 42
        %3528 = vperm.xlu0 %3527, %v139
        %v3529 = vpop.permute.xlu0 %3528
        %3531 = vset.pattern.permute.xlu0 42
        %3532 = vperm.xlu0 %3531, %v140
        %v3533 = vpop.permute.xlu0 %3532
        %3535 = vset.pattern.permute.xlu0 42
        %3536 = vperm.xlu0 %3535, %v141
        %v3537 = vpop.permute.xlu0 %3536
        %3539 = vset.pattern.permute.xlu0 42
        %3540 = vperm.xlu0 %3539, %v142
        %v3541 = vpop.permute.xlu0 %3540
        %3543 = vset.pattern.permute.xlu0 42
        %3544 = vperm.xlu0 %3543, %v143
        %v3545 = vpop.permute.xlu0 %3544
        %3547 = vset.pattern.permute.xlu0 42
        %3548 = vperm.xlu0 %3547, %v144
        %v3549 = vpop.permute.xlu0 %3548
        %v3551 = vsub.f32 %v3521, %v149
        %v3552 = vsub.f32 %v3525, %v149
        %v3553 = vsub.f32 %v3529, %v149
        %v3554 = vsub.f32 %v3533, %v149
        %v3555 = vsub.f32 %v3537, %v149
        %v3556 = vsub.f32 %v3541, %v149
        %v3557 = vsub.f32 %v3545, %v149
        %v3558 = vsub.f32 %v3549, %v149
        %3559 = vset.pattern.permute.xlu0 43
        %3560 = vperm.xlu0 %3559, %v137
        %v3561 = vpop.permute.xlu0 %3560
        %3563 = vset.pattern.permute.xlu0 43
        %3564 = vperm.xlu0 %3563, %v138
        %v3565 = vpop.permute.xlu0 %3564
        %3567 = vset.pattern.permute.xlu0 43
        %3568 = vperm.xlu0 %3567, %v139
        %v3569 = vpop.permute.xlu0 %3568
        %3571 = vset.pattern.permute.xlu0 43
        %3572 = vperm.xlu0 %3571, %v140
        %v3573 = vpop.permute.xlu0 %3572
        %3575 = vset.pattern.permute.xlu0 43
        %3576 = vperm.xlu0 %3575, %v141
        %v3577 = vpop.permute.xlu0 %3576
        %3579 = vset.pattern.permute.xlu0 43
        %3580 = vperm.xlu0 %3579, %v142
        %v3581 = vpop.permute.xlu0 %3580
        %3583 = vset.pattern.permute.xlu0 43
        %3584 = vperm.xlu0 %3583, %v143
        %v3585 = vpop.permute.xlu0 %3584
        %3587 = vset.pattern.permute.xlu0 43
        %3588 = vperm.xlu0 %3587, %v144
        %v3589 = vpop.permute.xlu0 %3588
        %v3591 = vsub.f32 %v3561, %v149
        %v3592 = vsub.f32 %v3565, %v149
        %v3593 = vsub.f32 %v3569, %v149
        %v3594 = vsub.f32 %v3573, %v149
        %v3595 = vsub.f32 %v3577, %v149
        %v3596 = vsub.f32 %v3581, %v149
        %v3597 = vsub.f32 %v3585, %v149
        %v3598 = vsub.f32 %v3589, %v149
        %3607 = vrot.lane.b32.xlu0 %v3591, 64
        %v3608 = vpop.permute.xlu0 %3607
        %3609 = vrot.lane.b32.xlu0 %v3592, 64
        %v3610 = vpop.permute.xlu0 %3609
        %3611 = vrot.lane.b32.xlu0 %v3593, 64
        %v3612 = vpop.permute.xlu0 %3611
        %3613 = vrot.lane.b32.xlu0 %v3594, 64
        %v3614 = vpop.permute.xlu0 %3613
        %3615 = vrot.lane.b32.xlu0 %v3595, 64
        %v3616 = vpop.permute.xlu0 %3615
        %3617 = vrot.lane.b32.xlu0 %v3596, 64
        %v3618 = vpop.permute.xlu0 %3617
        %3619 = vrot.lane.b32.xlu0 %v3597, 64
        %v3620 = vpop.permute.xlu0 %3619
        %3621 = vrot.lane.b32.xlu0 %v3598, 64
        %v3622 = vpop.permute.xlu0 %3621
        %v3631 = vsel %vm270, %v3551, %v3608
        %v3632 = vsel %vm270, %v3552, %v3610
        %v3633 = vsel %vm270, %v3553, %v3612
        %v3634 = vsel %vm270, %v3554, %v3614
        %v3635 = vsel %vm270, %v3555, %v3616
        %v3636 = vsel %vm270, %v3556, %v3618
        %v3637 = vsel %vm270, %v3557, %v3620
        %v3638 = vsel %vm270, %v3558, %v3622
        %v3639 = vmul.f32 %v3631, -12.6
        %v3640 = vmul.f32 %v3632, -12.6
        %v3641 = vmul.f32 %v3633, -12.6
        %v3642 = vmul.f32 %v3634, -12.6
        %v3643 = vmul.f32 %v3635, -12.6
        %v3644 = vmul.f32 %v3636, -12.6
        %v3645 = vmul.f32 %v3637, -12.6
        %v3646 = vmul.f32 %v3638, -12.6
        %v3647 = vmul.f32 %v3639, %v3631
        %v3648 = vmul.f32 %v3640, %v3632
        %v3649 = vmul.f32 %v3641, %v3633
        %v3650 = vmul.f32 %v3642, %v3634
        %v3651 = vmul.f32 %v3643, %v3635
        %v3652 = vmul.f32 %v3644, %v3636
        %v3653 = vmul.f32 %v3645, %v3637
        %v3654 = vmul.f32 %v3646, %v3638
        %v3655 = vmul.f32 %v3647, 1.442695
        %v3656 = vpow.pop %v3655
        %v3657 = vmul.f32 %v3648, 1.442695
        %v3658 = vpow.pop %v3657
        %v3659 = vmul.f32 %v3649, 1.442695
        %v3660 = vpow.pop %v3659
        %v3661 = vmul.f32 %v3650, 1.442695
        %v3662 = vpow.pop %v3661
        %v3663 = vmul.f32 %v3651, 1.442695
        %v3664 = vpow.pop %v3663
        %v3665 = vmul.f32 %v3652, 1.442695
        %v3666 = vpow.pop %v3665
        %v3667 = vmul.f32 %v3653, 1.442695
        %v3668 = vpow.pop %v3667
        %v3669 = vmul.f32 %v3654, 1.442695
        %v3670 = vpow.pop %v3669
        %3671 = vst [vmem:[%s134 + $0xa8] sm:$0xff] %v3656
        %3672 = vst [vmem:[%s134 + $0x2a8] sm:$0xff] %v3658
        %3673 = vst [vmem:[%s134 + $0x4a8] sm:$0xff] %v3660
        %3674 = vst [vmem:[%s134 + $0x6a8] sm:$0xff] %v3662
        %3675 = vst [vmem:[%s134 + $0x8a8] sm:$0xff] %v3664
        %3676 = vst [vmem:[%s134 + $0xaa8] sm:$0xff] %v3666
        %3677 = vst [vmem:[%s134 + $0xca8] sm:$0xff] %v3668
        %3678 = vst [vmem:[%s134 + $0xea8] sm:$0xff] %v3670
        %3679 = vset.pattern.permute.xlu0 44
        %3680 = vperm.xlu0 %3679, %v137
        %v3681 = vpop.permute.xlu0 %3680
        %3683 = vset.pattern.permute.xlu0 44
        %3684 = vperm.xlu0 %3683, %v138
        %v3685 = vpop.permute.xlu0 %3684
        %3687 = vset.pattern.permute.xlu0 44
        %3688 = vperm.xlu0 %3687, %v139
        %v3689 = vpop.permute.xlu0 %3688
        %3691 = vset.pattern.permute.xlu0 44
        %3692 = vperm.xlu0 %3691, %v140
        %v3693 = vpop.permute.xlu0 %3692
        %3695 = vset.pattern.permute.xlu0 44
        %3696 = vperm.xlu0 %3695, %v141
        %v3697 = vpop.permute.xlu0 %3696
        %3699 = vset.pattern.permute.xlu0 44
        %3700 = vperm.xlu0 %3699, %v142
        %v3701 = vpop.permute.xlu0 %3700
        %3703 = vset.pattern.permute.xlu0 44
        %3704 = vperm.xlu0 %3703, %v143
        %v3705 = vpop.permute.xlu0 %3704
        %3707 = vset.pattern.permute.xlu0 44
        %3708 = vperm.xlu0 %3707, %v144
        %v3709 = vpop.permute.xlu0 %3708
        %v3711 = vsub.f32 %v3681, %v149
        %v3712 = vsub.f32 %v3685, %v149
        %v3713 = vsub.f32 %v3689, %v149
        %v3714 = vsub.f32 %v3693, %v149
        %v3715 = vsub.f32 %v3697, %v149
        %v3716 = vsub.f32 %v3701, %v149
        %v3717 = vsub.f32 %v3705, %v149
        %v3718 = vsub.f32 %v3709, %v149
        %3719 = vset.pattern.permute.xlu0 45
        %3720 = vperm.xlu0 %3719, %v137
        %v3721 = vpop.permute.xlu0 %3720
        %3723 = vset.pattern.permute.xlu0 45
        %3724 = vperm.xlu0 %3723, %v138
        %v3725 = vpop.permute.xlu0 %3724
        %3727 = vset.pattern.permute.xlu0 45
        %3728 = vperm.xlu0 %3727, %v139
        %v3729 = vpop.permute.xlu0 %3728
        %3731 = vset.pattern.permute.xlu0 45
        %3732 = vperm.xlu0 %3731, %v140
        %v3733 = vpop.permute.xlu0 %3732
        %3735 = vset.pattern.permute.xlu0 45
        %3736 = vperm.xlu0 %3735, %v141
        %v3737 = vpop.permute.xlu0 %3736
        %3739 = vset.pattern.permute.xlu0 45
        %3740 = vperm.xlu0 %3739, %v142
        %v3741 = vpop.permute.xlu0 %3740
        %3743 = vset.pattern.permute.xlu0 45
        %3744 = vperm.xlu0 %3743, %v143
        %v3745 = vpop.permute.xlu0 %3744
        %3747 = vset.pattern.permute.xlu0 45
        %3748 = vperm.xlu0 %3747, %v144
        %v3749 = vpop.permute.xlu0 %3748
        %v3751 = vsub.f32 %v3721, %v149
        %v3752 = vsub.f32 %v3725, %v149
        %v3753 = vsub.f32 %v3729, %v149
        %v3754 = vsub.f32 %v3733, %v149
        %v3755 = vsub.f32 %v3737, %v149
        %v3756 = vsub.f32 %v3741, %v149
        %v3757 = vsub.f32 %v3745, %v149
        %v3758 = vsub.f32 %v3749, %v149
        %3767 = vrot.lane.b32.xlu0 %v3751, 64
        %v3768 = vpop.permute.xlu0 %3767
        %3769 = vrot.lane.b32.xlu0 %v3752, 64
        %v3770 = vpop.permute.xlu0 %3769
        %3771 = vrot.lane.b32.xlu0 %v3753, 64
        %v3772 = vpop.permute.xlu0 %3771
        %3773 = vrot.lane.b32.xlu0 %v3754, 64
        %v3774 = vpop.permute.xlu0 %3773
        %3775 = vrot.lane.b32.xlu0 %v3755, 64
        %v3776 = vpop.permute.xlu0 %3775
        %3777 = vrot.lane.b32.xlu0 %v3756, 64
        %v3778 = vpop.permute.xlu0 %3777
        %3779 = vrot.lane.b32.xlu0 %v3757, 64
        %v3780 = vpop.permute.xlu0 %3779
        %3781 = vrot.lane.b32.xlu0 %v3758, 64
        %v3782 = vpop.permute.xlu0 %3781
        %v3791 = vsel %vm270, %v3711, %v3768
        %v3792 = vsel %vm270, %v3712, %v3770
        %v3793 = vsel %vm270, %v3713, %v3772
        %v3794 = vsel %vm270, %v3714, %v3774
        %v3795 = vsel %vm270, %v3715, %v3776
        %v3796 = vsel %vm270, %v3716, %v3778
        %v3797 = vsel %vm270, %v3717, %v3780
        %v3798 = vsel %vm270, %v3718, %v3782
        %v3799 = vmul.f32 %v3791, -12.6
        %v3800 = vmul.f32 %v3792, -12.6
        %v3801 = vmul.f32 %v3793, -12.6
        %v3802 = vmul.f32 %v3794, -12.6
        %v3803 = vmul.f32 %v3795, -12.6
        %v3804 = vmul.f32 %v3796, -12.6
        %v3805 = vmul.f32 %v3797, -12.6
        %v3806 = vmul.f32 %v3798, -12.6
        %v3807 = vmul.f32 %v3799, %v3791
        %v3808 = vmul.f32 %v3800, %v3792
        %v3809 = vmul.f32 %v3801, %v3793
        %v3810 = vmul.f32 %v3802, %v3794
        %v3811 = vmul.f32 %v3803, %v3795
        %v3812 = vmul.f32 %v3804, %v3796
        %v3813 = vmul.f32 %v3805, %v3797
        %v3814 = vmul.f32 %v3806, %v3798
        %v3815 = vmul.f32 %v3807, 1.442695
        %v3816 = vpow.pop %v3815
        %v3817 = vmul.f32 %v3808, 1.442695
        %v3818 = vpow.pop %v3817
        %v3819 = vmul.f32 %v3809, 1.442695
        %v3820 = vpow.pop %v3819
        %v3821 = vmul.f32 %v3810, 1.442695
        %v3822 = vpow.pop %v3821
        %v3823 = vmul.f32 %v3811, 1.442695
        %v3824 = vpow.pop %v3823
        %v3825 = vmul.f32 %v3812, 1.442695
        %v3826 = vpow.pop %v3825
        %v3827 = vmul.f32 %v3813, 1.442695
        %v3828 = vpow.pop %v3827
        %v3829 = vmul.f32 %v3814, 1.442695
        %v3830 = vpow.pop %v3829
        %3831 = vst [vmem:[%s134 + $0xb0] sm:$0xff] %v3816
        %3832 = vst [vmem:[%s134 + $0x2b0] sm:$0xff] %v3818
        %3833 = vst [vmem:[%s134 + $0x4b0] sm:$0xff] %v3820
        %3834 = vst [vmem:[%s134 + $0x6b0] sm:$0xff] %v3822
        %3835 = vst [vmem:[%s134 + $0x8b0] sm:$0xff] %v3824
        %3836 = vst [vmem:[%s134 + $0xab0] sm:$0xff] %v3826
        %3837 = vst [vmem:[%s134 + $0xcb0] sm:$0xff] %v3828
        %3838 = vst [vmem:[%s134 + $0xeb0] sm:$0xff] %v3830
        %3839 = vset.pattern.permute.xlu0 46
        %3840 = vperm.xlu0 %3839, %v137
        %v3841 = vpop.permute.xlu0 %3840
        %3843 = vset.pattern.permute.xlu0 46
        %3844 = vperm.xlu0 %3843, %v138
        %v3845 = vpop.permute.xlu0 %3844
        %3847 = vset.pattern.permute.xlu0 46
        %3848 = vperm.xlu0 %3847, %v139
        %v3849 = vpop.permute.xlu0 %3848
        %3851 = vset.pattern.permute.xlu0 46
        %3852 = vperm.xlu0 %3851, %v140
        %v3853 = vpop.permute.xlu0 %3852
        %3855 = vset.pattern.permute.xlu0 46
        %3856 = vperm.xlu0 %3855, %v141
        %v3857 = vpop.permute.xlu0 %3856
        %3859 = vset.pattern.permute.xlu0 46
        %3860 = vperm.xlu0 %3859, %v142
        %v3861 = vpop.permute.xlu0 %3860
        %3863 = vset.pattern.permute.xlu0 46
        %3864 = vperm.xlu0 %3863, %v143
        %v3865 = vpop.permute.xlu0 %3864
        %3867 = vset.pattern.permute.xlu0 46
        %3868 = vperm.xlu0 %3867, %v144
        %v3869 = vpop.permute.xlu0 %3868
        %v3871 = vsub.f32 %v3841, %v149
        %v3872 = vsub.f32 %v3845, %v149
        %v3873 = vsub.f32 %v3849, %v149
        %v3874 = vsub.f32 %v3853, %v149
        %v3875 = vsub.f32 %v3857, %v149
        %v3876 = vsub.f32 %v3861, %v149
        %v3877 = vsub.f32 %v3865, %v149
        %v3878 = vsub.f32 %v3869, %v149
        %3879 = vset.pattern.permute.xlu0 47
        %3880 = vperm.xlu0 %3879, %v137
        %v3881 = vpop.permute.xlu0 %3880
        %3883 = vset.pattern.permute.xlu0 47
        %3884 = vperm.xlu0 %3883, %v138
        %v3885 = vpop.permute.xlu0 %3884
        %3887 = vset.pattern.permute.xlu0 47
        %3888 = vperm.xlu0 %3887, %v139
        %v3889 = vpop.permute.xlu0 %3888
        %3891 = vset.pattern.permute.xlu0 47
        %3892 = vperm.xlu0 %3891, %v140
        %v3893 = vpop.permute.xlu0 %3892
        %3895 = vset.pattern.permute.xlu0 47
        %3896 = vperm.xlu0 %3895, %v141
        %v3897 = vpop.permute.xlu0 %3896
        %3899 = vset.pattern.permute.xlu0 47
        %3900 = vperm.xlu0 %3899, %v142
        %v3901 = vpop.permute.xlu0 %3900
        %3903 = vset.pattern.permute.xlu0 47
        %3904 = vperm.xlu0 %3903, %v143
        %v3905 = vpop.permute.xlu0 %3904
        %3907 = vset.pattern.permute.xlu0 47
        %3908 = vperm.xlu0 %3907, %v144
        %v3909 = vpop.permute.xlu0 %3908
        %v3911 = vsub.f32 %v3881, %v149
        %v3912 = vsub.f32 %v3885, %v149
        %v3913 = vsub.f32 %v3889, %v149
        %v3914 = vsub.f32 %v3893, %v149
        %v3915 = vsub.f32 %v3897, %v149
        %v3916 = vsub.f32 %v3901, %v149
        %v3917 = vsub.f32 %v3905, %v149
        %v3918 = vsub.f32 %v3909, %v149
        %3927 = vrot.lane.b32.xlu0 %v3911, 64
        %v3928 = vpop.permute.xlu0 %3927
        %3929 = vrot.lane.b32.xlu0 %v3912, 64
        %v3930 = vpop.permute.xlu0 %3929
        %3931 = vrot.lane.b32.xlu0 %v3913, 64
        %v3932 = vpop.permute.xlu0 %3931
        %3933 = vrot.lane.b32.xlu0 %v3914, 64
        %v3934 = vpop.permute.xlu0 %3933
        %3935 = vrot.lane.b32.xlu0 %v3915, 64
        %v3936 = vpop.permute.xlu0 %3935
        %3937 = vrot.lane.b32.xlu0 %v3916, 64
        %v3938 = vpop.permute.xlu0 %3937
        %3939 = vrot.lane.b32.xlu0 %v3917, 64
        %v3940 = vpop.permute.xlu0 %3939
        %3941 = vrot.lane.b32.xlu0 %v3918, 64
        %v3942 = vpop.permute.xlu0 %3941
        %v3951 = vsel %vm270, %v3871, %v3928
        %v3952 = vsel %vm270, %v3872, %v3930
        %v3953 = vsel %vm270, %v3873, %v3932
        %v3954 = vsel %vm270, %v3874, %v3934
        %v3955 = vsel %vm270, %v3875, %v3936
        %v3956 = vsel %vm270, %v3876, %v3938
        %v3957 = vsel %vm270, %v3877, %v3940
        %v3958 = vsel %vm270, %v3878, %v3942
        %v3959 = vmul.f32 %v3951, -12.6
        %v3960 = vmul.f32 %v3952, -12.6
        %v3961 = vmul.f32 %v3953, -12.6
        %v3962 = vmul.f32 %v3954, -12.6
        %v3963 = vmul.f32 %v3955, -12.6
        %v3964 = vmul.f32 %v3956, -12.6
        %v3965 = vmul.f32 %v3957, -12.6
        %v3966 = vmul.f32 %v3958, -12.6
        %v3967 = vmul.f32 %v3959, %v3951
        %v3968 = vmul.f32 %v3960, %v3952
        %v3969 = vmul.f32 %v3961, %v3953
        %v3970 = vmul.f32 %v3962, %v3954
        %v3971 = vmul.f32 %v3963, %v3955
        %v3972 = vmul.f32 %v3964, %v3956
        %v3973 = vmul.f32 %v3965, %v3957
        %v3974 = vmul.f32 %v3966, %v3958
        %v3975 = vmul.f32 %v3967, 1.442695
        %v3976 = vpow.pop %v3975
        %v3977 = vmul.f32 %v3968, 1.442695
        %v3978 = vpow.pop %v3977
        %v3979 = vmul.f32 %v3969, 1.442695
        %v3980 = vpow.pop %v3979
        %v3981 = vmul.f32 %v3970, 1.442695
        %v3982 = vpow.pop %v3981
        %v3983 = vmul.f32 %v3971, 1.442695
        %v3984 = vpow.pop %v3983
        %v3985 = vmul.f32 %v3972, 1.442695
        %v3986 = vpow.pop %v3985
        %v3987 = vmul.f32 %v3973, 1.442695
        %v3988 = vpow.pop %v3987
        %v3989 = vmul.f32 %v3974, 1.442695
        %v3990 = vpow.pop %v3989
        %3991 = vst [vmem:[%s134 + $0xb8] sm:$0xff] %v3976
        %3992 = vst [vmem:[%s134 + $0x2b8] sm:$0xff] %v3978
        %3993 = vst [vmem:[%s134 + $0x4b8] sm:$0xff] %v3980
        %3994 = vst [vmem:[%s134 + $0x6b8] sm:$0xff] %v3982
        %3995 = vst [vmem:[%s134 + $0x8b8] sm:$0xff] %v3984
        %3996 = vst [vmem:[%s134 + $0xab8] sm:$0xff] %v3986
        %3997 = vst [vmem:[%s134 + $0xcb8] sm:$0xff] %v3988
        %3998 = vst [vmem:[%s134 + $0xeb8] sm:$0xff] %v3990
        %3999 = vset.pattern.permute.xlu0 48
        %4000 = vperm.xlu0 %3999, %v137
        %v4001 = vpop.permute.xlu0 %4000
        %4003 = vset.pattern.permute.xlu0 48
        %4004 = vperm.xlu0 %4003, %v138
        %v4005 = vpop.permute.xlu0 %4004
        %4007 = vset.pattern.permute.xlu0 48
        %4008 = vperm.xlu0 %4007, %v139
        %v4009 = vpop.permute.xlu0 %4008
        %4011 = vset.pattern.permute.xlu0 48
        %4012 = vperm.xlu0 %4011, %v140
        %v4013 = vpop.permute.xlu0 %4012
        %4015 = vset.pattern.permute.xlu0 48
        %4016 = vperm.xlu0 %4015, %v141
        %v4017 = vpop.permute.xlu0 %4016
        %4019 = vset.pattern.permute.xlu0 48
        %4020 = vperm.xlu0 %4019, %v142
        %v4021 = vpop.permute.xlu0 %4020
        %4023 = vset.pattern.permute.xlu0 48
        %4024 = vperm.xlu0 %4023, %v143
        %v4025 = vpop.permute.xlu0 %4024
        %4027 = vset.pattern.permute.xlu0 48
        %4028 = vperm.xlu0 %4027, %v144
        %v4029 = vpop.permute.xlu0 %4028
        %v4031 = vsub.f32 %v4001, %v149
        %v4032 = vsub.f32 %v4005, %v149
        %v4033 = vsub.f32 %v4009, %v149
        %v4034 = vsub.f32 %v4013, %v149
        %v4035 = vsub.f32 %v4017, %v149
        %v4036 = vsub.f32 %v4021, %v149
        %v4037 = vsub.f32 %v4025, %v149
        %v4038 = vsub.f32 %v4029, %v149
        %4039 = vset.pattern.permute.xlu0 49
        %4040 = vperm.xlu0 %4039, %v137
        %v4041 = vpop.permute.xlu0 %4040
        %4043 = vset.pattern.permute.xlu0 49
        %4044 = vperm.xlu0 %4043, %v138
        %v4045 = vpop.permute.xlu0 %4044
        %4047 = vset.pattern.permute.xlu0 49
        %4048 = vperm.xlu0 %4047, %v139
        %v4049 = vpop.permute.xlu0 %4048
        %4051 = vset.pattern.permute.xlu0 49
        %4052 = vperm.xlu0 %4051, %v140
        %v4053 = vpop.permute.xlu0 %4052
        %4055 = vset.pattern.permute.xlu0 49
        %4056 = vperm.xlu0 %4055, %v141
        %v4057 = vpop.permute.xlu0 %4056
        %4059 = vset.pattern.permute.xlu0 49
        %4060 = vperm.xlu0 %4059, %v142
        %v4061 = vpop.permute.xlu0 %4060
        %4063 = vset.pattern.permute.xlu0 49
        %4064 = vperm.xlu0 %4063, %v143
        %v4065 = vpop.permute.xlu0 %4064
        %4067 = vset.pattern.permute.xlu0 49
        %4068 = vperm.xlu0 %4067, %v144
        %v4069 = vpop.permute.xlu0 %4068
        %v4071 = vsub.f32 %v4041, %v149
        %v4072 = vsub.f32 %v4045, %v149
        %v4073 = vsub.f32 %v4049, %v149
        %v4074 = vsub.f32 %v4053, %v149
        %v4075 = vsub.f32 %v4057, %v149
        %v4076 = vsub.f32 %v4061, %v149
        %v4077 = vsub.f32 %v4065, %v149
        %v4078 = vsub.f32 %v4069, %v149
        %4087 = vrot.lane.b32.xlu0 %v4071, 64
        %v4088 = vpop.permute.xlu0 %4087
        %4089 = vrot.lane.b32.xlu0 %v4072, 64
        %v4090 = vpop.permute.xlu0 %4089
        %4091 = vrot.lane.b32.xlu0 %v4073, 64
        %v4092 = vpop.permute.xlu0 %4091
        %4093 = vrot.lane.b32.xlu0 %v4074, 64
        %v4094 = vpop.permute.xlu0 %4093
        %4095 = vrot.lane.b32.xlu0 %v4075, 64
        %v4096 = vpop.permute.xlu0 %4095
        %4097 = vrot.lane.b32.xlu0 %v4076, 64
        %v4098 = vpop.permute.xlu0 %4097
        %4099 = vrot.lane.b32.xlu0 %v4077, 64
        %v4100 = vpop.permute.xlu0 %4099
        %4101 = vrot.lane.b32.xlu0 %v4078, 64
        %v4102 = vpop.permute.xlu0 %4101
        %v4111 = vsel %vm270, %v4031, %v4088
        %v4112 = vsel %vm270, %v4032, %v4090
        %v4113 = vsel %vm270, %v4033, %v4092
        %v4114 = vsel %vm270, %v4034, %v4094
        %v4115 = vsel %vm270, %v4035, %v4096
        %v4116 = vsel %vm270, %v4036, %v4098
        %v4117 = vsel %vm270, %v4037, %v4100
        %v4118 = vsel %vm270, %v4038, %v4102
        %v4119 = vmul.f32 %v4111, -12.6
        %v4120 = vmul.f32 %v4112, -12.6
        %v4121 = vmul.f32 %v4113, -12.6
        %v4122 = vmul.f32 %v4114, -12.6
        %v4123 = vmul.f32 %v4115, -12.6
        %v4124 = vmul.f32 %v4116, -12.6
        %v4125 = vmul.f32 %v4117, -12.6
        %v4126 = vmul.f32 %v4118, -12.6
        %v4127 = vmul.f32 %v4119, %v4111
        %v4128 = vmul.f32 %v4120, %v4112
        %v4129 = vmul.f32 %v4121, %v4113
        %v4130 = vmul.f32 %v4122, %v4114
        %v4131 = vmul.f32 %v4123, %v4115
        %v4132 = vmul.f32 %v4124, %v4116
        %v4133 = vmul.f32 %v4125, %v4117
        %v4134 = vmul.f32 %v4126, %v4118
        %v4135 = vmul.f32 %v4127, 1.442695
        %v4136 = vpow.pop %v4135
        %v4137 = vmul.f32 %v4128, 1.442695
        %v4138 = vpow.pop %v4137
        %v4139 = vmul.f32 %v4129, 1.442695
        %v4140 = vpow.pop %v4139
        %v4141 = vmul.f32 %v4130, 1.442695
        %v4142 = vpow.pop %v4141
        %v4143 = vmul.f32 %v4131, 1.442695
        %v4144 = vpow.pop %v4143
        %v4145 = vmul.f32 %v4132, 1.442695
        %v4146 = vpow.pop %v4145
        %v4147 = vmul.f32 %v4133, 1.442695
        %v4148 = vpow.pop %v4147
        %v4149 = vmul.f32 %v4134, 1.442695
        %v4150 = vpow.pop %v4149
        %4151 = vst [vmem:[%s134 + $0xc0] sm:$0xff] %v4136
        %4152 = vst [vmem:[%s134 + $0x2c0] sm:$0xff] %v4138
        %4153 = vst [vmem:[%s134 + $0x4c0] sm:$0xff] %v4140
        %4154 = vst [vmem:[%s134 + $0x6c0] sm:$0xff] %v4142
        %4155 = vst [vmem:[%s134 + $0x8c0] sm:$0xff] %v4144
        %4156 = vst [vmem:[%s134 + $0xac0] sm:$0xff] %v4146
        %4157 = vst [vmem:[%s134 + $0xcc0] sm:$0xff] %v4148
        %4158 = vst [vmem:[%s134 + $0xec0] sm:$0xff] %v4150
        %4159 = vset.pattern.permute.xlu0 50
        %4160 = vperm.xlu0 %4159, %v137
        %v4161 = vpop.permute.xlu0 %4160
        %4163 = vset.pattern.permute.xlu0 50
        %4164 = vperm.xlu0 %4163, %v138
        %v4165 = vpop.permute.xlu0 %4164
        %4167 = vset.pattern.permute.xlu0 50
        %4168 = vperm.xlu0 %4167, %v139
        %v4169 = vpop.permute.xlu0 %4168
        %4171 = vset.pattern.permute.xlu0 50
        %4172 = vperm.xlu0 %4171, %v140
        %v4173 = vpop.permute.xlu0 %4172
        %4175 = vset.pattern.permute.xlu0 50
        %4176 = vperm.xlu0 %4175, %v141
        %v4177 = vpop.permute.xlu0 %4176
        %4179 = vset.pattern.permute.xlu0 50
        %4180 = vperm.xlu0 %4179, %v142
        %v4181 = vpop.permute.xlu0 %4180
        %4183 = vset.pattern.permute.xlu0 50
        %4184 = vperm.xlu0 %4183, %v143
        %v4185 = vpop.permute.xlu0 %4184
        %4187 = vset.pattern.permute.xlu0 50
        %4188 = vperm.xlu0 %4187, %v144
        %v4189 = vpop.permute.xlu0 %4188
        %v4191 = vsub.f32 %v4161, %v149
        %v4192 = vsub.f32 %v4165, %v149
        %v4193 = vsub.f32 %v4169, %v149
        %v4194 = vsub.f32 %v4173, %v149
        %v4195 = vsub.f32 %v4177, %v149
        %v4196 = vsub.f32 %v4181, %v149
        %v4197 = vsub.f32 %v4185, %v149
        %v4198 = vsub.f32 %v4189, %v149
        %4199 = vset.pattern.permute.xlu0 51
        %4200 = vperm.xlu0 %4199, %v137
        %v4201 = vpop.permute.xlu0 %4200
        %4203 = vset.pattern.permute.xlu0 51
        %4204 = vperm.xlu0 %4203, %v138
        %v4205 = vpop.permute.xlu0 %4204
        %4207 = vset.pattern.permute.xlu0 51
        %4208 = vperm.xlu0 %4207, %v139
        %v4209 = vpop.permute.xlu0 %4208
        %4211 = vset.pattern.permute.xlu0 51
        %4212 = vperm.xlu0 %4211, %v140
        %v4213 = vpop.permute.xlu0 %4212
        %4215 = vset.pattern.permute.xlu0 51
        %4216 = vperm.xlu0 %4215, %v141
        %v4217 = vpop.permute.xlu0 %4216
        %4219 = vset.pattern.permute.xlu0 51
        %4220 = vperm.xlu0 %4219, %v142
        %v4221 = vpop.permute.xlu0 %4220
        %4223 = vset.pattern.permute.xlu0 51
        %4224 = vperm.xlu0 %4223, %v143
        %v4225 = vpop.permute.xlu0 %4224
        %4227 = vset.pattern.permute.xlu0 51
        %4228 = vperm.xlu0 %4227, %v144
        %v4229 = vpop.permute.xlu0 %4228
        %v4231 = vsub.f32 %v4201, %v149
        %v4232 = vsub.f32 %v4205, %v149
        %v4233 = vsub.f32 %v4209, %v149
        %v4234 = vsub.f32 %v4213, %v149
        %v4235 = vsub.f32 %v4217, %v149
        %v4236 = vsub.f32 %v4221, %v149
        %v4237 = vsub.f32 %v4225, %v149
        %v4238 = vsub.f32 %v4229, %v149
        %4247 = vrot.lane.b32.xlu0 %v4231, 64
        %v4248 = vpop.permute.xlu0 %4247
        %4249 = vrot.lane.b32.xlu0 %v4232, 64
        %v4250 = vpop.permute.xlu0 %4249
        %4251 = vrot.lane.b32.xlu0 %v4233, 64
        %v4252 = vpop.permute.xlu0 %4251
        %4253 = vrot.lane.b32.xlu0 %v4234, 64
        %v4254 = vpop.permute.xlu0 %4253
        %4255 = vrot.lane.b32.xlu0 %v4235, 64
        %v4256 = vpop.permute.xlu0 %4255
        %4257 = vrot.lane.b32.xlu0 %v4236, 64
        %v4258 = vpop.permute.xlu0 %4257
        %4259 = vrot.lane.b32.xlu0 %v4237, 64
        %v4260 = vpop.permute.xlu0 %4259
        %4261 = vrot.lane.b32.xlu0 %v4238, 64
        %v4262 = vpop.permute.xlu0 %4261
        %v4271 = vsel %vm270, %v4191, %v4248
        %v4272 = vsel %vm270, %v4192, %v4250
        %v4273 = vsel %vm270, %v4193, %v4252
        %v4274 = vsel %vm270, %v4194, %v4254
        %v4275 = vsel %vm270, %v4195, %v4256
        %v4276 = vsel %vm270, %v4196, %v4258
        %v4277 = vsel %vm270, %v4197, %v4260
        %v4278 = vsel %vm270, %v4198, %v4262
        %v4279 = vmul.f32 %v4271, -12.6
        %v4280 = vmul.f32 %v4272, -12.6
        %v4281 = vmul.f32 %v4273, -12.6
        %v4282 = vmul.f32 %v4274, -12.6
        %v4283 = vmul.f32 %v4275, -12.6
        %v4284 = vmul.f32 %v4276, -12.6
        %v4285 = vmul.f32 %v4277, -12.6
        %v4286 = vmul.f32 %v4278, -12.6
        %v4287 = vmul.f32 %v4279, %v4271
        %v4288 = vmul.f32 %v4280, %v4272
        %v4289 = vmul.f32 %v4281, %v4273
        %v4290 = vmul.f32 %v4282, %v4274
        %v4291 = vmul.f32 %v4283, %v4275
        %v4292 = vmul.f32 %v4284, %v4276
        %v4293 = vmul.f32 %v4285, %v4277
        %v4294 = vmul.f32 %v4286, %v4278
        %v4295 = vmul.f32 %v4287, 1.442695
        %v4296 = vpow.pop %v4295
        %v4297 = vmul.f32 %v4288, 1.442695
        %v4298 = vpow.pop %v4297
        %v4299 = vmul.f32 %v4289, 1.442695
        %v4300 = vpow.pop %v4299
        %v4301 = vmul.f32 %v4290, 1.442695
        %v4302 = vpow.pop %v4301
        %v4303 = vmul.f32 %v4291, 1.442695
        %v4304 = vpow.pop %v4303
        %v4305 = vmul.f32 %v4292, 1.442695
        %v4306 = vpow.pop %v4305
        %v4307 = vmul.f32 %v4293, 1.442695
        %v4308 = vpow.pop %v4307
        %v4309 = vmul.f32 %v4294, 1.442695
        %v4310 = vpow.pop %v4309
        %4311 = vst [vmem:[%s134 + $0xc8] sm:$0xff] %v4296
        %4312 = vst [vmem:[%s134 + $0x2c8] sm:$0xff] %v4298
        %4313 = vst [vmem:[%s134 + $0x4c8] sm:$0xff] %v4300
        %4314 = vst [vmem:[%s134 + $0x6c8] sm:$0xff] %v4302
        %4315 = vst [vmem:[%s134 + $0x8c8] sm:$0xff] %v4304
        %4316 = vst [vmem:[%s134 + $0xac8] sm:$0xff] %v4306
        %4317 = vst [vmem:[%s134 + $0xcc8] sm:$0xff] %v4308
        %4318 = vst [vmem:[%s134 + $0xec8] sm:$0xff] %v4310
        %4319 = vset.pattern.permute.xlu0 52
        %4320 = vperm.xlu0 %4319, %v137
        %v4321 = vpop.permute.xlu0 %4320
        %4323 = vset.pattern.permute.xlu0 52
        %4324 = vperm.xlu0 %4323, %v138
        %v4325 = vpop.permute.xlu0 %4324
        %4327 = vset.pattern.permute.xlu0 52
        %4328 = vperm.xlu0 %4327, %v139
        %v4329 = vpop.permute.xlu0 %4328
        %4331 = vset.pattern.permute.xlu0 52
        %4332 = vperm.xlu0 %4331, %v140
        %v4333 = vpop.permute.xlu0 %4332
        %4335 = vset.pattern.permute.xlu0 52
        %4336 = vperm.xlu0 %4335, %v141
        %v4337 = vpop.permute.xlu0 %4336
        %4339 = vset.pattern.permute.xlu0 52
        %4340 = vperm.xlu0 %4339, %v142
        %v4341 = vpop.permute.xlu0 %4340
        %4343 = vset.pattern.permute.xlu0 52
        %4344 = vperm.xlu0 %4343, %v143
        %v4345 = vpop.permute.xlu0 %4344
        %4347 = vset.pattern.permute.xlu0 52
        %4348 = vperm.xlu0 %4347, %v144
        %v4349 = vpop.permute.xlu0 %4348
        %v4351 = vsub.f32 %v4321, %v149
        %v4352 = vsub.f32 %v4325, %v149
        %v4353 = vsub.f32 %v4329, %v149
        %v4354 = vsub.f32 %v4333, %v149
        %v4355 = vsub.f32 %v4337, %v149
        %v4356 = vsub.f32 %v4341, %v149
        %v4357 = vsub.f32 %v4345, %v149
        %v4358 = vsub.f32 %v4349, %v149
        %4359 = vset.pattern.permute.xlu0 53
        %4360 = vperm.xlu0 %4359, %v137
        %v4361 = vpop.permute.xlu0 %4360
        %4363 = vset.pattern.permute.xlu0 53
        %4364 = vperm.xlu0 %4363, %v138
        %v4365 = vpop.permute.xlu0 %4364
        %4367 = vset.pattern.permute.xlu0 53
        %4368 = vperm.xlu0 %4367, %v139
        %v4369 = vpop.permute.xlu0 %4368
        %4371 = vset.pattern.permute.xlu0 53
        %4372 = vperm.xlu0 %4371, %v140
        %v4373 = vpop.permute.xlu0 %4372
        %4375 = vset.pattern.permute.xlu0 53
        %4376 = vperm.xlu0 %4375, %v141
        %v4377 = vpop.permute.xlu0 %4376
        %4379 = vset.pattern.permute.xlu0 53
        %4380 = vperm.xlu0 %4379, %v142
        %v4381 = vpop.permute.xlu0 %4380
        %4383 = vset.pattern.permute.xlu0 53
        %4384 = vperm.xlu0 %4383, %v143
        %v4385 = vpop.permute.xlu0 %4384
        %4387 = vset.pattern.permute.xlu0 53
        %4388 = vperm.xlu0 %4387, %v144
        %v4389 = vpop.permute.xlu0 %4388
        %v4391 = vsub.f32 %v4361, %v149
        %v4392 = vsub.f32 %v4365, %v149
        %v4393 = vsub.f32 %v4369, %v149
        %v4394 = vsub.f32 %v4373, %v149
        %v4395 = vsub.f32 %v4377, %v149
        %v4396 = vsub.f32 %v4381, %v149
        %v4397 = vsub.f32 %v4385, %v149
        %v4398 = vsub.f32 %v4389, %v149
        %4407 = vrot.lane.b32.xlu0 %v4391, 64
        %v4408 = vpop.permute.xlu0 %4407
        %4409 = vrot.lane.b32.xlu0 %v4392, 64
        %v4410 = vpop.permute.xlu0 %4409
        %4411 = vrot.lane.b32.xlu0 %v4393, 64
        %v4412 = vpop.permute.xlu0 %4411
        %4413 = vrot.lane.b32.xlu0 %v4394, 64
        %v4414 = vpop.permute.xlu0 %4413
        %4415 = vrot.lane.b32.xlu0 %v4395, 64
        %v4416 = vpop.permute.xlu0 %4415
        %4417 = vrot.lane.b32.xlu0 %v4396, 64
        %v4418 = vpop.permute.xlu0 %4417
        %4419 = vrot.lane.b32.xlu0 %v4397, 64
        %v4420 = vpop.permute.xlu0 %4419
        %4421 = vrot.lane.b32.xlu0 %v4398, 64
        %v4422 = vpop.permute.xlu0 %4421
        %v4431 = vsel %vm270, %v4351, %v4408
        %v4432 = vsel %vm270, %v4352, %v4410
        %v4433 = vsel %vm270, %v4353, %v4412
        %v4434 = vsel %vm270, %v4354, %v4414
        %v4435 = vsel %vm270, %v4355, %v4416
        %v4436 = vsel %vm270, %v4356, %v4418
        %v4437 = vsel %vm270, %v4357, %v4420
        %v4438 = vsel %vm270, %v4358, %v4422
        %v4439 = vmul.f32 %v4431, -12.6
        %v4440 = vmul.f32 %v4432, -12.6
        %v4441 = vmul.f32 %v4433, -12.6
        %v4442 = vmul.f32 %v4434, -12.6
        %v4443 = vmul.f32 %v4435, -12.6
        %v4444 = vmul.f32 %v4436, -12.6
        %v4445 = vmul.f32 %v4437, -12.6
        %v4446 = vmul.f32 %v4438, -12.6
        %v4447 = vmul.f32 %v4439, %v4431
        %v4448 = vmul.f32 %v4440, %v4432
        %v4449 = vmul.f32 %v4441, %v4433
        %v4450 = vmul.f32 %v4442, %v4434
        %v4451 = vmul.f32 %v4443, %v4435
        %v4452 = vmul.f32 %v4444, %v4436
        %v4453 = vmul.f32 %v4445, %v4437
        %v4454 = vmul.f32 %v4446, %v4438
        %v4455 = vmul.f32 %v4447, 1.442695
        %v4456 = vpow.pop %v4455
        %v4457 = vmul.f32 %v4448, 1.442695
        %v4458 = vpow.pop %v4457
        %v4459 = vmul.f32 %v4449, 1.442695
        %v4460 = vpow.pop %v4459
        %v4461 = vmul.f32 %v4450, 1.442695
        %v4462 = vpow.pop %v4461
        %v4463 = vmul.f32 %v4451, 1.442695
        %v4464 = vpow.pop %v4463
        %v4465 = vmul.f32 %v4452, 1.442695
        %v4466 = vpow.pop %v4465
        %v4467 = vmul.f32 %v4453, 1.442695
        %v4468 = vpow.pop %v4467
        %v4469 = vmul.f32 %v4454, 1.442695
        %v4470 = vpow.pop %v4469
        %4471 = vst [vmem:[%s134 + $0xd0] sm:$0xff] %v4456
        %4472 = vst [vmem:[%s134 + $0x2d0] sm:$0xff] %v4458
        %4473 = vst [vmem:[%s134 + $0x4d0] sm:$0xff] %v4460
        %4474 = vst [vmem:[%s134 + $0x6d0] sm:$0xff] %v4462
        %4475 = vst [vmem:[%s134 + $0x8d0] sm:$0xff] %v4464
        %4476 = vst [vmem:[%s134 + $0xad0] sm:$0xff] %v4466
        %4477 = vst [vmem:[%s134 + $0xcd0] sm:$0xff] %v4468
        %4478 = vst [vmem:[%s134 + $0xed0] sm:$0xff] %v4470
        %4479 = vset.pattern.permute.xlu0 54
        %4480 = vperm.xlu0 %4479, %v137
        %v4481 = vpop.permute.xlu0 %4480
        %4483 = vset.pattern.permute.xlu0 54
        %4484 = vperm.xlu0 %4483, %v138
        %v4485 = vpop.permute.xlu0 %4484
        %4487 = vset.pattern.permute.xlu0 54
        %4488 = vperm.xlu0 %4487, %v139
        %v4489 = vpop.permute.xlu0 %4488
        %4491 = vset.pattern.permute.xlu0 54
        %4492 = vperm.xlu0 %4491, %v140
        %v4493 = vpop.permute.xlu0 %4492
        %4495 = vset.pattern.permute.xlu0 54
        %4496 = vperm.xlu0 %4495, %v141
        %v4497 = vpop.permute.xlu0 %4496
        %4499 = vset.pattern.permute.xlu0 54
        %4500 = vperm.xlu0 %4499, %v142
        %v4501 = vpop.permute.xlu0 %4500
        %4503 = vset.pattern.permute.xlu0 54
        %4504 = vperm.xlu0 %4503, %v143
        %v4505 = vpop.permute.xlu0 %4504
        %4507 = vset.pattern.permute.xlu0 54
        %4508 = vperm.xlu0 %4507, %v144
        %v4509 = vpop.permute.xlu0 %4508
        %v4511 = vsub.f32 %v4481, %v149
        %v4512 = vsub.f32 %v4485, %v149
        %v4513 = vsub.f32 %v4489, %v149
        %v4514 = vsub.f32 %v4493, %v149
        %v4515 = vsub.f32 %v4497, %v149
        %v4516 = vsub.f32 %v4501, %v149
        %v4517 = vsub.f32 %v4505, %v149
        %v4518 = vsub.f32 %v4509, %v149
        %4519 = vset.pattern.permute.xlu0 55
        %4520 = vperm.xlu0 %4519, %v137
        %v4521 = vpop.permute.xlu0 %4520
        %4523 = vset.pattern.permute.xlu0 55
        %4524 = vperm.xlu0 %4523, %v138
        %v4525 = vpop.permute.xlu0 %4524
        %4527 = vset.pattern.permute.xlu0 55
        %4528 = vperm.xlu0 %4527, %v139
        %v4529 = vpop.permute.xlu0 %4528
        %4531 = vset.pattern.permute.xlu0 55
        %4532 = vperm.xlu0 %4531, %v140
        %v4533 = vpop.permute.xlu0 %4532
        %4535 = vset.pattern.permute.xlu0 55
        %4536 = vperm.xlu0 %4535, %v141
        %v4537 = vpop.permute.xlu0 %4536
        %4539 = vset.pattern.permute.xlu0 55
        %4540 = vperm.xlu0 %4539, %v142
        %v4541 = vpop.permute.xlu0 %4540
        %4543 = vset.pattern.permute.xlu0 55
        %4544 = vperm.xlu0 %4543, %v143
        %v4545 = vpop.permute.xlu0 %4544
        %4547 = vset.pattern.permute.xlu0 55
        %4548 = vperm.xlu0 %4547, %v144
        %v4549 = vpop.permute.xlu0 %4548
        %v4551 = vsub.f32 %v4521, %v149
        %v4552 = vsub.f32 %v4525, %v149
        %v4553 = vsub.f32 %v4529, %v149
        %v4554 = vsub.f32 %v4533, %v149
        %v4555 = vsub.f32 %v4537, %v149
        %v4556 = vsub.f32 %v4541, %v149
        %v4557 = vsub.f32 %v4545, %v149
        %v4558 = vsub.f32 %v4549, %v149
        %4567 = vrot.lane.b32.xlu0 %v4551, 64
        %v4568 = vpop.permute.xlu0 %4567
        %4569 = vrot.lane.b32.xlu0 %v4552, 64
        %v4570 = vpop.permute.xlu0 %4569
        %4571 = vrot.lane.b32.xlu0 %v4553, 64
        %v4572 = vpop.permute.xlu0 %4571
        %4573 = vrot.lane.b32.xlu0 %v4554, 64
        %v4574 = vpop.permute.xlu0 %4573
        %4575 = vrot.lane.b32.xlu0 %v4555, 64
        %v4576 = vpop.permute.xlu0 %4575
        %4577 = vrot.lane.b32.xlu0 %v4556, 64
        %v4578 = vpop.permute.xlu0 %4577
        %4579 = vrot.lane.b32.xlu0 %v4557, 64
        %v4580 = vpop.permute.xlu0 %4579
        %4581 = vrot.lane.b32.xlu0 %v4558, 64
        %v4582 = vpop.permute.xlu0 %4581
        %v4591 = vsel %vm270, %v4511, %v4568
        %v4592 = vsel %vm270, %v4512, %v4570
        %v4593 = vsel %vm270, %v4513, %v4572
        %v4594 = vsel %vm270, %v4514, %v4574
        %v4595 = vsel %vm270, %v4515, %v4576
        %v4596 = vsel %vm270, %v4516, %v4578
        %v4597 = vsel %vm270, %v4517, %v4580
        %v4598 = vsel %vm270, %v4518, %v4582
        %v4599 = vmul.f32 %v4591, -12.6
        %v4600 = vmul.f32 %v4592, -12.6
        %v4601 = vmul.f32 %v4593, -12.6
        %v4602 = vmul.f32 %v4594, -12.6
        %v4603 = vmul.f32 %v4595, -12.6
        %v4604 = vmul.f32 %v4596, -12.6
        %v4605 = vmul.f32 %v4597, -12.6
        %v4606 = vmul.f32 %v4598, -12.6
        %v4607 = vmul.f32 %v4599, %v4591
        %v4608 = vmul.f32 %v4600, %v4592
        %v4609 = vmul.f32 %v4601, %v4593
        %v4610 = vmul.f32 %v4602, %v4594
        %v4611 = vmul.f32 %v4603, %v4595
        %v4612 = vmul.f32 %v4604, %v4596
        %v4613 = vmul.f32 %v4605, %v4597
        %v4614 = vmul.f32 %v4606, %v4598
        %v4615 = vmul.f32 %v4607, 1.442695
        %v4616 = vpow.pop %v4615
        %v4617 = vmul.f32 %v4608, 1.442695
        %v4618 = vpow.pop %v4617
        %v4619 = vmul.f32 %v4609, 1.442695
        %v4620 = vpow.pop %v4619
        %v4621 = vmul.f32 %v4610, 1.442695
        %v4622 = vpow.pop %v4621
        %v4623 = vmul.f32 %v4611, 1.442695
        %v4624 = vpow.pop %v4623
        %v4625 = vmul.f32 %v4612, 1.442695
        %v4626 = vpow.pop %v4625
        %v4627 = vmul.f32 %v4613, 1.442695
        %v4628 = vpow.pop %v4627
        %v4629 = vmul.f32 %v4614, 1.442695
        %v4630 = vpow.pop %v4629
        %4631 = vst [vmem:[%s134 + $0xd8] sm:$0xff] %v4616
        %4632 = vst [vmem:[%s134 + $0x2d8] sm:$0xff] %v4618
        %4633 = vst [vmem:[%s134 + $0x4d8] sm:$0xff] %v4620
        %4634 = vst [vmem:[%s134 + $0x6d8] sm:$0xff] %v4622
        %4635 = vst [vmem:[%s134 + $0x8d8] sm:$0xff] %v4624
        %4636 = vst [vmem:[%s134 + $0xad8] sm:$0xff] %v4626
        %4637 = vst [vmem:[%s134 + $0xcd8] sm:$0xff] %v4628
        %4638 = vst [vmem:[%s134 + $0xed8] sm:$0xff] %v4630
        %4639 = vset.pattern.permute.xlu0 56
        %4640 = vperm.xlu0 %4639, %v137
        %v4641 = vpop.permute.xlu0 %4640
        %4643 = vset.pattern.permute.xlu0 56
        %4644 = vperm.xlu0 %4643, %v138
        %v4645 = vpop.permute.xlu0 %4644
        %4647 = vset.pattern.permute.xlu0 56
        %4648 = vperm.xlu0 %4647, %v139
        %v4649 = vpop.permute.xlu0 %4648
        %4651 = vset.pattern.permute.xlu0 56
        %4652 = vperm.xlu0 %4651, %v140
        %v4653 = vpop.permute.xlu0 %4652
        %4655 = vset.pattern.permute.xlu0 56
        %4656 = vperm.xlu0 %4655, %v141
        %v4657 = vpop.permute.xlu0 %4656
        %4659 = vset.pattern.permute.xlu0 56
        %4660 = vperm.xlu0 %4659, %v142
        %v4661 = vpop.permute.xlu0 %4660
        %4663 = vset.pattern.permute.xlu0 56
        %4664 = vperm.xlu0 %4663, %v143
        %v4665 = vpop.permute.xlu0 %4664
        %4667 = vset.pattern.permute.xlu0 56
        %4668 = vperm.xlu0 %4667, %v144
        %v4669 = vpop.permute.xlu0 %4668
        %v4671 = vsub.f32 %v4641, %v149
        %v4672 = vsub.f32 %v4645, %v149
        %v4673 = vsub.f32 %v4649, %v149
        %v4674 = vsub.f32 %v4653, %v149
        %v4675 = vsub.f32 %v4657, %v149
        %v4676 = vsub.f32 %v4661, %v149
        %v4677 = vsub.f32 %v4665, %v149
        %v4678 = vsub.f32 %v4669, %v149
        %4679 = vset.pattern.permute.xlu0 57
        %4680 = vperm.xlu0 %4679, %v137
        %v4681 = vpop.permute.xlu0 %4680
        %4683 = vset.pattern.permute.xlu0 57
        %4684 = vperm.xlu0 %4683, %v138
        %v4685 = vpop.permute.xlu0 %4684
        %4687 = vset.pattern.permute.xlu0 57
        %4688 = vperm.xlu0 %4687, %v139
        %v4689 = vpop.permute.xlu0 %4688
        %4691 = vset.pattern.permute.xlu0 57
        %4692 = vperm.xlu0 %4691, %v140
        %v4693 = vpop.permute.xlu0 %4692
        %4695 = vset.pattern.permute.xlu0 57
        %4696 = vperm.xlu0 %4695, %v141
        %v4697 = vpop.permute.xlu0 %4696
        %4699 = vset.pattern.permute.xlu0 57
        %4700 = vperm.xlu0 %4699, %v142
        %v4701 = vpop.permute.xlu0 %4700
        %4703 = vset.pattern.permute.xlu0 57
        %4704 = vperm.xlu0 %4703, %v143
        %v4705 = vpop.permute.xlu0 %4704
        %4707 = vset.pattern.permute.xlu0 57
        %4708 = vperm.xlu0 %4707, %v144
        %v4709 = vpop.permute.xlu0 %4708
        %v4711 = vsub.f32 %v4681, %v149
        %v4712 = vsub.f32 %v4685, %v149
        %v4713 = vsub.f32 %v4689, %v149
        %v4714 = vsub.f32 %v4693, %v149
        %v4715 = vsub.f32 %v4697, %v149
        %v4716 = vsub.f32 %v4701, %v149
        %v4717 = vsub.f32 %v4705, %v149
        %v4718 = vsub.f32 %v4709, %v149
        %4727 = vrot.lane.b32.xlu0 %v4711, 64
        %v4728 = vpop.permute.xlu0 %4727
        %4729 = vrot.lane.b32.xlu0 %v4712, 64
        %v4730 = vpop.permute.xlu0 %4729
        %4731 = vrot.lane.b32.xlu0 %v4713, 64
        %v4732 = vpop.permute.xlu0 %4731
        %4733 = vrot.lane.b32.xlu0 %v4714, 64
        %v4734 = vpop.permute.xlu0 %4733
        %4735 = vrot.lane.b32.xlu0 %v4715, 64
        %v4736 = vpop.permute.xlu0 %4735
        %4737 = vrot.lane.b32.xlu0 %v4716, 64
        %v4738 = vpop.permute.xlu0 %4737
        %4739 = vrot.lane.b32.xlu0 %v4717, 64
        %v4740 = vpop.permute.xlu0 %4739
        %4741 = vrot.lane.b32.xlu0 %v4718, 64
        %v4742 = vpop.permute.xlu0 %4741
        %v4751 = vsel %vm270, %v4671, %v4728
        %v4752 = vsel %vm270, %v4672, %v4730
        %v4753 = vsel %vm270, %v4673, %v4732
        %v4754 = vsel %vm270, %v4674, %v4734
        %v4755 = vsel %vm270, %v4675, %v4736
        %v4756 = vsel %vm270, %v4676, %v4738
        %v4757 = vsel %vm270, %v4677, %v4740
        %v4758 = vsel %vm270, %v4678, %v4742
        %v4759 = vmul.f32 %v4751, -12.6
        %v4760 = vmul.f32 %v4752, -12.6
        %v4761 = vmul.f32 %v4753, -12.6
        %v4762 = vmul.f32 %v4754, -12.6
        %v4763 = vmul.f32 %v4755, -12.6
        %v4764 = vmul.f32 %v4756, -12.6
        %v4765 = vmul.f32 %v4757, -12.6
        %v4766 = vmul.f32 %v4758, -12.6
        %v4767 = vmul.f32 %v4759, %v4751
        %v4768 = vmul.f32 %v4760, %v4752
        %v4769 = vmul.f32 %v4761, %v4753
        %v4770 = vmul.f32 %v4762, %v4754
        %v4771 = vmul.f32 %v4763, %v4755
        %v4772 = vmul.f32 %v4764, %v4756
        %v4773 = vmul.f32 %v4765, %v4757
        %v4774 = vmul.f32 %v4766, %v4758
        %v4775 = vmul.f32 %v4767, 1.442695
        %v4776 = vpow.pop %v4775
        %v4777 = vmul.f32 %v4768, 1.442695
        %v4778 = vpow.pop %v4777
        %v4779 = vmul.f32 %v4769, 1.442695
        %v4780 = vpow.pop %v4779
        %v4781 = vmul.f32 %v4770, 1.442695
        %v4782 = vpow.pop %v4781
        %v4783 = vmul.f32 %v4771, 1.442695
        %v4784 = vpow.pop %v4783
        %v4785 = vmul.f32 %v4772, 1.442695
        %v4786 = vpow.pop %v4785
        %v4787 = vmul.f32 %v4773, 1.442695
        %v4788 = vpow.pop %v4787
        %v4789 = vmul.f32 %v4774, 1.442695
        %v4790 = vpow.pop %v4789
        %4791 = vst [vmem:[%s134 + $0xe0] sm:$0xff] %v4776
        %4792 = vst [vmem:[%s134 + $0x2e0] sm:$0xff] %v4778
        %4793 = vst [vmem:[%s134 + $0x4e0] sm:$0xff] %v4780
        %4794 = vst [vmem:[%s134 + $0x6e0] sm:$0xff] %v4782
        %4795 = vst [vmem:[%s134 + $0x8e0] sm:$0xff] %v4784
        %4796 = vst [vmem:[%s134 + $0xae0] sm:$0xff] %v4786
        %4797 = vst [vmem:[%s134 + $0xce0] sm:$0xff] %v4788
        %4798 = vst [vmem:[%s134 + $0xee0] sm:$0xff] %v4790
        %4799 = vset.pattern.permute.xlu0 58
        %4800 = vperm.xlu0 %4799, %v137
        %v4801 = vpop.permute.xlu0 %4800
        %4803 = vset.pattern.permute.xlu0 58
        %4804 = vperm.xlu0 %4803, %v138
        %v4805 = vpop.permute.xlu0 %4804
        %4807 = vset.pattern.permute.xlu0 58
        %4808 = vperm.xlu0 %4807, %v139
        %v4809 = vpop.permute.xlu0 %4808
        %4811 = vset.pattern.permute.xlu0 58
        %4812 = vperm.xlu0 %4811, %v140
        %v4813 = vpop.permute.xlu0 %4812
        %4815 = vset.pattern.permute.xlu0 58
        %4816 = vperm.xlu0 %4815, %v141
        %v4817 = vpop.permute.xlu0 %4816
        %4819 = vset.pattern.permute.xlu0 58
        %4820 = vperm.xlu0 %4819, %v142
        %v4821 = vpop.permute.xlu0 %4820
        %4823 = vset.pattern.permute.xlu0 58
        %4824 = vperm.xlu0 %4823, %v143
        %v4825 = vpop.permute.xlu0 %4824
        %4827 = vset.pattern.permute.xlu0 58
        %4828 = vperm.xlu0 %4827, %v144
        %v4829 = vpop.permute.xlu0 %4828
        %v4831 = vsub.f32 %v4801, %v149
        %v4832 = vsub.f32 %v4805, %v149
        %v4833 = vsub.f32 %v4809, %v149
        %v4834 = vsub.f32 %v4813, %v149
        %v4835 = vsub.f32 %v4817, %v149
        %v4836 = vsub.f32 %v4821, %v149
        %v4837 = vsub.f32 %v4825, %v149
        %v4838 = vsub.f32 %v4829, %v149
        %4839 = vset.pattern.permute.xlu0 59
        %4840 = vperm.xlu0 %4839, %v137
        %v4841 = vpop.permute.xlu0 %4840
        %4843 = vset.pattern.permute.xlu0 59
        %4844 = vperm.xlu0 %4843, %v138
        %v4845 = vpop.permute.xlu0 %4844
        %4847 = vset.pattern.permute.xlu0 59
        %4848 = vperm.xlu0 %4847, %v139
        %v4849 = vpop.permute.xlu0 %4848
        %4851 = vset.pattern.permute.xlu0 59
        %4852 = vperm.xlu0 %4851, %v140
        %v4853 = vpop.permute.xlu0 %4852
        %4855 = vset.pattern.permute.xlu0 59
        %4856 = vperm.xlu0 %4855, %v141
        %v4857 = vpop.permute.xlu0 %4856
        %4859 = vset.pattern.permute.xlu0 59
        %4860 = vperm.xlu0 %4859, %v142
        %v4861 = vpop.permute.xlu0 %4860
        %4863 = vset.pattern.permute.xlu0 59
        %4864 = vperm.xlu0 %4863, %v143
        %v4865 = vpop.permute.xlu0 %4864
        %4867 = vset.pattern.permute.xlu0 59
        %4868 = vperm.xlu0 %4867, %v144
        %v4869 = vpop.permute.xlu0 %4868
        %v4871 = vsub.f32 %v4841, %v149
        %v4872 = vsub.f32 %v4845, %v149
        %v4873 = vsub.f32 %v4849, %v149
        %v4874 = vsub.f32 %v4853, %v149
        %v4875 = vsub.f32 %v4857, %v149
        %v4876 = vsub.f32 %v4861, %v149
        %v4877 = vsub.f32 %v4865, %v149
        %v4878 = vsub.f32 %v4869, %v149
        %4887 = vrot.lane.b32.xlu0 %v4871, 64
        %v4888 = vpop.permute.xlu0 %4887
        %4889 = vrot.lane.b32.xlu0 %v4872, 64
        %v4890 = vpop.permute.xlu0 %4889
        %4891 = vrot.lane.b32.xlu0 %v4873, 64
        %v4892 = vpop.permute.xlu0 %4891
        %4893 = vrot.lane.b32.xlu0 %v4874, 64
        %v4894 = vpop.permute.xlu0 %4893
        %4895 = vrot.lane.b32.xlu0 %v4875, 64
        %v4896 = vpop.permute.xlu0 %4895
        %4897 = vrot.lane.b32.xlu0 %v4876, 64
        %v4898 = vpop.permute.xlu0 %4897
        %4899 = vrot.lane.b32.xlu0 %v4877, 64
        %v4900 = vpop.permute.xlu0 %4899
        %4901 = vrot.lane.b32.xlu0 %v4878, 64
        %v4902 = vpop.permute.xlu0 %4901
        %v4911 = vsel %vm270, %v4831, %v4888
        %v4912 = vsel %vm270, %v4832, %v4890
        %v4913 = vsel %vm270, %v4833, %v4892
        %v4914 = vsel %vm270, %v4834, %v4894
        %v4915 = vsel %vm270, %v4835, %v4896
        %v4916 = vsel %vm270, %v4836, %v4898
        %v4917 = vsel %vm270, %v4837, %v4900
        %v4918 = vsel %vm270, %v4838, %v4902
        %v4919 = vmul.f32 %v4911, -12.6
        %v4920 = vmul.f32 %v4912, -12.6
        %v4921 = vmul.f32 %v4913, -12.6
        %v4922 = vmul.f32 %v4914, -12.6
        %v4923 = vmul.f32 %v4915, -12.6
        %v4924 = vmul.f32 %v4916, -12.6
        %v4925 = vmul.f32 %v4917, -12.6
        %v4926 = vmul.f32 %v4918, -12.6
        %v4927 = vmul.f32 %v4919, %v4911
        %v4928 = vmul.f32 %v4920, %v4912
        %v4929 = vmul.f32 %v4921, %v4913
        %v4930 = vmul.f32 %v4922, %v4914
        %v4931 = vmul.f32 %v4923, %v4915
        %v4932 = vmul.f32 %v4924, %v4916
        %v4933 = vmul.f32 %v4925, %v4917
        %v4934 = vmul.f32 %v4926, %v4918
        %v4935 = vmul.f32 %v4927, 1.442695
        %v4936 = vpow.pop %v4935
        %v4937 = vmul.f32 %v4928, 1.442695
        %v4938 = vpow.pop %v4937
        %v4939 = vmul.f32 %v4929, 1.442695
        %v4940 = vpow.pop %v4939
        %v4941 = vmul.f32 %v4930, 1.442695
        %v4942 = vpow.pop %v4941
        %v4943 = vmul.f32 %v4931, 1.442695
        %v4944 = vpow.pop %v4943
        %v4945 = vmul.f32 %v4932, 1.442695
        %v4946 = vpow.pop %v4945
        %v4947 = vmul.f32 %v4933, 1.442695
        %v4948 = vpow.pop %v4947
        %v4949 = vmul.f32 %v4934, 1.442695
        %v4950 = vpow.pop %v4949
        %4951 = vst [vmem:[%s134 + $0xe8] sm:$0xff] %v4936
        %4952 = vst [vmem:[%s134 + $0x2e8] sm:$0xff] %v4938
        %4953 = vst [vmem:[%s134 + $0x4e8] sm:$0xff] %v4940
        %4954 = vst [vmem:[%s134 + $0x6e8] sm:$0xff] %v4942
        %4955 = vst [vmem:[%s134 + $0x8e8] sm:$0xff] %v4944
        %4956 = vst [vmem:[%s134 + $0xae8] sm:$0xff] %v4946
        %4957 = vst [vmem:[%s134 + $0xce8] sm:$0xff] %v4948
        %4958 = vst [vmem:[%s134 + $0xee8] sm:$0xff] %v4950
        %4959 = vset.pattern.permute.xlu0 60
        %4960 = vperm.xlu0 %4959, %v137
        %v4961 = vpop.permute.xlu0 %4960
        %4963 = vset.pattern.permute.xlu0 60
        %4964 = vperm.xlu0 %4963, %v138
        %v4965 = vpop.permute.xlu0 %4964
        %4967 = vset.pattern.permute.xlu0 60
        %4968 = vperm.xlu0 %4967, %v139
        %v4969 = vpop.permute.xlu0 %4968
        %4971 = vset.pattern.permute.xlu0 60
        %4972 = vperm.xlu0 %4971, %v140
        %v4973 = vpop.permute.xlu0 %4972
        %4975 = vset.pattern.permute.xlu0 60
        %4976 = vperm.xlu0 %4975, %v141
        %v4977 = vpop.permute.xlu0 %4976
        %4979 = vset.pattern.permute.xlu0 60
        %4980 = vperm.xlu0 %4979, %v142
        %v4981 = vpop.permute.xlu0 %4980
        %4983 = vset.pattern.permute.xlu0 60
        %4984 = vperm.xlu0 %4983, %v143
        %v4985 = vpop.permute.xlu0 %4984
        %4987 = vset.pattern.permute.xlu0 60
        %4988 = vperm.xlu0 %4987, %v144
        %v4989 = vpop.permute.xlu0 %4988
        %v4991 = vsub.f32 %v4961, %v149
        %v4992 = vsub.f32 %v4965, %v149
        %v4993 = vsub.f32 %v4969, %v149
        %v4994 = vsub.f32 %v4973, %v149
        %v4995 = vsub.f32 %v4977, %v149
        %v4996 = vsub.f32 %v4981, %v149
        %v4997 = vsub.f32 %v4985, %v149
        %v4998 = vsub.f32 %v4989, %v149
        %4999 = vset.pattern.permute.xlu0 61
        %5000 = vperm.xlu0 %4999, %v137
        %v5001 = vpop.permute.xlu0 %5000
        %5003 = vset.pattern.permute.xlu0 61
        %5004 = vperm.xlu0 %5003, %v138
        %v5005 = vpop.permute.xlu0 %5004
        %5007 = vset.pattern.permute.xlu0 61
        %5008 = vperm.xlu0 %5007, %v139
        %v5009 = vpop.permute.xlu0 %5008
        %5011 = vset.pattern.permute.xlu0 61
        %5012 = vperm.xlu0 %5011, %v140
        %v5013 = vpop.permute.xlu0 %5012
        %5015 = vset.pattern.permute.xlu0 61
        %5016 = vperm.xlu0 %5015, %v141
        %v5017 = vpop.permute.xlu0 %5016
        %5019 = vset.pattern.permute.xlu0 61
        %5020 = vperm.xlu0 %5019, %v142
        %v5021 = vpop.permute.xlu0 %5020
        %5023 = vset.pattern.permute.xlu0 61
        %5024 = vperm.xlu0 %5023, %v143
        %v5025 = vpop.permute.xlu0 %5024
        %5027 = vset.pattern.permute.xlu0 61
        %5028 = vperm.xlu0 %5027, %v144
        %v5029 = vpop.permute.xlu0 %5028
        %v5031 = vsub.f32 %v5001, %v149
        %v5032 = vsub.f32 %v5005, %v149
        %v5033 = vsub.f32 %v5009, %v149
        %v5034 = vsub.f32 %v5013, %v149
        %v5035 = vsub.f32 %v5017, %v149
        %v5036 = vsub.f32 %v5021, %v149
        %v5037 = vsub.f32 %v5025, %v149
        %v5038 = vsub.f32 %v5029, %v149
        %5047 = vrot.lane.b32.xlu0 %v5031, 64
        %v5048 = vpop.permute.xlu0 %5047
        %5049 = vrot.lane.b32.xlu0 %v5032, 64
        %v5050 = vpop.permute.xlu0 %5049
        %5051 = vrot.lane.b32.xlu0 %v5033, 64
        %v5052 = vpop.permute.xlu0 %5051
        %5053 = vrot.lane.b32.xlu0 %v5034, 64
        %v5054 = vpop.permute.xlu0 %5053
        %5055 = vrot.lane.b32.xlu0 %v5035, 64
        %v5056 = vpop.permute.xlu0 %5055
        %5057 = vrot.lane.b32.xlu0 %v5036, 64
        %v5058 = vpop.permute.xlu0 %5057
        %5059 = vrot.lane.b32.xlu0 %v5037, 64
        %v5060 = vpop.permute.xlu0 %5059
        %5061 = vrot.lane.b32.xlu0 %v5038, 64
        %v5062 = vpop.permute.xlu0 %5061
        %v5071 = vsel %vm270, %v4991, %v5048
        %v5072 = vsel %vm270, %v4992, %v5050
        %v5073 = vsel %vm270, %v4993, %v5052
        %v5074 = vsel %vm270, %v4994, %v5054
        %v5075 = vsel %vm270, %v4995, %v5056
        %v5076 = vsel %vm270, %v4996, %v5058
        %v5077 = vsel %vm270, %v4997, %v5060
        %v5078 = vsel %vm270, %v4998, %v5062
        %v5079 = vmul.f32 %v5071, -12.6
        %v5080 = vmul.f32 %v5072, -12.6
        %v5081 = vmul.f32 %v5073, -12.6
        %v5082 = vmul.f32 %v5074, -12.6
        %v5083 = vmul.f32 %v5075, -12.6
        %v5084 = vmul.f32 %v5076, -12.6
        %v5085 = vmul.f32 %v5077, -12.6
        %v5086 = vmul.f32 %v5078, -12.6
        %v5087 = vmul.f32 %v5079, %v5071
        %v5088 = vmul.f32 %v5080, %v5072
        %v5089 = vmul.f32 %v5081, %v5073
        %v5090 = vmul.f32 %v5082, %v5074
        %v5091 = vmul.f32 %v5083, %v5075
        %v5092 = vmul.f32 %v5084, %v5076
        %v5093 = vmul.f32 %v5085, %v5077
        %v5094 = vmul.f32 %v5086, %v5078
        %v5095 = vmul.f32 %v5087, 1.442695
        %v5096 = vpow.pop %v5095
        %v5097 = vmul.f32 %v5088, 1.442695
        %v5098 = vpow.pop %v5097
        %v5099 = vmul.f32 %v5089, 1.442695
        %v5100 = vpow.pop %v5099
        %v5101 = vmul.f32 %v5090, 1.442695
        %v5102 = vpow.pop %v5101
        %v5103 = vmul.f32 %v5091, 1.442695
        %v5104 = vpow.pop %v5103
        %v5105 = vmul.f32 %v5092, 1.442695
        %v5106 = vpow.pop %v5105
        %v5107 = vmul.f32 %v5093, 1.442695
        %v5108 = vpow.pop %v5107
        %v5109 = vmul.f32 %v5094, 1.442695
        %v5110 = vpow.pop %v5109
        %5111 = vst [vmem:[%s134 + $0xf0] sm:$0xff] %v5096
        %5112 = vst [vmem:[%s134 + $0x2f0] sm:$0xff] %v5098
        %5113 = vst [vmem:[%s134 + $0x4f0] sm:$0xff] %v5100
        %5114 = vst [vmem:[%s134 + $0x6f0] sm:$0xff] %v5102
        %5115 = vst [vmem:[%s134 + $0x8f0] sm:$0xff] %v5104
        %5116 = vst [vmem:[%s134 + $0xaf0] sm:$0xff] %v5106
        %5117 = vst [vmem:[%s134 + $0xcf0] sm:$0xff] %v5108
        %5118 = vst [vmem:[%s134 + $0xef0] sm:$0xff] %v5110
        %5119 = vset.pattern.permute.xlu0 62
        %5120 = vperm.xlu0 %5119, %v137
        %v5121 = vpop.permute.xlu0 %5120
        %5123 = vset.pattern.permute.xlu0 62
        %5124 = vperm.xlu0 %5123, %v138
        %v5125 = vpop.permute.xlu0 %5124
        %5127 = vset.pattern.permute.xlu0 62
        %5128 = vperm.xlu0 %5127, %v139
        %v5129 = vpop.permute.xlu0 %5128
        %5131 = vset.pattern.permute.xlu0 62
        %5132 = vperm.xlu0 %5131, %v140
        %v5133 = vpop.permute.xlu0 %5132
        %5135 = vset.pattern.permute.xlu0 62
        %5136 = vperm.xlu0 %5135, %v141
        %v5137 = vpop.permute.xlu0 %5136
        %5139 = vset.pattern.permute.xlu0 62
        %5140 = vperm.xlu0 %5139, %v142
        %v5141 = vpop.permute.xlu0 %5140
        %5143 = vset.pattern.permute.xlu0 62
        %5144 = vperm.xlu0 %5143, %v143
        %v5145 = vpop.permute.xlu0 %5144
        %5147 = vset.pattern.permute.xlu0 62
        %5148 = vperm.xlu0 %5147, %v144
        %v5149 = vpop.permute.xlu0 %5148
        %v5151 = vsub.f32 %v5121, %v149
        %v5152 = vsub.f32 %v5125, %v149
        %v5153 = vsub.f32 %v5129, %v149
        %v5154 = vsub.f32 %v5133, %v149
        %v5155 = vsub.f32 %v5137, %v149
        %v5156 = vsub.f32 %v5141, %v149
        %v5157 = vsub.f32 %v5145, %v149
        %v5158 = vsub.f32 %v5149, %v149
        %5159 = vset.pattern.permute.xlu0 63
        %5160 = vperm.xlu0 %5159, %v137
        %v5161 = vpop.permute.xlu0 %5160
        %5163 = vset.pattern.permute.xlu0 63
        %5164 = vperm.xlu0 %5163, %v138
        %v5165 = vpop.permute.xlu0 %5164
        %5167 = vset.pattern.permute.xlu0 63
        %5168 = vperm.xlu0 %5167, %v139
        %v5169 = vpop.permute.xlu0 %5168
        %5171 = vset.pattern.permute.xlu0 63
        %5172 = vperm.xlu0 %5171, %v140
        %v5173 = vpop.permute.xlu0 %5172
        %5175 = vset.pattern.permute.xlu0 63
        %5176 = vperm.xlu0 %5175, %v141
        %v5177 = vpop.permute.xlu0 %5176
        %5179 = vset.pattern.permute.xlu0 63
        %5180 = vperm.xlu0 %5179, %v142
        %v5181 = vpop.permute.xlu0 %5180
        %5183 = vset.pattern.permute.xlu0 63
        %5184 = vperm.xlu0 %5183, %v143
        %v5185 = vpop.permute.xlu0 %5184
        %5187 = vset.pattern.permute.xlu0 63
        %5188 = vperm.xlu0 %5187, %v144
        %v5189 = vpop.permute.xlu0 %5188
        %v5191 = vsub.f32 %v5161, %v149
        %v5192 = vsub.f32 %v5165, %v149
        %v5193 = vsub.f32 %v5169, %v149
        %v5194 = vsub.f32 %v5173, %v149
        %v5195 = vsub.f32 %v5177, %v149
        %v5196 = vsub.f32 %v5181, %v149
        %v5197 = vsub.f32 %v5185, %v149
        %v5198 = vsub.f32 %v5189, %v149
        %5207 = vrot.lane.b32.xlu0 %v5191, 64
        %v5208 = vpop.permute.xlu0 %5207
        %5209 = vrot.lane.b32.xlu0 %v5192, 64
        %v5210 = vpop.permute.xlu0 %5209
        %5211 = vrot.lane.b32.xlu0 %v5193, 64
        %v5212 = vpop.permute.xlu0 %5211
        %5213 = vrot.lane.b32.xlu0 %v5194, 64
        %v5214 = vpop.permute.xlu0 %5213
        %5215 = vrot.lane.b32.xlu0 %v5195, 64
        %v5216 = vpop.permute.xlu0 %5215
        %5217 = vrot.lane.b32.xlu0 %v5196, 64
        %v5218 = vpop.permute.xlu0 %5217
        %5219 = vrot.lane.b32.xlu0 %v5197, 64
        %v5220 = vpop.permute.xlu0 %5219
        %5221 = vrot.lane.b32.xlu0 %v5198, 64
        %v5222 = vpop.permute.xlu0 %5221
        %v5231 = vsel %vm270, %v5151, %v5208
        %v5232 = vsel %vm270, %v5152, %v5210
        %v5233 = vsel %vm270, %v5153, %v5212
        %v5234 = vsel %vm270, %v5154, %v5214
        %v5235 = vsel %vm270, %v5155, %v5216
        %v5236 = vsel %vm270, %v5156, %v5218
        %v5237 = vsel %vm270, %v5157, %v5220
        %v5238 = vsel %vm270, %v5158, %v5222
        %v5239 = vmul.f32 %v5231, -12.6
        %v5240 = vmul.f32 %v5232, -12.6
        %v5241 = vmul.f32 %v5233, -12.6
        %v5242 = vmul.f32 %v5234, -12.6
        %v5243 = vmul.f32 %v5235, -12.6
        %v5244 = vmul.f32 %v5236, -12.6
        %v5245 = vmul.f32 %v5237, -12.6
        %v5246 = vmul.f32 %v5238, -12.6
        %v5247 = vmul.f32 %v5239, %v5231
        %v5248 = vmul.f32 %v5240, %v5232
        %v5249 = vmul.f32 %v5241, %v5233
        %v5250 = vmul.f32 %v5242, %v5234
        %v5251 = vmul.f32 %v5243, %v5235
        %v5252 = vmul.f32 %v5244, %v5236
        %v5253 = vmul.f32 %v5245, %v5237
        %v5254 = vmul.f32 %v5246, %v5238
        %v5255 = vmul.f32 %v5247, 1.442695
        %v5256 = vpow.pop %v5255
        %v5257 = vmul.f32 %v5248, 1.442695
        %v5258 = vpow.pop %v5257
        %v5259 = vmul.f32 %v5249, 1.442695
        %v5260 = vpow.pop %v5259
        %v5261 = vmul.f32 %v5250, 1.442695
        %v5262 = vpow.pop %v5261
        %v5263 = vmul.f32 %v5251, 1.442695
        %v5264 = vpow.pop %v5263
        %v5265 = vmul.f32 %v5252, 1.442695
        %v5266 = vpow.pop %v5265
        %v5267 = vmul.f32 %v5253, 1.442695
        %v5268 = vpow.pop %v5267
        %v5269 = vmul.f32 %v5254, 1.442695
        %v5270 = vpow.pop %v5269
        %5271 = vst [vmem:[%s134 + $0xf8] sm:$0xff] %v5256
        %5272 = vst [vmem:[%s134 + $0x2f8] sm:$0xff] %v5258
        %5273 = vst [vmem:[%s134 + $0x4f8] sm:$0xff] %v5260
        %5274 = vst [vmem:[%s134 + $0x6f8] sm:$0xff] %v5262
        %5275 = vst [vmem:[%s134 + $0x8f8] sm:$0xff] %v5264
        %5276 = vst [vmem:[%s134 + $0xaf8] sm:$0xff] %v5266
        %5277 = vst [vmem:[%s134 + $0xcf8] sm:$0xff] %v5268
        %5278 = vst [vmem:[%s134 + $0xef8] sm:$0xff] %v5270
        %5279 = vset.pattern.permute.xlu0 64
        %5280 = vperm.xlu0 %5279, %v137
        %v5281 = vpop.permute.xlu0 %5280
        %5283 = vset.pattern.permute.xlu0 64
        %5284 = vperm.xlu0 %5283, %v138
        %v5285 = vpop.permute.xlu0 %5284
        %5287 = vset.pattern.permute.xlu0 64
        %5288 = vperm.xlu0 %5287, %v139
        %v5289 = vpop.permute.xlu0 %5288
        %5291 = vset.pattern.permute.xlu0 64
        %5292 = vperm.xlu0 %5291, %v140
        %v5293 = vpop.permute.xlu0 %5292
        %5295 = vset.pattern.permute.xlu0 64
        %5296 = vperm.xlu0 %5295, %v141
        %v5297 = vpop.permute.xlu0 %5296
        %5299 = vset.pattern.permute.xlu0 64
        %5300 = vperm.xlu0 %5299, %v142
        %v5301 = vpop.permute.xlu0 %5300
        %5303 = vset.pattern.permute.xlu0 64
        %5304 = vperm.xlu0 %5303, %v143
        %v5305 = vpop.permute.xlu0 %5304
        %5307 = vset.pattern.permute.xlu0 64
        %5308 = vperm.xlu0 %5307, %v144
        %v5309 = vpop.permute.xlu0 %5308
        %v5311 = vsub.f32 %v5281, %v149
        %v5312 = vsub.f32 %v5285, %v149
        %v5313 = vsub.f32 %v5289, %v149
        %v5314 = vsub.f32 %v5293, %v149
        %v5315 = vsub.f32 %v5297, %v149
        %v5316 = vsub.f32 %v5301, %v149
        %v5317 = vsub.f32 %v5305, %v149
        %v5318 = vsub.f32 %v5309, %v149
        %5319 = vset.pattern.permute.xlu0 65
        %5320 = vperm.xlu0 %5319, %v137
        %v5321 = vpop.permute.xlu0 %5320
        %5323 = vset.pattern.permute.xlu0 65
        %5324 = vperm.xlu0 %5323, %v138
        %v5325 = vpop.permute.xlu0 %5324
        %5327 = vset.pattern.permute.xlu0 65
        %5328 = vperm.xlu0 %5327, %v139
        %v5329 = vpop.permute.xlu0 %5328
        %5331 = vset.pattern.permute.xlu0 65
        %5332 = vperm.xlu0 %5331, %v140
        %v5333 = vpop.permute.xlu0 %5332
        %5335 = vset.pattern.permute.xlu0 65
        %5336 = vperm.xlu0 %5335, %v141
        %v5337 = vpop.permute.xlu0 %5336
        %5339 = vset.pattern.permute.xlu0 65
        %5340 = vperm.xlu0 %5339, %v142
        %v5341 = vpop.permute.xlu0 %5340
        %5343 = vset.pattern.permute.xlu0 65
        %5344 = vperm.xlu0 %5343, %v143
        %v5345 = vpop.permute.xlu0 %5344
        %5347 = vset.pattern.permute.xlu0 65
        %5348 = vperm.xlu0 %5347, %v144
        %v5349 = vpop.permute.xlu0 %5348
        %v5351 = vsub.f32 %v5321, %v149
        %v5352 = vsub.f32 %v5325, %v149
        %v5353 = vsub.f32 %v5329, %v149
        %v5354 = vsub.f32 %v5333, %v149
        %v5355 = vsub.f32 %v5337, %v149
        %v5356 = vsub.f32 %v5341, %v149
        %v5357 = vsub.f32 %v5345, %v149
        %v5358 = vsub.f32 %v5349, %v149
        %5367 = vrot.lane.b32.xlu0 %v5351, 64
        %v5368 = vpop.permute.xlu0 %5367
        %5369 = vrot.lane.b32.xlu0 %v5352, 64
        %v5370 = vpop.permute.xlu0 %5369
        %5371 = vrot.lane.b32.xlu0 %v5353, 64
        %v5372 = vpop.permute.xlu0 %5371
        %5373 = vrot.lane.b32.xlu0 %v5354, 64
        %v5374 = vpop.permute.xlu0 %5373
        %5375 = vrot.lane.b32.xlu0 %v5355, 64
        %v5376 = vpop.permute.xlu0 %5375
        %5377 = vrot.lane.b32.xlu0 %v5356, 64
        %v5378 = vpop.permute.xlu0 %5377
        %5379 = vrot.lane.b32.xlu0 %v5357, 64
        %v5380 = vpop.permute.xlu0 %5379
        %5381 = vrot.lane.b32.xlu0 %v5358, 64
        %v5382 = vpop.permute.xlu0 %5381
        %v5391 = vsel %vm270, %v5311, %v5368
        %v5392 = vsel %vm270, %v5312, %v5370
        %v5393 = vsel %vm270, %v5313, %v5372
        %v5394 = vsel %vm270, %v5314, %v5374
        %v5395 = vsel %vm270, %v5315, %v5376
        %v5396 = vsel %vm270, %v5316, %v5378
        %v5397 = vsel %vm270, %v5317, %v5380
        %v5398 = vsel %vm270, %v5318, %v5382
        %v5399 = vmul.f32 %v5391, -12.6
        %v5400 = vmul.f32 %v5392, -12.6
        %v5401 = vmul.f32 %v5393, -12.6
        %v5402 = vmul.f32 %v5394, -12.6
        %v5403 = vmul.f32 %v5395, -12.6
        %v5404 = vmul.f32 %v5396, -12.6
        %v5405 = vmul.f32 %v5397, -12.6
        %v5406 = vmul.f32 %v5398, -12.6
        %v5407 = vmul.f32 %v5399, %v5391
        %v5408 = vmul.f32 %v5400, %v5392
        %v5409 = vmul.f32 %v5401, %v5393
        %v5410 = vmul.f32 %v5402, %v5394
        %v5411 = vmul.f32 %v5403, %v5395
        %v5412 = vmul.f32 %v5404, %v5396
        %v5413 = vmul.f32 %v5405, %v5397
        %v5414 = vmul.f32 %v5406, %v5398
        %v5415 = vmul.f32 %v5407, 1.442695
        %v5416 = vpow.pop %v5415
        %v5417 = vmul.f32 %v5408, 1.442695
        %v5418 = vpow.pop %v5417
        %v5419 = vmul.f32 %v5409, 1.442695
        %v5420 = vpow.pop %v5419
        %v5421 = vmul.f32 %v5410, 1.442695
        %v5422 = vpow.pop %v5421
        %v5423 = vmul.f32 %v5411, 1.442695
        %v5424 = vpow.pop %v5423
        %v5425 = vmul.f32 %v5412, 1.442695
        %v5426 = vpow.pop %v5425
        %v5427 = vmul.f32 %v5413, 1.442695
        %v5428 = vpow.pop %v5427
        %v5429 = vmul.f32 %v5414, 1.442695
        %v5430 = vpow.pop %v5429
        %5431 = vst [vmem:[%s134 + $0x100] sm:$0xff] %v5416
        %5432 = vst [vmem:[%s134 + $0x300] sm:$0xff] %v5418
        %5433 = vst [vmem:[%s134 + $0x500] sm:$0xff] %v5420
        %5434 = vst [vmem:[%s134 + $0x700] sm:$0xff] %v5422
        %5435 = vst [vmem:[%s134 + $0x900] sm:$0xff] %v5424
        %5436 = vst [vmem:[%s134 + $0xb00] sm:$0xff] %v5426
        %5437 = vst [vmem:[%s134 + $0xd00] sm:$0xff] %v5428
        %5438 = vst [vmem:[%s134 + $0xf00] sm:$0xff] %v5430
        %5439 = vset.pattern.permute.xlu0 66
        %5440 = vperm.xlu0 %5439, %v137
        %v5441 = vpop.permute.xlu0 %5440
        %5443 = vset.pattern.permute.xlu0 66
        %5444 = vperm.xlu0 %5443, %v138
        %v5445 = vpop.permute.xlu0 %5444
        %5447 = vset.pattern.permute.xlu0 66
        %5448 = vperm.xlu0 %5447, %v139
        %v5449 = vpop.permute.xlu0 %5448
        %5451 = vset.pattern.permute.xlu0 66
        %5452 = vperm.xlu0 %5451, %v140
        %v5453 = vpop.permute.xlu0 %5452
        %5455 = vset.pattern.permute.xlu0 66
        %5456 = vperm.xlu0 %5455, %v141
        %v5457 = vpop.permute.xlu0 %5456
        %5459 = vset.pattern.permute.xlu0 66
        %5460 = vperm.xlu0 %5459, %v142
        %v5461 = vpop.permute.xlu0 %5460
        %5463 = vset.pattern.permute.xlu0 66
        %5464 = vperm.xlu0 %5463, %v143
        %v5465 = vpop.permute.xlu0 %5464
        %5467 = vset.pattern.permute.xlu0 66
        %5468 = vperm.xlu0 %5467, %v144
        %v5469 = vpop.permute.xlu0 %5468
        %v5471 = vsub.f32 %v5441, %v149
        %v5472 = vsub.f32 %v5445, %v149
        %v5473 = vsub.f32 %v5449, %v149
        %v5474 = vsub.f32 %v5453, %v149
        %v5475 = vsub.f32 %v5457, %v149
        %v5476 = vsub.f32 %v5461, %v149
        %v5477 = vsub.f32 %v5465, %v149
        %v5478 = vsub.f32 %v5469, %v149
        %5479 = vset.pattern.permute.xlu0 67
        %5480 = vperm.xlu0 %5479, %v137
        %v5481 = vpop.permute.xlu0 %5480
        %5483 = vset.pattern.permute.xlu0 67
        %5484 = vperm.xlu0 %5483, %v138
        %v5485 = vpop.permute.xlu0 %5484
        %5487 = vset.pattern.permute.xlu0 67
        %5488 = vperm.xlu0 %5487, %v139
        %v5489 = vpop.permute.xlu0 %5488
        %5491 = vset.pattern.permute.xlu0 67
        %5492 = vperm.xlu0 %5491, %v140
        %v5493 = vpop.permute.xlu0 %5492
        %5495 = vset.pattern.permute.xlu0 67
        %5496 = vperm.xlu0 %5495, %v141
        %v5497 = vpop.permute.xlu0 %5496
        %5499 = vset.pattern.permute.xlu0 67
        %5500 = vperm.xlu0 %5499, %v142
        %v5501 = vpop.permute.xlu0 %5500
        %5503 = vset.pattern.permute.xlu0 67
        %5504 = vperm.xlu0 %5503, %v143
        %v5505 = vpop.permute.xlu0 %5504
        %5507 = vset.pattern.permute.xlu0 67
        %5508 = vperm.xlu0 %5507, %v144
        %v5509 = vpop.permute.xlu0 %5508
        %v5511 = vsub.f32 %v5481, %v149
        %v5512 = vsub.f32 %v5485, %v149
        %v5513 = vsub.f32 %v5489, %v149
        %v5514 = vsub.f32 %v5493, %v149
        %v5515 = vsub.f32 %v5497, %v149
        %v5516 = vsub.f32 %v5501, %v149
        %v5517 = vsub.f32 %v5505, %v149
        %v5518 = vsub.f32 %v5509, %v149
        %5527 = vrot.lane.b32.xlu0 %v5511, 64
        %v5528 = vpop.permute.xlu0 %5527
        %5529 = vrot.lane.b32.xlu0 %v5512, 64
        %v5530 = vpop.permute.xlu0 %5529
        %5531 = vrot.lane.b32.xlu0 %v5513, 64
        %v5532 = vpop.permute.xlu0 %5531
        %5533 = vrot.lane.b32.xlu0 %v5514, 64
        %v5534 = vpop.permute.xlu0 %5533
        %5535 = vrot.lane.b32.xlu0 %v5515, 64
        %v5536 = vpop.permute.xlu0 %5535
        %5537 = vrot.lane.b32.xlu0 %v5516, 64
        %v5538 = vpop.permute.xlu0 %5537
        %5539 = vrot.lane.b32.xlu0 %v5517, 64
        %v5540 = vpop.permute.xlu0 %5539
        %5541 = vrot.lane.b32.xlu0 %v5518, 64
        %v5542 = vpop.permute.xlu0 %5541
        %v5551 = vsel %vm270, %v5471, %v5528
        %v5552 = vsel %vm270, %v5472, %v5530
        %v5553 = vsel %vm270, %v5473, %v5532
        %v5554 = vsel %vm270, %v5474, %v5534
        %v5555 = vsel %vm270, %v5475, %v5536
        %v5556 = vsel %vm270, %v5476, %v5538
        %v5557 = vsel %vm270, %v5477, %v5540
        %v5558 = vsel %vm270, %v5478, %v5542
        %v5559 = vmul.f32 %v5551, -12.6
        %v5560 = vmul.f32 %v5552, -12.6
        %v5561 = vmul.f32 %v5553, -12.6
        %v5562 = vmul.f32 %v5554, -12.6
        %v5563 = vmul.f32 %v5555, -12.6
        %v5564 = vmul.f32 %v5556, -12.6
        %v5565 = vmul.f32 %v5557, -12.6
        %v5566 = vmul.f32 %v5558, -12.6
        %v5567 = vmul.f32 %v5559, %v5551
        %v5568 = vmul.f32 %v5560, %v5552
        %v5569 = vmul.f32 %v5561, %v5553
        %v5570 = vmul.f32 %v5562, %v5554
        %v5571 = vmul.f32 %v5563, %v5555
        %v5572 = vmul.f32 %v5564, %v5556
        %v5573 = vmul.f32 %v5565, %v5557
        %v5574 = vmul.f32 %v5566, %v5558
        %v5575 = vmul.f32 %v5567, 1.442695
        %v5576 = vpow.pop %v5575
        %v5577 = vmul.f32 %v5568, 1.442695
        %v5578 = vpow.pop %v5577
        %v5579 = vmul.f32 %v5569, 1.442695
        %v5580 = vpow.pop %v5579
        %v5581 = vmul.f32 %v5570, 1.442695
        %v5582 = vpow.pop %v5581
        %v5583 = vmul.f32 %v5571, 1.442695
        %v5584 = vpow.pop %v5583
        %v5585 = vmul.f32 %v5572, 1.442695
        %v5586 = vpow.pop %v5585
        %v5587 = vmul.f32 %v5573, 1.442695
        %v5588 = vpow.pop %v5587
        %v5589 = vmul.f32 %v5574, 1.442695
        %v5590 = vpow.pop %v5589
        %5591 = vst [vmem:[%s134 + $0x108] sm:$0xff] %v5576
        %5592 = vst [vmem:[%s134 + $0x308] sm:$0xff] %v5578
        %5593 = vst [vmem:[%s134 + $0x508] sm:$0xff] %v5580
        %5594 = vst [vmem:[%s134 + $0x708] sm:$0xff] %v5582
        %5595 = vst [vmem:[%s134 + $0x908] sm:$0xff] %v5584
        %5596 = vst [vmem:[%s134 + $0xb08] sm:$0xff] %v5586
        %5597 = vst [vmem:[%s134 + $0xd08] sm:$0xff] %v5588
        %5598 = vst [vmem:[%s134 + $0xf08] sm:$0xff] %v5590
        %5599 = vset.pattern.permute.xlu0 68
        %5600 = vperm.xlu0 %5599, %v137
        %v5601 = vpop.permute.xlu0 %5600
        %5603 = vset.pattern.permute.xlu0 68
        %5604 = vperm.xlu0 %5603, %v138
        %v5605 = vpop.permute.xlu0 %5604
        %5607 = vset.pattern.permute.xlu0 68
        %5608 = vperm.xlu0 %5607, %v139
        %v5609 = vpop.permute.xlu0 %5608
        %5611 = vset.pattern.permute.xlu0 68
        %5612 = vperm.xlu0 %5611, %v140
        %v5613 = vpop.permute.xlu0 %5612
        %5615 = vset.pattern.permute.xlu0 68
        %5616 = vperm.xlu0 %5615, %v141
        %v5617 = vpop.permute.xlu0 %5616
        %5619 = vset.pattern.permute.xlu0 68
        %5620 = vperm.xlu0 %5619, %v142
        %v5621 = vpop.permute.xlu0 %5620
        %5623 = vset.pattern.permute.xlu0 68
        %5624 = vperm.xlu0 %5623, %v143
        %v5625 = vpop.permute.xlu0 %5624
        %5627 = vset.pattern.permute.xlu0 68
        %5628 = vperm.xlu0 %5627, %v144
        %v5629 = vpop.permute.xlu0 %5628
        %v5631 = vsub.f32 %v5601, %v149
        %v5632 = vsub.f32 %v5605, %v149
        %v5633 = vsub.f32 %v5609, %v149
        %v5634 = vsub.f32 %v5613, %v149
        %v5635 = vsub.f32 %v5617, %v149
        %v5636 = vsub.f32 %v5621, %v149
        %v5637 = vsub.f32 %v5625, %v149
        %v5638 = vsub.f32 %v5629, %v149
        %5639 = vset.pattern.permute.xlu0 69
        %5640 = vperm.xlu0 %5639, %v137
        %v5641 = vpop.permute.xlu0 %5640
        %5643 = vset.pattern.permute.xlu0 69
        %5644 = vperm.xlu0 %5643, %v138
        %v5645 = vpop.permute.xlu0 %5644
        %5647 = vset.pattern.permute.xlu0 69
        %5648 = vperm.xlu0 %5647, %v139
        %v5649 = vpop.permute.xlu0 %5648
        %5651 = vset.pattern.permute.xlu0 69
        %5652 = vperm.xlu0 %5651, %v140
        %v5653 = vpop.permute.xlu0 %5652
        %5655 = vset.pattern.permute.xlu0 69
        %5656 = vperm.xlu0 %5655, %v141
        %v5657 = vpop.permute.xlu0 %5656
        %5659 = vset.pattern.permute.xlu0 69
        %5660 = vperm.xlu0 %5659, %v142
        %v5661 = vpop.permute.xlu0 %5660
        %5663 = vset.pattern.permute.xlu0 69
        %5664 = vperm.xlu0 %5663, %v143
        %v5665 = vpop.permute.xlu0 %5664
        %5667 = vset.pattern.permute.xlu0 69
        %5668 = vperm.xlu0 %5667, %v144
        %v5669 = vpop.permute.xlu0 %5668
        %v5671 = vsub.f32 %v5641, %v149
        %v5672 = vsub.f32 %v5645, %v149
        %v5673 = vsub.f32 %v5649, %v149
        %v5674 = vsub.f32 %v5653, %v149
        %v5675 = vsub.f32 %v5657, %v149
        %v5676 = vsub.f32 %v5661, %v149
        %v5677 = vsub.f32 %v5665, %v149
        %v5678 = vsub.f32 %v5669, %v149
        %5687 = vrot.lane.b32.xlu0 %v5671, 64
        %v5688 = vpop.permute.xlu0 %5687
        %5689 = vrot.lane.b32.xlu0 %v5672, 64
        %v5690 = vpop.permute.xlu0 %5689
        %5691 = vrot.lane.b32.xlu0 %v5673, 64
        %v5692 = vpop.permute.xlu0 %5691
        %5693 = vrot.lane.b32.xlu0 %v5674, 64
        %v5694 = vpop.permute.xlu0 %5693
        %5695 = vrot.lane.b32.xlu0 %v5675, 64
        %v5696 = vpop.permute.xlu0 %5695
        %5697 = vrot.lane.b32.xlu0 %v5676, 64
        %v5698 = vpop.permute.xlu0 %5697
        %5699 = vrot.lane.b32.xlu0 %v5677, 64
        %v5700 = vpop.permute.xlu0 %5699
        %5701 = vrot.lane.b32.xlu0 %v5678, 64
        %v5702 = vpop.permute.xlu0 %5701
        %v5711 = vsel %vm270, %v5631, %v5688
        %v5712 = vsel %vm270, %v5632, %v5690
        %v5713 = vsel %vm270, %v5633, %v5692
        %v5714 = vsel %vm270, %v5634, %v5694
        %v5715 = vsel %vm270, %v5635, %v5696
        %v5716 = vsel %vm270, %v5636, %v5698
        %v5717 = vsel %vm270, %v5637, %v5700
        %v5718 = vsel %vm270, %v5638, %v5702
        %v5719 = vmul.f32 %v5711, -12.6
        %v5720 = vmul.f32 %v5712, -12.6
        %v5721 = vmul.f32 %v5713, -12.6
        %v5722 = vmul.f32 %v5714, -12.6
        %v5723 = vmul.f32 %v5715, -12.6
        %v5724 = vmul.f32 %v5716, -12.6
        %v5725 = vmul.f32 %v5717, -12.6
        %v5726 = vmul.f32 %v5718, -12.6
        %v5727 = vmul.f32 %v5719, %v5711
        %v5728 = vmul.f32 %v5720, %v5712
        %v5729 = vmul.f32 %v5721, %v5713
        %v5730 = vmul.f32 %v5722, %v5714
        %v5731 = vmul.f32 %v5723, %v5715
        %v5732 = vmul.f32 %v5724, %v5716
        %v5733 = vmul.f32 %v5725, %v5717
        %v5734 = vmul.f32 %v5726, %v5718
        %v5735 = vmul.f32 %v5727, 1.442695
        %v5736 = vpow.pop %v5735
        %v5737 = vmul.f32 %v5728, 1.442695
        %v5738 = vpow.pop %v5737
        %v5739 = vmul.f32 %v5729, 1.442695
        %v5740 = vpow.pop %v5739
        %v5741 = vmul.f32 %v5730, 1.442695
        %v5742 = vpow.pop %v5741
        %v5743 = vmul.f32 %v5731, 1.442695
        %v5744 = vpow.pop %v5743
        %v5745 = vmul.f32 %v5732, 1.442695
        %v5746 = vpow.pop %v5745
        %v5747 = vmul.f32 %v5733, 1.442695
        %v5748 = vpow.pop %v5747
        %v5749 = vmul.f32 %v5734, 1.442695
        %v5750 = vpow.pop %v5749
        %5751 = vst [vmem:[%s134 + $0x110] sm:$0xff] %v5736
        %5752 = vst [vmem:[%s134 + $0x310] sm:$0xff] %v5738
        %5753 = vst [vmem:[%s134 + $0x510] sm:$0xff] %v5740
        %5754 = vst [vmem:[%s134 + $0x710] sm:$0xff] %v5742
        %5755 = vst [vmem:[%s134 + $0x910] sm:$0xff] %v5744
        %5756 = vst [vmem:[%s134 + $0xb10] sm:$0xff] %v5746
        %5757 = vst [vmem:[%s134 + $0xd10] sm:$0xff] %v5748
        %5758 = vst [vmem:[%s134 + $0xf10] sm:$0xff] %v5750
        %5759 = vset.pattern.permute.xlu0 70
        %5760 = vperm.xlu0 %5759, %v137
        %v5761 = vpop.permute.xlu0 %5760
        %5763 = vset.pattern.permute.xlu0 70
        %5764 = vperm.xlu0 %5763, %v138
        %v5765 = vpop.permute.xlu0 %5764
        %5767 = vset.pattern.permute.xlu0 70
        %5768 = vperm.xlu0 %5767, %v139
        %v5769 = vpop.permute.xlu0 %5768
        %5771 = vset.pattern.permute.xlu0 70
        %5772 = vperm.xlu0 %5771, %v140
        %v5773 = vpop.permute.xlu0 %5772
        %5775 = vset.pattern.permute.xlu0 70
        %5776 = vperm.xlu0 %5775, %v141
        %v5777 = vpop.permute.xlu0 %5776
        %5779 = vset.pattern.permute.xlu0 70
        %5780 = vperm.xlu0 %5779, %v142
        %v5781 = vpop.permute.xlu0 %5780
        %5783 = vset.pattern.permute.xlu0 70
        %5784 = vperm.xlu0 %5783, %v143
        %v5785 = vpop.permute.xlu0 %5784
        %5787 = vset.pattern.permute.xlu0 70
        %5788 = vperm.xlu0 %5787, %v144
        %v5789 = vpop.permute.xlu0 %5788
        %v5791 = vsub.f32 %v5761, %v149
        %v5792 = vsub.f32 %v5765, %v149
        %v5793 = vsub.f32 %v5769, %v149
        %v5794 = vsub.f32 %v5773, %v149
        %v5795 = vsub.f32 %v5777, %v149
        %v5796 = vsub.f32 %v5781, %v149
        %v5797 = vsub.f32 %v5785, %v149
        %v5798 = vsub.f32 %v5789, %v149
        %5799 = vset.pattern.permute.xlu0 71
        %5800 = vperm.xlu0 %5799, %v137
        %v5801 = vpop.permute.xlu0 %5800
        %5803 = vset.pattern.permute.xlu0 71
        %5804 = vperm.xlu0 %5803, %v138
        %v5805 = vpop.permute.xlu0 %5804
        %5807 = vset.pattern.permute.xlu0 71
        %5808 = vperm.xlu0 %5807, %v139
        %v5809 = vpop.permute.xlu0 %5808
        %5811 = vset.pattern.permute.xlu0 71
        %5812 = vperm.xlu0 %5811, %v140
        %v5813 = vpop.permute.xlu0 %5812
        %5815 = vset.pattern.permute.xlu0 71
        %5816 = vperm.xlu0 %5815, %v141
        %v5817 = vpop.permute.xlu0 %5816
        %5819 = vset.pattern.permute.xlu0 71
        %5820 = vperm.xlu0 %5819, %v142
        %v5821 = vpop.permute.xlu0 %5820
        %5823 = vset.pattern.permute.xlu0 71
        %5824 = vperm.xlu0 %5823, %v143
        %v5825 = vpop.permute.xlu0 %5824
        %5827 = vset.pattern.permute.xlu0 71
        %5828 = vperm.xlu0 %5827, %v144
        %v5829 = vpop.permute.xlu0 %5828
        %v5831 = vsub.f32 %v5801, %v149
        %v5832 = vsub.f32 %v5805, %v149
        %v5833 = vsub.f32 %v5809, %v149
        %v5834 = vsub.f32 %v5813, %v149
        %v5835 = vsub.f32 %v5817, %v149
        %v5836 = vsub.f32 %v5821, %v149
        %v5837 = vsub.f32 %v5825, %v149
        %v5838 = vsub.f32 %v5829, %v149
        %5847 = vrot.lane.b32.xlu0 %v5831, 64
        %v5848 = vpop.permute.xlu0 %5847
        %5849 = vrot.lane.b32.xlu0 %v5832, 64
        %v5850 = vpop.permute.xlu0 %5849
        %5851 = vrot.lane.b32.xlu0 %v5833, 64
        %v5852 = vpop.permute.xlu0 %5851
        %5853 = vrot.lane.b32.xlu0 %v5834, 64
        %v5854 = vpop.permute.xlu0 %5853
        %5855 = vrot.lane.b32.xlu0 %v5835, 64
        %v5856 = vpop.permute.xlu0 %5855
        %5857 = vrot.lane.b32.xlu0 %v5836, 64
        %v5858 = vpop.permute.xlu0 %5857
        %5859 = vrot.lane.b32.xlu0 %v5837, 64
        %v5860 = vpop.permute.xlu0 %5859
        %5861 = vrot.lane.b32.xlu0 %v5838, 64
        %v5862 = vpop.permute.xlu0 %5861
        %v5871 = vsel %vm270, %v5791, %v5848
        %v5872 = vsel %vm270, %v5792, %v5850
        %v5873 = vsel %vm270, %v5793, %v5852
        %v5874 = vsel %vm270, %v5794, %v5854
        %v5875 = vsel %vm270, %v5795, %v5856
        %v5876 = vsel %vm270, %v5796, %v5858
        %v5877 = vsel %vm270, %v5797, %v5860
        %v5878 = vsel %vm270, %v5798, %v5862
        %v5879 = vmul.f32 %v5871, -12.6
        %v5880 = vmul.f32 %v5872, -12.6
        %v5881 = vmul.f32 %v5873, -12.6
        %v5882 = vmul.f32 %v5874, -12.6
        %v5883 = vmul.f32 %v5875, -12.6
        %v5884 = vmul.f32 %v5876, -12.6
        %v5885 = vmul.f32 %v5877, -12.6
        %v5886 = vmul.f32 %v5878, -12.6
        %v5887 = vmul.f32 %v5879, %v5871
        %v5888 = vmul.f32 %v5880, %v5872
        %v5889 = vmul.f32 %v5881, %v5873
        %v5890 = vmul.f32 %v5882, %v5874
        %v5891 = vmul.f32 %v5883, %v5875
        %v5892 = vmul.f32 %v5884, %v5876
        %v5893 = vmul.f32 %v5885, %v5877
        %v5894 = vmul.f32 %v5886, %v5878
        %v5895 = vmul.f32 %v5887, 1.442695
        %v5896 = vpow.pop %v5895
        %v5897 = vmul.f32 %v5888, 1.442695
        %v5898 = vpow.pop %v5897
        %v5899 = vmul.f32 %v5889, 1.442695
        %v5900 = vpow.pop %v5899
        %v5901 = vmul.f32 %v5890, 1.442695
        %v5902 = vpow.pop %v5901
        %v5903 = vmul.f32 %v5891, 1.442695
        %v5904 = vpow.pop %v5903
        %v5905 = vmul.f32 %v5892, 1.442695
        %v5906 = vpow.pop %v5905
        %v5907 = vmul.f32 %v5893, 1.442695
        %v5908 = vpow.pop %v5907
        %v5909 = vmul.f32 %v5894, 1.442695
        %v5910 = vpow.pop %v5909
        %5911 = vst [vmem:[%s134 + $0x118] sm:$0xff] %v5896
        %5912 = vst [vmem:[%s134 + $0x318] sm:$0xff] %v5898
        %5913 = vst [vmem:[%s134 + $0x518] sm:$0xff] %v5900
        %5914 = vst [vmem:[%s134 + $0x718] sm:$0xff] %v5902
        %5915 = vst [vmem:[%s134 + $0x918] sm:$0xff] %v5904
        %5916 = vst [vmem:[%s134 + $0xb18] sm:$0xff] %v5906
        %5917 = vst [vmem:[%s134 + $0xd18] sm:$0xff] %v5908
        %5918 = vst [vmem:[%s134 + $0xf18] sm:$0xff] %v5910
        %5919 = vset.pattern.permute.xlu0 72
        %5920 = vperm.xlu0 %5919, %v137
        %v5921 = vpop.permute.xlu0 %5920
        %5923 = vset.pattern.permute.xlu0 72
        %5924 = vperm.xlu0 %5923, %v138
        %v5925 = vpop.permute.xlu0 %5924
        %5927 = vset.pattern.permute.xlu0 72
        %5928 = vperm.xlu0 %5927, %v139
        %v5929 = vpop.permute.xlu0 %5928
        %5931 = vset.pattern.permute.xlu0 72
        %5932 = vperm.xlu0 %5931, %v140
        %v5933 = vpop.permute.xlu0 %5932
        %5935 = vset.pattern.permute.xlu0 72
        %5936 = vperm.xlu0 %5935, %v141
        %v5937 = vpop.permute.xlu0 %5936
        %5939 = vset.pattern.permute.xlu0 72
        %5940 = vperm.xlu0 %5939, %v142
        %v5941 = vpop.permute.xlu0 %5940
        %5943 = vset.pattern.permute.xlu0 72
        %5944 = vperm.xlu0 %5943, %v143
        %v5945 = vpop.permute.xlu0 %5944
        %5947 = vset.pattern.permute.xlu0 72
        %5948 = vperm.xlu0 %5947, %v144
        %v5949 = vpop.permute.xlu0 %5948
        %v5951 = vsub.f32 %v5921, %v149
        %v5952 = vsub.f32 %v5925, %v149
        %v5953 = vsub.f32 %v5929, %v149
        %v5954 = vsub.f32 %v5933, %v149
        %v5955 = vsub.f32 %v5937, %v149
        %v5956 = vsub.f32 %v5941, %v149
        %v5957 = vsub.f32 %v5945, %v149
        %v5958 = vsub.f32 %v5949, %v149
        %5959 = vset.pattern.permute.xlu0 73
        %5960 = vperm.xlu0 %5959, %v137
        %v5961 = vpop.permute.xlu0 %5960
        %5963 = vset.pattern.permute.xlu0 73
        %5964 = vperm.xlu0 %5963, %v138
        %v5965 = vpop.permute.xlu0 %5964
        %5967 = vset.pattern.permute.xlu0 73
        %5968 = vperm.xlu0 %5967, %v139
        %v5969 = vpop.permute.xlu0 %5968
        %5971 = vset.pattern.permute.xlu0 73
        %5972 = vperm.xlu0 %5971, %v140
        %v5973 = vpop.permute.xlu0 %5972
        %5975 = vset.pattern.permute.xlu0 73
        %5976 = vperm.xlu0 %5975, %v141
        %v5977 = vpop.permute.xlu0 %5976
        %5979 = vset.pattern.permute.xlu0 73
        %5980 = vperm.xlu0 %5979, %v142
        %v5981 = vpop.permute.xlu0 %5980
        %5983 = vset.pattern.permute.xlu0 73
        %5984 = vperm.xlu0 %5983, %v143
        %v5985 = vpop.permute.xlu0 %5984
        %5987 = vset.pattern.permute.xlu0 73
        %5988 = vperm.xlu0 %5987, %v144
        %v5989 = vpop.permute.xlu0 %5988
        %v5991 = vsub.f32 %v5961, %v149
        %v5992 = vsub.f32 %v5965, %v149
        %v5993 = vsub.f32 %v5969, %v149
        %v5994 = vsub.f32 %v5973, %v149
        %v5995 = vsub.f32 %v5977, %v149
        %v5996 = vsub.f32 %v5981, %v149
        %v5997 = vsub.f32 %v5985, %v149
        %v5998 = vsub.f32 %v5989, %v149
        %6007 = vrot.lane.b32.xlu0 %v5991, 64
        %v6008 = vpop.permute.xlu0 %6007
        %6009 = vrot.lane.b32.xlu0 %v5992, 64
        %v6010 = vpop.permute.xlu0 %6009
        %6011 = vrot.lane.b32.xlu0 %v5993, 64
        %v6012 = vpop.permute.xlu0 %6011
        %6013 = vrot.lane.b32.xlu0 %v5994, 64
        %v6014 = vpop.permute.xlu0 %6013
        %6015 = vrot.lane.b32.xlu0 %v5995, 64
        %v6016 = vpop.permute.xlu0 %6015
        %6017 = vrot.lane.b32.xlu0 %v5996, 64
        %v6018 = vpop.permute.xlu0 %6017
        %6019 = vrot.lane.b32.xlu0 %v5997, 64
        %v6020 = vpop.permute.xlu0 %6019
        %6021 = vrot.lane.b32.xlu0 %v5998, 64
        %v6022 = vpop.permute.xlu0 %6021
        %v6031 = vsel %vm270, %v5951, %v6008
        %v6032 = vsel %vm270, %v5952, %v6010
        %v6033 = vsel %vm270, %v5953, %v6012
        %v6034 = vsel %vm270, %v5954, %v6014
        %v6035 = vsel %vm270, %v5955, %v6016
        %v6036 = vsel %vm270, %v5956, %v6018
        %v6037 = vsel %vm270, %v5957, %v6020
        %v6038 = vsel %vm270, %v5958, %v6022
        %v6039 = vmul.f32 %v6031, -12.6
        %v6040 = vmul.f32 %v6032, -12.6
        %v6041 = vmul.f32 %v6033, -12.6
        %v6042 = vmul.f32 %v6034, -12.6
        %v6043 = vmul.f32 %v6035, -12.6
        %v6044 = vmul.f32 %v6036, -12.6
        %v6045 = vmul.f32 %v6037, -12.6
        %v6046 = vmul.f32 %v6038, -12.6
        %v6047 = vmul.f32 %v6039, %v6031
        %v6048 = vmul.f32 %v6040, %v6032
        %v6049 = vmul.f32 %v6041, %v6033
        %v6050 = vmul.f32 %v6042, %v6034
        %v6051 = vmul.f32 %v6043, %v6035
        %v6052 = vmul.f32 %v6044, %v6036
        %v6053 = vmul.f32 %v6045, %v6037
        %v6054 = vmul.f32 %v6046, %v6038
        %v6055 = vmul.f32 %v6047, 1.442695
        %v6056 = vpow.pop %v6055
        %v6057 = vmul.f32 %v6048, 1.442695
        %v6058 = vpow.pop %v6057
        %v6059 = vmul.f32 %v6049, 1.442695
        %v6060 = vpow.pop %v6059
        %v6061 = vmul.f32 %v6050, 1.442695
        %v6062 = vpow.pop %v6061
        %v6063 = vmul.f32 %v6051, 1.442695
        %v6064 = vpow.pop %v6063
        %v6065 = vmul.f32 %v6052, 1.442695
        %v6066 = vpow.pop %v6065
        %v6067 = vmul.f32 %v6053, 1.442695
        %v6068 = vpow.pop %v6067
        %v6069 = vmul.f32 %v6054, 1.442695
        %v6070 = vpow.pop %v6069
        %6071 = vst [vmem:[%s134 + $0x120] sm:$0xff] %v6056
        %6072 = vst [vmem:[%s134 + $0x320] sm:$0xff] %v6058
        %6073 = vst [vmem:[%s134 + $0x520] sm:$0xff] %v6060
        %6074 = vst [vmem:[%s134 + $0x720] sm:$0xff] %v6062
        %6075 = vst [vmem:[%s134 + $0x920] sm:$0xff] %v6064
        %6076 = vst [vmem:[%s134 + $0xb20] sm:$0xff] %v6066
        %6077 = vst [vmem:[%s134 + $0xd20] sm:$0xff] %v6068
        %6078 = vst [vmem:[%s134 + $0xf20] sm:$0xff] %v6070
        %6079 = vset.pattern.permute.xlu0 74
        %6080 = vperm.xlu0 %6079, %v137
        %v6081 = vpop.permute.xlu0 %6080
        %6083 = vset.pattern.permute.xlu0 74
        %6084 = vperm.xlu0 %6083, %v138
        %v6085 = vpop.permute.xlu0 %6084
        %6087 = vset.pattern.permute.xlu0 74
        %6088 = vperm.xlu0 %6087, %v139
        %v6089 = vpop.permute.xlu0 %6088
        %6091 = vset.pattern.permute.xlu0 74
        %6092 = vperm.xlu0 %6091, %v140
        %v6093 = vpop.permute.xlu0 %6092
        %6095 = vset.pattern.permute.xlu0 74
        %6096 = vperm.xlu0 %6095, %v141
        %v6097 = vpop.permute.xlu0 %6096
        %6099 = vset.pattern.permute.xlu0 74
        %6100 = vperm.xlu0 %6099, %v142
        %v6101 = vpop.permute.xlu0 %6100
        %6103 = vset.pattern.permute.xlu0 74
        %6104 = vperm.xlu0 %6103, %v143
        %v6105 = vpop.permute.xlu0 %6104
        %6107 = vset.pattern.permute.xlu0 74
        %6108 = vperm.xlu0 %6107, %v144
        %v6109 = vpop.permute.xlu0 %6108
        %v6111 = vsub.f32 %v6081, %v149
        %v6112 = vsub.f32 %v6085, %v149
        %v6113 = vsub.f32 %v6089, %v149
        %v6114 = vsub.f32 %v6093, %v149
        %v6115 = vsub.f32 %v6097, %v149
        %v6116 = vsub.f32 %v6101, %v149
        %v6117 = vsub.f32 %v6105, %v149
        %v6118 = vsub.f32 %v6109, %v149
        %6119 = vset.pattern.permute.xlu0 75
        %6120 = vperm.xlu0 %6119, %v137
        %v6121 = vpop.permute.xlu0 %6120
        %6123 = vset.pattern.permute.xlu0 75
        %6124 = vperm.xlu0 %6123, %v138
        %v6125 = vpop.permute.xlu0 %6124
        %6127 = vset.pattern.permute.xlu0 75
        %6128 = vperm.xlu0 %6127, %v139
        %v6129 = vpop.permute.xlu0 %6128
        %6131 = vset.pattern.permute.xlu0 75
        %6132 = vperm.xlu0 %6131, %v140
        %v6133 = vpop.permute.xlu0 %6132
        %6135 = vset.pattern.permute.xlu0 75
        %6136 = vperm.xlu0 %6135, %v141
        %v6137 = vpop.permute.xlu0 %6136
        %6139 = vset.pattern.permute.xlu0 75
        %6140 = vperm.xlu0 %6139, %v142
        %v6141 = vpop.permute.xlu0 %6140
        %6143 = vset.pattern.permute.xlu0 75
        %6144 = vperm.xlu0 %6143, %v143
        %v6145 = vpop.permute.xlu0 %6144
        %6147 = vset.pattern.permute.xlu0 75
        %6148 = vperm.xlu0 %6147, %v144
        %v6149 = vpop.permute.xlu0 %6148
        %v6151 = vsub.f32 %v6121, %v149
        %v6152 = vsub.f32 %v6125, %v149
        %v6153 = vsub.f32 %v6129, %v149
        %v6154 = vsub.f32 %v6133, %v149
        %v6155 = vsub.f32 %v6137, %v149
        %v6156 = vsub.f32 %v6141, %v149
        %v6157 = vsub.f32 %v6145, %v149
        %v6158 = vsub.f32 %v6149, %v149
        %6167 = vrot.lane.b32.xlu0 %v6151, 64
        %v6168 = vpop.permute.xlu0 %6167
        %6169 = vrot.lane.b32.xlu0 %v6152, 64
        %v6170 = vpop.permute.xlu0 %6169
        %6171 = vrot.lane.b32.xlu0 %v6153, 64
        %v6172 = vpop.permute.xlu0 %6171
        %6173 = vrot.lane.b32.xlu0 %v6154, 64
        %v6174 = vpop.permute.xlu0 %6173
        %6175 = vrot.lane.b32.xlu0 %v6155, 64
        %v6176 = vpop.permute.xlu0 %6175
        %6177 = vrot.lane.b32.xlu0 %v6156, 64
        %v6178 = vpop.permute.xlu0 %6177
        %6179 = vrot.lane.b32.xlu0 %v6157, 64
        %v6180 = vpop.permute.xlu0 %6179
        %6181 = vrot.lane.b32.xlu0 %v6158, 64
        %v6182 = vpop.permute.xlu0 %6181
        %v6191 = vsel %vm270, %v6111, %v6168
        %v6192 = vsel %vm270, %v6112, %v6170
        %v6193 = vsel %vm270, %v6113, %v6172
        %v6194 = vsel %vm270, %v6114, %v6174
        %v6195 = vsel %vm270, %v6115, %v6176
        %v6196 = vsel %vm270, %v6116, %v6178
        %v6197 = vsel %vm270, %v6117, %v6180
        %v6198 = vsel %vm270, %v6118, %v6182
        %v6199 = vmul.f32 %v6191, -12.6
        %v6200 = vmul.f32 %v6192, -12.6
        %v6201 = vmul.f32 %v6193, -12.6
        %v6202 = vmul.f32 %v6194, -12.6
        %v6203 = vmul.f32 %v6195, -12.6
        %v6204 = vmul.f32 %v6196, -12.6
        %v6205 = vmul.f32 %v6197, -12.6
        %v6206 = vmul.f32 %v6198, -12.6
        %v6207 = vmul.f32 %v6199, %v6191
        %v6208 = vmul.f32 %v6200, %v6192
        %v6209 = vmul.f32 %v6201, %v6193
        %v6210 = vmul.f32 %v6202, %v6194
        %v6211 = vmul.f32 %v6203, %v6195
        %v6212 = vmul.f32 %v6204, %v6196
        %v6213 = vmul.f32 %v6205, %v6197
        %v6214 = vmul.f32 %v6206, %v6198
        %v6215 = vmul.f32 %v6207, 1.442695
        %v6216 = vpow.pop %v6215
        %v6217 = vmul.f32 %v6208, 1.442695
        %v6218 = vpow.pop %v6217
        %v6219 = vmul.f32 %v6209, 1.442695
        %v6220 = vpow.pop %v6219
        %v6221 = vmul.f32 %v6210, 1.442695
        %v6222 = vpow.pop %v6221
        %v6223 = vmul.f32 %v6211, 1.442695
        %v6224 = vpow.pop %v6223
        %v6225 = vmul.f32 %v6212, 1.442695
        %v6226 = vpow.pop %v6225
        %v6227 = vmul.f32 %v6213, 1.442695
        %v6228 = vpow.pop %v6227
        %v6229 = vmul.f32 %v6214, 1.442695
        %v6230 = vpow.pop %v6229
        %6231 = vst [vmem:[%s134 + $0x128] sm:$0xff] %v6216
        %6232 = vst [vmem:[%s134 + $0x328] sm:$0xff] %v6218
        %6233 = vst [vmem:[%s134 + $0x528] sm:$0xff] %v6220
        %6234 = vst [vmem:[%s134 + $0x728] sm:$0xff] %v6222
        %6235 = vst [vmem:[%s134 + $0x928] sm:$0xff] %v6224
        %6236 = vst [vmem:[%s134 + $0xb28] sm:$0xff] %v6226
        %6237 = vst [vmem:[%s134 + $0xd28] sm:$0xff] %v6228
        %6238 = vst [vmem:[%s134 + $0xf28] sm:$0xff] %v6230
        %6239 = vset.pattern.permute.xlu0 76
        %6240 = vperm.xlu0 %6239, %v137
        %v6241 = vpop.permute.xlu0 %6240
        %6243 = vset.pattern.permute.xlu0 76
        %6244 = vperm.xlu0 %6243, %v138
        %v6245 = vpop.permute.xlu0 %6244
        %6247 = vset.pattern.permute.xlu0 76
        %6248 = vperm.xlu0 %6247, %v139
        %v6249 = vpop.permute.xlu0 %6248
        %6251 = vset.pattern.permute.xlu0 76
        %6252 = vperm.xlu0 %6251, %v140
        %v6253 = vpop.permute.xlu0 %6252
        %6255 = vset.pattern.permute.xlu0 76
        %6256 = vperm.xlu0 %6255, %v141
        %v6257 = vpop.permute.xlu0 %6256
        %6259 = vset.pattern.permute.xlu0 76
        %6260 = vperm.xlu0 %6259, %v142
        %v6261 = vpop.permute.xlu0 %6260
        %6263 = vset.pattern.permute.xlu0 76
        %6264 = vperm.xlu0 %6263, %v143
        %v6265 = vpop.permute.xlu0 %6264
        %6267 = vset.pattern.permute.xlu0 76
        %6268 = vperm.xlu0 %6267, %v144
        %v6269 = vpop.permute.xlu0 %6268
        %v6271 = vsub.f32 %v6241, %v149
        %v6272 = vsub.f32 %v6245, %v149
        %v6273 = vsub.f32 %v6249, %v149
        %v6274 = vsub.f32 %v6253, %v149
        %v6275 = vsub.f32 %v6257, %v149
        %v6276 = vsub.f32 %v6261, %v149
        %v6277 = vsub.f32 %v6265, %v149
        %v6278 = vsub.f32 %v6269, %v149
        %6279 = vset.pattern.permute.xlu0 77
        %6280 = vperm.xlu0 %6279, %v137
        %v6281 = vpop.permute.xlu0 %6280
        %6283 = vset.pattern.permute.xlu0 77
        %6284 = vperm.xlu0 %6283, %v138
        %v6285 = vpop.permute.xlu0 %6284
        %6287 = vset.pattern.permute.xlu0 77
        %6288 = vperm.xlu0 %6287, %v139
        %v6289 = vpop.permute.xlu0 %6288
        %6291 = vset.pattern.permute.xlu0 77
        %6292 = vperm.xlu0 %6291, %v140
        %v6293 = vpop.permute.xlu0 %6292
        %6295 = vset.pattern.permute.xlu0 77
        %6296 = vperm.xlu0 %6295, %v141
        %v6297 = vpop.permute.xlu0 %6296
        %6299 = vset.pattern.permute.xlu0 77
        %6300 = vperm.xlu0 %6299, %v142
        %v6301 = vpop.permute.xlu0 %6300
        %6303 = vset.pattern.permute.xlu0 77
        %6304 = vperm.xlu0 %6303, %v143
        %v6305 = vpop.permute.xlu0 %6304
        %6307 = vset.pattern.permute.xlu0 77
        %6308 = vperm.xlu0 %6307, %v144
        %v6309 = vpop.permute.xlu0 %6308
        %v6311 = vsub.f32 %v6281, %v149
        %v6312 = vsub.f32 %v6285, %v149
        %v6313 = vsub.f32 %v6289, %v149
        %v6314 = vsub.f32 %v6293, %v149
        %v6315 = vsub.f32 %v6297, %v149
        %v6316 = vsub.f32 %v6301, %v149
        %v6317 = vsub.f32 %v6305, %v149
        %v6318 = vsub.f32 %v6309, %v149
        %6327 = vrot.lane.b32.xlu0 %v6311, 64
        %v6328 = vpop.permute.xlu0 %6327
        %6329 = vrot.lane.b32.xlu0 %v6312, 64
        %v6330 = vpop.permute.xlu0 %6329
        %6331 = vrot.lane.b32.xlu0 %v6313, 64
        %v6332 = vpop.permute.xlu0 %6331
        %6333 = vrot.lane.b32.xlu0 %v6314, 64
        %v6334 = vpop.permute.xlu0 %6333
        %6335 = vrot.lane.b32.xlu0 %v6315, 64
        %v6336 = vpop.permute.xlu0 %6335
        %6337 = vrot.lane.b32.xlu0 %v6316, 64
        %v6338 = vpop.permute.xlu0 %6337
        %6339 = vrot.lane.b32.xlu0 %v6317, 64
        %v6340 = vpop.permute.xlu0 %6339
        %6341 = vrot.lane.b32.xlu0 %v6318, 64
        %v6342 = vpop.permute.xlu0 %6341
        %v6351 = vsel %vm270, %v6271, %v6328
        %v6352 = vsel %vm270, %v6272, %v6330
        %v6353 = vsel %vm270, %v6273, %v6332
        %v6354 = vsel %vm270, %v6274, %v6334
        %v6355 = vsel %vm270, %v6275, %v6336
        %v6356 = vsel %vm270, %v6276, %v6338
        %v6357 = vsel %vm270, %v6277, %v6340
        %v6358 = vsel %vm270, %v6278, %v6342
        %v6359 = vmul.f32 %v6351, -12.6
        %v6360 = vmul.f32 %v6352, -12.6
        %v6361 = vmul.f32 %v6353, -12.6
        %v6362 = vmul.f32 %v6354, -12.6
        %v6363 = vmul.f32 %v6355, -12.6
        %v6364 = vmul.f32 %v6356, -12.6
        %v6365 = vmul.f32 %v6357, -12.6
        %v6366 = vmul.f32 %v6358, -12.6
        %v6367 = vmul.f32 %v6359, %v6351
        %v6368 = vmul.f32 %v6360, %v6352
        %v6369 = vmul.f32 %v6361, %v6353
        %v6370 = vmul.f32 %v6362, %v6354
        %v6371 = vmul.f32 %v6363, %v6355
        %v6372 = vmul.f32 %v6364, %v6356
        %v6373 = vmul.f32 %v6365, %v6357
        %v6374 = vmul.f32 %v6366, %v6358
        %v6375 = vmul.f32 %v6367, 1.442695
        %v6376 = vpow.pop %v6375
        %v6377 = vmul.f32 %v6368, 1.442695
        %v6378 = vpow.pop %v6377
        %v6379 = vmul.f32 %v6369, 1.442695
        %v6380 = vpow.pop %v6379
        %v6381 = vmul.f32 %v6370, 1.442695
        %v6382 = vpow.pop %v6381
        %v6383 = vmul.f32 %v6371, 1.442695
        %v6384 = vpow.pop %v6383
        %v6385 = vmul.f32 %v6372, 1.442695
        %v6386 = vpow.pop %v6385
        %v6387 = vmul.f32 %v6373, 1.442695
        %v6388 = vpow.pop %v6387
        %v6389 = vmul.f32 %v6374, 1.442695
        %v6390 = vpow.pop %v6389
        %6391 = vst [vmem:[%s134 + $0x130] sm:$0xff] %v6376
        %6392 = vst [vmem:[%s134 + $0x330] sm:$0xff] %v6378
        %6393 = vst [vmem:[%s134 + $0x530] sm:$0xff] %v6380
        %6394 = vst [vmem:[%s134 + $0x730] sm:$0xff] %v6382
        %6395 = vst [vmem:[%s134 + $0x930] sm:$0xff] %v6384
        %6396 = vst [vmem:[%s134 + $0xb30] sm:$0xff] %v6386
        %6397 = vst [vmem:[%s134 + $0xd30] sm:$0xff] %v6388
        %6398 = vst [vmem:[%s134 + $0xf30] sm:$0xff] %v6390
        %6399 = vset.pattern.permute.xlu0 78
        %6400 = vperm.xlu0 %6399, %v137
        %v6401 = vpop.permute.xlu0 %6400
        %6403 = vset.pattern.permute.xlu0 78
        %6404 = vperm.xlu0 %6403, %v138
        %v6405 = vpop.permute.xlu0 %6404
        %6407 = vset.pattern.permute.xlu0 78
        %6408 = vperm.xlu0 %6407, %v139
        %v6409 = vpop.permute.xlu0 %6408
        %6411 = vset.pattern.permute.xlu0 78
        %6412 = vperm.xlu0 %6411, %v140
        %v6413 = vpop.permute.xlu0 %6412
        %6415 = vset.pattern.permute.xlu0 78
        %6416 = vperm.xlu0 %6415, %v141
        %v6417 = vpop.permute.xlu0 %6416
        %6419 = vset.pattern.permute.xlu0 78
        %6420 = vperm.xlu0 %6419, %v142
        %v6421 = vpop.permute.xlu0 %6420
        %6423 = vset.pattern.permute.xlu0 78
        %6424 = vperm.xlu0 %6423, %v143
        %v6425 = vpop.permute.xlu0 %6424
        %6427 = vset.pattern.permute.xlu0 78
        %6428 = vperm.xlu0 %6427, %v144
        %v6429 = vpop.permute.xlu0 %6428
        %v6431 = vsub.f32 %v6401, %v149
        %v6432 = vsub.f32 %v6405, %v149
        %v6433 = vsub.f32 %v6409, %v149
        %v6434 = vsub.f32 %v6413, %v149
        %v6435 = vsub.f32 %v6417, %v149
        %v6436 = vsub.f32 %v6421, %v149
        %v6437 = vsub.f32 %v6425, %v149
        %v6438 = vsub.f32 %v6429, %v149
        %6439 = vset.pattern.permute.xlu0 79
        %6440 = vperm.xlu0 %6439, %v137
        %v6441 = vpop.permute.xlu0 %6440
        %6443 = vset.pattern.permute.xlu0 79
        %6444 = vperm.xlu0 %6443, %v138
        %v6445 = vpop.permute.xlu0 %6444
        %6447 = vset.pattern.permute.xlu0 79
        %6448 = vperm.xlu0 %6447, %v139
        %v6449 = vpop.permute.xlu0 %6448
        %6451 = vset.pattern.permute.xlu0 79
        %6452 = vperm.xlu0 %6451, %v140
        %v6453 = vpop.permute.xlu0 %6452
        %6455 = vset.pattern.permute.xlu0 79
        %6456 = vperm.xlu0 %6455, %v141
        %v6457 = vpop.permute.xlu0 %6456
        %6459 = vset.pattern.permute.xlu0 79
        %6460 = vperm.xlu0 %6459, %v142
        %v6461 = vpop.permute.xlu0 %6460
        %6463 = vset.pattern.permute.xlu0 79
        %6464 = vperm.xlu0 %6463, %v143
        %v6465 = vpop.permute.xlu0 %6464
        %6467 = vset.pattern.permute.xlu0 79
        %6468 = vperm.xlu0 %6467, %v144
        %v6469 = vpop.permute.xlu0 %6468
        %v6471 = vsub.f32 %v6441, %v149
        %v6472 = vsub.f32 %v6445, %v149
        %v6473 = vsub.f32 %v6449, %v149
        %v6474 = vsub.f32 %v6453, %v149
        %v6475 = vsub.f32 %v6457, %v149
        %v6476 = vsub.f32 %v6461, %v149
        %v6477 = vsub.f32 %v6465, %v149
        %v6478 = vsub.f32 %v6469, %v149
        %6487 = vrot.lane.b32.xlu0 %v6471, 64
        %v6488 = vpop.permute.xlu0 %6487
        %6489 = vrot.lane.b32.xlu0 %v6472, 64
        %v6490 = vpop.permute.xlu0 %6489
        %6491 = vrot.lane.b32.xlu0 %v6473, 64
        %v6492 = vpop.permute.xlu0 %6491
        %6493 = vrot.lane.b32.xlu0 %v6474, 64
        %v6494 = vpop.permute.xlu0 %6493
        %6495 = vrot.lane.b32.xlu0 %v6475, 64
        %v6496 = vpop.permute.xlu0 %6495
        %6497 = vrot.lane.b32.xlu0 %v6476, 64
        %v6498 = vpop.permute.xlu0 %6497
        %6499 = vrot.lane.b32.xlu0 %v6477, 64
        %v6500 = vpop.permute.xlu0 %6499
        %6501 = vrot.lane.b32.xlu0 %v6478, 64
        %v6502 = vpop.permute.xlu0 %6501
        %v6511 = vsel %vm270, %v6431, %v6488
        %v6512 = vsel %vm270, %v6432, %v6490
        %v6513 = vsel %vm270, %v6433, %v6492
        %v6514 = vsel %vm270, %v6434, %v6494
        %v6515 = vsel %vm270, %v6435, %v6496
        %v6516 = vsel %vm270, %v6436, %v6498
        %v6517 = vsel %vm270, %v6437, %v6500
        %v6518 = vsel %vm270, %v6438, %v6502
        %v6519 = vmul.f32 %v6511, -12.6
        %v6520 = vmul.f32 %v6512, -12.6
        %v6521 = vmul.f32 %v6513, -12.6
        %v6522 = vmul.f32 %v6514, -12.6
        %v6523 = vmul.f32 %v6515, -12.6
        %v6524 = vmul.f32 %v6516, -12.6
        %v6525 = vmul.f32 %v6517, -12.6
        %v6526 = vmul.f32 %v6518, -12.6
        %v6527 = vmul.f32 %v6519, %v6511
        %v6528 = vmul.f32 %v6520, %v6512
        %v6529 = vmul.f32 %v6521, %v6513
        %v6530 = vmul.f32 %v6522, %v6514
        %v6531 = vmul.f32 %v6523, %v6515
        %v6532 = vmul.f32 %v6524, %v6516
        %v6533 = vmul.f32 %v6525, %v6517
        %v6534 = vmul.f32 %v6526, %v6518
        %v6535 = vmul.f32 %v6527, 1.442695
        %v6536 = vpow.pop %v6535
        %v6537 = vmul.f32 %v6528, 1.442695
        %v6538 = vpow.pop %v6537
        %v6539 = vmul.f32 %v6529, 1.442695
        %v6540 = vpow.pop %v6539
        %v6541 = vmul.f32 %v6530, 1.442695
        %v6542 = vpow.pop %v6541
        %v6543 = vmul.f32 %v6531, 1.442695
        %v6544 = vpow.pop %v6543
        %v6545 = vmul.f32 %v6532, 1.442695
        %v6546 = vpow.pop %v6545
        %v6547 = vmul.f32 %v6533, 1.442695
        %v6548 = vpow.pop %v6547
        %v6549 = vmul.f32 %v6534, 1.442695
        %v6550 = vpow.pop %v6549
        %6551 = vst [vmem:[%s134 + $0x138] sm:$0xff] %v6536
        %6552 = vst [vmem:[%s134 + $0x338] sm:$0xff] %v6538
        %6553 = vst [vmem:[%s134 + $0x538] sm:$0xff] %v6540
        %6554 = vst [vmem:[%s134 + $0x738] sm:$0xff] %v6542
        %6555 = vst [vmem:[%s134 + $0x938] sm:$0xff] %v6544
        %6556 = vst [vmem:[%s134 + $0xb38] sm:$0xff] %v6546
        %6557 = vst [vmem:[%s134 + $0xd38] sm:$0xff] %v6548
        %6558 = vst [vmem:[%s134 + $0xf38] sm:$0xff] %v6550
        %6559 = vset.pattern.permute.xlu0 80
        %6560 = vperm.xlu0 %6559, %v137
        %v6561 = vpop.permute.xlu0 %6560
        %6563 = vset.pattern.permute.xlu0 80
        %6564 = vperm.xlu0 %6563, %v138
        %v6565 = vpop.permute.xlu0 %6564
        %6567 = vset.pattern.permute.xlu0 80
        %6568 = vperm.xlu0 %6567, %v139
        %v6569 = vpop.permute.xlu0 %6568
        %6571 = vset.pattern.permute.xlu0 80
        %6572 = vperm.xlu0 %6571, %v140
        %v6573 = vpop.permute.xlu0 %6572
        %6575 = vset.pattern.permute.xlu0 80
        %6576 = vperm.xlu0 %6575, %v141
        %v6577 = vpop.permute.xlu0 %6576
        %6579 = vset.pattern.permute.xlu0 80
        %6580 = vperm.xlu0 %6579, %v142
        %v6581 = vpop.permute.xlu0 %6580
        %6583 = vset.pattern.permute.xlu0 80
        %6584 = vperm.xlu0 %6583, %v143
        %v6585 = vpop.permute.xlu0 %6584
        %6587 = vset.pattern.permute.xlu0 80
        %6588 = vperm.xlu0 %6587, %v144
        %v6589 = vpop.permute.xlu0 %6588
        %v6591 = vsub.f32 %v6561, %v149
        %v6592 = vsub.f32 %v6565, %v149
        %v6593 = vsub.f32 %v6569, %v149
        %v6594 = vsub.f32 %v6573, %v149
        %v6595 = vsub.f32 %v6577, %v149
        %v6596 = vsub.f32 %v6581, %v149
        %v6597 = vsub.f32 %v6585, %v149
        %v6598 = vsub.f32 %v6589, %v149
        %6599 = vset.pattern.permute.xlu0 81
        %6600 = vperm.xlu0 %6599, %v137
        %v6601 = vpop.permute.xlu0 %6600
        %6603 = vset.pattern.permute.xlu0 81
        %6604 = vperm.xlu0 %6603, %v138
        %v6605 = vpop.permute.xlu0 %6604
        %6607 = vset.pattern.permute.xlu0 81
        %6608 = vperm.xlu0 %6607, %v139
        %v6609 = vpop.permute.xlu0 %6608
        %6611 = vset.pattern.permute.xlu0 81
        %6612 = vperm.xlu0 %6611, %v140
        %v6613 = vpop.permute.xlu0 %6612
        %6615 = vset.pattern.permute.xlu0 81
        %6616 = vperm.xlu0 %6615, %v141
        %v6617 = vpop.permute.xlu0 %6616
        %6619 = vset.pattern.permute.xlu0 81
        %6620 = vperm.xlu0 %6619, %v142
        %v6621 = vpop.permute.xlu0 %6620
        %6623 = vset.pattern.permute.xlu0 81
        %6624 = vperm.xlu0 %6623, %v143
        %v6625 = vpop.permute.xlu0 %6624
        %6627 = vset.pattern.permute.xlu0 81
        %6628 = vperm.xlu0 %6627, %v144
        %v6629 = vpop.permute.xlu0 %6628
        %v6631 = vsub.f32 %v6601, %v149
        %v6632 = vsub.f32 %v6605, %v149
        %v6633 = vsub.f32 %v6609, %v149
        %v6634 = vsub.f32 %v6613, %v149
        %v6635 = vsub.f32 %v6617, %v149
        %v6636 = vsub.f32 %v6621, %v149
        %v6637 = vsub.f32 %v6625, %v149
        %v6638 = vsub.f32 %v6629, %v149
        %6647 = vrot.lane.b32.xlu0 %v6631, 64
        %v6648 = vpop.permute.xlu0 %6647
        %6649 = vrot.lane.b32.xlu0 %v6632, 64
        %v6650 = vpop.permute.xlu0 %6649
        %6651 = vrot.lane.b32.xlu0 %v6633, 64
        %v6652 = vpop.permute.xlu0 %6651
        %6653 = vrot.lane.b32.xlu0 %v6634, 64
        %v6654 = vpop.permute.xlu0 %6653
        %6655 = vrot.lane.b32.xlu0 %v6635, 64
        %v6656 = vpop.permute.xlu0 %6655
        %6657 = vrot.lane.b32.xlu0 %v6636, 64
        %v6658 = vpop.permute.xlu0 %6657
        %6659 = vrot.lane.b32.xlu0 %v6637, 64
        %v6660 = vpop.permute.xlu0 %6659
        %6661 = vrot.lane.b32.xlu0 %v6638, 64
        %v6662 = vpop.permute.xlu0 %6661
        %v6671 = vsel %vm270, %v6591, %v6648
        %v6672 = vsel %vm270, %v6592, %v6650
        %v6673 = vsel %vm270, %v6593, %v6652
        %v6674 = vsel %vm270, %v6594, %v6654
        %v6675 = vsel %vm270, %v6595, %v6656
        %v6676 = vsel %vm270, %v6596, %v6658
        %v6677 = vsel %vm270, %v6597, %v6660
        %v6678 = vsel %vm270, %v6598, %v6662
        %v6679 = vmul.f32 %v6671, -12.6
        %v6680 = vmul.f32 %v6672, -12.6
        %v6681 = vmul.f32 %v6673, -12.6
        %v6682 = vmul.f32 %v6674, -12.6
        %v6683 = vmul.f32 %v6675, -12.6
        %v6684 = vmul.f32 %v6676, -12.6
        %v6685 = vmul.f32 %v6677, -12.6
        %v6686 = vmul.f32 %v6678, -12.6
        %v6687 = vmul.f32 %v6679, %v6671
        %v6688 = vmul.f32 %v6680, %v6672
        %v6689 = vmul.f32 %v6681, %v6673
        %v6690 = vmul.f32 %v6682, %v6674
        %v6691 = vmul.f32 %v6683, %v6675
        %v6692 = vmul.f32 %v6684, %v6676
        %v6693 = vmul.f32 %v6685, %v6677
        %v6694 = vmul.f32 %v6686, %v6678
        %v6695 = vmul.f32 %v6687, 1.442695
        %v6696 = vpow.pop %v6695
        %v6697 = vmul.f32 %v6688, 1.442695
        %v6698 = vpow.pop %v6697
        %v6699 = vmul.f32 %v6689, 1.442695
        %v6700 = vpow.pop %v6699
        %v6701 = vmul.f32 %v6690, 1.442695
        %v6702 = vpow.pop %v6701
        %v6703 = vmul.f32 %v6691, 1.442695
        %v6704 = vpow.pop %v6703
        %v6705 = vmul.f32 %v6692, 1.442695
        %v6706 = vpow.pop %v6705
        %v6707 = vmul.f32 %v6693, 1.442695
        %v6708 = vpow.pop %v6707
        %v6709 = vmul.f32 %v6694, 1.442695
        %v6710 = vpow.pop %v6709
        %6711 = vst [vmem:[%s134 + $0x140] sm:$0xff] %v6696
        %6712 = vst [vmem:[%s134 + $0x340] sm:$0xff] %v6698
        %6713 = vst [vmem:[%s134 + $0x540] sm:$0xff] %v6700
        %6714 = vst [vmem:[%s134 + $0x740] sm:$0xff] %v6702
        %6715 = vst [vmem:[%s134 + $0x940] sm:$0xff] %v6704
        %6716 = vst [vmem:[%s134 + $0xb40] sm:$0xff] %v6706
        %6717 = vst [vmem:[%s134 + $0xd40] sm:$0xff] %v6708
        %6718 = vst [vmem:[%s134 + $0xf40] sm:$0xff] %v6710
        %6719 = vset.pattern.permute.xlu0 82
        %6720 = vperm.xlu0 %6719, %v137
        %v6721 = vpop.permute.xlu0 %6720
        %6723 = vset.pattern.permute.xlu0 82
        %6724 = vperm.xlu0 %6723, %v138
        %v6725 = vpop.permute.xlu0 %6724
        %6727 = vset.pattern.permute.xlu0 82
        %6728 = vperm.xlu0 %6727, %v139
        %v6729 = vpop.permute.xlu0 %6728
        %6731 = vset.pattern.permute.xlu0 82
        %6732 = vperm.xlu0 %6731, %v140
        %v6733 = vpop.permute.xlu0 %6732
        %6735 = vset.pattern.permute.xlu0 82
        %6736 = vperm.xlu0 %6735, %v141
        %v6737 = vpop.permute.xlu0 %6736
        %6739 = vset.pattern.permute.xlu0 82
        %6740 = vperm.xlu0 %6739, %v142
        %v6741 = vpop.permute.xlu0 %6740
        %6743 = vset.pattern.permute.xlu0 82
        %6744 = vperm.xlu0 %6743, %v143
        %v6745 = vpop.permute.xlu0 %6744
        %6747 = vset.pattern.permute.xlu0 82
        %6748 = vperm.xlu0 %6747, %v144
        %v6749 = vpop.permute.xlu0 %6748
        %v6751 = vsub.f32 %v6721, %v149
        %v6752 = vsub.f32 %v6725, %v149
        %v6753 = vsub.f32 %v6729, %v149
        %v6754 = vsub.f32 %v6733, %v149
        %v6755 = vsub.f32 %v6737, %v149
        %v6756 = vsub.f32 %v6741, %v149
        %v6757 = vsub.f32 %v6745, %v149
        %v6758 = vsub.f32 %v6749, %v149
        %6759 = vset.pattern.permute.xlu0 83
        %6760 = vperm.xlu0 %6759, %v137
        %v6761 = vpop.permute.xlu0 %6760
        %6763 = vset.pattern.permute.xlu0 83
        %6764 = vperm.xlu0 %6763, %v138
        %v6765 = vpop.permute.xlu0 %6764
        %6767 = vset.pattern.permute.xlu0 83
        %6768 = vperm.xlu0 %6767, %v139
        %v6769 = vpop.permute.xlu0 %6768
        %6771 = vset.pattern.permute.xlu0 83
        %6772 = vperm.xlu0 %6771, %v140
        %v6773 = vpop.permute.xlu0 %6772
        %6775 = vset.pattern.permute.xlu0 83
        %6776 = vperm.xlu0 %6775, %v141
        %v6777 = vpop.permute.xlu0 %6776
        %6779 = vset.pattern.permute.xlu0 83
        %6780 = vperm.xlu0 %6779, %v142
        %v6781 = vpop.permute.xlu0 %6780
        %6783 = vset.pattern.permute.xlu0 83
        %6784 = vperm.xlu0 %6783, %v143
        %v6785 = vpop.permute.xlu0 %6784
        %6787 = vset.pattern.permute.xlu0 83
        %6788 = vperm.xlu0 %6787, %v144
        %v6789 = vpop.permute.xlu0 %6788
        %v6791 = vsub.f32 %v6761, %v149
        %v6792 = vsub.f32 %v6765, %v149
        %v6793 = vsub.f32 %v6769, %v149
        %v6794 = vsub.f32 %v6773, %v149
        %v6795 = vsub.f32 %v6777, %v149
        %v6796 = vsub.f32 %v6781, %v149
        %v6797 = vsub.f32 %v6785, %v149
        %v6798 = vsub.f32 %v6789, %v149
        %6807 = vrot.lane.b32.xlu0 %v6791, 64
        %v6808 = vpop.permute.xlu0 %6807
        %6809 = vrot.lane.b32.xlu0 %v6792, 64
        %v6810 = vpop.permute.xlu0 %6809
        %6811 = vrot.lane.b32.xlu0 %v6793, 64
        %v6812 = vpop.permute.xlu0 %6811
        %6813 = vrot.lane.b32.xlu0 %v6794, 64
        %v6814 = vpop.permute.xlu0 %6813
        %6815 = vrot.lane.b32.xlu0 %v6795, 64
        %v6816 = vpop.permute.xlu0 %6815
        %6817 = vrot.lane.b32.xlu0 %v6796, 64
        %v6818 = vpop.permute.xlu0 %6817
        %6819 = vrot.lane.b32.xlu0 %v6797, 64
        %v6820 = vpop.permute.xlu0 %6819
        %6821 = vrot.lane.b32.xlu0 %v6798, 64
        %v6822 = vpop.permute.xlu0 %6821
        %v6831 = vsel %vm270, %v6751, %v6808
        %v6832 = vsel %vm270, %v6752, %v6810
        %v6833 = vsel %vm270, %v6753, %v6812
        %v6834 = vsel %vm270, %v6754, %v6814
        %v6835 = vsel %vm270, %v6755, %v6816
        %v6836 = vsel %vm270, %v6756, %v6818
        %v6837 = vsel %vm270, %v6757, %v6820
        %v6838 = vsel %vm270, %v6758, %v6822
        %v6839 = vmul.f32 %v6831, -12.6
        %v6840 = vmul.f32 %v6832, -12.6
        %v6841 = vmul.f32 %v6833, -12.6
        %v6842 = vmul.f32 %v6834, -12.6
        %v6843 = vmul.f32 %v6835, -12.6
        %v6844 = vmul.f32 %v6836, -12.6
        %v6845 = vmul.f32 %v6837, -12.6
        %v6846 = vmul.f32 %v6838, -12.6
        %v6847 = vmul.f32 %v6839, %v6831
        %v6848 = vmul.f32 %v6840, %v6832
        %v6849 = vmul.f32 %v6841, %v6833
        %v6850 = vmul.f32 %v6842, %v6834
        %v6851 = vmul.f32 %v6843, %v6835
        %v6852 = vmul.f32 %v6844, %v6836
        %v6853 = vmul.f32 %v6845, %v6837
        %v6854 = vmul.f32 %v6846, %v6838
        %v6855 = vmul.f32 %v6847, 1.442695
        %v6856 = vpow.pop %v6855
        %v6857 = vmul.f32 %v6848, 1.442695
        %v6858 = vpow.pop %v6857
        %v6859 = vmul.f32 %v6849, 1.442695
        %v6860 = vpow.pop %v6859
        %v6861 = vmul.f32 %v6850, 1.442695
        %v6862 = vpow.pop %v6861
        %v6863 = vmul.f32 %v6851, 1.442695
        %v6864 = vpow.pop %v6863
        %v6865 = vmul.f32 %v6852, 1.442695
        %v6866 = vpow.pop %v6865
        %v6867 = vmul.f32 %v6853, 1.442695
        %v6868 = vpow.pop %v6867
        %v6869 = vmul.f32 %v6854, 1.442695
        %v6870 = vpow.pop %v6869
        %6871 = vst [vmem:[%s134 + $0x148] sm:$0xff] %v6856
        %6872 = vst [vmem:[%s134 + $0x348] sm:$0xff] %v6858
        %6873 = vst [vmem:[%s134 + $0x548] sm:$0xff] %v6860
        %6874 = vst [vmem:[%s134 + $0x748] sm:$0xff] %v6862
        %6875 = vst [vmem:[%s134 + $0x948] sm:$0xff] %v6864
        %6876 = vst [vmem:[%s134 + $0xb48] sm:$0xff] %v6866
        %6877 = vst [vmem:[%s134 + $0xd48] sm:$0xff] %v6868
        %6878 = vst [vmem:[%s134 + $0xf48] sm:$0xff] %v6870
        %6879 = vset.pattern.permute.xlu0 84
        %6880 = vperm.xlu0 %6879, %v137
        %v6881 = vpop.permute.xlu0 %6880
        %6883 = vset.pattern.permute.xlu0 84
        %6884 = vperm.xlu0 %6883, %v138
        %v6885 = vpop.permute.xlu0 %6884
        %6887 = vset.pattern.permute.xlu0 84
        %6888 = vperm.xlu0 %6887, %v139
        %v6889 = vpop.permute.xlu0 %6888
        %6891 = vset.pattern.permute.xlu0 84
        %6892 = vperm.xlu0 %6891, %v140
        %v6893 = vpop.permute.xlu0 %6892
        %6895 = vset.pattern.permute.xlu0 84
        %6896 = vperm.xlu0 %6895, %v141
        %v6897 = vpop.permute.xlu0 %6896
        %6899 = vset.pattern.permute.xlu0 84
        %6900 = vperm.xlu0 %6899, %v142
        %v6901 = vpop.permute.xlu0 %6900
        %6903 = vset.pattern.permute.xlu0 84
        %6904 = vperm.xlu0 %6903, %v143
        %v6905 = vpop.permute.xlu0 %6904
        %6907 = vset.pattern.permute.xlu0 84
        %6908 = vperm.xlu0 %6907, %v144
        %v6909 = vpop.permute.xlu0 %6908
        %v6911 = vsub.f32 %v6881, %v149
        %v6912 = vsub.f32 %v6885, %v149
        %v6913 = vsub.f32 %v6889, %v149
        %v6914 = vsub.f32 %v6893, %v149
        %v6915 = vsub.f32 %v6897, %v149
        %v6916 = vsub.f32 %v6901, %v149
        %v6917 = vsub.f32 %v6905, %v149
        %v6918 = vsub.f32 %v6909, %v149
        %6919 = vset.pattern.permute.xlu0 85
        %6920 = vperm.xlu0 %6919, %v137
        %v6921 = vpop.permute.xlu0 %6920
        %6923 = vset.pattern.permute.xlu0 85
        %6924 = vperm.xlu0 %6923, %v138
        %v6925 = vpop.permute.xlu0 %6924
        %6927 = vset.pattern.permute.xlu0 85
        %6928 = vperm.xlu0 %6927, %v139
        %v6929 = vpop.permute.xlu0 %6928
        %6931 = vset.pattern.permute.xlu0 85
        %6932 = vperm.xlu0 %6931, %v140
        %v6933 = vpop.permute.xlu0 %6932
        %6935 = vset.pattern.permute.xlu0 85
        %6936 = vperm.xlu0 %6935, %v141
        %v6937 = vpop.permute.xlu0 %6936
        %6939 = vset.pattern.permute.xlu0 85
        %6940 = vperm.xlu0 %6939, %v142
        %v6941 = vpop.permute.xlu0 %6940
        %6943 = vset.pattern.permute.xlu0 85
        %6944 = vperm.xlu0 %6943, %v143
        %v6945 = vpop.permute.xlu0 %6944
        %6947 = vset.pattern.permute.xlu0 85
        %6948 = vperm.xlu0 %6947, %v144
        %v6949 = vpop.permute.xlu0 %6948
        %v6951 = vsub.f32 %v6921, %v149
        %v6952 = vsub.f32 %v6925, %v149
        %v6953 = vsub.f32 %v6929, %v149
        %v6954 = vsub.f32 %v6933, %v149
        %v6955 = vsub.f32 %v6937, %v149
        %v6956 = vsub.f32 %v6941, %v149
        %v6957 = vsub.f32 %v6945, %v149
        %v6958 = vsub.f32 %v6949, %v149
        %6967 = vrot.lane.b32.xlu0 %v6951, 64
        %v6968 = vpop.permute.xlu0 %6967
        %6969 = vrot.lane.b32.xlu0 %v6952, 64
        %v6970 = vpop.permute.xlu0 %6969
        %6971 = vrot.lane.b32.xlu0 %v6953, 64
        %v6972 = vpop.permute.xlu0 %6971
        %6973 = vrot.lane.b32.xlu0 %v6954, 64
        %v6974 = vpop.permute.xlu0 %6973
        %6975 = vrot.lane.b32.xlu0 %v6955, 64
        %v6976 = vpop.permute.xlu0 %6975
        %6977 = vrot.lane.b32.xlu0 %v6956, 64
        %v6978 = vpop.permute.xlu0 %6977
        %6979 = vrot.lane.b32.xlu0 %v6957, 64
        %v6980 = vpop.permute.xlu0 %6979
        %6981 = vrot.lane.b32.xlu0 %v6958, 64
        %v6982 = vpop.permute.xlu0 %6981
        %v6991 = vsel %vm270, %v6911, %v6968
        %v6992 = vsel %vm270, %v6912, %v6970
        %v6993 = vsel %vm270, %v6913, %v6972
        %v6994 = vsel %vm270, %v6914, %v6974
        %v6995 = vsel %vm270, %v6915, %v6976
        %v6996 = vsel %vm270, %v6916, %v6978
        %v6997 = vsel %vm270, %v6917, %v6980
        %v6998 = vsel %vm270, %v6918, %v6982
        %v6999 = vmul.f32 %v6991, -12.6
        %v7000 = vmul.f32 %v6992, -12.6
        %v7001 = vmul.f32 %v6993, -12.6
        %v7002 = vmul.f32 %v6994, -12.6
        %v7003 = vmul.f32 %v6995, -12.6
        %v7004 = vmul.f32 %v6996, -12.6
        %v7005 = vmul.f32 %v6997, -12.6
        %v7006 = vmul.f32 %v6998, -12.6
        %v7007 = vmul.f32 %v6999, %v6991
        %v7008 = vmul.f32 %v7000, %v6992
        %v7009 = vmul.f32 %v7001, %v6993
        %v7010 = vmul.f32 %v7002, %v6994
        %v7011 = vmul.f32 %v7003, %v6995
        %v7012 = vmul.f32 %v7004, %v6996
        %v7013 = vmul.f32 %v7005, %v6997
        %v7014 = vmul.f32 %v7006, %v6998
        %v7015 = vmul.f32 %v7007, 1.442695
        %v7016 = vpow.pop %v7015
        %v7017 = vmul.f32 %v7008, 1.442695
        %v7018 = vpow.pop %v7017
        %v7019 = vmul.f32 %v7009, 1.442695
        %v7020 = vpow.pop %v7019
        %v7021 = vmul.f32 %v7010, 1.442695
        %v7022 = vpow.pop %v7021
        %v7023 = vmul.f32 %v7011, 1.442695
        %v7024 = vpow.pop %v7023
        %v7025 = vmul.f32 %v7012, 1.442695
        %v7026 = vpow.pop %v7025
        %v7027 = vmul.f32 %v7013, 1.442695
        %v7028 = vpow.pop %v7027
        %v7029 = vmul.f32 %v7014, 1.442695
        %v7030 = vpow.pop %v7029
        %7031 = vst [vmem:[%s134 + $0x150] sm:$0xff] %v7016
        %7032 = vst [vmem:[%s134 + $0x350] sm:$0xff] %v7018
        %7033 = vst [vmem:[%s134 + $0x550] sm:$0xff] %v7020
        %7034 = vst [vmem:[%s134 + $0x750] sm:$0xff] %v7022
        %7035 = vst [vmem:[%s134 + $0x950] sm:$0xff] %v7024
        %7036 = vst [vmem:[%s134 + $0xb50] sm:$0xff] %v7026
        %7037 = vst [vmem:[%s134 + $0xd50] sm:$0xff] %v7028
        %7038 = vst [vmem:[%s134 + $0xf50] sm:$0xff] %v7030
        %7039 = vset.pattern.permute.xlu0 86
        %7040 = vperm.xlu0 %7039, %v137
        %v7041 = vpop.permute.xlu0 %7040
        %7043 = vset.pattern.permute.xlu0 86
        %7044 = vperm.xlu0 %7043, %v138
        %v7045 = vpop.permute.xlu0 %7044
        %7047 = vset.pattern.permute.xlu0 86
        %7048 = vperm.xlu0 %7047, %v139
        %v7049 = vpop.permute.xlu0 %7048
        %7051 = vset.pattern.permute.xlu0 86
        %7052 = vperm.xlu0 %7051, %v140
        %v7053 = vpop.permute.xlu0 %7052
        %7055 = vset.pattern.permute.xlu0 86
        %7056 = vperm.xlu0 %7055, %v141
        %v7057 = vpop.permute.xlu0 %7056
        %7059 = vset.pattern.permute.xlu0 86
        %7060 = vperm.xlu0 %7059, %v142
        %v7061 = vpop.permute.xlu0 %7060
        %7063 = vset.pattern.permute.xlu0 86
        %7064 = vperm.xlu0 %7063, %v143
        %v7065 = vpop.permute.xlu0 %7064
        %7067 = vset.pattern.permute.xlu0 86
        %7068 = vperm.xlu0 %7067, %v144
        %v7069 = vpop.permute.xlu0 %7068
        %v7071 = vsub.f32 %v7041, %v149
        %v7072 = vsub.f32 %v7045, %v149
        %v7073 = vsub.f32 %v7049, %v149
        %v7074 = vsub.f32 %v7053, %v149
        %v7075 = vsub.f32 %v7057, %v149
        %v7076 = vsub.f32 %v7061, %v149
        %v7077 = vsub.f32 %v7065, %v149
        %v7078 = vsub.f32 %v7069, %v149
        %7079 = vset.pattern.permute.xlu0 87
        %7080 = vperm.xlu0 %7079, %v137
        %v7081 = vpop.permute.xlu0 %7080
        %7083 = vset.pattern.permute.xlu0 87
        %7084 = vperm.xlu0 %7083, %v138
        %v7085 = vpop.permute.xlu0 %7084
        %7087 = vset.pattern.permute.xlu0 87
        %7088 = vperm.xlu0 %7087, %v139
        %v7089 = vpop.permute.xlu0 %7088
        %7091 = vset.pattern.permute.xlu0 87
        %7092 = vperm.xlu0 %7091, %v140
        %v7093 = vpop.permute.xlu0 %7092
        %7095 = vset.pattern.permute.xlu0 87
        %7096 = vperm.xlu0 %7095, %v141
        %v7097 = vpop.permute.xlu0 %7096
        %7099 = vset.pattern.permute.xlu0 87
        %7100 = vperm.xlu0 %7099, %v142
        %v7101 = vpop.permute.xlu0 %7100
        %7103 = vset.pattern.permute.xlu0 87
        %7104 = vperm.xlu0 %7103, %v143
        %v7105 = vpop.permute.xlu0 %7104
        %7107 = vset.pattern.permute.xlu0 87
        %7108 = vperm.xlu0 %7107, %v144
        %v7109 = vpop.permute.xlu0 %7108
        %v7111 = vsub.f32 %v7081, %v149
        %v7112 = vsub.f32 %v7085, %v149
        %v7113 = vsub.f32 %v7089, %v149
        %v7114 = vsub.f32 %v7093, %v149
        %v7115 = vsub.f32 %v7097, %v149
        %v7116 = vsub.f32 %v7101, %v149
        %v7117 = vsub.f32 %v7105, %v149
        %v7118 = vsub.f32 %v7109, %v149
        %7127 = vrot.lane.b32.xlu0 %v7111, 64
        %v7128 = vpop.permute.xlu0 %7127
        %7129 = vrot.lane.b32.xlu0 %v7112, 64
        %v7130 = vpop.permute.xlu0 %7129
        %7131 = vrot.lane.b32.xlu0 %v7113, 64
        %v7132 = vpop.permute.xlu0 %7131
        %7133 = vrot.lane.b32.xlu0 %v7114, 64
        %v7134 = vpop.permute.xlu0 %7133
        %7135 = vrot.lane.b32.xlu0 %v7115, 64
        %v7136 = vpop.permute.xlu0 %7135
        %7137 = vrot.lane.b32.xlu0 %v7116, 64
        %v7138 = vpop.permute.xlu0 %7137
        %7139 = vrot.lane.b32.xlu0 %v7117, 64
        %v7140 = vpop.permute.xlu0 %7139
        %7141 = vrot.lane.b32.xlu0 %v7118, 64
        %v7142 = vpop.permute.xlu0 %7141
        %v7151 = vsel %vm270, %v7071, %v7128
        %v7152 = vsel %vm270, %v7072, %v7130
        %v7153 = vsel %vm270, %v7073, %v7132
        %v7154 = vsel %vm270, %v7074, %v7134
        %v7155 = vsel %vm270, %v7075, %v7136
        %v7156 = vsel %vm270, %v7076, %v7138
        %v7157 = vsel %vm270, %v7077, %v7140
        %v7158 = vsel %vm270, %v7078, %v7142
        %v7159 = vmul.f32 %v7151, -12.6
        %v7160 = vmul.f32 %v7152, -12.6
        %v7161 = vmul.f32 %v7153, -12.6
        %v7162 = vmul.f32 %v7154, -12.6
        %v7163 = vmul.f32 %v7155, -12.6
        %v7164 = vmul.f32 %v7156, -12.6
        %v7165 = vmul.f32 %v7157, -12.6
        %v7166 = vmul.f32 %v7158, -12.6
        %v7167 = vmul.f32 %v7159, %v7151
        %v7168 = vmul.f32 %v7160, %v7152
        %v7169 = vmul.f32 %v7161, %v7153
        %v7170 = vmul.f32 %v7162, %v7154
        %v7171 = vmul.f32 %v7163, %v7155
        %v7172 = vmul.f32 %v7164, %v7156
        %v7173 = vmul.f32 %v7165, %v7157
        %v7174 = vmul.f32 %v7166, %v7158
        %v7175 = vmul.f32 %v7167, 1.442695
        %v7176 = vpow.pop %v7175
        %v7177 = vmul.f32 %v7168, 1.442695
        %v7178 = vpow.pop %v7177
        %v7179 = vmul.f32 %v7169, 1.442695
        %v7180 = vpow.pop %v7179
        %v7181 = vmul.f32 %v7170, 1.442695
        %v7182 = vpow.pop %v7181
        %v7183 = vmul.f32 %v7171, 1.442695
        %v7184 = vpow.pop %v7183
        %v7185 = vmul.f32 %v7172, 1.442695
        %v7186 = vpow.pop %v7185
        %v7187 = vmul.f32 %v7173, 1.442695
        %v7188 = vpow.pop %v7187
        %v7189 = vmul.f32 %v7174, 1.442695
        %v7190 = vpow.pop %v7189
        %7191 = vst [vmem:[%s134 + $0x158] sm:$0xff] %v7176
        %7192 = vst [vmem:[%s134 + $0x358] sm:$0xff] %v7178
        %7193 = vst [vmem:[%s134 + $0x558] sm:$0xff] %v7180
        %7194 = vst [vmem:[%s134 + $0x758] sm:$0xff] %v7182
        %7195 = vst [vmem:[%s134 + $0x958] sm:$0xff] %v7184
        %7196 = vst [vmem:[%s134 + $0xb58] sm:$0xff] %v7186
        %7197 = vst [vmem:[%s134 + $0xd58] sm:$0xff] %v7188
        %7198 = vst [vmem:[%s134 + $0xf58] sm:$0xff] %v7190
        %7199 = vset.pattern.permute.xlu0 88
        %7200 = vperm.xlu0 %7199, %v137
        %v7201 = vpop.permute.xlu0 %7200
        %7203 = vset.pattern.permute.xlu0 88
        %7204 = vperm.xlu0 %7203, %v138
        %v7205 = vpop.permute.xlu0 %7204
        %7207 = vset.pattern.permute.xlu0 88
        %7208 = vperm.xlu0 %7207, %v139
        %v7209 = vpop.permute.xlu0 %7208
        %7211 = vset.pattern.permute.xlu0 88
        %7212 = vperm.xlu0 %7211, %v140
        %v7213 = vpop.permute.xlu0 %7212
        %7215 = vset.pattern.permute.xlu0 88
        %7216 = vperm.xlu0 %7215, %v141
        %v7217 = vpop.permute.xlu0 %7216
        %7219 = vset.pattern.permute.xlu0 88
        %7220 = vperm.xlu0 %7219, %v142
        %v7221 = vpop.permute.xlu0 %7220
        %7223 = vset.pattern.permute.xlu0 88
        %7224 = vperm.xlu0 %7223, %v143
        %v7225 = vpop.permute.xlu0 %7224
        %7227 = vset.pattern.permute.xlu0 88
        %7228 = vperm.xlu0 %7227, %v144
        %v7229 = vpop.permute.xlu0 %7228
        %v7231 = vsub.f32 %v7201, %v149
        %v7232 = vsub.f32 %v7205, %v149
        %v7233 = vsub.f32 %v7209, %v149
        %v7234 = vsub.f32 %v7213, %v149
        %v7235 = vsub.f32 %v7217, %v149
        %v7236 = vsub.f32 %v7221, %v149
        %v7237 = vsub.f32 %v7225, %v149
        %v7238 = vsub.f32 %v7229, %v149
        %7239 = vset.pattern.permute.xlu0 89
        %7240 = vperm.xlu0 %7239, %v137
        %v7241 = vpop.permute.xlu0 %7240
        %7243 = vset.pattern.permute.xlu0 89
        %7244 = vperm.xlu0 %7243, %v138
        %v7245 = vpop.permute.xlu0 %7244
        %7247 = vset.pattern.permute.xlu0 89
        %7248 = vperm.xlu0 %7247, %v139
        %v7249 = vpop.permute.xlu0 %7248
        %7251 = vset.pattern.permute.xlu0 89
        %7252 = vperm.xlu0 %7251, %v140
        %v7253 = vpop.permute.xlu0 %7252
        %7255 = vset.pattern.permute.xlu0 89
        %7256 = vperm.xlu0 %7255, %v141
        %v7257 = vpop.permute.xlu0 %7256
        %7259 = vset.pattern.permute.xlu0 89
        %7260 = vperm.xlu0 %7259, %v142
        %v7261 = vpop.permute.xlu0 %7260
        %7263 = vset.pattern.permute.xlu0 89
        %7264 = vperm.xlu0 %7263, %v143
        %v7265 = vpop.permute.xlu0 %7264
        %7267 = vset.pattern.permute.xlu0 89
        %7268 = vperm.xlu0 %7267, %v144
        %v7269 = vpop.permute.xlu0 %7268
        %v7271 = vsub.f32 %v7241, %v149
        %v7272 = vsub.f32 %v7245, %v149
        %v7273 = vsub.f32 %v7249, %v149
        %v7274 = vsub.f32 %v7253, %v149
        %v7275 = vsub.f32 %v7257, %v149
        %v7276 = vsub.f32 %v7261, %v149
        %v7277 = vsub.f32 %v7265, %v149
        %v7278 = vsub.f32 %v7269, %v149
        %7287 = vrot.lane.b32.xlu0 %v7271, 64
        %v7288 = vpop.permute.xlu0 %7287
        %7289 = vrot.lane.b32.xlu0 %v7272, 64
        %v7290 = vpop.permute.xlu0 %7289
        %7291 = vrot.lane.b32.xlu0 %v7273, 64
        %v7292 = vpop.permute.xlu0 %7291
        %7293 = vrot.lane.b32.xlu0 %v7274, 64
        %v7294 = vpop.permute.xlu0 %7293
        %7295 = vrot.lane.b32.xlu0 %v7275, 64
        %v7296 = vpop.permute.xlu0 %7295
        %7297 = vrot.lane.b32.xlu0 %v7276, 64
        %v7298 = vpop.permute.xlu0 %7297
        %7299 = vrot.lane.b32.xlu0 %v7277, 64
        %v7300 = vpop.permute.xlu0 %7299
        %7301 = vrot.lane.b32.xlu0 %v7278, 64
        %v7302 = vpop.permute.xlu0 %7301
        %v7311 = vsel %vm270, %v7231, %v7288
        %v7312 = vsel %vm270, %v7232, %v7290
        %v7313 = vsel %vm270, %v7233, %v7292
        %v7314 = vsel %vm270, %v7234, %v7294
        %v7315 = vsel %vm270, %v7235, %v7296
        %v7316 = vsel %vm270, %v7236, %v7298
        %v7317 = vsel %vm270, %v7237, %v7300
        %v7318 = vsel %vm270, %v7238, %v7302
        %v7319 = vmul.f32 %v7311, -12.6
        %v7320 = vmul.f32 %v7312, -12.6
        %v7321 = vmul.f32 %v7313, -12.6
        %v7322 = vmul.f32 %v7314, -12.6
        %v7323 = vmul.f32 %v7315, -12.6
        %v7324 = vmul.f32 %v7316, -12.6
        %v7325 = vmul.f32 %v7317, -12.6
        %v7326 = vmul.f32 %v7318, -12.6
        %v7327 = vmul.f32 %v7319, %v7311
        %v7328 = vmul.f32 %v7320, %v7312
        %v7329 = vmul.f32 %v7321, %v7313
        %v7330 = vmul.f32 %v7322, %v7314
        %v7331 = vmul.f32 %v7323, %v7315
        %v7332 = vmul.f32 %v7324, %v7316
        %v7333 = vmul.f32 %v7325, %v7317
        %v7334 = vmul.f32 %v7326, %v7318
        %v7335 = vmul.f32 %v7327, 1.442695
        %v7336 = vpow.pop %v7335
        %v7337 = vmul.f32 %v7328, 1.442695
        %v7338 = vpow.pop %v7337
        %v7339 = vmul.f32 %v7329, 1.442695
        %v7340 = vpow.pop %v7339
        %v7341 = vmul.f32 %v7330, 1.442695
        %v7342 = vpow.pop %v7341
        %v7343 = vmul.f32 %v7331, 1.442695
        %v7344 = vpow.pop %v7343
        %v7345 = vmul.f32 %v7332, 1.442695
        %v7346 = vpow.pop %v7345
        %v7347 = vmul.f32 %v7333, 1.442695
        %v7348 = vpow.pop %v7347
        %v7349 = vmul.f32 %v7334, 1.442695
        %v7350 = vpow.pop %v7349
        %7351 = vst [vmem:[%s134 + $0x160] sm:$0xff] %v7336
        %7352 = vst [vmem:[%s134 + $0x360] sm:$0xff] %v7338
        %7353 = vst [vmem:[%s134 + $0x560] sm:$0xff] %v7340
        %7354 = vst [vmem:[%s134 + $0x760] sm:$0xff] %v7342
        %7355 = vst [vmem:[%s134 + $0x960] sm:$0xff] %v7344
        %7356 = vst [vmem:[%s134 + $0xb60] sm:$0xff] %v7346
        %7357 = vst [vmem:[%s134 + $0xd60] sm:$0xff] %v7348
        %7358 = vst [vmem:[%s134 + $0xf60] sm:$0xff] %v7350
        %7359 = vset.pattern.permute.xlu0 90
        %7360 = vperm.xlu0 %7359, %v137
        %v7361 = vpop.permute.xlu0 %7360
        %7363 = vset.pattern.permute.xlu0 90
        %7364 = vperm.xlu0 %7363, %v138
        %v7365 = vpop.permute.xlu0 %7364
        %7367 = vset.pattern.permute.xlu0 90
        %7368 = vperm.xlu0 %7367, %v139
        %v7369 = vpop.permute.xlu0 %7368
        %7371 = vset.pattern.permute.xlu0 90
        %7372 = vperm.xlu0 %7371, %v140
        %v7373 = vpop.permute.xlu0 %7372
        %7375 = vset.pattern.permute.xlu0 90
        %7376 = vperm.xlu0 %7375, %v141
        %v7377 = vpop.permute.xlu0 %7376
        %7379 = vset.pattern.permute.xlu0 90
        %7380 = vperm.xlu0 %7379, %v142
        %v7381 = vpop.permute.xlu0 %7380
        %7383 = vset.pattern.permute.xlu0 90
        %7384 = vperm.xlu0 %7383, %v143
        %v7385 = vpop.permute.xlu0 %7384
        %7387 = vset.pattern.permute.xlu0 90
        %7388 = vperm.xlu0 %7387, %v144
        %v7389 = vpop.permute.xlu0 %7388
        %v7391 = vsub.f32 %v7361, %v149
        %v7392 = vsub.f32 %v7365, %v149
        %v7393 = vsub.f32 %v7369, %v149
        %v7394 = vsub.f32 %v7373, %v149
        %v7395 = vsub.f32 %v7377, %v149
        %v7396 = vsub.f32 %v7381, %v149
        %v7397 = vsub.f32 %v7385, %v149
        %v7398 = vsub.f32 %v7389, %v149
        %7399 = vset.pattern.permute.xlu0 91
        %7400 = vperm.xlu0 %7399, %v137
        %v7401 = vpop.permute.xlu0 %7400
        %7403 = vset.pattern.permute.xlu0 91
        %7404 = vperm.xlu0 %7403, %v138
        %v7405 = vpop.permute.xlu0 %7404
        %7407 = vset.pattern.permute.xlu0 91
        %7408 = vperm.xlu0 %7407, %v139
        %v7409 = vpop.permute.xlu0 %7408
        %7411 = vset.pattern.permute.xlu0 91
        %7412 = vperm.xlu0 %7411, %v140
        %v7413 = vpop.permute.xlu0 %7412
        %7415 = vset.pattern.permute.xlu0 91
        %7416 = vperm.xlu0 %7415, %v141
        %v7417 = vpop.permute.xlu0 %7416
        %7419 = vset.pattern.permute.xlu0 91
        %7420 = vperm.xlu0 %7419, %v142
        %v7421 = vpop.permute.xlu0 %7420
        %7423 = vset.pattern.permute.xlu0 91
        %7424 = vperm.xlu0 %7423, %v143
        %v7425 = vpop.permute.xlu0 %7424
        %7427 = vset.pattern.permute.xlu0 91
        %7428 = vperm.xlu0 %7427, %v144
        %v7429 = vpop.permute.xlu0 %7428
        %v7431 = vsub.f32 %v7401, %v149
        %v7432 = vsub.f32 %v7405, %v149
        %v7433 = vsub.f32 %v7409, %v149
        %v7434 = vsub.f32 %v7413, %v149
        %v7435 = vsub.f32 %v7417, %v149
        %v7436 = vsub.f32 %v7421, %v149
        %v7437 = vsub.f32 %v7425, %v149
        %v7438 = vsub.f32 %v7429, %v149
        %7447 = vrot.lane.b32.xlu0 %v7431, 64
        %v7448 = vpop.permute.xlu0 %7447
        %7449 = vrot.lane.b32.xlu0 %v7432, 64
        %v7450 = vpop.permute.xlu0 %7449
        %7451 = vrot.lane.b32.xlu0 %v7433, 64
        %v7452 = vpop.permute.xlu0 %7451
        %7453 = vrot.lane.b32.xlu0 %v7434, 64
        %v7454 = vpop.permute.xlu0 %7453
        %7455 = vrot.lane.b32.xlu0 %v7435, 64
        %v7456 = vpop.permute.xlu0 %7455
        %7457 = vrot.lane.b32.xlu0 %v7436, 64
        %v7458 = vpop.permute.xlu0 %7457
        %7459 = vrot.lane.b32.xlu0 %v7437, 64
        %v7460 = vpop.permute.xlu0 %7459
        %7461 = vrot.lane.b32.xlu0 %v7438, 64
        %v7462 = vpop.permute.xlu0 %7461
        %v7471 = vsel %vm270, %v7391, %v7448
        %v7472 = vsel %vm270, %v7392, %v7450
        %v7473 = vsel %vm270, %v7393, %v7452
        %v7474 = vsel %vm270, %v7394, %v7454
        %v7475 = vsel %vm270, %v7395, %v7456
        %v7476 = vsel %vm270, %v7396, %v7458
        %v7477 = vsel %vm270, %v7397, %v7460
        %v7478 = vsel %vm270, %v7398, %v7462
        %v7479 = vmul.f32 %v7471, -12.6
        %v7480 = vmul.f32 %v7472, -12.6
        %v7481 = vmul.f32 %v7473, -12.6
        %v7482 = vmul.f32 %v7474, -12.6
        %v7483 = vmul.f32 %v7475, -12.6
        %v7484 = vmul.f32 %v7476, -12.6
        %v7485 = vmul.f32 %v7477, -12.6
        %v7486 = vmul.f32 %v7478, -12.6
        %v7487 = vmul.f32 %v7479, %v7471
        %v7488 = vmul.f32 %v7480, %v7472
        %v7489 = vmul.f32 %v7481, %v7473
        %v7490 = vmul.f32 %v7482, %v7474
        %v7491 = vmul.f32 %v7483, %v7475
        %v7492 = vmul.f32 %v7484, %v7476
        %v7493 = vmul.f32 %v7485, %v7477
        %v7494 = vmul.f32 %v7486, %v7478
        %v7495 = vmul.f32 %v7487, 1.442695
        %v7496 = vpow.pop %v7495
        %v7497 = vmul.f32 %v7488, 1.442695
        %v7498 = vpow.pop %v7497
        %v7499 = vmul.f32 %v7489, 1.442695
        %v7500 = vpow.pop %v7499
        %v7501 = vmul.f32 %v7490, 1.442695
        %v7502 = vpow.pop %v7501
        %v7503 = vmul.f32 %v7491, 1.442695
        %v7504 = vpow.pop %v7503
        %v7505 = vmul.f32 %v7492, 1.442695
        %v7506 = vpow.pop %v7505
        %v7507 = vmul.f32 %v7493, 1.442695
        %v7508 = vpow.pop %v7507
        %v7509 = vmul.f32 %v7494, 1.442695
        %v7510 = vpow.pop %v7509
        %7511 = vst [vmem:[%s134 + $0x168] sm:$0xff] %v7496
        %7512 = vst [vmem:[%s134 + $0x368] sm:$0xff] %v7498
        %7513 = vst [vmem:[%s134 + $0x568] sm:$0xff] %v7500
        %7514 = vst [vmem:[%s134 + $0x768] sm:$0xff] %v7502
        %7515 = vst [vmem:[%s134 + $0x968] sm:$0xff] %v7504
        %7516 = vst [vmem:[%s134 + $0xb68] sm:$0xff] %v7506
        %7517 = vst [vmem:[%s134 + $0xd68] sm:$0xff] %v7508
        %7518 = vst [vmem:[%s134 + $0xf68] sm:$0xff] %v7510
        %7519 = vset.pattern.permute.xlu0 92
        %7520 = vperm.xlu0 %7519, %v137
        %v7521 = vpop.permute.xlu0 %7520
        %7523 = vset.pattern.permute.xlu0 92
        %7524 = vperm.xlu0 %7523, %v138
        %v7525 = vpop.permute.xlu0 %7524
        %7527 = vset.pattern.permute.xlu0 92
        %7528 = vperm.xlu0 %7527, %v139
        %v7529 = vpop.permute.xlu0 %7528
        %7531 = vset.pattern.permute.xlu0 92
        %7532 = vperm.xlu0 %7531, %v140
        %v7533 = vpop.permute.xlu0 %7532
        %7535 = vset.pattern.permute.xlu0 92
        %7536 = vperm.xlu0 %7535, %v141
        %v7537 = vpop.permute.xlu0 %7536
        %7539 = vset.pattern.permute.xlu0 92
        %7540 = vperm.xlu0 %7539, %v142
        %v7541 = vpop.permute.xlu0 %7540
        %7543 = vset.pattern.permute.xlu0 92
        %7544 = vperm.xlu0 %7543, %v143
        %v7545 = vpop.permute.xlu0 %7544
        %7547 = vset.pattern.permute.xlu0 92
        %7548 = vperm.xlu0 %7547, %v144
        %v7549 = vpop.permute.xlu0 %7548
        %v7551 = vsub.f32 %v7521, %v149
        %v7552 = vsub.f32 %v7525, %v149
        %v7553 = vsub.f32 %v7529, %v149
        %v7554 = vsub.f32 %v7533, %v149
        %v7555 = vsub.f32 %v7537, %v149
        %v7556 = vsub.f32 %v7541, %v149
        %v7557 = vsub.f32 %v7545, %v149
        %v7558 = vsub.f32 %v7549, %v149
        %7559 = vset.pattern.permute.xlu0 93
        %7560 = vperm.xlu0 %7559, %v137
        %v7561 = vpop.permute.xlu0 %7560
        %7563 = vset.pattern.permute.xlu0 93
        %7564 = vperm.xlu0 %7563, %v138
        %v7565 = vpop.permute.xlu0 %7564
        %7567 = vset.pattern.permute.xlu0 93
        %7568 = vperm.xlu0 %7567, %v139
        %v7569 = vpop.permute.xlu0 %7568
        %7571 = vset.pattern.permute.xlu0 93
        %7572 = vperm.xlu0 %7571, %v140
        %v7573 = vpop.permute.xlu0 %7572
        %7575 = vset.pattern.permute.xlu0 93
        %7576 = vperm.xlu0 %7575, %v141
        %v7577 = vpop.permute.xlu0 %7576
        %7579 = vset.pattern.permute.xlu0 93
        %7580 = vperm.xlu0 %7579, %v142
        %v7581 = vpop.permute.xlu0 %7580
        %7583 = vset.pattern.permute.xlu0 93
        %7584 = vperm.xlu0 %7583, %v143
        %v7585 = vpop.permute.xlu0 %7584
        %7587 = vset.pattern.permute.xlu0 93
        %7588 = vperm.xlu0 %7587, %v144
        %v7589 = vpop.permute.xlu0 %7588
        %v7591 = vsub.f32 %v7561, %v149
        %v7592 = vsub.f32 %v7565, %v149
        %v7593 = vsub.f32 %v7569, %v149
        %v7594 = vsub.f32 %v7573, %v149
        %v7595 = vsub.f32 %v7577, %v149
        %v7596 = vsub.f32 %v7581, %v149
        %v7597 = vsub.f32 %v7585, %v149
        %v7598 = vsub.f32 %v7589, %v149
        %7607 = vrot.lane.b32.xlu0 %v7591, 64
        %v7608 = vpop.permute.xlu0 %7607
        %7609 = vrot.lane.b32.xlu0 %v7592, 64
        %v7610 = vpop.permute.xlu0 %7609
        %7611 = vrot.lane.b32.xlu0 %v7593, 64
        %v7612 = vpop.permute.xlu0 %7611
        %7613 = vrot.lane.b32.xlu0 %v7594, 64
        %v7614 = vpop.permute.xlu0 %7613
        %7615 = vrot.lane.b32.xlu0 %v7595, 64
        %v7616 = vpop.permute.xlu0 %7615
        %7617 = vrot.lane.b32.xlu0 %v7596, 64
        %v7618 = vpop.permute.xlu0 %7617
        %7619 = vrot.lane.b32.xlu0 %v7597, 64
        %v7620 = vpop.permute.xlu0 %7619
        %7621 = vrot.lane.b32.xlu0 %v7598, 64
        %v7622 = vpop.permute.xlu0 %7621
        %v7631 = vsel %vm270, %v7551, %v7608
        %v7632 = vsel %vm270, %v7552, %v7610
        %v7633 = vsel %vm270, %v7553, %v7612
        %v7634 = vsel %vm270, %v7554, %v7614
        %v7635 = vsel %vm270, %v7555, %v7616
        %v7636 = vsel %vm270, %v7556, %v7618
        %v7637 = vsel %vm270, %v7557, %v7620
        %v7638 = vsel %vm270, %v7558, %v7622
        %v7639 = vmul.f32 %v7631, -12.6
        %v7640 = vmul.f32 %v7632, -12.6
        %v7641 = vmul.f32 %v7633, -12.6
        %v7642 = vmul.f32 %v7634, -12.6
        %v7643 = vmul.f32 %v7635, -12.6
        %v7644 = vmul.f32 %v7636, -12.6
        %v7645 = vmul.f32 %v7637, -12.6
        %v7646 = vmul.f32 %v7638, -12.6
        %v7647 = vmul.f32 %v7639, %v7631
        %v7648 = vmul.f32 %v7640, %v7632
        %v7649 = vmul.f32 %v7641, %v7633
        %v7650 = vmul.f32 %v7642, %v7634
        %v7651 = vmul.f32 %v7643, %v7635
        %v7652 = vmul.f32 %v7644, %v7636
        %v7653 = vmul.f32 %v7645, %v7637
        %v7654 = vmul.f32 %v7646, %v7638
        %v7655 = vmul.f32 %v7647, 1.442695
        %v7656 = vpow.pop %v7655
        %v7657 = vmul.f32 %v7648, 1.442695
        %v7658 = vpow.pop %v7657
        %v7659 = vmul.f32 %v7649, 1.442695
        %v7660 = vpow.pop %v7659
        %v7661 = vmul.f32 %v7650, 1.442695
        %v7662 = vpow.pop %v7661
        %v7663 = vmul.f32 %v7651, 1.442695
        %v7664 = vpow.pop %v7663
        %v7665 = vmul.f32 %v7652, 1.442695
        %v7666 = vpow.pop %v7665
        %v7667 = vmul.f32 %v7653, 1.442695
        %v7668 = vpow.pop %v7667
        %v7669 = vmul.f32 %v7654, 1.442695
        %v7670 = vpow.pop %v7669
        %7671 = vst [vmem:[%s134 + $0x170] sm:$0xff] %v7656
        %7672 = vst [vmem:[%s134 + $0x370] sm:$0xff] %v7658
        %7673 = vst [vmem:[%s134 + $0x570] sm:$0xff] %v7660
        %7674 = vst [vmem:[%s134 + $0x770] sm:$0xff] %v7662
        %7675 = vst [vmem:[%s134 + $0x970] sm:$0xff] %v7664
        %7676 = vst [vmem:[%s134 + $0xb70] sm:$0xff] %v7666
        %7677 = vst [vmem:[%s134 + $0xd70] sm:$0xff] %v7668
        %7678 = vst [vmem:[%s134 + $0xf70] sm:$0xff] %v7670
        %7679 = vset.pattern.permute.xlu0 94
        %7680 = vperm.xlu0 %7679, %v137
        %v7681 = vpop.permute.xlu0 %7680
        %7683 = vset.pattern.permute.xlu0 94
        %7684 = vperm.xlu0 %7683, %v138
        %v7685 = vpop.permute.xlu0 %7684
        %7687 = vset.pattern.permute.xlu0 94
        %7688 = vperm.xlu0 %7687, %v139
        %v7689 = vpop.permute.xlu0 %7688
        %7691 = vset.pattern.permute.xlu0 94
        %7692 = vperm.xlu0 %7691, %v140
        %v7693 = vpop.permute.xlu0 %7692
        %7695 = vset.pattern.permute.xlu0 94
        %7696 = vperm.xlu0 %7695, %v141
        %v7697 = vpop.permute.xlu0 %7696
        %7699 = vset.pattern.permute.xlu0 94
        %7700 = vperm.xlu0 %7699, %v142
        %v7701 = vpop.permute.xlu0 %7700
        %7703 = vset.pattern.permute.xlu0 94
        %7704 = vperm.xlu0 %7703, %v143
        %v7705 = vpop.permute.xlu0 %7704
        %7707 = vset.pattern.permute.xlu0 94
        %7708 = vperm.xlu0 %7707, %v144
        %v7709 = vpop.permute.xlu0 %7708
        %v7711 = vsub.f32 %v7681, %v149
        %v7712 = vsub.f32 %v7685, %v149
        %v7713 = vsub.f32 %v7689, %v149
        %v7714 = vsub.f32 %v7693, %v149
        %v7715 = vsub.f32 %v7697, %v149
        %v7716 = vsub.f32 %v7701, %v149
        %v7717 = vsub.f32 %v7705, %v149
        %v7718 = vsub.f32 %v7709, %v149
        %7719 = vset.pattern.permute.xlu0 95
        %7720 = vperm.xlu0 %7719, %v137
        %v7721 = vpop.permute.xlu0 %7720
        %7723 = vset.pattern.permute.xlu0 95
        %7724 = vperm.xlu0 %7723, %v138
        %v7725 = vpop.permute.xlu0 %7724
        %7727 = vset.pattern.permute.xlu0 95
        %7728 = vperm.xlu0 %7727, %v139
        %v7729 = vpop.permute.xlu0 %7728
        %7731 = vset.pattern.permute.xlu0 95
        %7732 = vperm.xlu0 %7731, %v140
        %v7733 = vpop.permute.xlu0 %7732
        %7735 = vset.pattern.permute.xlu0 95
        %7736 = vperm.xlu0 %7735, %v141
        %v7737 = vpop.permute.xlu0 %7736
        %7739 = vset.pattern.permute.xlu0 95
        %7740 = vperm.xlu0 %7739, %v142
        %v7741 = vpop.permute.xlu0 %7740
        %7743 = vset.pattern.permute.xlu0 95
        %7744 = vperm.xlu0 %7743, %v143
        %v7745 = vpop.permute.xlu0 %7744
        %7747 = vset.pattern.permute.xlu0 95
        %7748 = vperm.xlu0 %7747, %v144
        %v7749 = vpop.permute.xlu0 %7748
        %v7751 = vsub.f32 %v7721, %v149
        %v7752 = vsub.f32 %v7725, %v149
        %v7753 = vsub.f32 %v7729, %v149
        %v7754 = vsub.f32 %v7733, %v149
        %v7755 = vsub.f32 %v7737, %v149
        %v7756 = vsub.f32 %v7741, %v149
        %v7757 = vsub.f32 %v7745, %v149
        %v7758 = vsub.f32 %v7749, %v149
        %7767 = vrot.lane.b32.xlu0 %v7751, 64
        %v7768 = vpop.permute.xlu0 %7767
        %7769 = vrot.lane.b32.xlu0 %v7752, 64
        %v7770 = vpop.permute.xlu0 %7769
        %7771 = vrot.lane.b32.xlu0 %v7753, 64
        %v7772 = vpop.permute.xlu0 %7771
        %7773 = vrot.lane.b32.xlu0 %v7754, 64
        %v7774 = vpop.permute.xlu0 %7773
        %7775 = vrot.lane.b32.xlu0 %v7755, 64
        %v7776 = vpop.permute.xlu0 %7775
        %7777 = vrot.lane.b32.xlu0 %v7756, 64
        %v7778 = vpop.permute.xlu0 %7777
        %7779 = vrot.lane.b32.xlu0 %v7757, 64
        %v7780 = vpop.permute.xlu0 %7779
        %7781 = vrot.lane.b32.xlu0 %v7758, 64
        %v7782 = vpop.permute.xlu0 %7781
        %v7791 = vsel %vm270, %v7711, %v7768
        %v7792 = vsel %vm270, %v7712, %v7770
        %v7793 = vsel %vm270, %v7713, %v7772
        %v7794 = vsel %vm270, %v7714, %v7774
        %v7795 = vsel %vm270, %v7715, %v7776
        %v7796 = vsel %vm270, %v7716, %v7778
        %v7797 = vsel %vm270, %v7717, %v7780
        %v7798 = vsel %vm270, %v7718, %v7782
        %v7799 = vmul.f32 %v7791, -12.6
        %v7800 = vmul.f32 %v7792, -12.6
        %v7801 = vmul.f32 %v7793, -12.6
        %v7802 = vmul.f32 %v7794, -12.6
        %v7803 = vmul.f32 %v7795, -12.6
        %v7804 = vmul.f32 %v7796, -12.6
        %v7805 = vmul.f32 %v7797, -12.6
        %v7806 = vmul.f32 %v7798, -12.6
        %v7807 = vmul.f32 %v7799, %v7791
        %v7808 = vmul.f32 %v7800, %v7792
        %v7809 = vmul.f32 %v7801, %v7793
        %v7810 = vmul.f32 %v7802, %v7794
        %v7811 = vmul.f32 %v7803, %v7795
        %v7812 = vmul.f32 %v7804, %v7796
        %v7813 = vmul.f32 %v7805, %v7797
        %v7814 = vmul.f32 %v7806, %v7798
        %v7815 = vmul.f32 %v7807, 1.442695
        %v7816 = vpow.pop %v7815
        %v7817 = vmul.f32 %v7808, 1.442695
        %v7818 = vpow.pop %v7817
        %v7819 = vmul.f32 %v7809, 1.442695
        %v7820 = vpow.pop %v7819
        %v7821 = vmul.f32 %v7810, 1.442695
        %v7822 = vpow.pop %v7821
        %v7823 = vmul.f32 %v7811, 1.442695
        %v7824 = vpow.pop %v7823
        %v7825 = vmul.f32 %v7812, 1.442695
        %v7826 = vpow.pop %v7825
        %v7827 = vmul.f32 %v7813, 1.442695
        %v7828 = vpow.pop %v7827
        %v7829 = vmul.f32 %v7814, 1.442695
        %v7830 = vpow.pop %v7829
        %7831 = vst [vmem:[%s134 + $0x178] sm:$0xff] %v7816
        %7832 = vst [vmem:[%s134 + $0x378] sm:$0xff] %v7818
        %7833 = vst [vmem:[%s134 + $0x578] sm:$0xff] %v7820
        %7834 = vst [vmem:[%s134 + $0x778] sm:$0xff] %v7822
        %7835 = vst [vmem:[%s134 + $0x978] sm:$0xff] %v7824
        %7836 = vst [vmem:[%s134 + $0xb78] sm:$0xff] %v7826
        %7837 = vst [vmem:[%s134 + $0xd78] sm:$0xff] %v7828
        %7838 = vst [vmem:[%s134 + $0xf78] sm:$0xff] %v7830
        %7839 = vset.pattern.permute.xlu0 96
        %7840 = vperm.xlu0 %7839, %v137
        %v7841 = vpop.permute.xlu0 %7840
        %7843 = vset.pattern.permute.xlu0 96
        %7844 = vperm.xlu0 %7843, %v138
        %v7845 = vpop.permute.xlu0 %7844
        %7847 = vset.pattern.permute.xlu0 96
        %7848 = vperm.xlu0 %7847, %v139
        %v7849 = vpop.permute.xlu0 %7848
        %7851 = vset.pattern.permute.xlu0 96
        %7852 = vperm.xlu0 %7851, %v140
        %v7853 = vpop.permute.xlu0 %7852
        %7855 = vset.pattern.permute.xlu0 96
        %7856 = vperm.xlu0 %7855, %v141
        %v7857 = vpop.permute.xlu0 %7856
        %7859 = vset.pattern.permute.xlu0 96
        %7860 = vperm.xlu0 %7859, %v142
        %v7861 = vpop.permute.xlu0 %7860
        %7863 = vset.pattern.permute.xlu0 96
        %7864 = vperm.xlu0 %7863, %v143
        %v7865 = vpop.permute.xlu0 %7864
        %7867 = vset.pattern.permute.xlu0 96
        %7868 = vperm.xlu0 %7867, %v144
        %v7869 = vpop.permute.xlu0 %7868
        %v7871 = vsub.f32 %v7841, %v149
        %v7872 = vsub.f32 %v7845, %v149
        %v7873 = vsub.f32 %v7849, %v149
        %v7874 = vsub.f32 %v7853, %v149
        %v7875 = vsub.f32 %v7857, %v149
        %v7876 = vsub.f32 %v7861, %v149
        %v7877 = vsub.f32 %v7865, %v149
        %v7878 = vsub.f32 %v7869, %v149
        %7879 = vset.pattern.permute.xlu0 97
        %7880 = vperm.xlu0 %7879, %v137
        %v7881 = vpop.permute.xlu0 %7880
        %7883 = vset.pattern.permute.xlu0 97
        %7884 = vperm.xlu0 %7883, %v138
        %v7885 = vpop.permute.xlu0 %7884
        %7887 = vset.pattern.permute.xlu0 97
        %7888 = vperm.xlu0 %7887, %v139
        %v7889 = vpop.permute.xlu0 %7888
        %7891 = vset.pattern.permute.xlu0 97
        %7892 = vperm.xlu0 %7891, %v140
        %v7893 = vpop.permute.xlu0 %7892
        %7895 = vset.pattern.permute.xlu0 97
        %7896 = vperm.xlu0 %7895, %v141
        %v7897 = vpop.permute.xlu0 %7896
        %7899 = vset.pattern.permute.xlu0 97
        %7900 = vperm.xlu0 %7899, %v142
        %v7901 = vpop.permute.xlu0 %7900
        %7903 = vset.pattern.permute.xlu0 97
        %7904 = vperm.xlu0 %7903, %v143
        %v7905 = vpop.permute.xlu0 %7904
        %7907 = vset.pattern.permute.xlu0 97
        %7908 = vperm.xlu0 %7907, %v144
        %v7909 = vpop.permute.xlu0 %7908
        %v7911 = vsub.f32 %v7881, %v149
        %v7912 = vsub.f32 %v7885, %v149
        %v7913 = vsub.f32 %v7889, %v149
        %v7914 = vsub.f32 %v7893, %v149
        %v7915 = vsub.f32 %v7897, %v149
        %v7916 = vsub.f32 %v7901, %v149
        %v7917 = vsub.f32 %v7905, %v149
        %v7918 = vsub.f32 %v7909, %v149
        %7927 = vrot.lane.b32.xlu0 %v7911, 64
        %v7928 = vpop.permute.xlu0 %7927
        %7929 = vrot.lane.b32.xlu0 %v7912, 64
        %v7930 = vpop.permute.xlu0 %7929
        %7931 = vrot.lane.b32.xlu0 %v7913, 64
        %v7932 = vpop.permute.xlu0 %7931
        %7933 = vrot.lane.b32.xlu0 %v7914, 64
        %v7934 = vpop.permute.xlu0 %7933
        %7935 = vrot.lane.b32.xlu0 %v7915, 64
        %v7936 = vpop.permute.xlu0 %7935
        %7937 = vrot.lane.b32.xlu0 %v7916, 64
        %v7938 = vpop.permute.xlu0 %7937
        %7939 = vrot.lane.b32.xlu0 %v7917, 64
        %v7940 = vpop.permute.xlu0 %7939
        %7941 = vrot.lane.b32.xlu0 %v7918, 64
        %v7942 = vpop.permute.xlu0 %7941
        %v7951 = vsel %vm270, %v7871, %v7928
        %v7952 = vsel %vm270, %v7872, %v7930
        %v7953 = vsel %vm270, %v7873, %v7932
        %v7954 = vsel %vm270, %v7874, %v7934
        %v7955 = vsel %vm270, %v7875, %v7936
        %v7956 = vsel %vm270, %v7876, %v7938
        %v7957 = vsel %vm270, %v7877, %v7940
        %v7958 = vsel %vm270, %v7878, %v7942
        %v7959 = vmul.f32 %v7951, -12.6
        %v7960 = vmul.f32 %v7952, -12.6
        %v7961 = vmul.f32 %v7953, -12.6
        %v7962 = vmul.f32 %v7954, -12.6
        %v7963 = vmul.f32 %v7955, -12.6
        %v7964 = vmul.f32 %v7956, -12.6
        %v7965 = vmul.f32 %v7957, -12.6
        %v7966 = vmul.f32 %v7958, -12.6
        %v7967 = vmul.f32 %v7959, %v7951
        %v7968 = vmul.f32 %v7960, %v7952
        %v7969 = vmul.f32 %v7961, %v7953
        %v7970 = vmul.f32 %v7962, %v7954
        %v7971 = vmul.f32 %v7963, %v7955
        %v7972 = vmul.f32 %v7964, %v7956
        %v7973 = vmul.f32 %v7965, %v7957
        %v7974 = vmul.f32 %v7966, %v7958
        %v7975 = vmul.f32 %v7967, 1.442695
        %v7976 = vpow.pop %v7975
        %v7977 = vmul.f32 %v7968, 1.442695
        %v7978 = vpow.pop %v7977
        %v7979 = vmul.f32 %v7969, 1.442695
        %v7980 = vpow.pop %v7979
        %v7981 = vmul.f32 %v7970, 1.442695
        %v7982 = vpow.pop %v7981
        %v7983 = vmul.f32 %v7971, 1.442695
        %v7984 = vpow.pop %v7983
        %v7985 = vmul.f32 %v7972, 1.442695
        %v7986 = vpow.pop %v7985
        %v7987 = vmul.f32 %v7973, 1.442695
        %v7988 = vpow.pop %v7987
        %v7989 = vmul.f32 %v7974, 1.442695
        %v7990 = vpow.pop %v7989
        %7991 = vst [vmem:[%s134 + $0x180] sm:$0xff] %v7976
        %7992 = vst [vmem:[%s134 + $0x380] sm:$0xff] %v7978
        %7993 = vst [vmem:[%s134 + $0x580] sm:$0xff] %v7980
        %7994 = vst [vmem:[%s134 + $0x780] sm:$0xff] %v7982
        %7995 = vst [vmem:[%s134 + $0x980] sm:$0xff] %v7984
        %7996 = vst [vmem:[%s134 + $0xb80] sm:$0xff] %v7986
        %7997 = vst [vmem:[%s134 + $0xd80] sm:$0xff] %v7988
        %7998 = vst [vmem:[%s134 + $0xf80] sm:$0xff] %v7990
        %7999 = vset.pattern.permute.xlu0 98
        %8000 = vperm.xlu0 %7999, %v137
        %v8001 = vpop.permute.xlu0 %8000
        %8003 = vset.pattern.permute.xlu0 98
        %8004 = vperm.xlu0 %8003, %v138
        %v8005 = vpop.permute.xlu0 %8004
        %8007 = vset.pattern.permute.xlu0 98
        %8008 = vperm.xlu0 %8007, %v139
        %v8009 = vpop.permute.xlu0 %8008
        %8011 = vset.pattern.permute.xlu0 98
        %8012 = vperm.xlu0 %8011, %v140
        %v8013 = vpop.permute.xlu0 %8012
        %8015 = vset.pattern.permute.xlu0 98
        %8016 = vperm.xlu0 %8015, %v141
        %v8017 = vpop.permute.xlu0 %8016
        %8019 = vset.pattern.permute.xlu0 98
        %8020 = vperm.xlu0 %8019, %v142
        %v8021 = vpop.permute.xlu0 %8020
        %8023 = vset.pattern.permute.xlu0 98
        %8024 = vperm.xlu0 %8023, %v143
        %v8025 = vpop.permute.xlu0 %8024
        %8027 = vset.pattern.permute.xlu0 98
        %8028 = vperm.xlu0 %8027, %v144
        %v8029 = vpop.permute.xlu0 %8028
        %v8031 = vsub.f32 %v8001, %v149
        %v8032 = vsub.f32 %v8005, %v149
        %v8033 = vsub.f32 %v8009, %v149
        %v8034 = vsub.f32 %v8013, %v149
        %v8035 = vsub.f32 %v8017, %v149
        %v8036 = vsub.f32 %v8021, %v149
        %v8037 = vsub.f32 %v8025, %v149
        %v8038 = vsub.f32 %v8029, %v149
        %8039 = vset.pattern.permute.xlu0 99
        %8040 = vperm.xlu0 %8039, %v137
        %v8041 = vpop.permute.xlu0 %8040
        %8043 = vset.pattern.permute.xlu0 99
        %8044 = vperm.xlu0 %8043, %v138
        %v8045 = vpop.permute.xlu0 %8044
        %8047 = vset.pattern.permute.xlu0 99
        %8048 = vperm.xlu0 %8047, %v139
        %v8049 = vpop.permute.xlu0 %8048
        %8051 = vset.pattern.permute.xlu0 99
        %8052 = vperm.xlu0 %8051, %v140
        %v8053 = vpop.permute.xlu0 %8052
        %8055 = vset.pattern.permute.xlu0 99
        %8056 = vperm.xlu0 %8055, %v141
        %v8057 = vpop.permute.xlu0 %8056
        %8059 = vset.pattern.permute.xlu0 99
        %8060 = vperm.xlu0 %8059, %v142
        %v8061 = vpop.permute.xlu0 %8060
        %8063 = vset.pattern.permute.xlu0 99
        %8064 = vperm.xlu0 %8063, %v143
        %v8065 = vpop.permute.xlu0 %8064
        %8067 = vset.pattern.permute.xlu0 99
        %8068 = vperm.xlu0 %8067, %v144
        %v8069 = vpop.permute.xlu0 %8068
        %v8071 = vsub.f32 %v8041, %v149
        %v8072 = vsub.f32 %v8045, %v149
        %v8073 = vsub.f32 %v8049, %v149
        %v8074 = vsub.f32 %v8053, %v149
        %v8075 = vsub.f32 %v8057, %v149
        %v8076 = vsub.f32 %v8061, %v149
        %v8077 = vsub.f32 %v8065, %v149
        %v8078 = vsub.f32 %v8069, %v149
        %8087 = vrot.lane.b32.xlu0 %v8071, 64
        %v8088 = vpop.permute.xlu0 %8087
        %8089 = vrot.lane.b32.xlu0 %v8072, 64
        %v8090 = vpop.permute.xlu0 %8089
        %8091 = vrot.lane.b32.xlu0 %v8073, 64
        %v8092 = vpop.permute.xlu0 %8091
        %8093 = vrot.lane.b32.xlu0 %v8074, 64
        %v8094 = vpop.permute.xlu0 %8093
        %8095 = vrot.lane.b32.xlu0 %v8075, 64
        %v8096 = vpop.permute.xlu0 %8095
        %8097 = vrot.lane.b32.xlu0 %v8076, 64
        %v8098 = vpop.permute.xlu0 %8097
        %8099 = vrot.lane.b32.xlu0 %v8077, 64
        %v8100 = vpop.permute.xlu0 %8099
        %8101 = vrot.lane.b32.xlu0 %v8078, 64
        %v8102 = vpop.permute.xlu0 %8101
        %v8111 = vsel %vm270, %v8031, %v8088
        %v8112 = vsel %vm270, %v8032, %v8090
        %v8113 = vsel %vm270, %v8033, %v8092
        %v8114 = vsel %vm270, %v8034, %v8094
        %v8115 = vsel %vm270, %v8035, %v8096
        %v8116 = vsel %vm270, %v8036, %v8098
        %v8117 = vsel %vm270, %v8037, %v8100
        %v8118 = vsel %vm270, %v8038, %v8102
        %v8119 = vmul.f32 %v8111, -12.6
        %v8120 = vmul.f32 %v8112, -12.6
        %v8121 = vmul.f32 %v8113, -12.6
        %v8122 = vmul.f32 %v8114, -12.6
        %v8123 = vmul.f32 %v8115, -12.6
        %v8124 = vmul.f32 %v8116, -12.6
        %v8125 = vmul.f32 %v8117, -12.6
        %v8126 = vmul.f32 %v8118, -12.6
        %v8127 = vmul.f32 %v8119, %v8111
        %v8128 = vmul.f32 %v8120, %v8112
        %v8129 = vmul.f32 %v8121, %v8113
        %v8130 = vmul.f32 %v8122, %v8114
        %v8131 = vmul.f32 %v8123, %v8115
        %v8132 = vmul.f32 %v8124, %v8116
        %v8133 = vmul.f32 %v8125, %v8117
        %v8134 = vmul.f32 %v8126, %v8118
        %v8135 = vmul.f32 %v8127, 1.442695
        %v8136 = vpow.pop %v8135
        %v8137 = vmul.f32 %v8128, 1.442695
        %v8138 = vpow.pop %v8137
        %v8139 = vmul.f32 %v8129, 1.442695
        %v8140 = vpow.pop %v8139
        %v8141 = vmul.f32 %v8130, 1.442695
        %v8142 = vpow.pop %v8141
        %v8143 = vmul.f32 %v8131, 1.442695
        %v8144 = vpow.pop %v8143
        %v8145 = vmul.f32 %v8132, 1.442695
        %v8146 = vpow.pop %v8145
        %v8147 = vmul.f32 %v8133, 1.442695
        %v8148 = vpow.pop %v8147
        %v8149 = vmul.f32 %v8134, 1.442695
        %v8150 = vpow.pop %v8149
        %8151 = vst [vmem:[%s134 + $0x188] sm:$0xff] %v8136
        %8152 = vst [vmem:[%s134 + $0x388] sm:$0xff] %v8138
        %8153 = vst [vmem:[%s134 + $0x588] sm:$0xff] %v8140
        %8154 = vst [vmem:[%s134 + $0x788] sm:$0xff] %v8142
        %8155 = vst [vmem:[%s134 + $0x988] sm:$0xff] %v8144
        %8156 = vst [vmem:[%s134 + $0xb88] sm:$0xff] %v8146
        %8157 = vst [vmem:[%s134 + $0xd88] sm:$0xff] %v8148
        %8158 = vst [vmem:[%s134 + $0xf88] sm:$0xff] %v8150
        %8159 = vset.pattern.permute.xlu0 100
        %8160 = vperm.xlu0 %8159, %v137
        %v8161 = vpop.permute.xlu0 %8160
        %8163 = vset.pattern.permute.xlu0 100
        %8164 = vperm.xlu0 %8163, %v138
        %v8165 = vpop.permute.xlu0 %8164
        %8167 = vset.pattern.permute.xlu0 100
        %8168 = vperm.xlu0 %8167, %v139
        %v8169 = vpop.permute.xlu0 %8168
        %8171 = vset.pattern.permute.xlu0 100
        %8172 = vperm.xlu0 %8171, %v140
        %v8173 = vpop.permute.xlu0 %8172
        %8175 = vset.pattern.permute.xlu0 100
        %8176 = vperm.xlu0 %8175, %v141
        %v8177 = vpop.permute.xlu0 %8176
        %8179 = vset.pattern.permute.xlu0 100
        %8180 = vperm.xlu0 %8179, %v142
        %v8181 = vpop.permute.xlu0 %8180
        %8183 = vset.pattern.permute.xlu0 100
        %8184 = vperm.xlu0 %8183, %v143
        %v8185 = vpop.permute.xlu0 %8184
        %8187 = vset.pattern.permute.xlu0 100
        %8188 = vperm.xlu0 %8187, %v144
        %v8189 = vpop.permute.xlu0 %8188
        %v8191 = vsub.f32 %v8161, %v149
        %v8192 = vsub.f32 %v8165, %v149
        %v8193 = vsub.f32 %v8169, %v149
        %v8194 = vsub.f32 %v8173, %v149
        %v8195 = vsub.f32 %v8177, %v149
        %v8196 = vsub.f32 %v8181, %v149
        %v8197 = vsub.f32 %v8185, %v149
        %v8198 = vsub.f32 %v8189, %v149
        %8199 = vset.pattern.permute.xlu0 101
        %8200 = vperm.xlu0 %8199, %v137
        %v8201 = vpop.permute.xlu0 %8200
        %8203 = vset.pattern.permute.xlu0 101
        %8204 = vperm.xlu0 %8203, %v138
        %v8205 = vpop.permute.xlu0 %8204
        %8207 = vset.pattern.permute.xlu0 101
        %8208 = vperm.xlu0 %8207, %v139
        %v8209 = vpop.permute.xlu0 %8208
        %8211 = vset.pattern.permute.xlu0 101
        %8212 = vperm.xlu0 %8211, %v140
        %v8213 = vpop.permute.xlu0 %8212
        %8215 = vset.pattern.permute.xlu0 101
        %8216 = vperm.xlu0 %8215, %v141
        %v8217 = vpop.permute.xlu0 %8216
        %8219 = vset.pattern.permute.xlu0 101
        %8220 = vperm.xlu0 %8219, %v142
        %v8221 = vpop.permute.xlu0 %8220
        %8223 = vset.pattern.permute.xlu0 101
        %8224 = vperm.xlu0 %8223, %v143
        %v8225 = vpop.permute.xlu0 %8224
        %8227 = vset.pattern.permute.xlu0 101
        %8228 = vperm.xlu0 %8227, %v144
        %v8229 = vpop.permute.xlu0 %8228
        %v8231 = vsub.f32 %v8201, %v149
        %v8232 = vsub.f32 %v8205, %v149
        %v8233 = vsub.f32 %v8209, %v149
        %v8234 = vsub.f32 %v8213, %v149
        %v8235 = vsub.f32 %v8217, %v149
        %v8236 = vsub.f32 %v8221, %v149
        %v8237 = vsub.f32 %v8225, %v149
        %v8238 = vsub.f32 %v8229, %v149
        %8247 = vrot.lane.b32.xlu0 %v8231, 64
        %v8248 = vpop.permute.xlu0 %8247
        %8249 = vrot.lane.b32.xlu0 %v8232, 64
        %v8250 = vpop.permute.xlu0 %8249
        %8251 = vrot.lane.b32.xlu0 %v8233, 64
        %v8252 = vpop.permute.xlu0 %8251
        %8253 = vrot.lane.b32.xlu0 %v8234, 64
        %v8254 = vpop.permute.xlu0 %8253
        %8255 = vrot.lane.b32.xlu0 %v8235, 64
        %v8256 = vpop.permute.xlu0 %8255
        %8257 = vrot.lane.b32.xlu0 %v8236, 64
        %v8258 = vpop.permute.xlu0 %8257
        %8259 = vrot.lane.b32.xlu0 %v8237, 64
        %v8260 = vpop.permute.xlu0 %8259
        %8261 = vrot.lane.b32.xlu0 %v8238, 64
        %v8262 = vpop.permute.xlu0 %8261
        %v8271 = vsel %vm270, %v8191, %v8248
        %v8272 = vsel %vm270, %v8192, %v8250
        %v8273 = vsel %vm270, %v8193, %v8252
        %v8274 = vsel %vm270, %v8194, %v8254
        %v8275 = vsel %vm270, %v8195, %v8256
        %v8276 = vsel %vm270, %v8196, %v8258
        %v8277 = vsel %vm270, %v8197, %v8260
        %v8278 = vsel %vm270, %v8198, %v8262
        %v8279 = vmul.f32 %v8271, -12.6
        %v8280 = vmul.f32 %v8272, -12.6
        %v8281 = vmul.f32 %v8273, -12.6
        %v8282 = vmul.f32 %v8274, -12.6
        %v8283 = vmul.f32 %v8275, -12.6
        %v8284 = vmul.f32 %v8276, -12.6
        %v8285 = vmul.f32 %v8277, -12.6
        %v8286 = vmul.f32 %v8278, -12.6
        %v8287 = vmul.f32 %v8279, %v8271
        %v8288 = vmul.f32 %v8280, %v8272
        %v8289 = vmul.f32 %v8281, %v8273
        %v8290 = vmul.f32 %v8282, %v8274
        %v8291 = vmul.f32 %v8283, %v8275
        %v8292 = vmul.f32 %v8284, %v8276
        %v8293 = vmul.f32 %v8285, %v8277
        %v8294 = vmul.f32 %v8286, %v8278
        %v8295 = vmul.f32 %v8287, 1.442695
        %v8296 = vpow.pop %v8295
        %v8297 = vmul.f32 %v8288, 1.442695
        %v8298 = vpow.pop %v8297
        %v8299 = vmul.f32 %v8289, 1.442695
        %v8300 = vpow.pop %v8299
        %v8301 = vmul.f32 %v8290, 1.442695
        %v8302 = vpow.pop %v8301
        %v8303 = vmul.f32 %v8291, 1.442695
        %v8304 = vpow.pop %v8303
        %v8305 = vmul.f32 %v8292, 1.442695
        %v8306 = vpow.pop %v8305
        %v8307 = vmul.f32 %v8293, 1.442695
        %v8308 = vpow.pop %v8307
        %v8309 = vmul.f32 %v8294, 1.442695
        %v8310 = vpow.pop %v8309
        %8311 = vst [vmem:[%s134 + $0x190] sm:$0xff] %v8296
        %8312 = vst [vmem:[%s134 + $0x390] sm:$0xff] %v8298
        %8313 = vst [vmem:[%s134 + $0x590] sm:$0xff] %v8300
        %8314 = vst [vmem:[%s134 + $0x790] sm:$0xff] %v8302
        %8315 = vst [vmem:[%s134 + $0x990] sm:$0xff] %v8304
        %8316 = vst [vmem:[%s134 + $0xb90] sm:$0xff] %v8306
        %8317 = vst [vmem:[%s134 + $0xd90] sm:$0xff] %v8308
        %8318 = vst [vmem:[%s134 + $0xf90] sm:$0xff] %v8310
        %8319 = vset.pattern.permute.xlu0 102
        %8320 = vperm.xlu0 %8319, %v137
        %v8321 = vpop.permute.xlu0 %8320
        %8323 = vset.pattern.permute.xlu0 102
        %8324 = vperm.xlu0 %8323, %v138
        %v8325 = vpop.permute.xlu0 %8324
        %8327 = vset.pattern.permute.xlu0 102
        %8328 = vperm.xlu0 %8327, %v139
        %v8329 = vpop.permute.xlu0 %8328
        %8331 = vset.pattern.permute.xlu0 102
        %8332 = vperm.xlu0 %8331, %v140
        %v8333 = vpop.permute.xlu0 %8332
        %8335 = vset.pattern.permute.xlu0 102
        %8336 = vperm.xlu0 %8335, %v141
        %v8337 = vpop.permute.xlu0 %8336
        %8339 = vset.pattern.permute.xlu0 102
        %8340 = vperm.xlu0 %8339, %v142
        %v8341 = vpop.permute.xlu0 %8340
        %8343 = vset.pattern.permute.xlu0 102
        %8344 = vperm.xlu0 %8343, %v143
        %v8345 = vpop.permute.xlu0 %8344
        %8347 = vset.pattern.permute.xlu0 102
        %8348 = vperm.xlu0 %8347, %v144
        %v8349 = vpop.permute.xlu0 %8348
        %v8351 = vsub.f32 %v8321, %v149
        %v8352 = vsub.f32 %v8325, %v149
        %v8353 = vsub.f32 %v8329, %v149
        %v8354 = vsub.f32 %v8333, %v149
        %v8355 = vsub.f32 %v8337, %v149
        %v8356 = vsub.f32 %v8341, %v149
        %v8357 = vsub.f32 %v8345, %v149
        %v8358 = vsub.f32 %v8349, %v149
        %8359 = vset.pattern.permute.xlu0 103
        %8360 = vperm.xlu0 %8359, %v137
        %v8361 = vpop.permute.xlu0 %8360
        %8363 = vset.pattern.permute.xlu0 103
        %8364 = vperm.xlu0 %8363, %v138
        %v8365 = vpop.permute.xlu0 %8364
        %8367 = vset.pattern.permute.xlu0 103
        %8368 = vperm.xlu0 %8367, %v139
        %v8369 = vpop.permute.xlu0 %8368
        %8371 = vset.pattern.permute.xlu0 103
        %8372 = vperm.xlu0 %8371, %v140
        %v8373 = vpop.permute.xlu0 %8372
        %8375 = vset.pattern.permute.xlu0 103
        %8376 = vperm.xlu0 %8375, %v141
        %v8377 = vpop.permute.xlu0 %8376
        %8379 = vset.pattern.permute.xlu0 103
        %8380 = vperm.xlu0 %8379, %v142
        %v8381 = vpop.permute.xlu0 %8380
        %8383 = vset.pattern.permute.xlu0 103
        %8384 = vperm.xlu0 %8383, %v143
        %v8385 = vpop.permute.xlu0 %8384
        %8387 = vset.pattern.permute.xlu0 103
        %8388 = vperm.xlu0 %8387, %v144
        %v8389 = vpop.permute.xlu0 %8388
        %v8391 = vsub.f32 %v8361, %v149
        %v8392 = vsub.f32 %v8365, %v149
        %v8393 = vsub.f32 %v8369, %v149
        %v8394 = vsub.f32 %v8373, %v149
        %v8395 = vsub.f32 %v8377, %v149
        %v8396 = vsub.f32 %v8381, %v149
        %v8397 = vsub.f32 %v8385, %v149
        %v8398 = vsub.f32 %v8389, %v149
        %8407 = vrot.lane.b32.xlu0 %v8391, 64
        %v8408 = vpop.permute.xlu0 %8407
        %8409 = vrot.lane.b32.xlu0 %v8392, 64
        %v8410 = vpop.permute.xlu0 %8409
        %8411 = vrot.lane.b32.xlu0 %v8393, 64
        %v8412 = vpop.permute.xlu0 %8411
        %8413 = vrot.lane.b32.xlu0 %v8394, 64
        %v8414 = vpop.permute.xlu0 %8413
        %8415 = vrot.lane.b32.xlu0 %v8395, 64
        %v8416 = vpop.permute.xlu0 %8415
        %8417 = vrot.lane.b32.xlu0 %v8396, 64
        %v8418 = vpop.permute.xlu0 %8417
        %8419 = vrot.lane.b32.xlu0 %v8397, 64
        %v8420 = vpop.permute.xlu0 %8419
        %8421 = vrot.lane.b32.xlu0 %v8398, 64
        %v8422 = vpop.permute.xlu0 %8421
        %v8431 = vsel %vm270, %v8351, %v8408
        %v8432 = vsel %vm270, %v8352, %v8410
        %v8433 = vsel %vm270, %v8353, %v8412
        %v8434 = vsel %vm270, %v8354, %v8414
        %v8435 = vsel %vm270, %v8355, %v8416
        %v8436 = vsel %vm270, %v8356, %v8418
        %v8437 = vsel %vm270, %v8357, %v8420
        %v8438 = vsel %vm270, %v8358, %v8422
        %v8439 = vmul.f32 %v8431, -12.6
        %v8440 = vmul.f32 %v8432, -12.6
        %v8441 = vmul.f32 %v8433, -12.6
        %v8442 = vmul.f32 %v8434, -12.6
        %v8443 = vmul.f32 %v8435, -12.6
        %v8444 = vmul.f32 %v8436, -12.6
        %v8445 = vmul.f32 %v8437, -12.6
        %v8446 = vmul.f32 %v8438, -12.6
        %v8447 = vmul.f32 %v8439, %v8431
        %v8448 = vmul.f32 %v8440, %v8432
        %v8449 = vmul.f32 %v8441, %v8433
        %v8450 = vmul.f32 %v8442, %v8434
        %v8451 = vmul.f32 %v8443, %v8435
        %v8452 = vmul.f32 %v8444, %v8436
        %v8453 = vmul.f32 %v8445, %v8437
        %v8454 = vmul.f32 %v8446, %v8438
        %v8455 = vmul.f32 %v8447, 1.442695
        %v8456 = vpow.pop %v8455
        %v8457 = vmul.f32 %v8448, 1.442695
        %v8458 = vpow.pop %v8457
        %v8459 = vmul.f32 %v8449, 1.442695
        %v8460 = vpow.pop %v8459
        %v8461 = vmul.f32 %v8450, 1.442695
        %v8462 = vpow.pop %v8461
        %v8463 = vmul.f32 %v8451, 1.442695
        %v8464 = vpow.pop %v8463
        %v8465 = vmul.f32 %v8452, 1.442695
        %v8466 = vpow.pop %v8465
        %v8467 = vmul.f32 %v8453, 1.442695
        %v8468 = vpow.pop %v8467
        %v8469 = vmul.f32 %v8454, 1.442695
        %v8470 = vpow.pop %v8469
        %8471 = vst [vmem:[%s134 + $0x198] sm:$0xff] %v8456
        %8472 = vst [vmem:[%s134 + $0x398] sm:$0xff] %v8458
        %8473 = vst [vmem:[%s134 + $0x598] sm:$0xff] %v8460
        %8474 = vst [vmem:[%s134 + $0x798] sm:$0xff] %v8462
        %8475 = vst [vmem:[%s134 + $0x998] sm:$0xff] %v8464
        %8476 = vst [vmem:[%s134 + $0xb98] sm:$0xff] %v8466
        %8477 = vst [vmem:[%s134 + $0xd98] sm:$0xff] %v8468
        %8478 = vst [vmem:[%s134 + $0xf98] sm:$0xff] %v8470
        %8479 = vset.pattern.permute.xlu0 104
        %8480 = vperm.xlu0 %8479, %v137
        %v8481 = vpop.permute.xlu0 %8480
        %8483 = vset.pattern.permute.xlu0 104
        %8484 = vperm.xlu0 %8483, %v138
        %v8485 = vpop.permute.xlu0 %8484
        %8487 = vset.pattern.permute.xlu0 104
        %8488 = vperm.xlu0 %8487, %v139
        %v8489 = vpop.permute.xlu0 %8488
        %8491 = vset.pattern.permute.xlu0 104
        %8492 = vperm.xlu0 %8491, %v140
        %v8493 = vpop.permute.xlu0 %8492
        %8495 = vset.pattern.permute.xlu0 104
        %8496 = vperm.xlu0 %8495, %v141
        %v8497 = vpop.permute.xlu0 %8496
        %8499 = vset.pattern.permute.xlu0 104
        %8500 = vperm.xlu0 %8499, %v142
        %v8501 = vpop.permute.xlu0 %8500
        %8503 = vset.pattern.permute.xlu0 104
        %8504 = vperm.xlu0 %8503, %v143
        %v8505 = vpop.permute.xlu0 %8504
        %8507 = vset.pattern.permute.xlu0 104
        %8508 = vperm.xlu0 %8507, %v144
        %v8509 = vpop.permute.xlu0 %8508
        %v8511 = vsub.f32 %v8481, %v149
        %v8512 = vsub.f32 %v8485, %v149
        %v8513 = vsub.f32 %v8489, %v149
        %v8514 = vsub.f32 %v8493, %v149
        %v8515 = vsub.f32 %v8497, %v149
        %v8516 = vsub.f32 %v8501, %v149
        %v8517 = vsub.f32 %v8505, %v149
        %v8518 = vsub.f32 %v8509, %v149
        %8519 = vset.pattern.permute.xlu0 105
        %8520 = vperm.xlu0 %8519, %v137
        %v8521 = vpop.permute.xlu0 %8520
        %8523 = vset.pattern.permute.xlu0 105
        %8524 = vperm.xlu0 %8523, %v138
        %v8525 = vpop.permute.xlu0 %8524
        %8527 = vset.pattern.permute.xlu0 105
        %8528 = vperm.xlu0 %8527, %v139
        %v8529 = vpop.permute.xlu0 %8528
        %8531 = vset.pattern.permute.xlu0 105
        %8532 = vperm.xlu0 %8531, %v140
        %v8533 = vpop.permute.xlu0 %8532
        %8535 = vset.pattern.permute.xlu0 105
        %8536 = vperm.xlu0 %8535, %v141
        %v8537 = vpop.permute.xlu0 %8536
        %8539 = vset.pattern.permute.xlu0 105
        %8540 = vperm.xlu0 %8539, %v142
        %v8541 = vpop.permute.xlu0 %8540
        %8543 = vset.pattern.permute.xlu0 105
        %8544 = vperm.xlu0 %8543, %v143
        %v8545 = vpop.permute.xlu0 %8544
        %8547 = vset.pattern.permute.xlu0 105
        %8548 = vperm.xlu0 %8547, %v144
        %v8549 = vpop.permute.xlu0 %8548
        %v8551 = vsub.f32 %v8521, %v149
        %v8552 = vsub.f32 %v8525, %v149
        %v8553 = vsub.f32 %v8529, %v149
        %v8554 = vsub.f32 %v8533, %v149
        %v8555 = vsub.f32 %v8537, %v149
        %v8556 = vsub.f32 %v8541, %v149
        %v8557 = vsub.f32 %v8545, %v149
        %v8558 = vsub.f32 %v8549, %v149
        %8567 = vrot.lane.b32.xlu0 %v8551, 64
        %v8568 = vpop.permute.xlu0 %8567
        %8569 = vrot.lane.b32.xlu0 %v8552, 64
        %v8570 = vpop.permute.xlu0 %8569
        %8571 = vrot.lane.b32.xlu0 %v8553, 64
        %v8572 = vpop.permute.xlu0 %8571
        %8573 = vrot.lane.b32.xlu0 %v8554, 64
        %v8574 = vpop.permute.xlu0 %8573
        %8575 = vrot.lane.b32.xlu0 %v8555, 64
        %v8576 = vpop.permute.xlu0 %8575
        %8577 = vrot.lane.b32.xlu0 %v8556, 64
        %v8578 = vpop.permute.xlu0 %8577
        %8579 = vrot.lane.b32.xlu0 %v8557, 64
        %v8580 = vpop.permute.xlu0 %8579
        %8581 = vrot.lane.b32.xlu0 %v8558, 64
        %v8582 = vpop.permute.xlu0 %8581
        %v8591 = vsel %vm270, %v8511, %v8568
        %v8592 = vsel %vm270, %v8512, %v8570
        %v8593 = vsel %vm270, %v8513, %v8572
        %v8594 = vsel %vm270, %v8514, %v8574
        %v8595 = vsel %vm270, %v8515, %v8576
        %v8596 = vsel %vm270, %v8516, %v8578
        %v8597 = vsel %vm270, %v8517, %v8580
        %v8598 = vsel %vm270, %v8518, %v8582
        %v8599 = vmul.f32 %v8591, -12.6
        %v8600 = vmul.f32 %v8592, -12.6
        %v8601 = vmul.f32 %v8593, -12.6
        %v8602 = vmul.f32 %v8594, -12.6
        %v8603 = vmul.f32 %v8595, -12.6
        %v8604 = vmul.f32 %v8596, -12.6
        %v8605 = vmul.f32 %v8597, -12.6
        %v8606 = vmul.f32 %v8598, -12.6
        %v8607 = vmul.f32 %v8599, %v8591
        %v8608 = vmul.f32 %v8600, %v8592
        %v8609 = vmul.f32 %v8601, %v8593
        %v8610 = vmul.f32 %v8602, %v8594
        %v8611 = vmul.f32 %v8603, %v8595
        %v8612 = vmul.f32 %v8604, %v8596
        %v8613 = vmul.f32 %v8605, %v8597
        %v8614 = vmul.f32 %v8606, %v8598
        %v8615 = vmul.f32 %v8607, 1.442695
        %v8616 = vpow.pop %v8615
        %v8617 = vmul.f32 %v8608, 1.442695
        %v8618 = vpow.pop %v8617
        %v8619 = vmul.f32 %v8609, 1.442695
        %v8620 = vpow.pop %v8619
        %v8621 = vmul.f32 %v8610, 1.442695
        %v8622 = vpow.pop %v8621
        %v8623 = vmul.f32 %v8611, 1.442695
        %v8624 = vpow.pop %v8623
        %v8625 = vmul.f32 %v8612, 1.442695
        %v8626 = vpow.pop %v8625
        %v8627 = vmul.f32 %v8613, 1.442695
        %v8628 = vpow.pop %v8627
        %v8629 = vmul.f32 %v8614, 1.442695
        %v8630 = vpow.pop %v8629
        %8631 = vst [vmem:[%s134 + $0x1a0] sm:$0xff] %v8616
        %8632 = vst [vmem:[%s134 + $0x3a0] sm:$0xff] %v8618
        %8633 = vst [vmem:[%s134 + $0x5a0] sm:$0xff] %v8620
        %8634 = vst [vmem:[%s134 + $0x7a0] sm:$0xff] %v8622
        %8635 = vst [vmem:[%s134 + $0x9a0] sm:$0xff] %v8624
        %8636 = vst [vmem:[%s134 + $0xba0] sm:$0xff] %v8626
        %8637 = vst [vmem:[%s134 + $0xda0] sm:$0xff] %v8628
        %8638 = vst [vmem:[%s134 + $0xfa0] sm:$0xff] %v8630
        %8639 = vset.pattern.permute.xlu0 106
        %8640 = vperm.xlu0 %8639, %v137
        %v8641 = vpop.permute.xlu0 %8640
        %8643 = vset.pattern.permute.xlu0 106
        %8644 = vperm.xlu0 %8643, %v138
        %v8645 = vpop.permute.xlu0 %8644
        %8647 = vset.pattern.permute.xlu0 106
        %8648 = vperm.xlu0 %8647, %v139
        %v8649 = vpop.permute.xlu0 %8648
        %8651 = vset.pattern.permute.xlu0 106
        %8652 = vperm.xlu0 %8651, %v140
        %v8653 = vpop.permute.xlu0 %8652
        %8655 = vset.pattern.permute.xlu0 106
        %8656 = vperm.xlu0 %8655, %v141
        %v8657 = vpop.permute.xlu0 %8656
        %8659 = vset.pattern.permute.xlu0 106
        %8660 = vperm.xlu0 %8659, %v142
        %v8661 = vpop.permute.xlu0 %8660
        %8663 = vset.pattern.permute.xlu0 106
        %8664 = vperm.xlu0 %8663, %v143
        %v8665 = vpop.permute.xlu0 %8664
        %8667 = vset.pattern.permute.xlu0 106
        %8668 = vperm.xlu0 %8667, %v144
        %v8669 = vpop.permute.xlu0 %8668
        %v8671 = vsub.f32 %v8641, %v149
        %v8672 = vsub.f32 %v8645, %v149
        %v8673 = vsub.f32 %v8649, %v149
        %v8674 = vsub.f32 %v8653, %v149
        %v8675 = vsub.f32 %v8657, %v149
        %v8676 = vsub.f32 %v8661, %v149
        %v8677 = vsub.f32 %v8665, %v149
        %v8678 = vsub.f32 %v8669, %v149
        %8679 = vset.pattern.permute.xlu0 107
        %8680 = vperm.xlu0 %8679, %v137
        %v8681 = vpop.permute.xlu0 %8680
        %8683 = vset.pattern.permute.xlu0 107
        %8684 = vperm.xlu0 %8683, %v138
        %v8685 = vpop.permute.xlu0 %8684
        %8687 = vset.pattern.permute.xlu0 107
        %8688 = vperm.xlu0 %8687, %v139
        %v8689 = vpop.permute.xlu0 %8688
        %8691 = vset.pattern.permute.xlu0 107
        %8692 = vperm.xlu0 %8691, %v140
        %v8693 = vpop.permute.xlu0 %8692
        %8695 = vset.pattern.permute.xlu0 107
        %8696 = vperm.xlu0 %8695, %v141
        %v8697 = vpop.permute.xlu0 %8696
        %8699 = vset.pattern.permute.xlu0 107
        %8700 = vperm.xlu0 %8699, %v142
        %v8701 = vpop.permute.xlu0 %8700
        %8703 = vset.pattern.permute.xlu0 107
        %8704 = vperm.xlu0 %8703, %v143
        %v8705 = vpop.permute.xlu0 %8704
        %8707 = vset.pattern.permute.xlu0 107
        %8708 = vperm.xlu0 %8707, %v144
        %v8709 = vpop.permute.xlu0 %8708
        %v8711 = vsub.f32 %v8681, %v149
        %v8712 = vsub.f32 %v8685, %v149
        %v8713 = vsub.f32 %v8689, %v149
        %v8714 = vsub.f32 %v8693, %v149
        %v8715 = vsub.f32 %v8697, %v149
        %v8716 = vsub.f32 %v8701, %v149
        %v8717 = vsub.f32 %v8705, %v149
        %v8718 = vsub.f32 %v8709, %v149
        %8727 = vrot.lane.b32.xlu0 %v8711, 64
        %v8728 = vpop.permute.xlu0 %8727
        %8729 = vrot.lane.b32.xlu0 %v8712, 64
        %v8730 = vpop.permute.xlu0 %8729
        %8731 = vrot.lane.b32.xlu0 %v8713, 64
        %v8732 = vpop.permute.xlu0 %8731
        %8733 = vrot.lane.b32.xlu0 %v8714, 64
        %v8734 = vpop.permute.xlu0 %8733
        %8735 = vrot.lane.b32.xlu0 %v8715, 64
        %v8736 = vpop.permute.xlu0 %8735
        %8737 = vrot.lane.b32.xlu0 %v8716, 64
        %v8738 = vpop.permute.xlu0 %8737
        %8739 = vrot.lane.b32.xlu0 %v8717, 64
        %v8740 = vpop.permute.xlu0 %8739
        %8741 = vrot.lane.b32.xlu0 %v8718, 64
        %v8742 = vpop.permute.xlu0 %8741
        %v8751 = vsel %vm270, %v8671, %v8728
        %v8752 = vsel %vm270, %v8672, %v8730
        %v8753 = vsel %vm270, %v8673, %v8732
        %v8754 = vsel %vm270, %v8674, %v8734
        %v8755 = vsel %vm270, %v8675, %v8736
        %v8756 = vsel %vm270, %v8676, %v8738
        %v8757 = vsel %vm270, %v8677, %v8740
        %v8758 = vsel %vm270, %v8678, %v8742
        %v8759 = vmul.f32 %v8751, -12.6
        %v8760 = vmul.f32 %v8752, -12.6
        %v8761 = vmul.f32 %v8753, -12.6
        %v8762 = vmul.f32 %v8754, -12.6
        %v8763 = vmul.f32 %v8755, -12.6
        %v8764 = vmul.f32 %v8756, -12.6
        %v8765 = vmul.f32 %v8757, -12.6
        %v8766 = vmul.f32 %v8758, -12.6
        %v8767 = vmul.f32 %v8759, %v8751
        %v8768 = vmul.f32 %v8760, %v8752
        %v8769 = vmul.f32 %v8761, %v8753
        %v8770 = vmul.f32 %v8762, %v8754
        %v8771 = vmul.f32 %v8763, %v8755
        %v8772 = vmul.f32 %v8764, %v8756
        %v8773 = vmul.f32 %v8765, %v8757
        %v8774 = vmul.f32 %v8766, %v8758
        %v8775 = vmul.f32 %v8767, 1.442695
        %v8776 = vpow.pop %v8775
        %v8777 = vmul.f32 %v8768, 1.442695
        %v8778 = vpow.pop %v8777
        %v8779 = vmul.f32 %v8769, 1.442695
        %v8780 = vpow.pop %v8779
        %v8781 = vmul.f32 %v8770, 1.442695
        %v8782 = vpow.pop %v8781
        %v8783 = vmul.f32 %v8771, 1.442695
        %v8784 = vpow.pop %v8783
        %v8785 = vmul.f32 %v8772, 1.442695
        %v8786 = vpow.pop %v8785
        %v8787 = vmul.f32 %v8773, 1.442695
        %v8788 = vpow.pop %v8787
        %v8789 = vmul.f32 %v8774, 1.442695
        %v8790 = vpow.pop %v8789
        %8791 = vst [vmem:[%s134 + $0x1a8] sm:$0xff] %v8776
        %8792 = vst [vmem:[%s134 + $0x3a8] sm:$0xff] %v8778
        %8793 = vst [vmem:[%s134 + $0x5a8] sm:$0xff] %v8780
        %8794 = vst [vmem:[%s134 + $0x7a8] sm:$0xff] %v8782
        %8795 = vst [vmem:[%s134 + $0x9a8] sm:$0xff] %v8784
        %8796 = vst [vmem:[%s134 + $0xba8] sm:$0xff] %v8786
        %8797 = vst [vmem:[%s134 + $0xda8] sm:$0xff] %v8788
        %8798 = vst [vmem:[%s134 + $0xfa8] sm:$0xff] %v8790
        %8799 = vset.pattern.permute.xlu0 108
        %8800 = vperm.xlu0 %8799, %v137
        %v8801 = vpop.permute.xlu0 %8800
        %8803 = vset.pattern.permute.xlu0 108
        %8804 = vperm.xlu0 %8803, %v138
        %v8805 = vpop.permute.xlu0 %8804
        %8807 = vset.pattern.permute.xlu0 108
        %8808 = vperm.xlu0 %8807, %v139
        %v8809 = vpop.permute.xlu0 %8808
        %8811 = vset.pattern.permute.xlu0 108
        %8812 = vperm.xlu0 %8811, %v140
        %v8813 = vpop.permute.xlu0 %8812
        %8815 = vset.pattern.permute.xlu0 108
        %8816 = vperm.xlu0 %8815, %v141
        %v8817 = vpop.permute.xlu0 %8816
        %8819 = vset.pattern.permute.xlu0 108
        %8820 = vperm.xlu0 %8819, %v142
        %v8821 = vpop.permute.xlu0 %8820
        %8823 = vset.pattern.permute.xlu0 108
        %8824 = vperm.xlu0 %8823, %v143
        %v8825 = vpop.permute.xlu0 %8824
        %8827 = vset.pattern.permute.xlu0 108
        %8828 = vperm.xlu0 %8827, %v144
        %v8829 = vpop.permute.xlu0 %8828
        %v8831 = vsub.f32 %v8801, %v149
        %v8832 = vsub.f32 %v8805, %v149
        %v8833 = vsub.f32 %v8809, %v149
        %v8834 = vsub.f32 %v8813, %v149
        %v8835 = vsub.f32 %v8817, %v149
        %v8836 = vsub.f32 %v8821, %v149
        %v8837 = vsub.f32 %v8825, %v149
        %v8838 = vsub.f32 %v8829, %v149
        %8839 = vset.pattern.permute.xlu0 109
        %8840 = vperm.xlu0 %8839, %v137
        %v8841 = vpop.permute.xlu0 %8840
        %8843 = vset.pattern.permute.xlu0 109
        %8844 = vperm.xlu0 %8843, %v138
        %v8845 = vpop.permute.xlu0 %8844
        %8847 = vset.pattern.permute.xlu0 109
        %8848 = vperm.xlu0 %8847, %v139
        %v8849 = vpop.permute.xlu0 %8848
        %8851 = vset.pattern.permute.xlu0 109
        %8852 = vperm.xlu0 %8851, %v140
        %v8853 = vpop.permute.xlu0 %8852
        %8855 = vset.pattern.permute.xlu0 109
        %8856 = vperm.xlu0 %8855, %v141
        %v8857 = vpop.permute.xlu0 %8856
        %8859 = vset.pattern.permute.xlu0 109
        %8860 = vperm.xlu0 %8859, %v142
        %v8861 = vpop.permute.xlu0 %8860
        %8863 = vset.pattern.permute.xlu0 109
        %8864 = vperm.xlu0 %8863, %v143
        %v8865 = vpop.permute.xlu0 %8864
        %8867 = vset.pattern.permute.xlu0 109
        %8868 = vperm.xlu0 %8867, %v144
        %v8869 = vpop.permute.xlu0 %8868
        %v8871 = vsub.f32 %v8841, %v149
        %v8872 = vsub.f32 %v8845, %v149
        %v8873 = vsub.f32 %v8849, %v149
        %v8874 = vsub.f32 %v8853, %v149
        %v8875 = vsub.f32 %v8857, %v149
        %v8876 = vsub.f32 %v8861, %v149
        %v8877 = vsub.f32 %v8865, %v149
        %v8878 = vsub.f32 %v8869, %v149
        %8887 = vrot.lane.b32.xlu0 %v8871, 64
        %v8888 = vpop.permute.xlu0 %8887
        %8889 = vrot.lane.b32.xlu0 %v8872, 64
        %v8890 = vpop.permute.xlu0 %8889
        %8891 = vrot.lane.b32.xlu0 %v8873, 64
        %v8892 = vpop.permute.xlu0 %8891
        %8893 = vrot.lane.b32.xlu0 %v8874, 64
        %v8894 = vpop.permute.xlu0 %8893
        %8895 = vrot.lane.b32.xlu0 %v8875, 64
        %v8896 = vpop.permute.xlu0 %8895
        %8897 = vrot.lane.b32.xlu0 %v8876, 64
        %v8898 = vpop.permute.xlu0 %8897
        %8899 = vrot.lane.b32.xlu0 %v8877, 64
        %v8900 = vpop.permute.xlu0 %8899
        %8901 = vrot.lane.b32.xlu0 %v8878, 64
        %v8902 = vpop.permute.xlu0 %8901
        %v8911 = vsel %vm270, %v8831, %v8888
        %v8912 = vsel %vm270, %v8832, %v8890
        %v8913 = vsel %vm270, %v8833, %v8892
        %v8914 = vsel %vm270, %v8834, %v8894
        %v8915 = vsel %vm270, %v8835, %v8896
        %v8916 = vsel %vm270, %v8836, %v8898
        %v8917 = vsel %vm270, %v8837, %v8900
        %v8918 = vsel %vm270, %v8838, %v8902
        %v8919 = vmul.f32 %v8911, -12.6
        %v8920 = vmul.f32 %v8912, -12.6
        %v8921 = vmul.f32 %v8913, -12.6
        %v8922 = vmul.f32 %v8914, -12.6
        %v8923 = vmul.f32 %v8915, -12.6
        %v8924 = vmul.f32 %v8916, -12.6
        %v8925 = vmul.f32 %v8917, -12.6
        %v8926 = vmul.f32 %v8918, -12.6
        %v8927 = vmul.f32 %v8919, %v8911
        %v8928 = vmul.f32 %v8920, %v8912
        %v8929 = vmul.f32 %v8921, %v8913
        %v8930 = vmul.f32 %v8922, %v8914
        %v8931 = vmul.f32 %v8923, %v8915
        %v8932 = vmul.f32 %v8924, %v8916
        %v8933 = vmul.f32 %v8925, %v8917
        %v8934 = vmul.f32 %v8926, %v8918
        %v8935 = vmul.f32 %v8927, 1.442695
        %v8936 = vpow.pop %v8935
        %v8937 = vmul.f32 %v8928, 1.442695
        %v8938 = vpow.pop %v8937
        %v8939 = vmul.f32 %v8929, 1.442695
        %v8940 = vpow.pop %v8939
        %v8941 = vmul.f32 %v8930, 1.442695
        %v8942 = vpow.pop %v8941
        %v8943 = vmul.f32 %v8931, 1.442695
        %v8944 = vpow.pop %v8943
        %v8945 = vmul.f32 %v8932, 1.442695
        %v8946 = vpow.pop %v8945
        %v8947 = vmul.f32 %v8933, 1.442695
        %v8948 = vpow.pop %v8947
        %v8949 = vmul.f32 %v8934, 1.442695
        %v8950 = vpow.pop %v8949
        %8951 = vst [vmem:[%s134 + $0x1b0] sm:$0xff] %v8936
        %8952 = vst [vmem:[%s134 + $0x3b0] sm:$0xff] %v8938
        %8953 = vst [vmem:[%s134 + $0x5b0] sm:$0xff] %v8940
        %8954 = vst [vmem:[%s134 + $0x7b0] sm:$0xff] %v8942
        %8955 = vst [vmem:[%s134 + $0x9b0] sm:$0xff] %v8944
        %8956 = vst [vmem:[%s134 + $0xbb0] sm:$0xff] %v8946
        %8957 = vst [vmem:[%s134 + $0xdb0] sm:$0xff] %v8948
        %8958 = vst [vmem:[%s134 + $0xfb0] sm:$0xff] %v8950
        %8959 = vset.pattern.permute.xlu0 110
        %8960 = vperm.xlu0 %8959, %v137
        %v8961 = vpop.permute.xlu0 %8960
        %8963 = vset.pattern.permute.xlu0 110
        %8964 = vperm.xlu0 %8963, %v138
        %v8965 = vpop.permute.xlu0 %8964
        %8967 = vset.pattern.permute.xlu0 110
        %8968 = vperm.xlu0 %8967, %v139
        %v8969 = vpop.permute.xlu0 %8968
        %8971 = vset.pattern.permute.xlu0 110
        %8972 = vperm.xlu0 %8971, %v140
        %v8973 = vpop.permute.xlu0 %8972
        %8975 = vset.pattern.permute.xlu0 110
        %8976 = vperm.xlu0 %8975, %v141
        %v8977 = vpop.permute.xlu0 %8976
        %8979 = vset.pattern.permute.xlu0 110
        %8980 = vperm.xlu0 %8979, %v142
        %v8981 = vpop.permute.xlu0 %8980
        %8983 = vset.pattern.permute.xlu0 110
        %8984 = vperm.xlu0 %8983, %v143
        %v8985 = vpop.permute.xlu0 %8984
        %8987 = vset.pattern.permute.xlu0 110
        %8988 = vperm.xlu0 %8987, %v144
        %v8989 = vpop.permute.xlu0 %8988
        %v8991 = vsub.f32 %v8961, %v149
        %v8992 = vsub.f32 %v8965, %v149
        %v8993 = vsub.f32 %v8969, %v149
        %v8994 = vsub.f32 %v8973, %v149
        %v8995 = vsub.f32 %v8977, %v149
        %v8996 = vsub.f32 %v8981, %v149
        %v8997 = vsub.f32 %v8985, %v149
        %v8998 = vsub.f32 %v8989, %v149
        %8999 = vset.pattern.permute.xlu0 111
        %9000 = vperm.xlu0 %8999, %v137
        %v9001 = vpop.permute.xlu0 %9000
        %9003 = vset.pattern.permute.xlu0 111
        %9004 = vperm.xlu0 %9003, %v138
        %v9005 = vpop.permute.xlu0 %9004
        %9007 = vset.pattern.permute.xlu0 111
        %9008 = vperm.xlu0 %9007, %v139
        %v9009 = vpop.permute.xlu0 %9008
        %9011 = vset.pattern.permute.xlu0 111
        %9012 = vperm.xlu0 %9011, %v140
        %v9013 = vpop.permute.xlu0 %9012
        %9015 = vset.pattern.permute.xlu0 111
        %9016 = vperm.xlu0 %9015, %v141
        %v9017 = vpop.permute.xlu0 %9016
        %9019 = vset.pattern.permute.xlu0 111
        %9020 = vperm.xlu0 %9019, %v142
        %v9021 = vpop.permute.xlu0 %9020
        %9023 = vset.pattern.permute.xlu0 111
        %9024 = vperm.xlu0 %9023, %v143
        %v9025 = vpop.permute.xlu0 %9024
        %9027 = vset.pattern.permute.xlu0 111
        %9028 = vperm.xlu0 %9027, %v144
        %v9029 = vpop.permute.xlu0 %9028
        %v9031 = vsub.f32 %v9001, %v149
        %v9032 = vsub.f32 %v9005, %v149
        %v9033 = vsub.f32 %v9009, %v149
        %v9034 = vsub.f32 %v9013, %v149
        %v9035 = vsub.f32 %v9017, %v149
        %v9036 = vsub.f32 %v9021, %v149
        %v9037 = vsub.f32 %v9025, %v149
        %v9038 = vsub.f32 %v9029, %v149
        %9047 = vrot.lane.b32.xlu0 %v9031, 64
        %v9048 = vpop.permute.xlu0 %9047
        %9049 = vrot.lane.b32.xlu0 %v9032, 64
        %v9050 = vpop.permute.xlu0 %9049
        %9051 = vrot.lane.b32.xlu0 %v9033, 64
        %v9052 = vpop.permute.xlu0 %9051
        %9053 = vrot.lane.b32.xlu0 %v9034, 64
        %v9054 = vpop.permute.xlu0 %9053
        %9055 = vrot.lane.b32.xlu0 %v9035, 64
        %v9056 = vpop.permute.xlu0 %9055
        %9057 = vrot.lane.b32.xlu0 %v9036, 64
        %v9058 = vpop.permute.xlu0 %9057
        %9059 = vrot.lane.b32.xlu0 %v9037, 64
        %v9060 = vpop.permute.xlu0 %9059
        %9061 = vrot.lane.b32.xlu0 %v9038, 64
        %v9062 = vpop.permute.xlu0 %9061
        %v9071 = vsel %vm270, %v8991, %v9048
        %v9072 = vsel %vm270, %v8992, %v9050
        %v9073 = vsel %vm270, %v8993, %v9052
        %v9074 = vsel %vm270, %v8994, %v9054
        %v9075 = vsel %vm270, %v8995, %v9056
        %v9076 = vsel %vm270, %v8996, %v9058
        %v9077 = vsel %vm270, %v8997, %v9060
        %v9078 = vsel %vm270, %v8998, %v9062
        %v9079 = vmul.f32 %v9071, -12.6
        %v9080 = vmul.f32 %v9072, -12.6
        %v9081 = vmul.f32 %v9073, -12.6
        %v9082 = vmul.f32 %v9074, -12.6
        %v9083 = vmul.f32 %v9075, -12.6
        %v9084 = vmul.f32 %v9076, -12.6
        %v9085 = vmul.f32 %v9077, -12.6
        %v9086 = vmul.f32 %v9078, -12.6
        %v9087 = vmul.f32 %v9079, %v9071
        %v9088 = vmul.f32 %v9080, %v9072
        %v9089 = vmul.f32 %v9081, %v9073
        %v9090 = vmul.f32 %v9082, %v9074
        %v9091 = vmul.f32 %v9083, %v9075
        %v9092 = vmul.f32 %v9084, %v9076
        %v9093 = vmul.f32 %v9085, %v9077
        %v9094 = vmul.f32 %v9086, %v9078
        %v9095 = vmul.f32 %v9087, 1.442695
        %v9096 = vpow.pop %v9095
        %v9097 = vmul.f32 %v9088, 1.442695
        %v9098 = vpow.pop %v9097
        %v9099 = vmul.f32 %v9089, 1.442695
        %v9100 = vpow.pop %v9099
        %v9101 = vmul.f32 %v9090, 1.442695
        %v9102 = vpow.pop %v9101
        %v9103 = vmul.f32 %v9091, 1.442695
        %v9104 = vpow.pop %v9103
        %v9105 = vmul.f32 %v9092, 1.442695
        %v9106 = vpow.pop %v9105
        %v9107 = vmul.f32 %v9093, 1.442695
        %v9108 = vpow.pop %v9107
        %v9109 = vmul.f32 %v9094, 1.442695
        %v9110 = vpow.pop %v9109
        %9111 = vst [vmem:[%s134 + $0x1b8] sm:$0xff] %v9096
        %9112 = vst [vmem:[%s134 + $0x3b8] sm:$0xff] %v9098
        %9113 = vst [vmem:[%s134 + $0x5b8] sm:$0xff] %v9100
        %9114 = vst [vmem:[%s134 + $0x7b8] sm:$0xff] %v9102
        %9115 = vst [vmem:[%s134 + $0x9b8] sm:$0xff] %v9104
        %9116 = vst [vmem:[%s134 + $0xbb8] sm:$0xff] %v9106
        %9117 = vst [vmem:[%s134 + $0xdb8] sm:$0xff] %v9108
        %9118 = vst [vmem:[%s134 + $0xfb8] sm:$0xff] %v9110
        %9119 = vset.pattern.permute.xlu0 112
        %9120 = vperm.xlu0 %9119, %v137
        %v9121 = vpop.permute.xlu0 %9120
        %9123 = vset.pattern.permute.xlu0 112
        %9124 = vperm.xlu0 %9123, %v138
        %v9125 = vpop.permute.xlu0 %9124
        %9127 = vset.pattern.permute.xlu0 112
        %9128 = vperm.xlu0 %9127, %v139
        %v9129 = vpop.permute.xlu0 %9128
        %9131 = vset.pattern.permute.xlu0 112
        %9132 = vperm.xlu0 %9131, %v140
        %v9133 = vpop.permute.xlu0 %9132
        %9135 = vset.pattern.permute.xlu0 112
        %9136 = vperm.xlu0 %9135, %v141
        %v9137 = vpop.permute.xlu0 %9136
        %9139 = vset.pattern.permute.xlu0 112
        %9140 = vperm.xlu0 %9139, %v142
        %v9141 = vpop.permute.xlu0 %9140
        %9143 = vset.pattern.permute.xlu0 112
        %9144 = vperm.xlu0 %9143, %v143
        %v9145 = vpop.permute.xlu0 %9144
        %9147 = vset.pattern.permute.xlu0 112
        %9148 = vperm.xlu0 %9147, %v144
        %v9149 = vpop.permute.xlu0 %9148
        %v9151 = vsub.f32 %v9121, %v149
        %v9152 = vsub.f32 %v9125, %v149
        %v9153 = vsub.f32 %v9129, %v149
        %v9154 = vsub.f32 %v9133, %v149
        %v9155 = vsub.f32 %v9137, %v149
        %v9156 = vsub.f32 %v9141, %v149
        %v9157 = vsub.f32 %v9145, %v149
        %v9158 = vsub.f32 %v9149, %v149
        %9159 = vset.pattern.permute.xlu0 113
        %9160 = vperm.xlu0 %9159, %v137
        %v9161 = vpop.permute.xlu0 %9160
        %9163 = vset.pattern.permute.xlu0 113
        %9164 = vperm.xlu0 %9163, %v138
        %v9165 = vpop.permute.xlu0 %9164
        %9167 = vset.pattern.permute.xlu0 113
        %9168 = vperm.xlu0 %9167, %v139
        %v9169 = vpop.permute.xlu0 %9168
        %9171 = vset.pattern.permute.xlu0 113
        %9172 = vperm.xlu0 %9171, %v140
        %v9173 = vpop.permute.xlu0 %9172
        %9175 = vset.pattern.permute.xlu0 113
        %9176 = vperm.xlu0 %9175, %v141
        %v9177 = vpop.permute.xlu0 %9176
        %9179 = vset.pattern.permute.xlu0 113
        %9180 = vperm.xlu0 %9179, %v142
        %v9181 = vpop.permute.xlu0 %9180
        %9183 = vset.pattern.permute.xlu0 113
        %9184 = vperm.xlu0 %9183, %v143
        %v9185 = vpop.permute.xlu0 %9184
        %9187 = vset.pattern.permute.xlu0 113
        %9188 = vperm.xlu0 %9187, %v144
        %v9189 = vpop.permute.xlu0 %9188
        %v9191 = vsub.f32 %v9161, %v149
        %v9192 = vsub.f32 %v9165, %v149
        %v9193 = vsub.f32 %v9169, %v149
        %v9194 = vsub.f32 %v9173, %v149
        %v9195 = vsub.f32 %v9177, %v149
        %v9196 = vsub.f32 %v9181, %v149
        %v9197 = vsub.f32 %v9185, %v149
        %v9198 = vsub.f32 %v9189, %v149
        %9207 = vrot.lane.b32.xlu0 %v9191, 64
        %v9208 = vpop.permute.xlu0 %9207
        %9209 = vrot.lane.b32.xlu0 %v9192, 64
        %v9210 = vpop.permute.xlu0 %9209
        %9211 = vrot.lane.b32.xlu0 %v9193, 64
        %v9212 = vpop.permute.xlu0 %9211
        %9213 = vrot.lane.b32.xlu0 %v9194, 64
        %v9214 = vpop.permute.xlu0 %9213
        %9215 = vrot.lane.b32.xlu0 %v9195, 64
        %v9216 = vpop.permute.xlu0 %9215
        %9217 = vrot.lane.b32.xlu0 %v9196, 64
        %v9218 = vpop.permute.xlu0 %9217
        %9219 = vrot.lane.b32.xlu0 %v9197, 64
        %v9220 = vpop.permute.xlu0 %9219
        %9221 = vrot.lane.b32.xlu0 %v9198, 64
        %v9222 = vpop.permute.xlu0 %9221
        %v9231 = vsel %vm270, %v9151, %v9208
        %v9232 = vsel %vm270, %v9152, %v9210
        %v9233 = vsel %vm270, %v9153, %v9212
        %v9234 = vsel %vm270, %v9154, %v9214
        %v9235 = vsel %vm270, %v9155, %v9216
        %v9236 = vsel %vm270, %v9156, %v9218
        %v9237 = vsel %vm270, %v9157, %v9220
        %v9238 = vsel %vm270, %v9158, %v9222
        %v9239 = vmul.f32 %v9231, -12.6
        %v9240 = vmul.f32 %v9232, -12.6
        %v9241 = vmul.f32 %v9233, -12.6
        %v9242 = vmul.f32 %v9234, -12.6
        %v9243 = vmul.f32 %v9235, -12.6
        %v9244 = vmul.f32 %v9236, -12.6
        %v9245 = vmul.f32 %v9237, -12.6
        %v9246 = vmul.f32 %v9238, -12.6
        %v9247 = vmul.f32 %v9239, %v9231
        %v9248 = vmul.f32 %v9240, %v9232
        %v9249 = vmul.f32 %v9241, %v9233
        %v9250 = vmul.f32 %v9242, %v9234
        %v9251 = vmul.f32 %v9243, %v9235
        %v9252 = vmul.f32 %v9244, %v9236
        %v9253 = vmul.f32 %v9245, %v9237
        %v9254 = vmul.f32 %v9246, %v9238
        %v9255 = vmul.f32 %v9247, 1.442695
        %v9256 = vpow.pop %v9255
        %v9257 = vmul.f32 %v9248, 1.442695
        %v9258 = vpow.pop %v9257
        %v9259 = vmul.f32 %v9249, 1.442695
        %v9260 = vpow.pop %v9259
        %v9261 = vmul.f32 %v9250, 1.442695
        %v9262 = vpow.pop %v9261
        %v9263 = vmul.f32 %v9251, 1.442695
        %v9264 = vpow.pop %v9263
        %v9265 = vmul.f32 %v9252, 1.442695
        %v9266 = vpow.pop %v9265
        %v9267 = vmul.f32 %v9253, 1.442695
        %v9268 = vpow.pop %v9267
        %v9269 = vmul.f32 %v9254, 1.442695
        %v9270 = vpow.pop %v9269
        %9271 = vst [vmem:[%s134 + $0x1c0] sm:$0xff] %v9256
        %9272 = vst [vmem:[%s134 + $0x3c0] sm:$0xff] %v9258
        %9273 = vst [vmem:[%s134 + $0x5c0] sm:$0xff] %v9260
        %9274 = vst [vmem:[%s134 + $0x7c0] sm:$0xff] %v9262
        %9275 = vst [vmem:[%s134 + $0x9c0] sm:$0xff] %v9264
        %9276 = vst [vmem:[%s134 + $0xbc0] sm:$0xff] %v9266
        %9277 = vst [vmem:[%s134 + $0xdc0] sm:$0xff] %v9268
        %9278 = vst [vmem:[%s134 + $0xfc0] sm:$0xff] %v9270
        %9279 = vset.pattern.permute.xlu0 114
        %9280 = vperm.xlu0 %9279, %v137
        %v9281 = vpop.permute.xlu0 %9280
        %9283 = vset.pattern.permute.xlu0 114
        %9284 = vperm.xlu0 %9283, %v138
        %v9285 = vpop.permute.xlu0 %9284
        %9287 = vset.pattern.permute.xlu0 114
        %9288 = vperm.xlu0 %9287, %v139
        %v9289 = vpop.permute.xlu0 %9288
        %9291 = vset.pattern.permute.xlu0 114
        %9292 = vperm.xlu0 %9291, %v140
        %v9293 = vpop.permute.xlu0 %9292
        %9295 = vset.pattern.permute.xlu0 114
        %9296 = vperm.xlu0 %9295, %v141
        %v9297 = vpop.permute.xlu0 %9296
        %9299 = vset.pattern.permute.xlu0 114
        %9300 = vperm.xlu0 %9299, %v142
        %v9301 = vpop.permute.xlu0 %9300
        %9303 = vset.pattern.permute.xlu0 114
        %9304 = vperm.xlu0 %9303, %v143
        %v9305 = vpop.permute.xlu0 %9304
        %9307 = vset.pattern.permute.xlu0 114
        %9308 = vperm.xlu0 %9307, %v144
        %v9309 = vpop.permute.xlu0 %9308
        %v9311 = vsub.f32 %v9281, %v149
        %v9312 = vsub.f32 %v9285, %v149
        %v9313 = vsub.f32 %v9289, %v149
        %v9314 = vsub.f32 %v9293, %v149
        %v9315 = vsub.f32 %v9297, %v149
        %v9316 = vsub.f32 %v9301, %v149
        %v9317 = vsub.f32 %v9305, %v149
        %v9318 = vsub.f32 %v9309, %v149
        %9319 = vset.pattern.permute.xlu0 115
        %9320 = vperm.xlu0 %9319, %v137
        %v9321 = vpop.permute.xlu0 %9320
        %9323 = vset.pattern.permute.xlu0 115
        %9324 = vperm.xlu0 %9323, %v138
        %v9325 = vpop.permute.xlu0 %9324
        %9327 = vset.pattern.permute.xlu0 115
        %9328 = vperm.xlu0 %9327, %v139
        %v9329 = vpop.permute.xlu0 %9328
        %9331 = vset.pattern.permute.xlu0 115
        %9332 = vperm.xlu0 %9331, %v140
        %v9333 = vpop.permute.xlu0 %9332
        %9335 = vset.pattern.permute.xlu0 115
        %9336 = vperm.xlu0 %9335, %v141
        %v9337 = vpop.permute.xlu0 %9336
        %9339 = vset.pattern.permute.xlu0 115
        %9340 = vperm.xlu0 %9339, %v142
        %v9341 = vpop.permute.xlu0 %9340
        %9343 = vset.pattern.permute.xlu0 115
        %9344 = vperm.xlu0 %9343, %v143
        %v9345 = vpop.permute.xlu0 %9344
        %9347 = vset.pattern.permute.xlu0 115
        %9348 = vperm.xlu0 %9347, %v144
        %v9349 = vpop.permute.xlu0 %9348
        %v9351 = vsub.f32 %v9321, %v149
        %v9352 = vsub.f32 %v9325, %v149
        %v9353 = vsub.f32 %v9329, %v149
        %v9354 = vsub.f32 %v9333, %v149
        %v9355 = vsub.f32 %v9337, %v149
        %v9356 = vsub.f32 %v9341, %v149
        %v9357 = vsub.f32 %v9345, %v149
        %v9358 = vsub.f32 %v9349, %v149
        %9367 = vrot.lane.b32.xlu0 %v9351, 64
        %v9368 = vpop.permute.xlu0 %9367
        %9369 = vrot.lane.b32.xlu0 %v9352, 64
        %v9370 = vpop.permute.xlu0 %9369
        %9371 = vrot.lane.b32.xlu0 %v9353, 64
        %v9372 = vpop.permute.xlu0 %9371
        %9373 = vrot.lane.b32.xlu0 %v9354, 64
        %v9374 = vpop.permute.xlu0 %9373
        %9375 = vrot.lane.b32.xlu0 %v9355, 64
        %v9376 = vpop.permute.xlu0 %9375
        %9377 = vrot.lane.b32.xlu0 %v9356, 64
        %v9378 = vpop.permute.xlu0 %9377
        %9379 = vrot.lane.b32.xlu0 %v9357, 64
        %v9380 = vpop.permute.xlu0 %9379
        %9381 = vrot.lane.b32.xlu0 %v9358, 64
        %v9382 = vpop.permute.xlu0 %9381
        %v9391 = vsel %vm270, %v9311, %v9368
        %v9392 = vsel %vm270, %v9312, %v9370
        %v9393 = vsel %vm270, %v9313, %v9372
        %v9394 = vsel %vm270, %v9314, %v9374
        %v9395 = vsel %vm270, %v9315, %v9376
        %v9396 = vsel %vm270, %v9316, %v9378
        %v9397 = vsel %vm270, %v9317, %v9380
        %v9398 = vsel %vm270, %v9318, %v9382
        %v9399 = vmul.f32 %v9391, -12.6
        %v9400 = vmul.f32 %v9392, -12.6
        %v9401 = vmul.f32 %v9393, -12.6
        %v9402 = vmul.f32 %v9394, -12.6
        %v9403 = vmul.f32 %v9395, -12.6
        %v9404 = vmul.f32 %v9396, -12.6
        %v9405 = vmul.f32 %v9397, -12.6
        %v9406 = vmul.f32 %v9398, -12.6
        %v9407 = vmul.f32 %v9399, %v9391
        %v9408 = vmul.f32 %v9400, %v9392
        %v9409 = vmul.f32 %v9401, %v9393
        %v9410 = vmul.f32 %v9402, %v9394
        %v9411 = vmul.f32 %v9403, %v9395
        %v9412 = vmul.f32 %v9404, %v9396
        %v9413 = vmul.f32 %v9405, %v9397
        %v9414 = vmul.f32 %v9406, %v9398
        %v9415 = vmul.f32 %v9407, 1.442695
        %v9416 = vpow.pop %v9415
        %v9417 = vmul.f32 %v9408, 1.442695
        %v9418 = vpow.pop %v9417
        %v9419 = vmul.f32 %v9409, 1.442695
        %v9420 = vpow.pop %v9419
        %v9421 = vmul.f32 %v9410, 1.442695
        %v9422 = vpow.pop %v9421
        %v9423 = vmul.f32 %v9411, 1.442695
        %v9424 = vpow.pop %v9423
        %v9425 = vmul.f32 %v9412, 1.442695
        %v9426 = vpow.pop %v9425
        %v9427 = vmul.f32 %v9413, 1.442695
        %v9428 = vpow.pop %v9427
        %v9429 = vmul.f32 %v9414, 1.442695
        %v9430 = vpow.pop %v9429
        %9431 = vst [vmem:[%s134 + $0x1c8] sm:$0xff] %v9416
        %9432 = vst [vmem:[%s134 + $0x3c8] sm:$0xff] %v9418
        %9433 = vst [vmem:[%s134 + $0x5c8] sm:$0xff] %v9420
        %9434 = vst [vmem:[%s134 + $0x7c8] sm:$0xff] %v9422
        %9435 = vst [vmem:[%s134 + $0x9c8] sm:$0xff] %v9424
        %9436 = vst [vmem:[%s134 + $0xbc8] sm:$0xff] %v9426
        %9437 = vst [vmem:[%s134 + $0xdc8] sm:$0xff] %v9428
        %9438 = vst [vmem:[%s134 + $0xfc8] sm:$0xff] %v9430
        %9439 = vset.pattern.permute.xlu0 116
        %9440 = vperm.xlu0 %9439, %v137
        %v9441 = vpop.permute.xlu0 %9440
        %9443 = vset.pattern.permute.xlu0 116
        %9444 = vperm.xlu0 %9443, %v138
        %v9445 = vpop.permute.xlu0 %9444
        %9447 = vset.pattern.permute.xlu0 116
        %9448 = vperm.xlu0 %9447, %v139
        %v9449 = vpop.permute.xlu0 %9448
        %9451 = vset.pattern.permute.xlu0 116
        %9452 = vperm.xlu0 %9451, %v140
        %v9453 = vpop.permute.xlu0 %9452
        %9455 = vset.pattern.permute.xlu0 116
        %9456 = vperm.xlu0 %9455, %v141
        %v9457 = vpop.permute.xlu0 %9456
        %9459 = vset.pattern.permute.xlu0 116
        %9460 = vperm.xlu0 %9459, %v142
        %v9461 = vpop.permute.xlu0 %9460
        %9463 = vset.pattern.permute.xlu0 116
        %9464 = vperm.xlu0 %9463, %v143
        %v9465 = vpop.permute.xlu0 %9464
        %9467 = vset.pattern.permute.xlu0 116
        %9468 = vperm.xlu0 %9467, %v144
        %v9469 = vpop.permute.xlu0 %9468
        %v9471 = vsub.f32 %v9441, %v149
        %v9472 = vsub.f32 %v9445, %v149
        %v9473 = vsub.f32 %v9449, %v149
        %v9474 = vsub.f32 %v9453, %v149
        %v9475 = vsub.f32 %v9457, %v149
        %v9476 = vsub.f32 %v9461, %v149
        %v9477 = vsub.f32 %v9465, %v149
        %v9478 = vsub.f32 %v9469, %v149
        %9479 = vset.pattern.permute.xlu0 117
        %9480 = vperm.xlu0 %9479, %v137
        %v9481 = vpop.permute.xlu0 %9480
        %9483 = vset.pattern.permute.xlu0 117
        %9484 = vperm.xlu0 %9483, %v138
        %v9485 = vpop.permute.xlu0 %9484
        %9487 = vset.pattern.permute.xlu0 117
        %9488 = vperm.xlu0 %9487, %v139
        %v9489 = vpop.permute.xlu0 %9488
        %9491 = vset.pattern.permute.xlu0 117
        %9492 = vperm.xlu0 %9491, %v140
        %v9493 = vpop.permute.xlu0 %9492
        %9495 = vset.pattern.permute.xlu0 117
        %9496 = vperm.xlu0 %9495, %v141
        %v9497 = vpop.permute.xlu0 %9496
        %9499 = vset.pattern.permute.xlu0 117
        %9500 = vperm.xlu0 %9499, %v142
        %v9501 = vpop.permute.xlu0 %9500
        %9503 = vset.pattern.permute.xlu0 117
        %9504 = vperm.xlu0 %9503, %v143
        %v9505 = vpop.permute.xlu0 %9504
        %9507 = vset.pattern.permute.xlu0 117
        %9508 = vperm.xlu0 %9507, %v144
        %v9509 = vpop.permute.xlu0 %9508
        %v9511 = vsub.f32 %v9481, %v149
        %v9512 = vsub.f32 %v9485, %v149
        %v9513 = vsub.f32 %v9489, %v149
        %v9514 = vsub.f32 %v9493, %v149
        %v9515 = vsub.f32 %v9497, %v149
        %v9516 = vsub.f32 %v9501, %v149
        %v9517 = vsub.f32 %v9505, %v149
        %v9518 = vsub.f32 %v9509, %v149
        %9527 = vrot.lane.b32.xlu0 %v9511, 64
        %v9528 = vpop.permute.xlu0 %9527
        %9529 = vrot.lane.b32.xlu0 %v9512, 64
        %v9530 = vpop.permute.xlu0 %9529
        %9531 = vrot.lane.b32.xlu0 %v9513, 64
        %v9532 = vpop.permute.xlu0 %9531
        %9533 = vrot.lane.b32.xlu0 %v9514, 64
        %v9534 = vpop.permute.xlu0 %9533
        %9535 = vrot.lane.b32.xlu0 %v9515, 64
        %v9536 = vpop.permute.xlu0 %9535
        %9537 = vrot.lane.b32.xlu0 %v9516, 64
        %v9538 = vpop.permute.xlu0 %9537
        %9539 = vrot.lane.b32.xlu0 %v9517, 64
        %v9540 = vpop.permute.xlu0 %9539
        %9541 = vrot.lane.b32.xlu0 %v9518, 64
        %v9542 = vpop.permute.xlu0 %9541
        %v9551 = vsel %vm270, %v9471, %v9528
        %v9552 = vsel %vm270, %v9472, %v9530
        %v9553 = vsel %vm270, %v9473, %v9532
        %v9554 = vsel %vm270, %v9474, %v9534
        %v9555 = vsel %vm270, %v9475, %v9536
        %v9556 = vsel %vm270, %v9476, %v9538
        %v9557 = vsel %vm270, %v9477, %v9540
        %v9558 = vsel %vm270, %v9478, %v9542
        %v9559 = vmul.f32 %v9551, -12.6
        %v9560 = vmul.f32 %v9552, -12.6
        %v9561 = vmul.f32 %v9553, -12.6
        %v9562 = vmul.f32 %v9554, -12.6
        %v9563 = vmul.f32 %v9555, -12.6
        %v9564 = vmul.f32 %v9556, -12.6
        %v9565 = vmul.f32 %v9557, -12.6
        %v9566 = vmul.f32 %v9558, -12.6
        %v9567 = vmul.f32 %v9559, %v9551
        %v9568 = vmul.f32 %v9560, %v9552
        %v9569 = vmul.f32 %v9561, %v9553
        %v9570 = vmul.f32 %v9562, %v9554
        %v9571 = vmul.f32 %v9563, %v9555
        %v9572 = vmul.f32 %v9564, %v9556
        %v9573 = vmul.f32 %v9565, %v9557
        %v9574 = vmul.f32 %v9566, %v9558
        %v9575 = vmul.f32 %v9567, 1.442695
        %v9576 = vpow.pop %v9575
        %v9577 = vmul.f32 %v9568, 1.442695
        %v9578 = vpow.pop %v9577
        %v9579 = vmul.f32 %v9569, 1.442695
        %v9580 = vpow.pop %v9579
        %v9581 = vmul.f32 %v9570, 1.442695
        %v9582 = vpow.pop %v9581
        %v9583 = vmul.f32 %v9571, 1.442695
        %v9584 = vpow.pop %v9583
        %v9585 = vmul.f32 %v9572, 1.442695
        %v9586 = vpow.pop %v9585
        %v9587 = vmul.f32 %v9573, 1.442695
        %v9588 = vpow.pop %v9587
        %v9589 = vmul.f32 %v9574, 1.442695
        %v9590 = vpow.pop %v9589
        %9591 = vst [vmem:[%s134 + $0x1d0] sm:$0xff] %v9576
        %9592 = vst [vmem:[%s134 + $0x3d0] sm:$0xff] %v9578
        %9593 = vst [vmem:[%s134 + $0x5d0] sm:$0xff] %v9580
        %9594 = vst [vmem:[%s134 + $0x7d0] sm:$0xff] %v9582
        %9595 = vst [vmem:[%s134 + $0x9d0] sm:$0xff] %v9584
        %9596 = vst [vmem:[%s134 + $0xbd0] sm:$0xff] %v9586
        %9597 = vst [vmem:[%s134 + $0xdd0] sm:$0xff] %v9588
        %9598 = vst [vmem:[%s134 + $0xfd0] sm:$0xff] %v9590
        %9599 = vset.pattern.permute.xlu0 118
        %9600 = vperm.xlu0 %9599, %v137
        %v9601 = vpop.permute.xlu0 %9600
        %9603 = vset.pattern.permute.xlu0 118
        %9604 = vperm.xlu0 %9603, %v138
        %v9605 = vpop.permute.xlu0 %9604
        %9607 = vset.pattern.permute.xlu0 118
        %9608 = vperm.xlu0 %9607, %v139
        %v9609 = vpop.permute.xlu0 %9608
        %9611 = vset.pattern.permute.xlu0 118
        %9612 = vperm.xlu0 %9611, %v140
        %v9613 = vpop.permute.xlu0 %9612
        %9615 = vset.pattern.permute.xlu0 118
        %9616 = vperm.xlu0 %9615, %v141
        %v9617 = vpop.permute.xlu0 %9616
        %9619 = vset.pattern.permute.xlu0 118
        %9620 = vperm.xlu0 %9619, %v142
        %v9621 = vpop.permute.xlu0 %9620
        %9623 = vset.pattern.permute.xlu0 118
        %9624 = vperm.xlu0 %9623, %v143
        %v9625 = vpop.permute.xlu0 %9624
        %9627 = vset.pattern.permute.xlu0 118
        %9628 = vperm.xlu0 %9627, %v144
        %v9629 = vpop.permute.xlu0 %9628
        %v9631 = vsub.f32 %v9601, %v149
        %v9632 = vsub.f32 %v9605, %v149
        %v9633 = vsub.f32 %v9609, %v149
        %v9634 = vsub.f32 %v9613, %v149
        %v9635 = vsub.f32 %v9617, %v149
        %v9636 = vsub.f32 %v9621, %v149
        %v9637 = vsub.f32 %v9625, %v149
        %v9638 = vsub.f32 %v9629, %v149
        %9639 = vset.pattern.permute.xlu0 119
        %9640 = vperm.xlu0 %9639, %v137
        %v9641 = vpop.permute.xlu0 %9640
        %9643 = vset.pattern.permute.xlu0 119
        %9644 = vperm.xlu0 %9643, %v138
        %v9645 = vpop.permute.xlu0 %9644
        %9647 = vset.pattern.permute.xlu0 119
        %9648 = vperm.xlu0 %9647, %v139
        %v9649 = vpop.permute.xlu0 %9648
        %9651 = vset.pattern.permute.xlu0 119
        %9652 = vperm.xlu0 %9651, %v140
        %v9653 = vpop.permute.xlu0 %9652
        %9655 = vset.pattern.permute.xlu0 119
        %9656 = vperm.xlu0 %9655, %v141
        %v9657 = vpop.permute.xlu0 %9656
        %9659 = vset.pattern.permute.xlu0 119
        %9660 = vperm.xlu0 %9659, %v142
        %v9661 = vpop.permute.xlu0 %9660
        %9663 = vset.pattern.permute.xlu0 119
        %9664 = vperm.xlu0 %9663, %v143
        %v9665 = vpop.permute.xlu0 %9664
        %9667 = vset.pattern.permute.xlu0 119
        %9668 = vperm.xlu0 %9667, %v144
        %v9669 = vpop.permute.xlu0 %9668
        %v9671 = vsub.f32 %v9641, %v149
        %v9672 = vsub.f32 %v9645, %v149
        %v9673 = vsub.f32 %v9649, %v149
        %v9674 = vsub.f32 %v9653, %v149
        %v9675 = vsub.f32 %v9657, %v149
        %v9676 = vsub.f32 %v9661, %v149
        %v9677 = vsub.f32 %v9665, %v149
        %v9678 = vsub.f32 %v9669, %v149
        %9687 = vrot.lane.b32.xlu0 %v9671, 64
        %v9688 = vpop.permute.xlu0 %9687
        %9689 = vrot.lane.b32.xlu0 %v9672, 64
        %v9690 = vpop.permute.xlu0 %9689
        %9691 = vrot.lane.b32.xlu0 %v9673, 64
        %v9692 = vpop.permute.xlu0 %9691
        %9693 = vrot.lane.b32.xlu0 %v9674, 64
        %v9694 = vpop.permute.xlu0 %9693
        %9695 = vrot.lane.b32.xlu0 %v9675, 64
        %v9696 = vpop.permute.xlu0 %9695
        %9697 = vrot.lane.b32.xlu0 %v9676, 64
        %v9698 = vpop.permute.xlu0 %9697
        %9699 = vrot.lane.b32.xlu0 %v9677, 64
        %v9700 = vpop.permute.xlu0 %9699
        %9701 = vrot.lane.b32.xlu0 %v9678, 64
        %v9702 = vpop.permute.xlu0 %9701
        %v9711 = vsel %vm270, %v9631, %v9688
        %v9712 = vsel %vm270, %v9632, %v9690
        %v9713 = vsel %vm270, %v9633, %v9692
        %v9714 = vsel %vm270, %v9634, %v9694
        %v9715 = vsel %vm270, %v9635, %v9696
        %v9716 = vsel %vm270, %v9636, %v9698
        %v9717 = vsel %vm270, %v9637, %v9700
        %v9718 = vsel %vm270, %v9638, %v9702
        %v9719 = vmul.f32 %v9711, -12.6
        %v9720 = vmul.f32 %v9712, -12.6
        %v9721 = vmul.f32 %v9713, -12.6
        %v9722 = vmul.f32 %v9714, -12.6
        %v9723 = vmul.f32 %v9715, -12.6
        %v9724 = vmul.f32 %v9716, -12.6
        %v9725 = vmul.f32 %v9717, -12.6
        %v9726 = vmul.f32 %v9718, -12.6
        %v9727 = vmul.f32 %v9719, %v9711
        %v9728 = vmul.f32 %v9720, %v9712
        %v9729 = vmul.f32 %v9721, %v9713
        %v9730 = vmul.f32 %v9722, %v9714
        %v9731 = vmul.f32 %v9723, %v9715
        %v9732 = vmul.f32 %v9724, %v9716
        %v9733 = vmul.f32 %v9725, %v9717
        %v9734 = vmul.f32 %v9726, %v9718
        %v9735 = vmul.f32 %v9727, 1.442695
        %v9736 = vpow.pop %v9735
        %v9737 = vmul.f32 %v9728, 1.442695
        %v9738 = vpow.pop %v9737
        %v9739 = vmul.f32 %v9729, 1.442695
        %v9740 = vpow.pop %v9739
        %v9741 = vmul.f32 %v9730, 1.442695
        %v9742 = vpow.pop %v9741
        %v9743 = vmul.f32 %v9731, 1.442695
        %v9744 = vpow.pop %v9743
        %v9745 = vmul.f32 %v9732, 1.442695
        %v9746 = vpow.pop %v9745
        %v9747 = vmul.f32 %v9733, 1.442695
        %v9748 = vpow.pop %v9747
        %v9749 = vmul.f32 %v9734, 1.442695
        %v9750 = vpow.pop %v9749
        %9751 = vst [vmem:[%s134 + $0x1d8] sm:$0xff] %v9736
        %9752 = vst [vmem:[%s134 + $0x3d8] sm:$0xff] %v9738
        %9753 = vst [vmem:[%s134 + $0x5d8] sm:$0xff] %v9740
        %9754 = vst [vmem:[%s134 + $0x7d8] sm:$0xff] %v9742
        %9755 = vst [vmem:[%s134 + $0x9d8] sm:$0xff] %v9744
        %9756 = vst [vmem:[%s134 + $0xbd8] sm:$0xff] %v9746
        %9757 = vst [vmem:[%s134 + $0xdd8] sm:$0xff] %v9748
        %9758 = vst [vmem:[%s134 + $0xfd8] sm:$0xff] %v9750
        %9759 = vset.pattern.permute.xlu0 120
        %9760 = vperm.xlu0 %9759, %v137
        %v9761 = vpop.permute.xlu0 %9760
        %9763 = vset.pattern.permute.xlu0 120
        %9764 = vperm.xlu0 %9763, %v138
        %v9765 = vpop.permute.xlu0 %9764
        %9767 = vset.pattern.permute.xlu0 120
        %9768 = vperm.xlu0 %9767, %v139
        %v9769 = vpop.permute.xlu0 %9768
        %9771 = vset.pattern.permute.xlu0 120
        %9772 = vperm.xlu0 %9771, %v140
        %v9773 = vpop.permute.xlu0 %9772
        %9775 = vset.pattern.permute.xlu0 120
        %9776 = vperm.xlu0 %9775, %v141
        %v9777 = vpop.permute.xlu0 %9776
        %9779 = vset.pattern.permute.xlu0 120
        %9780 = vperm.xlu0 %9779, %v142
        %v9781 = vpop.permute.xlu0 %9780
        %9783 = vset.pattern.permute.xlu0 120
        %9784 = vperm.xlu0 %9783, %v143
        %v9785 = vpop.permute.xlu0 %9784
        %9787 = vset.pattern.permute.xlu0 120
        %9788 = vperm.xlu0 %9787, %v144
        %v9789 = vpop.permute.xlu0 %9788
        %v9791 = vsub.f32 %v9761, %v149
        %v9792 = vsub.f32 %v9765, %v149
        %v9793 = vsub.f32 %v9769, %v149
        %v9794 = vsub.f32 %v9773, %v149
        %v9795 = vsub.f32 %v9777, %v149
        %v9796 = vsub.f32 %v9781, %v149
        %v9797 = vsub.f32 %v9785, %v149
        %v9798 = vsub.f32 %v9789, %v149
        %9799 = vset.pattern.permute.xlu0 121
        %9800 = vperm.xlu0 %9799, %v137
        %v9801 = vpop.permute.xlu0 %9800
        %9803 = vset.pattern.permute.xlu0 121
        %9804 = vperm.xlu0 %9803, %v138
        %v9805 = vpop.permute.xlu0 %9804
        %9807 = vset.pattern.permute.xlu0 121
        %9808 = vperm.xlu0 %9807, %v139
        %v9809 = vpop.permute.xlu0 %9808
        %9811 = vset.pattern.permute.xlu0 121
        %9812 = vperm.xlu0 %9811, %v140
        %v9813 = vpop.permute.xlu0 %9812
        %9815 = vset.pattern.permute.xlu0 121
        %9816 = vperm.xlu0 %9815, %v141
        %v9817 = vpop.permute.xlu0 %9816
        %9819 = vset.pattern.permute.xlu0 121
        %9820 = vperm.xlu0 %9819, %v142
        %v9821 = vpop.permute.xlu0 %9820
        %9823 = vset.pattern.permute.xlu0 121
        %9824 = vperm.xlu0 %9823, %v143
        %v9825 = vpop.permute.xlu0 %9824
        %9827 = vset.pattern.permute.xlu0 121
        %9828 = vperm.xlu0 %9827, %v144
        %v9829 = vpop.permute.xlu0 %9828
        %v9831 = vsub.f32 %v9801, %v149
        %v9832 = vsub.f32 %v9805, %v149
        %v9833 = vsub.f32 %v9809, %v149
        %v9834 = vsub.f32 %v9813, %v149
        %v9835 = vsub.f32 %v9817, %v149
        %v9836 = vsub.f32 %v9821, %v149
        %v9837 = vsub.f32 %v9825, %v149
        %v9838 = vsub.f32 %v9829, %v149
        %9847 = vrot.lane.b32.xlu0 %v9831, 64
        %v9848 = vpop.permute.xlu0 %9847
        %9849 = vrot.lane.b32.xlu0 %v9832, 64
        %v9850 = vpop.permute.xlu0 %9849
        %9851 = vrot.lane.b32.xlu0 %v9833, 64
        %v9852 = vpop.permute.xlu0 %9851
        %9853 = vrot.lane.b32.xlu0 %v9834, 64
        %v9854 = vpop.permute.xlu0 %9853
        %9855 = vrot.lane.b32.xlu0 %v9835, 64
        %v9856 = vpop.permute.xlu0 %9855
        %9857 = vrot.lane.b32.xlu0 %v9836, 64
        %v9858 = vpop.permute.xlu0 %9857
        %9859 = vrot.lane.b32.xlu0 %v9837, 64
        %v9860 = vpop.permute.xlu0 %9859
        %9861 = vrot.lane.b32.xlu0 %v9838, 64
        %v9862 = vpop.permute.xlu0 %9861
        %v9871 = vsel %vm270, %v9791, %v9848
        %v9872 = vsel %vm270, %v9792, %v9850
        %v9873 = vsel %vm270, %v9793, %v9852
        %v9874 = vsel %vm270, %v9794, %v9854
        %v9875 = vsel %vm270, %v9795, %v9856
        %v9876 = vsel %vm270, %v9796, %v9858
        %v9877 = vsel %vm270, %v9797, %v9860
        %v9878 = vsel %vm270, %v9798, %v9862
        %v9879 = vmul.f32 %v9871, -12.6
        %v9880 = vmul.f32 %v9872, -12.6
        %v9881 = vmul.f32 %v9873, -12.6
        %v9882 = vmul.f32 %v9874, -12.6
        %v9883 = vmul.f32 %v9875, -12.6
        %v9884 = vmul.f32 %v9876, -12.6
        %v9885 = vmul.f32 %v9877, -12.6
        %v9886 = vmul.f32 %v9878, -12.6
        %v9887 = vmul.f32 %v9879, %v9871
        %v9888 = vmul.f32 %v9880, %v9872
        %v9889 = vmul.f32 %v9881, %v9873
        %v9890 = vmul.f32 %v9882, %v9874
        %v9891 = vmul.f32 %v9883, %v9875
        %v9892 = vmul.f32 %v9884, %v9876
        %v9893 = vmul.f32 %v9885, %v9877
        %v9894 = vmul.f32 %v9886, %v9878
        %v9895 = vmul.f32 %v9887, 1.442695
        %v9896 = vpow.pop %v9895
        %v9897 = vmul.f32 %v9888, 1.442695
        %v9898 = vpow.pop %v9897
        %v9899 = vmul.f32 %v9889, 1.442695
        %v9900 = vpow.pop %v9899
        %v9901 = vmul.f32 %v9890, 1.442695
        %v9902 = vpow.pop %v9901
        %v9903 = vmul.f32 %v9891, 1.442695
        %v9904 = vpow.pop %v9903
        %v9905 = vmul.f32 %v9892, 1.442695
        %v9906 = vpow.pop %v9905
        %v9907 = vmul.f32 %v9893, 1.442695
        %v9908 = vpow.pop %v9907
        %v9909 = vmul.f32 %v9894, 1.442695
        %v9910 = vpow.pop %v9909
        %9911 = vst [vmem:[%s134 + $0x1e0] sm:$0xff] %v9896
        %9912 = vst [vmem:[%s134 + $0x3e0] sm:$0xff] %v9898
        %9913 = vst [vmem:[%s134 + $0x5e0] sm:$0xff] %v9900
        %9914 = vst [vmem:[%s134 + $0x7e0] sm:$0xff] %v9902
        %9915 = vst [vmem:[%s134 + $0x9e0] sm:$0xff] %v9904
        %9916 = vst [vmem:[%s134 + $0xbe0] sm:$0xff] %v9906
        %9917 = vst [vmem:[%s134 + $0xde0] sm:$0xff] %v9908
        %9918 = vst [vmem:[%s134 + $0xfe0] sm:$0xff] %v9910
        %9919 = vset.pattern.permute.xlu0 122
        %9920 = vperm.xlu0 %9919, %v137
        %v9921 = vpop.permute.xlu0 %9920
        %9923 = vset.pattern.permute.xlu0 122
        %9924 = vperm.xlu0 %9923, %v138
        %v9925 = vpop.permute.xlu0 %9924
        %9927 = vset.pattern.permute.xlu0 122
        %9928 = vperm.xlu0 %9927, %v139
        %v9929 = vpop.permute.xlu0 %9928
        %9931 = vset.pattern.permute.xlu0 122
        %9932 = vperm.xlu0 %9931, %v140
        %v9933 = vpop.permute.xlu0 %9932
        %9935 = vset.pattern.permute.xlu0 122
        %9936 = vperm.xlu0 %9935, %v141
        %v9937 = vpop.permute.xlu0 %9936
        %9939 = vset.pattern.permute.xlu0 122
        %9940 = vperm.xlu0 %9939, %v142
        %v9941 = vpop.permute.xlu0 %9940
        %9943 = vset.pattern.permute.xlu0 122
        %9944 = vperm.xlu0 %9943, %v143
        %v9945 = vpop.permute.xlu0 %9944
        %9947 = vset.pattern.permute.xlu0 122
        %9948 = vperm.xlu0 %9947, %v144
        %v9949 = vpop.permute.xlu0 %9948
        %v9951 = vsub.f32 %v9921, %v149
        %v9952 = vsub.f32 %v9925, %v149
        %v9953 = vsub.f32 %v9929, %v149
        %v9954 = vsub.f32 %v9933, %v149
        %v9955 = vsub.f32 %v9937, %v149
        %v9956 = vsub.f32 %v9941, %v149
        %v9957 = vsub.f32 %v9945, %v149
        %v9958 = vsub.f32 %v9949, %v149
        %9959 = vset.pattern.permute.xlu0 123
        %9960 = vperm.xlu0 %9959, %v137
        %v9961 = vpop.permute.xlu0 %9960
        %9963 = vset.pattern.permute.xlu0 123
        %9964 = vperm.xlu0 %9963, %v138
        %v9965 = vpop.permute.xlu0 %9964
        %9967 = vset.pattern.permute.xlu0 123
        %9968 = vperm.xlu0 %9967, %v139
        %v9969 = vpop.permute.xlu0 %9968
        %9971 = vset.pattern.permute.xlu0 123
        %9972 = vperm.xlu0 %9971, %v140
        %v9973 = vpop.permute.xlu0 %9972
        %9975 = vset.pattern.permute.xlu0 123
        %9976 = vperm.xlu0 %9975, %v141
        %v9977 = vpop.permute.xlu0 %9976
        %9979 = vset.pattern.permute.xlu0 123
        %9980 = vperm.xlu0 %9979, %v142
        %v9981 = vpop.permute.xlu0 %9980
        %9983 = vset.pattern.permute.xlu0 123
        %9984 = vperm.xlu0 %9983, %v143
        %v9985 = vpop.permute.xlu0 %9984
        %9987 = vset.pattern.permute.xlu0 123
        %9988 = vperm.xlu0 %9987, %v144
        %v9989 = vpop.permute.xlu0 %9988
        %v9991 = vsub.f32 %v9961, %v149
        %v9992 = vsub.f32 %v9965, %v149
        %v9993 = vsub.f32 %v9969, %v149
        %v9994 = vsub.f32 %v9973, %v149
        %v9995 = vsub.f32 %v9977, %v149
        %v9996 = vsub.f32 %v9981, %v149
        %v9997 = vsub.f32 %v9985, %v149
        %v9998 = vsub.f32 %v9989, %v149
        %10007 = vrot.lane.b32.xlu0 %v9991, 64
        %v10008 = vpop.permute.xlu0 %10007
        %10009 = vrot.lane.b32.xlu0 %v9992, 64
        %v10010 = vpop.permute.xlu0 %10009
        %10011 = vrot.lane.b32.xlu0 %v9993, 64
        %v10012 = vpop.permute.xlu0 %10011
        %10013 = vrot.lane.b32.xlu0 %v9994, 64
        %v10014 = vpop.permute.xlu0 %10013
        %10015 = vrot.lane.b32.xlu0 %v9995, 64
        %v10016 = vpop.permute.xlu0 %10015
        %10017 = vrot.lane.b32.xlu0 %v9996, 64
        %v10018 = vpop.permute.xlu0 %10017
        %10019 = vrot.lane.b32.xlu0 %v9997, 64
        %v10020 = vpop.permute.xlu0 %10019
        %10021 = vrot.lane.b32.xlu0 %v9998, 64
        %v10022 = vpop.permute.xlu0 %10021
        %v10031 = vsel %vm270, %v9951, %v10008
        %v10032 = vsel %vm270, %v9952, %v10010
        %v10033 = vsel %vm270, %v9953, %v10012
        %v10034 = vsel %vm270, %v9954, %v10014
        %v10035 = vsel %vm270, %v9955, %v10016
        %v10036 = vsel %vm270, %v9956, %v10018
        %v10037 = vsel %vm270, %v9957, %v10020
        %v10038 = vsel %vm270, %v9958, %v10022
        %v10039 = vmul.f32 %v10031, -12.6
        %v10040 = vmul.f32 %v10032, -12.6
        %v10041 = vmul.f32 %v10033, -12.6
        %v10042 = vmul.f32 %v10034, -12.6
        %v10043 = vmul.f32 %v10035, -12.6
        %v10044 = vmul.f32 %v10036, -12.6
        %v10045 = vmul.f32 %v10037, -12.6
        %v10046 = vmul.f32 %v10038, -12.6
        %v10047 = vmul.f32 %v10039, %v10031
        %v10048 = vmul.f32 %v10040, %v10032
        %v10049 = vmul.f32 %v10041, %v10033
        %v10050 = vmul.f32 %v10042, %v10034
        %v10051 = vmul.f32 %v10043, %v10035
        %v10052 = vmul.f32 %v10044, %v10036
        %v10053 = vmul.f32 %v10045, %v10037
        %v10054 = vmul.f32 %v10046, %v10038
        %v10055 = vmul.f32 %v10047, 1.442695
        %v10056 = vpow.pop %v10055
        %v10057 = vmul.f32 %v10048, 1.442695
        %v10058 = vpow.pop %v10057
        %v10059 = vmul.f32 %v10049, 1.442695
        %v10060 = vpow.pop %v10059
        %v10061 = vmul.f32 %v10050, 1.442695
        %v10062 = vpow.pop %v10061
        %v10063 = vmul.f32 %v10051, 1.442695
        %v10064 = vpow.pop %v10063
        %v10065 = vmul.f32 %v10052, 1.442695
        %v10066 = vpow.pop %v10065
        %v10067 = vmul.f32 %v10053, 1.442695
        %v10068 = vpow.pop %v10067
        %v10069 = vmul.f32 %v10054, 1.442695
        %v10070 = vpow.pop %v10069
        %10071 = vst [vmem:[%s134 + $0x1e8] sm:$0xff] %v10056
        %10072 = vst [vmem:[%s134 + $0x3e8] sm:$0xff] %v10058
        %10073 = vst [vmem:[%s134 + $0x5e8] sm:$0xff] %v10060
        %10074 = vst [vmem:[%s134 + $0x7e8] sm:$0xff] %v10062
        %10075 = vst [vmem:[%s134 + $0x9e8] sm:$0xff] %v10064
        %10076 = vst [vmem:[%s134 + $0xbe8] sm:$0xff] %v10066
        %10077 = vst [vmem:[%s134 + $0xde8] sm:$0xff] %v10068
        %10078 = vst [vmem:[%s134 + $0xfe8] sm:$0xff] %v10070
        %10079 = vset.pattern.permute.xlu0 124
        %10080 = vperm.xlu0 %10079, %v137
        %v10081 = vpop.permute.xlu0 %10080
        %10083 = vset.pattern.permute.xlu0 124
        %10084 = vperm.xlu0 %10083, %v138
        %v10085 = vpop.permute.xlu0 %10084
        %10087 = vset.pattern.permute.xlu0 124
        %10088 = vperm.xlu0 %10087, %v139
        %v10089 = vpop.permute.xlu0 %10088
        %10091 = vset.pattern.permute.xlu0 124
        %10092 = vperm.xlu0 %10091, %v140
        %v10093 = vpop.permute.xlu0 %10092
        %10095 = vset.pattern.permute.xlu0 124
        %10096 = vperm.xlu0 %10095, %v141
        %v10097 = vpop.permute.xlu0 %10096
        %10099 = vset.pattern.permute.xlu0 124
        %10100 = vperm.xlu0 %10099, %v142
        %v10101 = vpop.permute.xlu0 %10100
        %10103 = vset.pattern.permute.xlu0 124
        %10104 = vperm.xlu0 %10103, %v143
        %v10105 = vpop.permute.xlu0 %10104
        %10107 = vset.pattern.permute.xlu0 124
        %10108 = vperm.xlu0 %10107, %v144
        %v10109 = vpop.permute.xlu0 %10108
        %v10111 = vsub.f32 %v10081, %v149
        %v10112 = vsub.f32 %v10085, %v149
        %v10113 = vsub.f32 %v10089, %v149
        %v10114 = vsub.f32 %v10093, %v149
        %v10115 = vsub.f32 %v10097, %v149
        %v10116 = vsub.f32 %v10101, %v149
        %v10117 = vsub.f32 %v10105, %v149
        %v10118 = vsub.f32 %v10109, %v149
        %10119 = vset.pattern.permute.xlu0 125
        %10120 = vperm.xlu0 %10119, %v137
        %v10121 = vpop.permute.xlu0 %10120
        %10123 = vset.pattern.permute.xlu0 125
        %10124 = vperm.xlu0 %10123, %v138
        %v10125 = vpop.permute.xlu0 %10124
        %10127 = vset.pattern.permute.xlu0 125
        %10128 = vperm.xlu0 %10127, %v139
        %v10129 = vpop.permute.xlu0 %10128
        %10131 = vset.pattern.permute.xlu0 125
        %10132 = vperm.xlu0 %10131, %v140
        %v10133 = vpop.permute.xlu0 %10132
        %10135 = vset.pattern.permute.xlu0 125
        %10136 = vperm.xlu0 %10135, %v141
        %v10137 = vpop.permute.xlu0 %10136
        %10139 = vset.pattern.permute.xlu0 125
        %10140 = vperm.xlu0 %10139, %v142
        %v10141 = vpop.permute.xlu0 %10140
        %10143 = vset.pattern.permute.xlu0 125
        %10144 = vperm.xlu0 %10143, %v143
        %v10145 = vpop.permute.xlu0 %10144
        %10147 = vset.pattern.permute.xlu0 125
        %10148 = vperm.xlu0 %10147, %v144
        %v10149 = vpop.permute.xlu0 %10148
        %v10151 = vsub.f32 %v10121, %v149
        %v10152 = vsub.f32 %v10125, %v149
        %v10153 = vsub.f32 %v10129, %v149
        %v10154 = vsub.f32 %v10133, %v149
        %v10155 = vsub.f32 %v10137, %v149
        %v10156 = vsub.f32 %v10141, %v149
        %v10157 = vsub.f32 %v10145, %v149
        %v10158 = vsub.f32 %v10149, %v149
        %10167 = vrot.lane.b32.xlu0 %v10151, 64
        %v10168 = vpop.permute.xlu0 %10167
        %10169 = vrot.lane.b32.xlu0 %v10152, 64
        %v10170 = vpop.permute.xlu0 %10169
        %10171 = vrot.lane.b32.xlu0 %v10153, 64
        %v10172 = vpop.permute.xlu0 %10171
        %10173 = vrot.lane.b32.xlu0 %v10154, 64
        %v10174 = vpop.permute.xlu0 %10173
        %10175 = vrot.lane.b32.xlu0 %v10155, 64
        %v10176 = vpop.permute.xlu0 %10175
        %10177 = vrot.lane.b32.xlu0 %v10156, 64
        %v10178 = vpop.permute.xlu0 %10177
        %10179 = vrot.lane.b32.xlu0 %v10157, 64
        %v10180 = vpop.permute.xlu0 %10179
        %10181 = vrot.lane.b32.xlu0 %v10158, 64
        %v10182 = vpop.permute.xlu0 %10181
        %v10191 = vsel %vm270, %v10111, %v10168
        %v10192 = vsel %vm270, %v10112, %v10170
        %v10193 = vsel %vm270, %v10113, %v10172
        %v10194 = vsel %vm270, %v10114, %v10174
        %v10195 = vsel %vm270, %v10115, %v10176
        %v10196 = vsel %vm270, %v10116, %v10178
        %v10197 = vsel %vm270, %v10117, %v10180
        %v10198 = vsel %vm270, %v10118, %v10182
        %v10199 = vmul.f32 %v10191, -12.6
        %v10200 = vmul.f32 %v10192, -12.6
        %v10201 = vmul.f32 %v10193, -12.6
        %v10202 = vmul.f32 %v10194, -12.6
        %v10203 = vmul.f32 %v10195, -12.6
        %v10204 = vmul.f32 %v10196, -12.6
        %v10205 = vmul.f32 %v10197, -12.6
        %v10206 = vmul.f32 %v10198, -12.6
        %v10207 = vmul.f32 %v10199, %v10191
        %v10208 = vmul.f32 %v10200, %v10192
        %v10209 = vmul.f32 %v10201, %v10193
        %v10210 = vmul.f32 %v10202, %v10194
        %v10211 = vmul.f32 %v10203, %v10195
        %v10212 = vmul.f32 %v10204, %v10196
        %v10213 = vmul.f32 %v10205, %v10197
        %v10214 = vmul.f32 %v10206, %v10198
        %v10215 = vmul.f32 %v10207, 1.442695
        %v10216 = vpow.pop %v10215
        %v10217 = vmul.f32 %v10208, 1.442695
        %v10218 = vpow.pop %v10217
        %v10219 = vmul.f32 %v10209, 1.442695
        %v10220 = vpow.pop %v10219
        %v10221 = vmul.f32 %v10210, 1.442695
        %v10222 = vpow.pop %v10221
        %v10223 = vmul.f32 %v10211, 1.442695
        %v10224 = vpow.pop %v10223
        %v10225 = vmul.f32 %v10212, 1.442695
        %v10226 = vpow.pop %v10225
        %v10227 = vmul.f32 %v10213, 1.442695
        %v10228 = vpow.pop %v10227
        %v10229 = vmul.f32 %v10214, 1.442695
        %v10230 = vpow.pop %v10229
        %10231 = vst [vmem:[%s134 + $0x1f0] sm:$0xff] %v10216
        %10232 = vst [vmem:[%s134 + $0x3f0] sm:$0xff] %v10218
        %10233 = vst [vmem:[%s134 + $0x5f0] sm:$0xff] %v10220
        %10234 = vst [vmem:[%s134 + $0x7f0] sm:$0xff] %v10222
        %10235 = vst [vmem:[%s134 + $0x9f0] sm:$0xff] %v10224
        %10236 = vst [vmem:[%s134 + $0xbf0] sm:$0xff] %v10226
        %10237 = vst [vmem:[%s134 + $0xdf0] sm:$0xff] %v10228
        %10238 = vst [vmem:[%s134 + $0xff0] sm:$0xff] %v10230
        %10239 = vset.pattern.permute.xlu0 126
        %10240 = vperm.xlu0 %10239, %v137
        %v10241 = vpop.permute.xlu0 %10240
        %10243 = vset.pattern.permute.xlu0 126
        %10244 = vperm.xlu0 %10243, %v138
        %v10245 = vpop.permute.xlu0 %10244
        %10247 = vset.pattern.permute.xlu0 126
        %10248 = vperm.xlu0 %10247, %v139
        %v10249 = vpop.permute.xlu0 %10248
        %10251 = vset.pattern.permute.xlu0 126
        %10252 = vperm.xlu0 %10251, %v140
        %v10253 = vpop.permute.xlu0 %10252
        %10255 = vset.pattern.permute.xlu0 126
        %10256 = vperm.xlu0 %10255, %v141
        %v10257 = vpop.permute.xlu0 %10256
        %10259 = vset.pattern.permute.xlu0 126
        %10260 = vperm.xlu0 %10259, %v142
        %v10261 = vpop.permute.xlu0 %10260
        %10263 = vset.pattern.permute.xlu0 126
        %10264 = vperm.xlu0 %10263, %v143
        %v10265 = vpop.permute.xlu0 %10264
        %10267 = vset.pattern.permute.xlu0 126
        %10268 = vperm.xlu0 %10267, %v144
        %v10269 = vpop.permute.xlu0 %10268
        %v10271 = vsub.f32 %v10241, %v149
        %v10272 = vsub.f32 %v10245, %v149
        %v10273 = vsub.f32 %v10249, %v149
        %v10274 = vsub.f32 %v10253, %v149
        %v10275 = vsub.f32 %v10257, %v149
        %v10276 = vsub.f32 %v10261, %v149
        %v10277 = vsub.f32 %v10265, %v149
        %v10278 = vsub.f32 %v10269, %v149
        %10279 = vset.pattern.permute.xlu0 127
        %10280 = vperm.xlu0 %10279, %v137
        %v10281 = vpop.permute.xlu0 %10280
        %10283 = vset.pattern.permute.xlu0 127
        %10284 = vperm.xlu0 %10283, %v138
        %v10285 = vpop.permute.xlu0 %10284
        %10287 = vset.pattern.permute.xlu0 127
        %10288 = vperm.xlu0 %10287, %v139
        %v10289 = vpop.permute.xlu0 %10288
        %10291 = vset.pattern.permute.xlu0 127
        %10292 = vperm.xlu0 %10291, %v140
        %v10293 = vpop.permute.xlu0 %10292
        %10295 = vset.pattern.permute.xlu0 127
        %10296 = vperm.xlu0 %10295, %v141
        %v10297 = vpop.permute.xlu0 %10296
        %10299 = vset.pattern.permute.xlu0 127
        %10300 = vperm.xlu0 %10299, %v142
        %v10301 = vpop.permute.xlu0 %10300
        %10303 = vset.pattern.permute.xlu0 127
        %10304 = vperm.xlu0 %10303, %v143
        %v10305 = vpop.permute.xlu0 %10304
        %10307 = vset.pattern.permute.xlu0 127
        %10308 = vperm.xlu0 %10307, %v144
        %v10309 = vpop.permute.xlu0 %10308
        %v10311 = vsub.f32 %v10281, %v149
        %v10312 = vsub.f32 %v10285, %v149
        %v10313 = vsub.f32 %v10289, %v149
        %v10314 = vsub.f32 %v10293, %v149
        %v10315 = vsub.f32 %v10297, %v149
        %v10316 = vsub.f32 %v10301, %v149
        %v10317 = vsub.f32 %v10305, %v149
        %v10318 = vsub.f32 %v10309, %v149
        %10327 = vrot.lane.b32.xlu0 %v10311, 64
        %v10328 = vpop.permute.xlu0 %10327
        %10329 = vrot.lane.b32.xlu0 %v10312, 64
        %v10330 = vpop.permute.xlu0 %10329
        %10331 = vrot.lane.b32.xlu0 %v10313, 64
        %v10332 = vpop.permute.xlu0 %10331
        %10333 = vrot.lane.b32.xlu0 %v10314, 64
        %v10334 = vpop.permute.xlu0 %10333
        %10335 = vrot.lane.b32.xlu0 %v10315, 64
        %v10336 = vpop.permute.xlu0 %10335
        %10337 = vrot.lane.b32.xlu0 %v10316, 64
        %v10338 = vpop.permute.xlu0 %10337
        %10339 = vrot.lane.b32.xlu0 %v10317, 64
        %v10340 = vpop.permute.xlu0 %10339
        %10341 = vrot.lane.b32.xlu0 %v10318, 64
        %v10342 = vpop.permute.xlu0 %10341
        %v10351 = vsel %vm270, %v10271, %v10328
        %v10352 = vsel %vm270, %v10272, %v10330
        %v10353 = vsel %vm270, %v10273, %v10332
        %v10354 = vsel %vm270, %v10274, %v10334
        %v10355 = vsel %vm270, %v10275, %v10336
        %v10356 = vsel %vm270, %v10276, %v10338
        %v10357 = vsel %vm270, %v10277, %v10340
        %v10358 = vsel %vm270, %v10278, %v10342
        %v10359 = vmul.f32 %v10351, -12.6
        %v10360 = vmul.f32 %v10352, -12.6
        %v10361 = vmul.f32 %v10353, -12.6
        %v10362 = vmul.f32 %v10354, -12.6
        %v10363 = vmul.f32 %v10355, -12.6
        %v10364 = vmul.f32 %v10356, -12.6
        %v10365 = vmul.f32 %v10357, -12.6
        %v10366 = vmul.f32 %v10358, -12.6
        %v10367 = vmul.f32 %v10359, %v10351
        %v10368 = vmul.f32 %v10360, %v10352
        %v10369 = vmul.f32 %v10361, %v10353
        %v10370 = vmul.f32 %v10362, %v10354
        %v10371 = vmul.f32 %v10363, %v10355
        %v10372 = vmul.f32 %v10364, %v10356
        %v10373 = vmul.f32 %v10365, %v10357
        %v10374 = vmul.f32 %v10366, %v10358
        %v10375 = vmul.f32 %v10367, 1.442695
        %v10376 = vpow.pop %v10375
        %v10377 = vmul.f32 %v10368, 1.442695
        %v10378 = vpow.pop %v10377
        %v10379 = vmul.f32 %v10369, 1.442695
        %v10380 = vpow.pop %v10379
        %v10381 = vmul.f32 %v10370, 1.442695
        %v10382 = vpow.pop %v10381
        %v10383 = vmul.f32 %v10371, 1.442695
        %v10384 = vpow.pop %v10383
        %v10385 = vmul.f32 %v10372, 1.442695
        %v10386 = vpow.pop %v10385
        %v10387 = vmul.f32 %v10373, 1.442695
        %v10388 = vpow.pop %v10387
        %v10389 = vmul.f32 %v10374, 1.442695
        %v10390 = vpow.pop %v10389
        %10391 = vst [vmem:[%s134 + $0x1f8] sm:$0xff] %v10376
        %10392 = vst [vmem:[%s134 + $0x3f8] sm:$0xff] %v10378
        %10393 = vst [vmem:[%s134 + $0x5f8] sm:$0xff] %v10380
        %10394 = vst [vmem:[%s134 + $0x7f8] sm:$0xff] %v10382
        %10395 = vst [vmem:[%s134 + $0x9f8] sm:$0xff] %v10384
        %10396 = vst [vmem:[%s134 + $0xbf8] sm:$0xff] %v10386
        %10397 = vst [vmem:[%s134 + $0xdf8] sm:$0xff] %v10388
        %10398 = vst [vmem:[%s134 + $0xff8] sm:$0xff] %v10390
        %s10399 = sand.u32 %s52, 1
        %s10400 = scalar_lea.sflag [#allocation4], %s10399
        %s10401 = sand.u32 %s52, 1
        %s10402 = smul.addr %s10401, 4096
        %s10403 = scalar_lea.vmem [#allocation5], %s10402
        // Predicated region
        $region29: #{tpu_custom_call.1} parent=23 // pred_check
          %p10404 = pneg %p62
        $region30: #{tpu_custom_call.1} parent=23 // pred_check_branch
          %10406 = sbr.rel (%p10404) target = $region32
        $region31: #{tpu_custom_call.1} parent=23 // pred_region
          %s10407 = smul.u32 8, %s18
          %s10409 = ssub.s32 65536, 65536
          %10410 = vsyncadd %s10400, %s10409
          %s10411 = smul.addr %s10407, 64
          %s10412 = smul.addr %s10411, 128
          %s10413 = scalar_lea.hbm %s1, %s10412
          %s10414 = sshll.u32 %s10403, 4
          %s10415 = int_to_ptr.vmem [resolvable:$true] %s10414
          %10420 = dma.vmem_to_hbm [thread:$0]  %s10415, 65536, %s10413, %s10400, 8192, 8192, 512
        $region32: #{tpu_custom_call.1} parent=23 // pred_fallthru
          _
      $region24: #{tpu_custom_call.1} parent=5 // pred_fallthru
        _
      %p10421 = scmp.le.s32.totalorder 2, %s13
      // Predicated region
      $region33: #{tpu_custom_call.1} parent=5 // pred_check
        %p10422 = pneg %p10421
      $region34: #{tpu_custom_call.1} parent=5 // pred_check_branch
        %10424 = sbr.rel (%p10422) target = $region36
      $region35: #{tpu_custom_call.1} parent=5 // pred_region
        %s10425 = ssub.s32 %s13, 2
        // Predicated region
        $region37: #{tpu_custom_call.1} parent=35 // pred_check
          %p10426 = pneg %p68
        $region38: #{tpu_custom_call.1} parent=35 // pred_check_branch
          %10428 = sbr.rel (%p10426) target = $region40
        $region39: #{tpu_custom_call.1} parent=35 // pred_region
          %s10429 = sand.u32 %s53, 1
          %s10430 = scalar_lea.sflag [#allocation4], %s10429
          %s10431 = sand.u32 %s53, 1
          %s10432 = smul.addr %s10431, 4096
          %s10433 = scalar_lea.vmem [#allocation5], %s10432
          %10434 = dma.done %s10430, 65536
        $region40: #{tpu_custom_call.1} parent=35 // pred_fallthru
          _
      $region36: #{tpu_custom_call.1} parent=5 // pred_fallthru
        _
    $region6: #{tpu_custom_call.1} parent=1 // loop_footer
      %s17 = sadd.s32 1, %s13
    $region7: #{tpu_custom_call.1} parent=1 // loop_footer_branch
      %12 = sbr.rel target = $region3
    $region8: #{tpu_custom_call.1} parent=1 // loop_exit
      _
    %10435 = vsyncpa [#allocation3], 1
    %s10436 = scalar_lea.sflag [#allocation3], 1
    %10437 = vsyncpa %s10436, 1
    %10438 = vsyncpa [#allocation4], 1
    %s10439 = scalar_lea.sflag [#allocation4], 1
    %10440 = vsyncpa %s10439, 1

</llo_original>
